<compile_context>
chip_gen: v7x
topology: tpu7x:2x2x1
jax: 0.10.0
libtpu: 0.0.40
codegen_flags: <defaults>
</compile_context>

<pallas_src>
import functools

import jax
import jax.numpy as jnp
from jax.experimental import pallas as pl
from jax.experimental.pallas import tpu as pltpu


def _cc_kernel(xh_ref, xw_ref, wq_ref, bq_ref, wk_ref, bk_ref, wv_ref, bv_ref,
               gamma_ref, o_row_ref, o_col_ref, *, height, width):
    """One batch element per grid step; channels-last layouts throughout.

    xh_ref    : (1, H*W, C)   rows ordered (h, w)  -- h-major
    xw_ref    : (1, W*H, C)   rows ordered (w, h)  -- w-major
    w*_ref    : (C, Cq)/(C, C) transposed 1x1-conv weights (right-multiply form)
    b*_ref    : (1, Cq)/(1, C)
    gamma_ref : (1,) scalar in SMEM
    o_row_ref : (1, H*W, C)   gamma * out_W (row-attention part),    h-major
    o_col_ref : (1, W*H, C)   gamma * out_H (column-attention part), w-major
    """
    f32 = jnp.float32
    H, W = height, width

    xh = xh_ref[0]                                   # (HW, C)
    xw = xw_ref[0]                                   # (WH, C)
    wq, wk, wv = wq_ref[...], wk_ref[...], wv_ref[...]
    bq, bk, bv = bq_ref[...], bk_ref[...], bv_ref[...]
    cq = wq.shape[1]
    c = wv.shape[1]

    # 1x1 convs == per-pixel matmuls on the MXU, done in both row orderings so
    # every later contraction is a batch-leading dot (no 3-D transposes in the
    # kernel; the duplicated projection is cheap since Cq = C//4).
    qh = (jnp.dot(xh, wq, preferred_element_type=f32) + bq).reshape(H, W, cq)
    kh = (jnp.dot(xh, wk, preferred_element_type=f32) + bk).reshape(H, W, cq)
    vh = (jnp.dot(xh, wv, preferred_element_type=f32) + bv).reshape(H, W, c)
    qw = (jnp.dot(xw, wq, preferred_element_type=f32) + bq).reshape(W, H, cq)
    kw = (jnp.dot(xw, wk, preferred_element_type=f32) + bk).reshape(W, H, cq)
    vw = (jnp.dot(xw, wv, preferred_element_type=f32) + bv).reshape(W, H, c)

    # Attention energies: batched MXU matmuls (flash-attention einsum form).
    e_row = jnp.einsum('hwc,hvc->hwv', qh, kh, preferred_element_type=f32)  # (H,W,W)
    e_col = jnp.einsum('whc,wgc->whg', qw, kw, preferred_element_type=f32)  # (W,H,H)

    # Joint softmax over the concatenated (H + W) logits at every (h, w).
    # Only tiny 2-D (H,W) transposes couple the two branches (XLU slot, cheap).
    m = jnp.maximum(jnp.max(e_row, axis=-1), jnp.max(e_col, axis=-1).T)     # (H,W)
    p_row = jnp.exp(e_row - m[:, :, None])                                  # (H,W,W)
    p_col = jnp.exp(e_col - m.T[:, :, None])                                # (W,H,H)
    denom = jnp.sum(p_row, axis=-1) + jnp.sum(p_col, axis=-1).T             # (H,W)
    scale = gamma_ref[0] / denom                                            # (H,W)

    # Attention-weighted values (batched MXU matmuls), normalize, scale by gamma.
    o_row = jnp.einsum('hwv,hvc->hwc', p_row, vh, preferred_element_type=f32)
    o_col = jnp.einsum('whg,wgc->whc', p_col, vw, preferred_element_type=f32)

    o_row_ref[0] = (o_row * scale[:, :, None]).reshape(H * W, c).astype(o_row_ref.dtype)
    o_col_ref[0] = (o_col * scale.T[:, :, None]).reshape(W * H, c).astype(o_col_ref.dtype)


def cc_forward(x, wq, bq, wk, bk, wv, bv, gamma):
    """CC_module forward. x: (B, C, H, W) NCHW; weights in PyTorch (out, in) form."""
    B, C, H, W = x.shape
    Cq = wq.shape[0]
    f32 = jnp.float32

    # Channels-last inputs in both row orderings (layout plumbing in the
    # wrapper keeps the kernel free of 3-D relayouts).
    x_h = jnp.transpose(x, (0, 2, 3, 1)).reshape(B, H * W, C)   # rows (h, w)
    x_w = jnp.transpose(x, (0, 3, 2, 1)).reshape(B, W * H, C)   # rows (w, h)

    wq_t = wq.T.astype(f32)
    wk_t = wk.T.astype(f32)
    wv_t = wv.T.astype(f32)
    bq2 = bq.reshape(1, Cq).astype(f32)
    bk2 = bk.reshape(1, Cq).astype(f32)
    bv2 = bv.reshape(1, C).astype(f32)
    gamma1 = jnp.reshape(gamma, (1,)).astype(f32)

    hw = H * W
    flops = B * (4 * hw * C * (2 * Cq + C) + 2 * hw * (Cq + C) * (H + W))
    cost = pl.CostEstimate(
        flops=flops,
        transcendentals=B * hw * (H + W),
        bytes_accessed=4 * (4 * B * hw * C + 2 * C * Cq + C * C + 2 * Cq + C + 1),
    )

    kernel = functools.partial(_cc_kernel, height=H, width=W)

    o_row, o_col = pl.pallas_call(
        kernel,
        out_shape=(jax.ShapeDtypeStruct((B, H * W, C), x.dtype),
                   jax.ShapeDtypeStruct((B, W * H, C), x.dtype)),
        grid=(B,),
        in_specs=[
            pl.BlockSpec((1, H * W, C), lambda b: (b, 0, 0)),   # x, h-major
            pl.BlockSpec((1, W * H, C), lambda b: (b, 0, 0)),   # x, w-major
            pl.BlockSpec((C, Cq), lambda b: (0, 0)),            # Wq^T (resident)
            pl.BlockSpec((1, Cq), lambda b: (0, 0)),            # bq
            pl.BlockSpec((C, Cq), lambda b: (0, 0)),            # Wk^T (resident)
            pl.BlockSpec((1, Cq), lambda b: (0, 0)),            # bk
            pl.BlockSpec((C, C), lambda b: (0, 0)),             # Wv^T (resident)
            pl.BlockSpec((1, C), lambda b: (0, 0)),             # bv
            pl.BlockSpec(memory_space=pltpu.MemorySpace.SMEM),  # gamma
        ],
        out_specs=(pl.BlockSpec((1, H * W, C), lambda b: (b, 0, 0)),
                   pl.BlockSpec((1, W * H, C), lambda b: (b, 0, 0))),
        compiler_params=pltpu.CompilerParams(
            dimension_semantics=("parallel",)),
        cost_estimate=cost,
    )(x_h, x_w, wq_t, bq2, wk_t, bk2, wv_t, bv2, gamma1)

    # Combine the two criss-cross contributions back into NCHW (cheap XLA layout
    # ops; both parts are already softmax-normalised and scaled by gamma).
    out = (jnp.transpose(o_row.reshape(B, H, W, C), (0, 3, 1, 2))
           + jnp.transpose(o_col.reshape(B, W, H, C), (0, 3, 2, 1)))
    return out


def cc_ref(x, wq, bq, wk, bk, wv, bv, gamma):
    """Pure-JAX reference (mirrors the PyTorch forward literally)."""
    hp = jax.lax.Precision.HIGHEST
    B, C, H, W = x.shape
    q = jnp.einsum('oc,bchw->bohw', wq, x, precision=hp) + bq[None, :, None, None]
    k = jnp.einsum('oc,bchw->bohw', wk, x, precision=hp) + bk[None, :, None, None]
    v = jnp.einsum('oc,bchw->bohw', wv, x, precision=hp) + bv[None, :, None, None]
    e_h = jnp.einsum('bchw,bcgw->bhwg', q, k, precision=hp)          # (B,H,W,H)
    e_w = jnp.einsum('bchw,bchv->bhwv', q, k, precision=hp)          # (B,H,W,W)
    att = jax.nn.softmax(jnp.concatenate([e_h, e_w], axis=-1), axis=-1)
    att_h, att_w = att[..., :H], att[..., H:]
    out_h = jnp.einsum('bcgw,bhwg->bchw', v, att_h, precision=hp)
    out_w = jnp.einsum('bchv,bhwv->bchw', v, att_w, precision=hp)
    return gamma * (out_h + out_w)


def init_conv1x1(key, out_ch, in_ch):
    """PyTorch Conv2d(in_ch, out_ch, 1) default init: U(-1/sqrt(in_ch), 1/sqrt(in_ch))."""
    bound = 1.0 / float(in_ch) ** 0.5
    kw, kb = jax.random.split(key)
    w = jax.random.uniform(kw, (out_ch, in_ch), jnp.float32, -bound, bound)
    b = jax.random.uniform(kb, (out_ch,), jnp.float32, -bound, bound)
    return w, b


if __name__ == "__main__":
    B, C, H, W = 2, 8, 16, 16
    Cq = 1 if C <= 4 else C // 4                       # module's out_channels rule

    key = jax.random.PRNGKey(0)
    kx, kq, kk, kv = jax.random.split(key, 4)
    x = jax.random.normal(kx, (B, C, H, W), jnp.float32)
    wq, bq = init_conv1x1(kq, Cq, C)
    wk, bk = init_conv1x1(kk, Cq, C)
    wv, bv = init_conv1x1(kv, C, C)
    # nn.Parameter(torch.zeros(1)) would make the output identically zero;
    # use a nonzero gamma so the numerical check is meaningful.
    gamma = jnp.float32(0.5)

    out = cc_forward(x, wq, bq, wk, bk, wv, bv, gamma)
    out = jax.block_until_ready(out)

    ref = cc_ref(x, wq, bq, wk, bk, wv, bv, gamma)
    assert out.shape == (B, C, H, W)
    max_err = float(jnp.max(jnp.abs(out - ref)))
    assert jnp.allclose(out, ref, rtol=1e-3, atol=1e-4), max_err

    print("KERNEL_OK")
</pallas_src>

<mosaic_0001>
module attributes {stable_mosaic.version = 11 : i64} {
  func.func @_cc_kernel(%arg0: i32, %arg1: memref<1x256x8xf32, #tpu.memory_space<vmem>>, %arg2: memref<1x256x8xf32, #tpu.memory_space<vmem>>, %arg3: memref<8x2xf32, #tpu.memory_space<vmem>>, %arg4: memref<1x2xf32, #tpu.memory_space<vmem>>, %arg5: memref<8x2xf32, #tpu.memory_space<vmem>>, %arg6: memref<1x2xf32, #tpu.memory_space<vmem>>, %arg7: memref<8x8xf32, #tpu.memory_space<vmem>>, %arg8: memref<1x8xf32, #tpu.memory_space<vmem>>, %arg9: memref<1xf32, #tpu.memory_space<smem>>, %arg10: memref<1x256x8xf32, #tpu.memory_space<vmem>>, %arg11: memref<1x256x8xf32, #tpu.memory_space<vmem>>) attributes {dimension_semantics = [#tpu.dimension_semantics<parallel>], iteration_bounds = array<i64: 2>, scalar_prefetch = 0 : i64, scratch_operands = 0 : i64, tpu.core_type = #tpu.core_type<tc>, window_params = [{transform_indices = @transform_0, window_bounds = array<i64: 1, 256, 8>}, {transform_indices = @transform_1, window_bounds = array<i64: 1, 256, 8>}, {pipeline_mode = #tpu.pipeline_mode<synchronous>, transform_indices = @transform_2, window_bounds = array<i64: 8, 2>}, {pipeline_mode = #tpu.pipeline_mode<synchronous>, transform_indices = @transform_3, window_bounds = array<i64: 1, 2>}, {pipeline_mode = #tpu.pipeline_mode<synchronous>, transform_indices = @transform_4, window_bounds = array<i64: 8, 2>}, {pipeline_mode = #tpu.pipeline_mode<synchronous>, transform_indices = @transform_5, window_bounds = array<i64: 1, 2>}, {pipeline_mode = #tpu.pipeline_mode<synchronous>, transform_indices = @transform_6, window_bounds = array<i64: 8, 8>}, {pipeline_mode = #tpu.pipeline_mode<synchronous>, transform_indices = @transform_7, window_bounds = array<i64: 1, 8>}, {transform_indices = @transform_8, window_bounds = array<i64: 1>}, {transform_indices = @transform_9, window_bounds = array<i64: 1, 256, 8>}, {transform_indices = @transform_10, window_bounds = array<i64: 1, 256, 8>}]} {
    %c0 = arith.constant 0 : index
    %c0_0 = arith.constant 0 : index
    %c0_1 = arith.constant 0 : index
    %0 = vector.load %arg1[%c0, %c0_0, %c0_1] : memref<1x256x8xf32, #tpu.memory_space<vmem>>, vector<1x256x8xf32>
    %1 = vector.shape_cast %0 : vector<1x256x8xf32> to vector<256x8xf32>
    %c0_2 = arith.constant 0 : index
    %c0_3 = arith.constant 0 : index
    %c0_4 = arith.constant 0 : index
    %2 = vector.load %arg2[%c0_2, %c0_3, %c0_4] : memref<1x256x8xf32, #tpu.memory_space<vmem>>, vector<1x256x8xf32>
    %3 = vector.shape_cast %2 : vector<1x256x8xf32> to vector<256x8xf32>
    %c0_5 = arith.constant 0 : index
    %c0_6 = arith.constant 0 : index
    %4 = vector.load %arg3[%c0_5, %c0_6] : memref<8x2xf32, #tpu.memory_space<vmem>>, vector<8x2xf32>
    %c0_7 = arith.constant 0 : index
    %c0_8 = arith.constant 0 : index
    %5 = vector.load %arg5[%c0_7, %c0_8] : memref<8x2xf32, #tpu.memory_space<vmem>>, vector<8x2xf32>
    %c0_9 = arith.constant 0 : index
    %c0_10 = arith.constant 0 : index
    %6 = vector.load %arg7[%c0_9, %c0_10] : memref<8x8xf32, #tpu.memory_space<vmem>>, vector<8x8xf32>
    %c0_11 = arith.constant 0 : index
    %c0_12 = arith.constant 0 : index
    %7 = vector.load %arg4[%c0_11, %c0_12] : memref<1x2xf32, #tpu.memory_space<vmem>>, vector<1x2xf32>
    %c0_13 = arith.constant 0 : index
    %c0_14 = arith.constant 0 : index
    %8 = vector.load %arg6[%c0_13, %c0_14] : memref<1x2xf32, #tpu.memory_space<vmem>>, vector<1x2xf32>
    %c0_15 = arith.constant 0 : index
    %c0_16 = arith.constant 0 : index
    %9 = vector.load %arg8[%c0_15, %c0_16] : memref<1x8xf32, #tpu.memory_space<vmem>>, vector<1x8xf32>
    %cst = arith.constant dense<0.000000e+00> : vector<256x2xf32>
    %10 = tpu.matmul %1, %4, %cst {dimension_numbers = #tpu.dot_dimension_numbers<[1], [0], [0], [1], [0, 0, 1, 1], [], []>} : vector<256x8xf32>, vector<8x2xf32>, vector<256x2xf32> -> vector<256x2xf32>
    %11 = vector.broadcast %7 : vector<1x2xf32> to vector<256x2xf32>
    %12 = arith.addf %10, %11 : vector<256x2xf32>
    %13 = vector.shape_cast %12 : vector<256x2xf32> to vector<16x16x2xf32>
    %cst_17 = arith.constant dense<0.000000e+00> : vector<256x2xf32>
    %14 = tpu.matmul %1, %5, %cst_17 {dimension_numbers = #tpu.dot_dimension_numbers<[1], [0], [0], [1], [0, 0, 1, 1], [], []>} : vector<256x8xf32>, vector<8x2xf32>, vector<256x2xf32> -> vector<256x2xf32>
    %15 = vector.broadcast %8 : vector<1x2xf32> to vector<256x2xf32>
    %16 = arith.addf %14, %15 : vector<256x2xf32>
    %17 = vector.shape_cast %16 : vector<256x2xf32> to vector<16x16x2xf32>
    %cst_18 = arith.constant dense<0.000000e+00> : vector<256x8xf32>
    %18 = tpu.matmul %1, %6, %cst_18 {dimension_numbers = #tpu.dot_dimension_numbers<[1], [0], [0], [1], [0, 0, 1, 1], [], []>} : vector<256x8xf32>, vector<8x8xf32>, vector<256x8xf32> -> vector<256x8xf32>
    %19 = vector.broadcast %9 : vector<1x8xf32> to vector<256x8xf32>
    %20 = arith.addf %18, %19 : vector<256x8xf32>
    %21 = vector.shape_cast %20 : vector<256x8xf32> to vector<16x16x8xf32>
    %cst_19 = arith.constant dense<0.000000e+00> : vector<256x2xf32>
    %22 = tpu.matmul %3, %4, %cst_19 {dimension_numbers = #tpu.dot_dimension_numbers<[1], [0], [0], [1], [0, 0, 1, 1], [], []>} : vector<256x8xf32>, vector<8x2xf32>, vector<256x2xf32> -> vector<256x2xf32>
    %23 = vector.broadcast %7 : vector<1x2xf32> to vector<256x2xf32>
    %24 = arith.addf %22, %23 : vector<256x2xf32>
    %25 = vector.shape_cast %24 : vector<256x2xf32> to vector<16x16x2xf32>
    %cst_20 = arith.constant dense<0.000000e+00> : vector<256x2xf32>
    %26 = tpu.matmul %3, %5, %cst_20 {dimension_numbers = #tpu.dot_dimension_numbers<[1], [0], [0], [1], [0, 0, 1, 1], [], []>} : vector<256x8xf32>, vector<8x2xf32>, vector<256x2xf32> -> vector<256x2xf32>
    %27 = vector.broadcast %8 : vector<1x2xf32> to vector<256x2xf32>
    %28 = arith.addf %26, %27 : vector<256x2xf32>
    %29 = vector.shape_cast %28 : vector<256x2xf32> to vector<16x16x2xf32>
    %cst_21 = arith.constant dense<0.000000e+00> : vector<256x8xf32>
    %30 = tpu.matmul %3, %6, %cst_21 {dimension_numbers = #tpu.dot_dimension_numbers<[1], [0], [0], [1], [0, 0, 1, 1], [], []>} : vector<256x8xf32>, vector<8x8xf32>, vector<256x8xf32> -> vector<256x8xf32>
    %31 = vector.broadcast %9 : vector<1x8xf32> to vector<256x8xf32>
    %32 = arith.addf %30, %31 : vector<256x8xf32>
    %33 = vector.shape_cast %32 : vector<256x8xf32> to vector<16x16x8xf32>
    "tpu.trace_start"() <{level = 10 : i32, message = "hwc,hvc->hwv"}> : () -> ()
    %cst_22 = arith.constant dense<0.000000e+00> : vector<16x16x16xf32>
    %34 = tpu.matmul %13, %17, %cst_22 {dimension_numbers = #tpu.dot_dimension_numbers<[2], [2], [1], [1], [0, 0, 0, 1, 1, 1], [0], [0]>} : vector<16x16x2xf32>, vector<16x16x2xf32>, vector<16x16x16xf32> -> vector<16x16x16xf32>
    "tpu.trace_stop"() : () -> ()
    "tpu.trace_start"() <{level = 10 : i32, message = "whc,wgc->whg"}> : () -> ()
    %cst_23 = arith.constant dense<0.000000e+00> : vector<16x16x16xf32>
    %35 = tpu.matmul %25, %29, %cst_23 {dimension_numbers = #tpu.dot_dimension_numbers<[2], [2], [1], [1], [0, 0, 0, 1, 1, 1], [0], [0]>} : vector<16x16x2xf32>, vector<16x16x2xf32>, vector<16x16x16xf32> -> vector<16x16x16xf32>
    "tpu.trace_stop"() : () -> ()
    %cst_24 = arith.constant dense<0xFF800000> : vector<16x16xf32>
    %36 = vector.multi_reduction <maximumf>, %34, %cst_24 [2] : vector<16x16x16xf32> to vector<16x16xf32>
    %cst_25 = arith.constant dense<0xFF800000> : vector<16x16xf32>
    %37 = vector.multi_reduction <maximumf>, %35, %cst_25 [2] : vector<16x16x16xf32> to vector<16x16xf32>
    %38 = tpu.transpose %37, [1, 0] : vector<16x16xf32> -> vector<16x16xf32>
    %39 = arith.maximumf %36, %38 : vector<16x16xf32>
    %40 = vector.shape_cast %39 : vector<16x16xf32> to vector<16x16x1xf32>
    %41 = vector.broadcast %40 : vector<16x16x1xf32> to vector<16x16x16xf32>
    %42 = arith.subf %34, %41 : vector<16x16x16xf32>
    %43 = math.exp %42 : vector<16x16x16xf32>
    %44 = tpu.transpose %39, [1, 0] : vector<16x16xf32> -> vector<16x16xf32>
    %45 = vector.shape_cast %44 : vector<16x16xf32> to vector<16x16x1xf32>
    %46 = vector.broadcast %45 : vector<16x16x1xf32> to vector<16x16x16xf32>
    %47 = arith.subf %35, %46 : vector<16x16x16xf32>
    %48 = math.exp %47 : vector<16x16x16xf32>
    %cst_26 = arith.constant dense<0.000000e+00> : vector<16x16xf32>
    %49 = vector.multi_reduction <add>, %43, %cst_26 [2] : vector<16x16x16xf32> to vector<16x16xf32>
    %cst_27 = arith.constant dense<0.000000e+00> : vector<16x16xf32>
    %50 = vector.multi_reduction <add>, %48, %cst_27 [2] : vector<16x16x16xf32> to vector<16x16xf32>
    %51 = tpu.transpose %50, [1, 0] : vector<16x16xf32> -> vector<16x16xf32>
    %52 = arith.addf %49, %51 : vector<16x16xf32>
    %c0_28 = arith.constant 0 : index
    %53 = memref.load %arg9[%c0_28] : memref<1xf32, #tpu.memory_space<smem>>
    %54 = vector.broadcast %53 : f32 to vector<16x16xf32>
    %55 = arith.divf %54, %52 : vector<16x16xf32>
    "tpu.trace_start"() <{level = 10 : i32, message = "hwv,hvc->hwc"}> : () -> ()
    %cst_29 = arith.constant dense<0.000000e+00> : vector<16x16x8xf32>
    %56 = tpu.matmul %43, %21, %cst_29 {dimension_numbers = #tpu.dot_dimension_numbers<[2], [1], [1], [2], [0, 0, 0, 1, 1, 2], [0], [0]>} : vector<16x16x16xf32>, vector<16x16x8xf32>, vector<16x16x8xf32> -> vector<16x16x8xf32>
    "tpu.trace_stop"() : () -> ()
    "tpu.trace_start"() <{level = 10 : i32, message = "whg,wgc->whc"}> : () -> ()
    %cst_30 = arith.constant dense<0.000000e+00> : vector<16x16x8xf32>
    %57 = tpu.matmul %48, %33, %cst_30 {dimension_numbers = #tpu.dot_dimension_numbers<[2], [1], [1], [2], [0, 0, 0, 1, 1, 2], [0], [0]>} : vector<16x16x16xf32>, vector<16x16x8xf32>, vector<16x16x8xf32> -> vector<16x16x8xf32>
    "tpu.trace_stop"() : () -> ()
    %58 = vector.shape_cast %55 : vector<16x16xf32> to vector<16x16x1xf32>
    %59 = vector.broadcast %58 : vector<16x16x1xf32> to vector<16x16x8xf32>
    %60 = arith.mulf %56, %59 : vector<16x16x8xf32>
    %61 = vector.shape_cast %60 : vector<16x16x8xf32> to vector<256x8xf32>
    %c0_31 = arith.constant 0 : index
    %c0_32 = arith.constant 0 : index
    %c0_33 = arith.constant 0 : index
    %62 = vector.load %arg10[%c0_31, %c0_32, %c0_33] : memref<1x256x8xf32, #tpu.memory_space<vmem>>, vector<1x256x8xf32>
    %63 = vector.shape_cast %62 : vector<1x256x8xf32> to vector<256x8xf32>
    %64 = vector.shape_cast %61 : vector<256x8xf32> to vector<1x256x8xf32>
    tpu.vector_store %arg10[%c0_31, %c0_32, %c0_33], %64 {strides = array<i32>} : memref<1x256x8xf32, #tpu.memory_space<vmem>>, vector<1x256x8xf32>,
    %65 = tpu.transpose %55, [1, 0] : vector<16x16xf32> -> vector<16x16xf32>
    %66 = vector.shape_cast %65 : vector<16x16xf32> to vector<16x16x1xf32>
    %67 = vector.broadcast %66 : vector<16x16x1xf32> to vector<16x16x8xf32>
    %68 = arith.mulf %57, %67 : vector<16x16x8xf32>
    %69 = vector.shape_cast %68 : vector<16x16x8xf32> to vector<256x8xf32>
    %c0_34 = arith.constant 0 : index
    %c0_35 = arith.constant 0 : index
    %c0_36 = arith.constant 0 : index
    %70 = vector.load %arg11[%c0_34, %c0_35, %c0_36] : memref<1x256x8xf32, #tpu.memory_space<vmem>>, vector<1x256x8xf32>
    %71 = vector.shape_cast %70 : vector<1x256x8xf32> to vector<256x8xf32>
    %72 = vector.shape_cast %69 : vector<256x8xf32> to vector<1x256x8xf32>
    tpu.vector_store %arg11[%c0_34, %c0_35, %c0_36], %72 {strides = array<i32>} : memref<1x256x8xf32, #tpu.memory_space<vmem>>, vector<1x256x8xf32>,
    return
  }
  func.func @transform_0(%arg0: i32) -> (i32, i32, i32) {
    %c0_i32 = arith.constant 0 : i32
    %c0_i32_0 = arith.constant 0 : i32
    %c0_i32_1 = arith.constant 0 : i32
    return %arg0, %c0_i32, %c0_i32_0 : i32, i32, i32
  }
  func.func @transform_1(%arg0: i32) -> (i32, i32, i32) {
    %c0_i32 = arith.constant 0 : i32
    %c0_i32_0 = arith.constant 0 : i32
    %c0_i32_1 = arith.constant 0 : i32
    return %arg0, %c0_i32, %c0_i32_0 : i32, i32, i32
  }
  func.func @transform_2(%arg0: i32) -> (i32, i32) {
    %c0_i32 = arith.constant 0 : i32
    %c0_i32_0 = arith.constant 0 : i32
    %c0_i32_1 = arith.constant 0 : i32
    return %c0_i32, %c0_i32_0 : i32, i32
  }
  func.func @transform_3(%arg0: i32) -> (i32, i32) {
    %c0_i32 = arith.constant 0 : i32
    %c0_i32_0 = arith.constant 0 : i32
    %c0_i32_1 = arith.constant 0 : i32
    return %c0_i32, %c0_i32_0 : i32, i32
  }
  func.func @transform_4(%arg0: i32) -> (i32, i32) {
    %c0_i32 = arith.constant 0 : i32
    %c0_i32_0 = arith.constant 0 : i32
    %c0_i32_1 = arith.constant 0 : i32
    return %c0_i32, %c0_i32_0 : i32, i32
  }
  func.func @transform_5(%arg0: i32) -> (i32, i32) {
    %c0_i32 = arith.constant 0 : i32
    %c0_i32_0 = arith.constant 0 : i32
    %c0_i32_1 = arith.constant 0 : i32
    return %c0_i32, %c0_i32_0 : i32, i32
  }
  func.func @transform_6(%arg0: i32) -> (i32, i32) {
    %c0_i32 = arith.constant 0 : i32
    %c0_i32_0 = arith.constant 0 : i32
    %c0_i32_1 = arith.constant 0 : i32
    return %c0_i32, %c0_i32_0 : i32, i32
  }
  func.func @transform_7(%arg0: i32) -> (i32, i32) {
    %c0_i32 = arith.constant 0 : i32
    %c0_i32_0 = arith.constant 0 : i32
    %c0_i32_1 = arith.constant 0 : i32
    return %c0_i32, %c0_i32_0 : i32, i32
  }
  func.func @transform_8(%arg0: i32) -> i32 {
    %c0_i32 = arith.constant 0 : i32
    %c0_i32_0 = arith.constant 0 : i32
    return %c0_i32 : i32
  }
  func.func @transform_9(%arg0: i32) -> (i32, i32, i32) {
    %c0_i32 = arith.constant 0 : i32
    %c0_i32_0 = arith.constant 0 : i32
    %c0_i32_1 = arith.constant 0 : i32
    return %arg0, %c0_i32, %c0_i32_0 : i32, i32, i32
  }
  func.func @transform_10(%arg0: i32) -> (i32, i32, i32) {
    %c0_i32 = arith.constant 0 : i32
    %c0_i32_0 = arith.constant 0 : i32
    %c0_i32_1 = arith.constant 0 : i32
    return %arg0, %c0_i32, %c0_i32_0 : i32, i32, i32
  }
}

</mosaic_0001>

<llo_original>
// kernel: tpu_custom_call.1
$region0: #{tpu_custom_call.1}
  #allocation0 [shape = 'u32[]', space=smem, size = 0x4, offset = 0x4, fixed_abs, tag = 'smem constant byte address 0x4 - core index']
  #allocation1 [shape = 'u32[144,128]{1,0:T(1,128)}', space=vmem, size = 0x12000, scoped, tag = 'internal scratch']
  #allocation2 [shape = 'f32[1]{0:T(128)S(6)}', space=smem, size = 0x200, scoped, tag = 'scoped memory for tpu_custom_call.1']
  %s0 = inlined_call_operand.vmem [shape: f32[2,256,8], index: 0, kind: input, shape index: {}]
  %s1 = inlined_call_operand.vmem [shape: f32[2,256,8], index: 1, kind: input, shape index: {}]
  %s2 = inlined_call_operand.vmem [shape: f32[8,2], index: 2, kind: input, shape index: {}]
  %s3 = inlined_call_operand.vmem [shape: f32[1,2], index: 3, kind: input, shape index: {}]
  %s4 = inlined_call_operand.vmem [shape: f32[8,2], index: 4, kind: input, shape index: {}]
  %s5 = inlined_call_operand.vmem [shape: f32[1,2], index: 5, kind: input, shape index: {}]
  %s6 = inlined_call_operand.vmem [shape: f32[8,8], index: 6, kind: input, shape index: {}]
  %s7 = inlined_call_operand.vmem [shape: f32[1,8], index: 7, kind: input, shape index: {}]
  %s8 = inlined_call_operand.<no memory space> [shape: f32[1], index: 8, kind: input, shape index: {}]
  %s9 = inlined_call_operand.vmem [shape: f32[2,256,8], index: 9, kind: output, shape index: {0}]
  %s10 = inlined_call_operand.vmem [shape: f32[2,256,8], index: 10, kind: output, shape index: {1}]
  %11 = xla_tuple %s9, %s10
  %s12 = sld [smem:[#allocation0]]
  $region77: #{tpu_custom_call.1} parent=0
    _
  %s14 = ssub.s32 1, %s12
  %s15 = scalar_select 0, %s14, %s12
  %16 = sst [smem:[#allocation2]] %s8
  loop: start=0, step=1, limit=4
  $region2: #{tpu_custom_call.1} parent=0 // loop_pre_header
    _
  $region3: #{tpu_custom_call.1} parent=0 // loop_header
    %s18 = sphi 0, %s22
    %p19 = scmp.ge.s32.totalorder %s18, 4
    %s28 = sphi 0, %s30
    %s31 = sphi 0, %s28
    %s32 = sphi 0, %s31
    %s48 = sphi 0, %s32
    %s54 = sphi 0, %s56
    %s57 = sphi 0, %s54
    %s58 = sphi 0, %s57
    %s74 = sphi 0, %s58
    %s78 = sphi 0, %s78
    %s80 = sphi 0, %s78
    %s81 = sphi 0, %s80
    %s95 = sphi 0, %s81
    %s99 = sphi 0, %s99
    %s101 = sphi 0, %s99
    %s102 = sphi 0, %s101
    %s116 = sphi 0, %s102
    %s120 = sphi 0, %s120
    %s122 = sphi 0, %s120
    %s123 = sphi 0, %s122
    %s137 = sphi 0, %s123
    %s141 = sphi 0, %s141
    %s143 = sphi 0, %s141
    %s144 = sphi 0, %s143
    %s158 = sphi 0, %s144
    %s162 = sphi 0, %s162
    %s164 = sphi 0, %s162
    %s165 = sphi 0, %s164
    %s179 = sphi 0, %s165
    %s183 = sphi 0, %s183
    %s185 = sphi 0, %s183
    %s186 = sphi 0, %s185
    %s200 = sphi 0, %s186
    %s204 = sphi 0, %s204
    %s206 = sphi 0, %s204
    %s207 = sphi 0, %s206
    %s221 = sphi 0, %s207
    %s227 = sphi 0, %s229
    %s230 = sphi 0, %s227
    %s231 = sphi 0, %s230
    %s247 = sphi 0, %s231
    %s253 = sphi 0, %s255
    %s256 = sphi 0, %s253
    %s257 = sphi 0, %s256
    %s273 = sphi 0, %s257
  $region4: #{tpu_custom_call.1} parent=0 // loop_header_branch
    %21 = sbr.rel (%p19) target = $region8
  $region5: #{tpu_custom_call.1} parent=0 // loop_body
    %s23 = ssub.s32 %s18, 1
    %s24 = ssub.s32 %s18, 2
    %s25 = sadd.s32 %s18, 1
    %s26 = ssub.s32 %s18, %s25
    %p27 = scmp.eq.s32.totalorder %s26, 0
    %s29 = sadd.s32 %s28, 1
    %s30 = scalar_select %p27, %s28, %s29
    %p33 = pneg %p27
    %p34 = scmp.eq.s32.totalorder %s18, 1
    %p35 = por %p33, %p34
    %p36 = scmp.ne.s32.totalorder %s28, %s31
    %p37 = scmp.eq.s32.totalorder %s18, 0
    %p38 = por %p36, %p37
    %p39 = scmp.ne.s32.totalorder %s28, %s31
    %p40 = scmp.eq.s32.totalorder %s23, 1
    %p41 = por %p39, %p40
    %p42 = scmp.ne.s32.totalorder %s31, %s32
    %p43 = scmp.eq.s32.totalorder %s23, 0
    %p44 = por %p42, %p43
    %p45 = scmp.ne.s32.totalorder %s31, %s32
    %p46 = scmp.eq.s32.totalorder %s24, 1
    %p47 = por %p45, %p46
    %p49 = scmp.ne.s32.totalorder %s32, %s48
    %p50 = scmp.eq.s32.totalorder %s24, 0
    %p51 = por %p49, %p50
    %s52 = ssub.s32 %s18, %s25
    %p53 = scmp.eq.s32.totalorder %s52, 0
    %s55 = sadd.s32 %s54, 1
    %s56 = scalar_select %p53, %s54, %s55
    %p59 = pneg %p53
    %p60 = scmp.eq.s32.totalorder %s18, 1
    %p61 = por %p59, %p60
    %p62 = scmp.ne.s32.totalorder %s54, %s57
    %p63 = scmp.eq.s32.totalorder %s18, 0
    %p64 = por %p62, %p63
    %p65 = scmp.ne.s32.totalorder %s54, %s57
    %p66 = scmp.eq.s32.totalorder %s23, 1
    %p67 = por %p65, %p66
    %p68 = scmp.ne.s32.totalorder %s57, %s58
    %p69 = scmp.eq.s32.totalorder %s23, 0
    %p70 = por %p68, %p69
    %p71 = scmp.ne.s32.totalorder %s57, %s58
    %p72 = scmp.eq.s32.totalorder %s24, 1
    %p73 = por %p71, %p72
    %p75 = scmp.ne.s32.totalorder %s58, %s74
    %p76 = scmp.eq.s32.totalorder %s24, 0
    %p77 = por %p75, %p76
    %s79 = sadd.s32 %s78, 1
    %p82 = scmp.eq.s32.totalorder %s18, 1
    %p83 = scmp.ne.s32.totalorder %s78, %s80
    %p84 = scmp.eq.s32.totalorder %s18, 0
    %p85 = por %p83, %p84
    %p86 = scmp.ne.s32.totalorder %s78, %s80
    %p87 = scmp.eq.s32.totalorder %s23, 1
    %p88 = por %p86, %p87
    %p89 = scmp.ne.s32.totalorder %s80, %s81
    %p90 = scmp.eq.s32.totalorder %s23, 0
    %p91 = por %p89, %p90
    %p92 = scmp.ne.s32.totalorder %s80, %s81
    %p93 = scmp.eq.s32.totalorder %s24, 1
    %p94 = por %p92, %p93
    %p96 = scmp.ne.s32.totalorder %s81, %s95
    %p97 = scmp.eq.s32.totalorder %s24, 0
    %p98 = por %p96, %p97
    %s100 = sadd.s32 %s99, 1
    %p103 = scmp.eq.s32.totalorder %s18, 1
    %p104 = scmp.ne.s32.totalorder %s99, %s101
    %p105 = scmp.eq.s32.totalorder %s18, 0
    %p106 = por %p104, %p105
    %p107 = scmp.ne.s32.totalorder %s99, %s101
    %p108 = scmp.eq.s32.totalorder %s23, 1
    %p109 = por %p107, %p108
    %p110 = scmp.ne.s32.totalorder %s101, %s102
    %p111 = scmp.eq.s32.totalorder %s23, 0
    %p112 = por %p110, %p111
    %p113 = scmp.ne.s32.totalorder %s101, %s102
    %p114 = scmp.eq.s32.totalorder %s24, 1
    %p115 = por %p113, %p114
    %p117 = scmp.ne.s32.totalorder %s102, %s116
    %p118 = scmp.eq.s32.totalorder %s24, 0
    %p119 = por %p117, %p118
    %s121 = sadd.s32 %s120, 1
    %p124 = scmp.eq.s32.totalorder %s18, 1
    %p125 = scmp.ne.s32.totalorder %s120, %s122
    %p126 = scmp.eq.s32.totalorder %s18, 0
    %p127 = por %p125, %p126
    %p128 = scmp.ne.s32.totalorder %s120, %s122
    %p129 = scmp.eq.s32.totalorder %s23, 1
    %p130 = por %p128, %p129
    %p131 = scmp.ne.s32.totalorder %s122, %s123
    %p132 = scmp.eq.s32.totalorder %s23, 0
    %p133 = por %p131, %p132
    %p134 = scmp.ne.s32.totalorder %s122, %s123
    %p135 = scmp.eq.s32.totalorder %s24, 1
    %p136 = por %p134, %p135
    %p138 = scmp.ne.s32.totalorder %s123, %s137
    %p139 = scmp.eq.s32.totalorder %s24, 0
    %p140 = por %p138, %p139
    %s142 = sadd.s32 %s141, 1
    %p145 = scmp.eq.s32.totalorder %s18, 1
    %p146 = scmp.ne.s32.totalorder %s141, %s143
    %p147 = scmp.eq.s32.totalorder %s18, 0
    %p148 = por %p146, %p147
    %p149 = scmp.ne.s32.totalorder %s141, %s143
    %p150 = scmp.eq.s32.totalorder %s23, 1
    %p151 = por %p149, %p150
    %p152 = scmp.ne.s32.totalorder %s143, %s144
    %p153 = scmp.eq.s32.totalorder %s23, 0
    %p154 = por %p152, %p153
    %p155 = scmp.ne.s32.totalorder %s143, %s144
    %p156 = scmp.eq.s32.totalorder %s24, 1
    %p157 = por %p155, %p156
    %p159 = scmp.ne.s32.totalorder %s144, %s158
    %p160 = scmp.eq.s32.totalorder %s24, 0
    %p161 = por %p159, %p160
    %s163 = sadd.s32 %s162, 1
    %p166 = scmp.eq.s32.totalorder %s18, 1
    %p167 = scmp.ne.s32.totalorder %s162, %s164
    %p168 = scmp.eq.s32.totalorder %s18, 0
    %p169 = por %p167, %p168
    %p170 = scmp.ne.s32.totalorder %s162, %s164
    %p171 = scmp.eq.s32.totalorder %s23, 1
    %p172 = por %p170, %p171
    %p173 = scmp.ne.s32.totalorder %s164, %s165
    %p174 = scmp.eq.s32.totalorder %s23, 0
    %p175 = por %p173, %p174
    %p176 = scmp.ne.s32.totalorder %s164, %s165
    %p177 = scmp.eq.s32.totalorder %s24, 1
    %p178 = por %p176, %p177
    %p180 = scmp.ne.s32.totalorder %s165, %s179
    %p181 = scmp.eq.s32.totalorder %s24, 0
    %p182 = por %p180, %p181
    %s184 = sadd.s32 %s183, 1
    %p187 = scmp.eq.s32.totalorder %s18, 1
    %p188 = scmp.ne.s32.totalorder %s183, %s185
    %p189 = scmp.eq.s32.totalorder %s18, 0
    %p190 = por %p188, %p189
    %p191 = scmp.ne.s32.totalorder %s183, %s185
    %p192 = scmp.eq.s32.totalorder %s23, 1
    %p193 = por %p191, %p192
    %p194 = scmp.ne.s32.totalorder %s185, %s186
    %p195 = scmp.eq.s32.totalorder %s23, 0
    %p196 = por %p194, %p195
    %p197 = scmp.ne.s32.totalorder %s185, %s186
    %p198 = scmp.eq.s32.totalorder %s24, 1
    %p199 = por %p197, %p198
    %p201 = scmp.ne.s32.totalorder %s186, %s200
    %p202 = scmp.eq.s32.totalorder %s24, 0
    %p203 = por %p201, %p202
    %s205 = sadd.s32 %s204, 1
    %p208 = scmp.eq.s32.totalorder %s18, 1
    %p209 = scmp.ne.s32.totalorder %s204, %s206
    %p210 = scmp.eq.s32.totalorder %s18, 0
    %p211 = por %p209, %p210
    %p212 = scmp.ne.s32.totalorder %s204, %s206
    %p213 = scmp.eq.s32.totalorder %s23, 1
    %p214 = por %p212, %p213
    %p215 = scmp.ne.s32.totalorder %s206, %s207
    %p216 = scmp.eq.s32.totalorder %s23, 0
    %p217 = por %p215, %p216
    %p218 = scmp.ne.s32.totalorder %s206, %s207
    %p219 = scmp.eq.s32.totalorder %s24, 1
    %p220 = por %p218, %p219
    %p222 = scmp.ne.s32.totalorder %s207, %s221
    %p223 = scmp.eq.s32.totalorder %s24, 0
    %p224 = por %p222, %p223
    %s225 = ssub.s32 %s18, %s25
    %p226 = scmp.eq.s32.totalorder %s225, 0
    %s228 = sadd.s32 %s227, 1
    %s229 = scalar_select %p226, %s227, %s228
    %p232 = pneg %p226
    %p233 = scmp.eq.s32.totalorder %s18, 1
    %p234 = por %p232, %p233
    %p235 = scmp.ne.s32.totalorder %s227, %s230
    %p236 = scmp.eq.s32.totalorder %s18, 0
    %p237 = por %p235, %p236
    %p238 = scmp.ne.s32.totalorder %s227, %s230
    %p239 = scmp.eq.s32.totalorder %s23, 1
    %p240 = por %p238, %p239
    %p241 = scmp.ne.s32.totalorder %s230, %s231
    %p242 = scmp.eq.s32.totalorder %s23, 0
    %p243 = por %p241, %p242
    %p244 = scmp.ne.s32.totalorder %s230, %s231
    %p245 = scmp.eq.s32.totalorder %s24, 1
    %p246 = por %p244, %p245
    %p248 = scmp.ne.s32.totalorder %s231, %s247
    %p249 = scmp.eq.s32.totalorder %s24, 0
    %p250 = por %p248, %p249
    %s251 = ssub.s32 %s18, %s25
    %p252 = scmp.eq.s32.totalorder %s251, 0
    %s254 = sadd.s32 %s253, 1
    %s255 = scalar_select %p252, %s253, %s254
    %p258 = pneg %p252
    %p259 = scmp.eq.s32.totalorder %s18, 1
    %p260 = por %p258, %p259
    %p261 = scmp.ne.s32.totalorder %s253, %s256
    %p262 = scmp.eq.s32.totalorder %s18, 0
    %p263 = por %p261, %p262
    %p264 = scmp.ne.s32.totalorder %s253, %s256
    %p265 = scmp.eq.s32.totalorder %s23, 1
    %p266 = por %p264, %p265
    %p267 = scmp.ne.s32.totalorder %s256, %s257
    %p268 = scmp.eq.s32.totalorder %s23, 0
    %p269 = por %p267, %p268
    %p270 = scmp.ne.s32.totalorder %s256, %s257
    %p271 = scmp.eq.s32.totalorder %s24, 1
    %p272 = por %p270, %p271
    %p274 = scmp.ne.s32.totalorder %s257, %s273
    %p275 = scmp.eq.s32.totalorder %s24, 0
    %p276 = por %p274, %p275
    %p277 = scmp.le.s32.totalorder 1, %s18
    %p278 = scmp.lt.s32.totalorder %s18, 3
    %p279 = pnand %p277, %p278
    %p280 = pneg %p279
    // Predicated region
    $region9: #{tpu_custom_call.1} parent=5 // pred_check
      _
    $region10: #{tpu_custom_call.1} parent=5 // pred_check_branch
      %282 = sbr.rel (%p279) target = $region12
    $region11: #{tpu_custom_call.1} parent=5 // pred_region
      %s283 = ssub.s32 %s18, 1
      // Predicated region
      $region13: #{tpu_custom_call.1} parent=11 // pred_check
        %p284 = pneg %p91
      $region14: #{tpu_custom_call.1} parent=11 // pred_check_branch
        %286 = sbr.rel (%p284) target = $region16
      $region15: #{tpu_custom_call.1} parent=11 // pred_region
        _
      $region16: #{tpu_custom_call.1} parent=11 // pred_fallthru
        _
      // Predicated region
      $region17: #{tpu_custom_call.1} parent=11 // pred_check
        %p287 = pneg %p112
      $region18: #{tpu_custom_call.1} parent=11 // pred_check_branch
        %289 = sbr.rel (%p287) target = $region20
      $region19: #{tpu_custom_call.1} parent=11 // pred_region
        _
      $region20: #{tpu_custom_call.1} parent=11 // pred_fallthru
        _
      // Predicated region
      $region21: #{tpu_custom_call.1} parent=11 // pred_check
        %p290 = pneg %p133
      $region22: #{tpu_custom_call.1} parent=11 // pred_check_branch
        %292 = sbr.rel (%p290) target = $region24
      $region23: #{tpu_custom_call.1} parent=11 // pred_region
        _
      $region24: #{tpu_custom_call.1} parent=11 // pred_fallthru
        _
      // Predicated region
      $region25: #{tpu_custom_call.1} parent=11 // pred_check
        %p293 = pneg %p154
      $region26: #{tpu_custom_call.1} parent=11 // pred_check_branch
        %295 = sbr.rel (%p293) target = $region28
      $region27: #{tpu_custom_call.1} parent=11 // pred_region
        _
      $region28: #{tpu_custom_call.1} parent=11 // pred_fallthru
        _
      // Predicated region
      $region29: #{tpu_custom_call.1} parent=11 // pred_check
        %p296 = pneg %p175
      $region30: #{tpu_custom_call.1} parent=11 // pred_check_branch
        %298 = sbr.rel (%p296) target = $region32
      $region31: #{tpu_custom_call.1} parent=11 // pred_region
        _
      $region32: #{tpu_custom_call.1} parent=11 // pred_fallthru
        _
      // Predicated region
      $region33: #{tpu_custom_call.1} parent=11 // pred_check
        %p299 = pneg %p196
      $region34: #{tpu_custom_call.1} parent=11 // pred_check_branch
        %301 = sbr.rel (%p299) target = $region36
      $region35: #{tpu_custom_call.1} parent=11 // pred_region
        _
      $region36: #{tpu_custom_call.1} parent=11 // pred_fallthru
        _
      // Predicated region
      $region37: #{tpu_custom_call.1} parent=11 // pred_check
        %p302 = pneg %p217
      $region38: #{tpu_custom_call.1} parent=11 // pred_check_branch
        %304 = sbr.rel (%p302) target = $region40
      $region39: #{tpu_custom_call.1} parent=11 // pred_region
        _
      $region40: #{tpu_custom_call.1} parent=11 // pred_fallthru
        _
    $region12: #{tpu_custom_call.1} parent=5 // pred_fallthru
      _
    %p305 = scmp.lt.s32.totalorder %s18, 2
    // Predicated region
    $region41: #{tpu_custom_call.1} parent=5 // pred_check
      %p306 = pneg %p305
    $region42: #{tpu_custom_call.1} parent=5 // pred_check_branch
      %308 = sbr.rel (%p306) target = $region44
    $region43: #{tpu_custom_call.1} parent=5 // pred_region
      // Predicated region
      $region45: #{tpu_custom_call.1} parent=43 // pred_check
        %p309 = pneg %p38
      $region46: #{tpu_custom_call.1} parent=43 // pred_check_branch
        %311 = sbr.rel (%p309) target = $region48
      $region47: #{tpu_custom_call.1} parent=43 // pred_region
        %p312 = scmp.lt.s32.totalorder %s18, 1
        %s313 = scalar_select %p312, %s18, 1
        %s314 = smul.addr %s313, 32
        %s315 = smul.addr %s314, 8
        %s316 = scalar_lea.vmem %s0, %s315
      $region48: #{tpu_custom_call.1} parent=43 // pred_fallthru
        _
      // Predicated region
      $region49: #{tpu_custom_call.1} parent=43 // pred_check
        %p317 = pneg %p64
      $region50: #{tpu_custom_call.1} parent=43 // pred_check_branch
        %319 = sbr.rel (%p317) target = $region52
      $region51: #{tpu_custom_call.1} parent=43 // pred_region
        %p320 = scmp.lt.s32.totalorder %s18, 1
        %s321 = scalar_select %p320, %s18, 1
        %s322 = smul.addr %s321, 32
        %s323 = smul.addr %s322, 8
        %s324 = scalar_lea.vmem %s1, %s323
      $region52: #{tpu_custom_call.1} parent=43 // pred_fallthru
        _
    $region44: #{tpu_custom_call.1} parent=5 // pred_fallthru
      _
    %p325 = scmp.le.s32.totalorder 1, %s18
    %p326 = scmp.lt.s32.totalorder %s18, 3
    %p327 = pnand %p325, %p326
    %p328 = pneg %p327
    // Predicated region
    $region53: #{tpu_custom_call.1} parent=5 // pred_check
      _
    $region54: #{tpu_custom_call.1} parent=5 // pred_check_branch
      %330 = sbr.rel (%p327) target = $region56
    $region55: #{tpu_custom_call.1} parent=5 // pred_region
      %s331 = ssub.s32 %s18, 1
      %p332 = scmp.lt.s32.totalorder %s23, 1
      %s333 = scalar_select %p332, %s23, 1
      %s334 = smul.addr %s333, 32
      %s335 = smul.addr %s334, 8
      %s336 = scalar_lea.vmem %s0, %s335
      %p337 = pneg %p44
      %p338 = pneg %p41
      %p339 = scmp.lt.s32.totalorder %s23, 1
      %s340 = scalar_select %p339, %s23, 1
      %s341 = smul.addr %s340, 32
      %s342 = smul.addr %s341, 8
      %s343 = scalar_lea.vmem %s1, %s342
      %p344 = pneg %p70
      %p345 = pneg %p67
      %p346 = pneg %p91
      %p347 = pneg %p88
      %p348 = pneg %p112
      %p349 = pneg %p109
      %p350 = pneg %p133
      %p351 = pneg %p130
      %p352 = pneg %p154
      %p353 = pneg %p151
      %p354 = pneg %p175
      %p355 = pneg %p172
      %p356 = pneg %p196
      %p357 = pneg %p193
      %p358 = pneg %p217
      %p359 = pneg %p214
      %p360 = pneg %p243
      %p361 = pneg %p240
      %p362 = scmp.lt.s32.totalorder %s23, 1
      %s363 = scalar_select %p362, %s23, 1
      %s364 = smul.addr %s363, 32
      %s365 = smul.addr %s364, 8
      %s366 = scalar_lea.vmem %s9, %s365
      %p367 = pneg %p269
      %p368 = pneg %p266
      %p369 = scmp.lt.s32.totalorder %s23, 1
      %s370 = scalar_select %p369, %s23, 1
      %s371 = smul.addr %s370, 32
      %s372 = smul.addr %s371, 8
      %s373 = scalar_lea.vmem %s10, %s372
      %p374 = scmp.lt.s32.totalorder %s23, 1
      %s375 = scalar_select %p374, %s23, 1
      %s376 = smul.addr %s375, 32
      %s377 = smul.addr %s376, 8
      %s378 = scalar_lea.vmem %s0, %s377
      %p379 = scmp.lt.s32.totalorder %s23, 1
      %s380 = scalar_select %p379, %s23, 1
      %s381 = smul.addr %s380, 32
      %s382 = smul.addr %s381, 8
      %s383 = scalar_lea.vmem %s1, %s382
      %p384 = scmp.lt.s32.totalorder %s23, 1
      %s385 = scalar_select %p384, %s23, 1
      %s386 = smul.addr %s385, 32
      %s387 = smul.addr %s386, 8
      %s388 = scalar_lea.vmem %s9, %s387
      %p389 = scmp.lt.s32.totalorder %s23, 1
      %s390 = scalar_select %p389, %s23, 1
      %s391 = smul.addr %s390, 32
      %s392 = smul.addr %s391, 8
      %s393 = scalar_lea.vmem %s10, %s392
      %v394 = vld [vmem:[%s378] sm:$0xff]
      %v395 = vld [vmem:[%s378 + $0x8] sm:$0xff]
      %v396 = vld [vmem:[%s378 + $0x10] sm:$0xff]
      %v397 = vld [vmem:[%s378 + $0x18] sm:$0xff]
      %v398 = vld [vmem:[%s378 + $0x20] sm:$0xff]
      %v399 = vld [vmem:[%s378 + $0x28] sm:$0xff]
      %v400 = vld [vmem:[%s378 + $0x30] sm:$0xff]
      %v401 = vld [vmem:[%s378 + $0x38] sm:$0xff]
      %v402 = vld [vmem:[%s378 + $0x40] sm:$0xff]
      %v403 = vld [vmem:[%s378 + $0x48] sm:$0xff]
      %v404 = vld [vmem:[%s378 + $0x50] sm:$0xff]
      %v405 = vld [vmem:[%s378 + $0x58] sm:$0xff]
      %v406 = vld [vmem:[%s378 + $0x60] sm:$0xff]
      %v407 = vld [vmem:[%s378 + $0x68] sm:$0xff]
      %v408 = vld [vmem:[%s378 + $0x70] sm:$0xff]
      %v409 = vld [vmem:[%s378 + $0x78] sm:$0xff]
      %v410 = vld [vmem:[%s378 + $0x80] sm:$0xff]
      %v411 = vld [vmem:[%s378 + $0x88] sm:$0xff]
      %v412 = vld [vmem:[%s378 + $0x90] sm:$0xff]
      %v413 = vld [vmem:[%s378 + $0x98] sm:$0xff]
      %v414 = vld [vmem:[%s378 + $0xa0] sm:$0xff]
      %v415 = vld [vmem:[%s378 + $0xa8] sm:$0xff]
      %v416 = vld [vmem:[%s378 + $0xb0] sm:$0xff]
      %v417 = vld [vmem:[%s378 + $0xb8] sm:$0xff]
      %v418 = vld [vmem:[%s378 + $0xc0] sm:$0xff]
      %v419 = vld [vmem:[%s378 + $0xc8] sm:$0xff]
      %v420 = vld [vmem:[%s378 + $0xd0] sm:$0xff]
      %v421 = vld [vmem:[%s378 + $0xd8] sm:$0xff]
      %v422 = vld [vmem:[%s378 + $0xe0] sm:$0xff]
      %v423 = vld [vmem:[%s378 + $0xe8] sm:$0xff]
      %v424 = vld [vmem:[%s378 + $0xf0] sm:$0xff]
      %v425 = vld [vmem:[%s378 + $0xf8] sm:$0xff]
      %v426 = vld [vmem:[%s383] sm:$0xff]
      %v427 = vld [vmem:[%s383 + $0x8] sm:$0xff]
      %v428 = vld [vmem:[%s383 + $0x10] sm:$0xff]
      %v429 = vld [vmem:[%s383 + $0x18] sm:$0xff]
      %v430 = vld [vmem:[%s383 + $0x20] sm:$0xff]
      %v431 = vld [vmem:[%s383 + $0x28] sm:$0xff]
      %v432 = vld [vmem:[%s383 + $0x30] sm:$0xff]
      %v433 = vld [vmem:[%s383 + $0x38] sm:$0xff]
      %v434 = vld [vmem:[%s383 + $0x40] sm:$0xff]
      %v435 = vld [vmem:[%s383 + $0x48] sm:$0xff]
      %v436 = vld [vmem:[%s383 + $0x50] sm:$0xff]
      %v437 = vld [vmem:[%s383 + $0x58] sm:$0xff]
      %v438 = vld [vmem:[%s383 + $0x60] sm:$0xff]
      %v439 = vld [vmem:[%s383 + $0x68] sm:$0xff]
      %v440 = vld [vmem:[%s383 + $0x70] sm:$0xff]
      %v441 = vld [vmem:[%s383 + $0x78] sm:$0xff]
      %v442 = vld [vmem:[%s383 + $0x80] sm:$0xff]
      %v443 = vld [vmem:[%s383 + $0x88] sm:$0xff]
      %v444 = vld [vmem:[%s383 + $0x90] sm:$0xff]
      %v445 = vld [vmem:[%s383 + $0x98] sm:$0xff]
      %v446 = vld [vmem:[%s383 + $0xa0] sm:$0xff]
      %v447 = vld [vmem:[%s383 + $0xa8] sm:$0xff]
      %v448 = vld [vmem:[%s383 + $0xb0] sm:$0xff]
      %v449 = vld [vmem:[%s383 + $0xb8] sm:$0xff]
      %v450 = vld [vmem:[%s383 + $0xc0] sm:$0xff]
      %v451 = vld [vmem:[%s383 + $0xc8] sm:$0xff]
      %v452 = vld [vmem:[%s383 + $0xd0] sm:$0xff]
      %v453 = vld [vmem:[%s383 + $0xd8] sm:$0xff]
      %v454 = vld [vmem:[%s383 + $0xe0] sm:$0xff]
      %v455 = vld [vmem:[%s383 + $0xe8] sm:$0xff]
      %v456 = vld [vmem:[%s383 + $0xf0] sm:$0xff]
      %v457 = vld [vmem:[%s383 + $0xf8] sm:$0xff]
      %v458 = vld [vmem:[%s2] sm:$0xff]
      %v459 = vld [vmem:[%s4] sm:$0xff]
      %v460 = vld [vmem:[%s6] sm:$0xff]
      %v461 = vld [vmem:[%s3] sm:$0x1]
      %v462 = vld [vmem:[%s5] sm:$0x1]
      %v463 = vld [vmem:[%s7] sm:$0x1]
      %v465 = vlaneseq
      %v466 = vshrl.u32 %v465, 7
      %v467 = vsub.s32 0, %v466
      %v468 = vrot.slane %v461, %v467
      %vm470 = vcmask 64512
      %v472 = vsel %vm470, %v394, 0
      %v475 = vsel %vm470, %v395, 0
      %v478 = vsel %vm470, %v396, 0
      %v481 = vsel %vm470, %v397, 0
      %v484 = vsel %vm470, %v398, 0
      %v487 = vsel %vm470, %v399, 0
      %v490 = vsel %vm470, %v400, 0
      %v493 = vsel %vm470, %v401, 0
      %v496 = vsel %vm470, %v402, 0
      %v499 = vsel %vm470, %v403, 0
      %v502 = vsel %vm470, %v404, 0
      %v505 = vsel %vm470, %v405, 0
      %v508 = vsel %vm470, %v406, 0
      %v511 = vsel %vm470, %v407, 0
      %v514 = vsel %vm470, %v408, 0
      %v517 = vsel %vm470, %v409, 0
      %v520 = vsel %vm470, %v410, 0
      %v523 = vsel %vm470, %v411, 0
      %v526 = vsel %vm470, %v412, 0
      %v529 = vsel %vm470, %v413, 0
      %v532 = vsel %vm470, %v414, 0
      %v535 = vsel %vm470, %v415, 0
      %v538 = vsel %vm470, %v416, 0
      %v541 = vsel %vm470, %v417, 0
      %v544 = vsel %vm470, %v418, 0
      %v547 = vsel %vm470, %v419, 0
      %v550 = vsel %vm470, %v420, 0
      %v553 = vsel %vm470, %v421, 0
      %v556 = vsel %vm470, %v422, 0
      %v559 = vsel %vm470, %v423, 0
      %v562 = vsel %vm470, %v424, 0
      %v565 = vsel %vm470, %v425, 0
      %567 = vmatprep.subr.mxu0 0.0
      %568 = vmatpush1.msra.mxu0 %v458
      %569 = vmatprep.subr.mxu0 0.0
      %570 = vmatpush1.msra.mxu0 0.0
      %571 = vmatprep.subr.mxu0 0.0
      %572 = vmatpush1.msra.mxu0 0.0
      %573 = vmatprep.subr.mxu0 0.0
      %574 = vmatpush1.msra.mxu0 0.0
      %575 = vmatprep.subr.mxu0 0.0
      %576 = vmatpush1.msra.mxu0 0.0
      %577 = vmatprep.subr.mxu0 0.0
      %578 = vmatpush1.msra.mxu0 0.0
      %579 = vmatprep.subr.mxu0 0.0
      %580 = vmatpush1.msra.mxu0 0.0
      %581 = vmatprep.subr.mxu0 0.0
      %582 = vmatpush1.msra.mxu0 0.0
      %583 = vmatprep.subr.mxu0 0.0
      %584 = vmatpush1.msra.mxu0 0.0
      %585 = vmatprep.subr.mxu0 0.0
      %586 = vmatpush1.msra.mxu0 0.0
      %587 = vmatprep.subr.mxu0 0.0
      %588 = vmatpush1.msra.mxu0 0.0
      %589 = vmatprep.subr.mxu0 0.0
      %590 = vmatpush1.msra.mxu0 0.0
      %591 = vmatprep.subr.mxu0 0.0
      %592 = vmatpush1.msra.mxu0 0.0
      %593 = vmatprep.subr.mxu0 0.0
      %594 = vmatpush1.msra.mxu0 0.0
      %595 = vmatprep.subr.mxu0 0.0
      %596 = vmatpush1.msra.mxu0 0.0
      %597 = vmatprep.subr.mxu0 0.0
      %598 = vmatpush1.msra.mxu0 0.0
      %599 = vmatprep.subr.mxu0 0.0
      %600 = vmatpush1.msra.mxu0 0.0
      %601 = vmatprep.subr.mxu0 0.0
      %602 = vmatpush1.msra.mxu0 0.0
      %603 = vmatprep.subr.mxu0 0.0
      %604 = vmatpush1.msra.mxu0 0.0
      %605 = vmatprep.subr.mxu0 0.0
      %606 = vmatpush1.msra.mxu0 0.0
      %607 = vmatprep.subr.mxu0 0.0
      %608 = vmatpush1.msra.mxu0 0.0
      %609 = vmatprep.subr.mxu0 0.0
      %610 = vmatpush1.msra.mxu0 0.0
      %611 = vmatprep.subr.mxu0 0.0
      %612 = vmatpush1.msra.mxu0 0.0
      %613 = vmatprep.subr.mxu0 0.0
      %614 = vmatpush1.msra.mxu0 0.0
      %615 = vmatprep.subr.mxu0 0.0
      %616 = vmatpush1.msra.mxu0 0.0
      %617 = vmatprep.subr.mxu0 0.0
      %618 = vmatpush1.msra.mxu0 0.0
      %619 = vmatprep.subr.mxu0 0.0
      %620 = vmatpush1.msra.mxu0 0.0
      %621 = vmatprep.subr.mxu0 0.0
      %622 = vmatpush1.msra.mxu0 0.0
      %623 = vmatprep.subr.mxu0 0.0
      %624 = vmatpush1.msra.mxu0 0.0
      %625 = vmatprep.subr.mxu0 0.0
      %626 = vmatpush1.msra.mxu0 0.0
      %627 = vmatprep.subr.mxu0 0.0
      %628 = vmatpush1.msra.mxu0 0.0
      %629 = vmatprep.subr.mxu0 0.0
      %630 = vmatpush1.msra.mxu0 0.0
      %631 = vmatprep.mubr.f32.mxu0 0.0
      %632 = vmatmul.mubr.f32.gmra.mrb[0].mxu0 %v472
      %v633 = vpop.f32.mrb[0].mxu0
      %v634 = vadd.f32 %v468, %v633
      %v635 = vpop.f32.mrb[0].mxu0
      %636 = vmatprep.mubr.f32.mxu0 0.0
      %637 = vmatmul.mubr.f32.gmra.mrb[0].mxu0 %v475
      %v638 = vpop.f32.mrb[0].mxu0
      %v639 = vadd.f32 %v468, %v638
      %v640 = vpop.f32.mrb[0].mxu0
      %641 = vmatprep.mubr.f32.mxu0 0.0
      %642 = vmatmul.mubr.f32.gmra.mrb[0].mxu0 %v478
      %v643 = vpop.f32.mrb[0].mxu0
      %v644 = vadd.f32 %v468, %v643
      %v645 = vpop.f32.mrb[0].mxu0
      %646 = vmatprep.mubr.f32.mxu0 0.0
      %647 = vmatmul.mubr.f32.gmra.mrb[0].mxu0 %v481
      %v648 = vpop.f32.mrb[0].mxu0
      %v649 = vadd.f32 %v468, %v648
      %v650 = vpop.f32.mrb[0].mxu0
      %651 = vmatprep.mubr.f32.mxu0 0.0
      %652 = vmatmul.mubr.f32.gmra.mrb[0].mxu0 %v484
      %v653 = vpop.f32.mrb[0].mxu0
      %v654 = vadd.f32 %v468, %v653
      %v655 = vpop.f32.mrb[0].mxu0
      %656 = vmatprep.mubr.f32.mxu0 0.0
      %657 = vmatmul.mubr.f32.gmra.mrb[0].mxu0 %v487
      %v658 = vpop.f32.mrb[0].mxu0
      %v659 = vadd.f32 %v468, %v658
      %v660 = vpop.f32.mrb[0].mxu0
      %661 = vmatprep.mubr.f32.mxu0 0.0
      %662 = vmatmul.mubr.f32.gmra.mrb[0].mxu0 %v490
      %v663 = vpop.f32.mrb[0].mxu0
      %v664 = vadd.f32 %v468, %v663
      %v665 = vpop.f32.mrb[0].mxu0
      %666 = vmatprep.mubr.f32.mxu0 0.0
      %667 = vmatmul.mubr.f32.gmra.mrb[0].mxu0 %v493
      %v668 = vpop.f32.mrb[0].mxu0
      %v669 = vadd.f32 %v468, %v668
      %v670 = vpop.f32.mrb[0].mxu0
      %671 = vmatprep.mubr.f32.mxu0 0.0
      %672 = vmatmul.mubr.f32.gmra.mrb[0].mxu0 %v496
      %v673 = vpop.f32.mrb[0].mxu0
      %v674 = vadd.f32 %v468, %v673
      %v675 = vpop.f32.mrb[0].mxu0
      %676 = vmatprep.mubr.f32.mxu0 0.0
      %677 = vmatmul.mubr.f32.gmra.mrb[0].mxu0 %v499
      %v678 = vpop.f32.mrb[0].mxu0
      %v679 = vadd.f32 %v468, %v678
      %v680 = vpop.f32.mrb[0].mxu0
      %681 = vmatprep.mubr.f32.mxu0 0.0
      %682 = vmatmul.mubr.f32.gmra.mrb[0].mxu0 %v502
      %v683 = vpop.f32.mrb[0].mxu0
      %v684 = vadd.f32 %v468, %v683
      %v685 = vpop.f32.mrb[0].mxu0
      %686 = vmatprep.mubr.f32.mxu0 0.0
      %687 = vmatmul.mubr.f32.gmra.mrb[0].mxu0 %v505
      %v688 = vpop.f32.mrb[0].mxu0
      %v689 = vadd.f32 %v468, %v688
      %v690 = vpop.f32.mrb[0].mxu0
      %691 = vmatprep.mubr.f32.mxu0 0.0
      %692 = vmatmul.mubr.f32.gmra.mrb[0].mxu0 %v508
      %v693 = vpop.f32.mrb[0].mxu0
      %v694 = vadd.f32 %v468, %v693
      %v695 = vpop.f32.mrb[0].mxu0
      %696 = vmatprep.mubr.f32.mxu0 0.0
      %697 = vmatmul.mubr.f32.gmra.mrb[0].mxu0 %v511
      %v698 = vpop.f32.mrb[0].mxu0
      %v699 = vadd.f32 %v468, %v698
      %v700 = vpop.f32.mrb[0].mxu0
      %701 = vmatprep.mubr.f32.mxu0 0.0
      %702 = vmatmul.mubr.f32.gmra.mrb[0].mxu0 %v514
      %v703 = vpop.f32.mrb[0].mxu0
      %v704 = vadd.f32 %v468, %v703
      %v705 = vpop.f32.mrb[0].mxu0
      %706 = vmatprep.mubr.f32.mxu0 0.0
      %707 = vmatmul.mubr.f32.gmra.mrb[0].mxu0 %v517
      %v708 = vpop.f32.mrb[0].mxu0
      %v709 = vadd.f32 %v468, %v708
      %v710 = vpop.f32.mrb[0].mxu0
      %711 = vmatprep.mubr.f32.mxu0 0.0
      %712 = vmatmul.mubr.f32.gmra.mrb[0].mxu0 %v520
      %v713 = vpop.f32.mrb[0].mxu0
      %v714 = vadd.f32 %v468, %v713
      %v715 = vpop.f32.mrb[0].mxu0
      %716 = vmatprep.mubr.f32.mxu0 0.0
      %717 = vmatmul.mubr.f32.gmra.mrb[0].mxu0 %v523
      %v718 = vpop.f32.mrb[0].mxu0
      %v719 = vadd.f32 %v468, %v718
      %v720 = vpop.f32.mrb[0].mxu0
      %721 = vmatprep.mubr.f32.mxu0 0.0
      %722 = vmatmul.mubr.f32.gmra.mrb[0].mxu0 %v526
      %v723 = vpop.f32.mrb[0].mxu0
      %v724 = vadd.f32 %v468, %v723
      %v725 = vpop.f32.mrb[0].mxu0
      %726 = vmatprep.mubr.f32.mxu0 0.0
      %727 = vmatmul.mubr.f32.gmra.mrb[0].mxu0 %v529
      %v728 = vpop.f32.mrb[0].mxu0
      %v729 = vadd.f32 %v468, %v728
      %v730 = vpop.f32.mrb[0].mxu0
      %731 = vmatprep.mubr.f32.mxu0 0.0
      %732 = vmatmul.mubr.f32.gmra.mrb[0].mxu0 %v532
      %v733 = vpop.f32.mrb[0].mxu0
      %v734 = vadd.f32 %v468, %v733
      %v735 = vpop.f32.mrb[0].mxu0
      %736 = vmatprep.mubr.f32.mxu0 0.0
      %737 = vmatmul.mubr.f32.gmra.mrb[0].mxu0 %v535
      %v738 = vpop.f32.mrb[0].mxu0
      %v739 = vadd.f32 %v468, %v738
      %v740 = vpop.f32.mrb[0].mxu0
      %741 = vmatprep.mubr.f32.mxu0 0.0
      %742 = vmatmul.mubr.f32.gmra.mrb[0].mxu0 %v538
      %v743 = vpop.f32.mrb[0].mxu0
      %v744 = vadd.f32 %v468, %v743
      %v745 = vpop.f32.mrb[0].mxu0
      %746 = vmatprep.mubr.f32.mxu0 0.0
      %747 = vmatmul.mubr.f32.gmra.mrb[0].mxu0 %v541
      %v748 = vpop.f32.mrb[0].mxu0
      %v749 = vadd.f32 %v468, %v748
      %v750 = vpop.f32.mrb[0].mxu0
      %751 = vmatprep.mubr.f32.mxu0 0.0
      %752 = vmatmul.mubr.f32.gmra.mrb[0].mxu0 %v544
      %v753 = vpop.f32.mrb[0].mxu0
      %v754 = vadd.f32 %v468, %v753
      %v755 = vpop.f32.mrb[0].mxu0
      %756 = vmatprep.mubr.f32.mxu0 0.0
      %757 = vmatmul.mubr.f32.gmra.mrb[0].mxu0 %v547
      %v758 = vpop.f32.mrb[0].mxu0
      %v759 = vadd.f32 %v468, %v758
      %v760 = vpop.f32.mrb[0].mxu0
      %761 = vmatprep.mubr.f32.mxu0 0.0
      %762 = vmatmul.mubr.f32.gmra.mrb[0].mxu0 %v550
      %v763 = vpop.f32.mrb[0].mxu0
      %v764 = vadd.f32 %v468, %v763
      %v765 = vpop.f32.mrb[0].mxu0
      %766 = vmatprep.mubr.f32.mxu0 0.0
      %767 = vmatmul.mubr.f32.gmra.mrb[0].mxu0 %v553
      %v768 = vpop.f32.mrb[0].mxu0
      %v769 = vadd.f32 %v468, %v768
      %v770 = vpop.f32.mrb[0].mxu0
      %771 = vmatprep.mubr.f32.mxu0 0.0
      %772 = vmatmul.mubr.f32.gmra.mrb[0].mxu0 %v556
      %v773 = vpop.f32.mrb[0].mxu0
      %v774 = vadd.f32 %v468, %v773
      %v775 = vpop.f32.mrb[0].mxu0
      %776 = vmatprep.mubr.f32.mxu0 0.0
      %777 = vmatmul.mubr.f32.gmra.mrb[0].mxu0 %v559
      %v778 = vpop.f32.mrb[0].mxu0
      %v779 = vadd.f32 %v468, %v778
      %v780 = vpop.f32.mrb[0].mxu0
      %781 = vmatprep.mubr.f32.mxu0 0.0
      %782 = vmatmul.mubr.f32.gmra.mrb[0].mxu0 %v562
      %v783 = vpop.f32.mrb[0].mxu0
      %v784 = vadd.f32 %v468, %v783
      %v785 = vpop.f32.mrb[0].mxu0
      %786 = vmatprep.mubr.f32.mxu0 0.0
      %787 = vmatmul.mubr.f32.gmra.mrb[0].mxu0 %v565
      %v788 = vpop.f32.mrb[0].mxu0
      %v789 = vadd.f32 %v468, %v788
      %v790 = vpop.f32.mrb[0].mxu0
      %791 = vdwg.mxu0
      %v793 = vlaneseq
      %v794 = vshrl.u32 %v793, 7
      %v795 = vsub.s32 0, %v794
      %v796 = vrot.slane %v462, %v795
      %798 = vmatprep.subr.mxu0 0.0
      %799 = vmatpush1.msra.mxu0 %v459
      %800 = vmatprep.subr.mxu0 0.0
      %801 = vmatpush1.msra.mxu0 0.0
      %802 = vmatprep.subr.mxu0 0.0
      %803 = vmatpush1.msra.mxu0 0.0
      %804 = vmatprep.subr.mxu0 0.0
      %805 = vmatpush1.msra.mxu0 0.0
      %806 = vmatprep.subr.mxu0 0.0
      %807 = vmatpush1.msra.mxu0 0.0
      %808 = vmatprep.subr.mxu0 0.0
      %809 = vmatpush1.msra.mxu0 0.0
      %810 = vmatprep.subr.mxu0 0.0
      %811 = vmatpush1.msra.mxu0 0.0
      %812 = vmatprep.subr.mxu0 0.0
      %813 = vmatpush1.msra.mxu0 0.0
      %814 = vmatprep.subr.mxu0 0.0
      %815 = vmatpush1.msra.mxu0 0.0
      %816 = vmatprep.subr.mxu0 0.0
      %817 = vmatpush1.msra.mxu0 0.0
      %818 = vmatprep.subr.mxu0 0.0
      %819 = vmatpush1.msra.mxu0 0.0
      %820 = vmatprep.subr.mxu0 0.0
      %821 = vmatpush1.msra.mxu0 0.0
      %822 = vmatprep.subr.mxu0 0.0
      %823 = vmatpush1.msra.mxu0 0.0
      %824 = vmatprep.subr.mxu0 0.0
      %825 = vmatpush1.msra.mxu0 0.0
      %826 = vmatprep.subr.mxu0 0.0
      %827 = vmatpush1.msra.mxu0 0.0
      %828 = vmatprep.subr.mxu0 0.0
      %829 = vmatpush1.msra.mxu0 0.0
      %830 = vmatprep.subr.mxu0 0.0
      %831 = vmatpush1.msra.mxu0 0.0
      %832 = vmatprep.subr.mxu0 0.0
      %833 = vmatpush1.msra.mxu0 0.0
      %834 = vmatprep.subr.mxu0 0.0
      %835 = vmatpush1.msra.mxu0 0.0
      %836 = vmatprep.subr.mxu0 0.0
      %837 = vmatpush1.msra.mxu0 0.0
      %838 = vmatprep.subr.mxu0 0.0
      %839 = vmatpush1.msra.mxu0 0.0
      %840 = vmatprep.subr.mxu0 0.0
      %841 = vmatpush1.msra.mxu0 0.0
      %842 = vmatprep.subr.mxu0 0.0
      %843 = vmatpush1.msra.mxu0 0.0
      %844 = vmatprep.subr.mxu0 0.0
      %845 = vmatpush1.msra.mxu0 0.0
      %846 = vmatprep.subr.mxu0 0.0
      %847 = vmatpush1.msra.mxu0 0.0
      %848 = vmatprep.subr.mxu0 0.0
      %849 = vmatpush1.msra.mxu0 0.0
      %850 = vmatprep.subr.mxu0 0.0
      %851 = vmatpush1.msra.mxu0 0.0
      %852 = vmatprep.subr.mxu0 0.0
      %853 = vmatpush1.msra.mxu0 0.0
      %854 = vmatprep.subr.mxu0 0.0
      %855 = vmatpush1.msra.mxu0 0.0
      %856 = vmatprep.subr.mxu0 0.0
      %857 = vmatpush1.msra.mxu0 0.0
      %858 = vmatprep.subr.mxu0 0.0
      %859 = vmatpush1.msra.mxu0 0.0
      %860 = vmatprep.subr.mxu0 0.0
      %861 = vmatpush1.msra.mxu0 0.0
      %862 = vmatprep.mubr.f32.mxu0 0.0
      %863 = vmatmul.mubr.f32.gmra.mrb[0].mxu0 %v472
      %v864 = vpop.f32.mrb[0].mxu0
      %v865 = vadd.f32 %v796, %v864
      %v866 = vpop.f32.mrb[0].mxu0
      %867 = vmatprep.mubr.f32.mxu0 0.0
      %868 = vmatmul.mubr.f32.gmra.mrb[0].mxu0 %v475
      %v869 = vpop.f32.mrb[0].mxu0
      %v870 = vadd.f32 %v796, %v869
      %v871 = vpop.f32.mrb[0].mxu0
      %872 = vmatprep.mubr.f32.mxu0 0.0
      %873 = vmatmul.mubr.f32.gmra.mrb[0].mxu0 %v478
      %v874 = vpop.f32.mrb[0].mxu0
      %v875 = vadd.f32 %v796, %v874
      %v876 = vpop.f32.mrb[0].mxu0
      %877 = vmatprep.mubr.f32.mxu0 0.0
      %878 = vmatmul.mubr.f32.gmra.mrb[0].mxu0 %v481
      %v879 = vpop.f32.mrb[0].mxu0
      %v880 = vadd.f32 %v796, %v879
      %v881 = vpop.f32.mrb[0].mxu0
      %882 = vmatprep.mubr.f32.mxu0 0.0
      %883 = vmatmul.mubr.f32.gmra.mrb[0].mxu0 %v484
      %v884 = vpop.f32.mrb[0].mxu0
      %v885 = vadd.f32 %v796, %v884
      %v886 = vpop.f32.mrb[0].mxu0
      %887 = vmatprep.mubr.f32.mxu0 0.0
      %888 = vmatmul.mubr.f32.gmra.mrb[0].mxu0 %v487
      %v889 = vpop.f32.mrb[0].mxu0
      %v890 = vadd.f32 %v796, %v889
      %v891 = vpop.f32.mrb[0].mxu0
      %892 = vmatprep.mubr.f32.mxu0 0.0
      %893 = vmatmul.mubr.f32.gmra.mrb[0].mxu0 %v490
      %v894 = vpop.f32.mrb[0].mxu0
      %v895 = vadd.f32 %v796, %v894
      %v896 = vpop.f32.mrb[0].mxu0
      %897 = vmatprep.mubr.f32.mxu0 0.0
      %898 = vmatmul.mubr.f32.gmra.mrb[0].mxu0 %v493
      %v899 = vpop.f32.mrb[0].mxu0
      %v900 = vadd.f32 %v796, %v899
      %v901 = vpop.f32.mrb[0].mxu0
      %902 = vmatprep.mubr.f32.mxu0 0.0
      %903 = vmatmul.mubr.f32.gmra.mrb[0].mxu0 %v496
      %v904 = vpop.f32.mrb[0].mxu0
      %v905 = vadd.f32 %v796, %v904
      %v906 = vpop.f32.mrb[0].mxu0
      %907 = vmatprep.mubr.f32.mxu0 0.0
      %908 = vmatmul.mubr.f32.gmra.mrb[0].mxu0 %v499
      %v909 = vpop.f32.mrb[0].mxu0
      %v910 = vadd.f32 %v796, %v909
      %v911 = vpop.f32.mrb[0].mxu0
      %912 = vmatprep.mubr.f32.mxu0 0.0
      %913 = vmatmul.mubr.f32.gmra.mrb[0].mxu0 %v502
      %v914 = vpop.f32.mrb[0].mxu0
      %v915 = vadd.f32 %v796, %v914
      %v916 = vpop.f32.mrb[0].mxu0
      %917 = vmatprep.mubr.f32.mxu0 0.0
      %918 = vmatmul.mubr.f32.gmra.mrb[0].mxu0 %v505
      %v919 = vpop.f32.mrb[0].mxu0
      %v920 = vadd.f32 %v796, %v919
      %v921 = vpop.f32.mrb[0].mxu0
      %922 = vmatprep.mubr.f32.mxu0 0.0
      %923 = vmatmul.mubr.f32.gmra.mrb[0].mxu0 %v508
      %v924 = vpop.f32.mrb[0].mxu0
      %v925 = vadd.f32 %v796, %v924
      %v926 = vpop.f32.mrb[0].mxu0
      %927 = vmatprep.mubr.f32.mxu0 0.0
      %928 = vmatmul.mubr.f32.gmra.mrb[0].mxu0 %v511
      %v929 = vpop.f32.mrb[0].mxu0
      %v930 = vadd.f32 %v796, %v929
      %v931 = vpop.f32.mrb[0].mxu0
      %932 = vmatprep.mubr.f32.mxu0 0.0
      %933 = vmatmul.mubr.f32.gmra.mrb[0].mxu0 %v514
      %v934 = vpop.f32.mrb[0].mxu0
      %v935 = vadd.f32 %v796, %v934
      %v936 = vpop.f32.mrb[0].mxu0
      %937 = vmatprep.mubr.f32.mxu0 0.0
      %938 = vmatmul.mubr.f32.gmra.mrb[0].mxu0 %v517
      %v939 = vpop.f32.mrb[0].mxu0
      %v940 = vadd.f32 %v796, %v939
      %v941 = vpop.f32.mrb[0].mxu0
      %942 = vmatprep.mubr.f32.mxu0 0.0
      %943 = vmatmul.mubr.f32.gmra.mrb[0].mxu0 %v520
      %v944 = vpop.f32.mrb[0].mxu0
      %v945 = vadd.f32 %v796, %v944
      %v946 = vpop.f32.mrb[0].mxu0
      %947 = vmatprep.mubr.f32.mxu0 0.0
      %948 = vmatmul.mubr.f32.gmra.mrb[0].mxu0 %v523
      %v949 = vpop.f32.mrb[0].mxu0
      %v950 = vadd.f32 %v796, %v949
      %v951 = vpop.f32.mrb[0].mxu0
      %952 = vmatprep.mubr.f32.mxu0 0.0
      %953 = vmatmul.mubr.f32.gmra.mrb[0].mxu0 %v526
      %v954 = vpop.f32.mrb[0].mxu0
      %v955 = vadd.f32 %v796, %v954
      %v956 = vpop.f32.mrb[0].mxu0
      %957 = vmatprep.mubr.f32.mxu0 0.0
      %958 = vmatmul.mubr.f32.gmra.mrb[0].mxu0 %v529
      %v959 = vpop.f32.mrb[0].mxu0
      %v960 = vadd.f32 %v796, %v959
      %v961 = vpop.f32.mrb[0].mxu0
      %962 = vmatprep.mubr.f32.mxu0 0.0
      %963 = vmatmul.mubr.f32.gmra.mrb[0].mxu0 %v532
      %v964 = vpop.f32.mrb[0].mxu0
      %v965 = vadd.f32 %v796, %v964
      %v966 = vpop.f32.mrb[0].mxu0
      %967 = vmatprep.mubr.f32.mxu0 0.0
      %968 = vmatmul.mubr.f32.gmra.mrb[0].mxu0 %v535
      %v969 = vpop.f32.mrb[0].mxu0
      %v970 = vadd.f32 %v796, %v969
      %v971 = vpop.f32.mrb[0].mxu0
      %972 = vmatprep.mubr.f32.mxu0 0.0
      %973 = vmatmul.mubr.f32.gmra.mrb[0].mxu0 %v538
      %v974 = vpop.f32.mrb[0].mxu0
      %v975 = vadd.f32 %v796, %v974
      %v976 = vpop.f32.mrb[0].mxu0
      %977 = vmatprep.mubr.f32.mxu0 0.0
      %978 = vmatmul.mubr.f32.gmra.mrb[0].mxu0 %v541
      %v979 = vpop.f32.mrb[0].mxu0
      %v980 = vadd.f32 %v796, %v979
      %v981 = vpop.f32.mrb[0].mxu0
      %982 = vmatprep.mubr.f32.mxu0 0.0
      %983 = vmatmul.mubr.f32.gmra.mrb[0].mxu0 %v544
      %v984 = vpop.f32.mrb[0].mxu0
      %v985 = vadd.f32 %v796, %v984
      %v986 = vpop.f32.mrb[0].mxu0
      %987 = vmatprep.mubr.f32.mxu0 0.0
      %988 = vmatmul.mubr.f32.gmra.mrb[0].mxu0 %v547
      %v989 = vpop.f32.mrb[0].mxu0
      %v990 = vadd.f32 %v796, %v989
      %v991 = vpop.f32.mrb[0].mxu0
      %992 = vmatprep.mubr.f32.mxu0 0.0
      %993 = vmatmul.mubr.f32.gmra.mrb[0].mxu0 %v550
      %v994 = vpop.f32.mrb[0].mxu0
      %v995 = vadd.f32 %v796, %v994
      %v996 = vpop.f32.mrb[0].mxu0
      %997 = vmatprep.mubr.f32.mxu0 0.0
      %998 = vmatmul.mubr.f32.gmra.mrb[0].mxu0 %v553
      %v999 = vpop.f32.mrb[0].mxu0
      %v1000 = vadd.f32 %v796, %v999
      %v1001 = vpop.f32.mrb[0].mxu0
      %1002 = vmatprep.mubr.f32.mxu0 0.0
      %1003 = vmatmul.mubr.f32.gmra.mrb[0].mxu0 %v556
      %v1004 = vpop.f32.mrb[0].mxu0
      %v1005 = vadd.f32 %v796, %v1004
      %v1006 = vpop.f32.mrb[0].mxu0
      %1007 = vmatprep.mubr.f32.mxu0 0.0
      %1008 = vmatmul.mubr.f32.gmra.mrb[0].mxu0 %v559
      %v1009 = vpop.f32.mrb[0].mxu0
      %v1010 = vadd.f32 %v796, %v1009
      %v1011 = vpop.f32.mrb[0].mxu0
      %1012 = vmatprep.mubr.f32.mxu0 0.0
      %1013 = vmatmul.mubr.f32.gmra.mrb[0].mxu0 %v562
      %v1014 = vpop.f32.mrb[0].mxu0
      %v1015 = vadd.f32 %v796, %v1014
      %v1016 = vpop.f32.mrb[0].mxu0
      %1017 = vmatprep.mubr.f32.mxu0 0.0
      %1018 = vmatmul.mubr.f32.gmra.mrb[0].mxu0 %v565
      %v1019 = vpop.f32.mrb[0].mxu0
      %v1020 = vadd.f32 %v796, %v1019
      %v1021 = vpop.f32.mrb[0].mxu0
      %1022 = vdwg.mxu0
      %v1024 = vlaneseq
      %v1025 = vshrl.u32 %v1024, 7
      %v1026 = vsub.s32 0, %v1025
      %v1027 = vrot.slane %v463, %v1026
      %1029 = vmatprep.subr.mxu0 0.0
      %1030 = vmatpush1.msra.mxu0 %v460
      %1031 = vmatprep.subr.mxu0 0.0
      %1032 = vmatpush1.msra.mxu0 0.0
      %1033 = vmatprep.subr.mxu0 0.0
      %1034 = vmatpush1.msra.mxu0 0.0
      %1035 = vmatprep.subr.mxu0 0.0
      %1036 = vmatpush1.msra.mxu0 0.0
      %1037 = vmatprep.subr.mxu0 0.0
      %1038 = vmatpush1.msra.mxu0 0.0
      %1039 = vmatprep.subr.mxu0 0.0
      %1040 = vmatpush1.msra.mxu0 0.0
      %1041 = vmatprep.subr.mxu0 0.0
      %1042 = vmatpush1.msra.mxu0 0.0
      %1043 = vmatprep.subr.mxu0 0.0
      %1044 = vmatpush1.msra.mxu0 0.0
      %1045 = vmatprep.subr.mxu0 0.0
      %1046 = vmatpush1.msra.mxu0 0.0
      %1047 = vmatprep.subr.mxu0 0.0
      %1048 = vmatpush1.msra.mxu0 0.0
      %1049 = vmatprep.subr.mxu0 0.0
      %1050 = vmatpush1.msra.mxu0 0.0
      %1051 = vmatprep.subr.mxu0 0.0
      %1052 = vmatpush1.msra.mxu0 0.0
      %1053 = vmatprep.subr.mxu0 0.0
      %1054 = vmatpush1.msra.mxu0 0.0
      %1055 = vmatprep.subr.mxu0 0.0
      %1056 = vmatpush1.msra.mxu0 0.0
      %1057 = vmatprep.subr.mxu0 0.0
      %1058 = vmatpush1.msra.mxu0 0.0
      %1059 = vmatprep.subr.mxu0 0.0
      %1060 = vmatpush1.msra.mxu0 0.0
      %1061 = vmatprep.subr.mxu0 0.0
      %1062 = vmatpush1.msra.mxu0 0.0
      %1063 = vmatprep.subr.mxu0 0.0
      %1064 = vmatpush1.msra.mxu0 0.0
      %1065 = vmatprep.subr.mxu0 0.0
      %1066 = vmatpush1.msra.mxu0 0.0
      %1067 = vmatprep.subr.mxu0 0.0
      %1068 = vmatpush1.msra.mxu0 0.0
      %1069 = vmatprep.subr.mxu0 0.0
      %1070 = vmatpush1.msra.mxu0 0.0
      %1071 = vmatprep.subr.mxu0 0.0
      %1072 = vmatpush1.msra.mxu0 0.0
      %1073 = vmatprep.subr.mxu0 0.0
      %1074 = vmatpush1.msra.mxu0 0.0
      %1075 = vmatprep.subr.mxu0 0.0
      %1076 = vmatpush1.msra.mxu0 0.0
      %1077 = vmatprep.subr.mxu0 0.0
      %1078 = vmatpush1.msra.mxu0 0.0
      %1079 = vmatprep.subr.mxu0 0.0
      %1080 = vmatpush1.msra.mxu0 0.0
      %1081 = vmatprep.subr.mxu0 0.0
      %1082 = vmatpush1.msra.mxu0 0.0
      %1083 = vmatprep.subr.mxu0 0.0
      %1084 = vmatpush1.msra.mxu0 0.0
      %1085 = vmatprep.subr.mxu0 0.0
      %1086 = vmatpush1.msra.mxu0 0.0
      %1087 = vmatprep.subr.mxu0 0.0
      %1088 = vmatpush1.msra.mxu0 0.0
      %1089 = vmatprep.subr.mxu0 0.0
      %1090 = vmatpush1.msra.mxu0 0.0
      %1091 = vmatprep.subr.mxu0 0.0
      %1092 = vmatpush1.msra.mxu0 0.0
      %1093 = vmatprep.mubr.f32.mxu0 0.0
      %1094 = vmatmul.mubr.f32.gmra.mrb[0].mxu0 %v472
      %v1095 = vpop.f32.mrb[0].mxu0
      %v1096 = vadd.f32 %v1027, %v1095
      %v1097 = vpop.f32.mrb[0].mxu0
      %1098 = vmatprep.mubr.f32.mxu0 0.0
      %1099 = vmatmul.mubr.f32.gmra.mrb[0].mxu0 %v475
      %v1100 = vpop.f32.mrb[0].mxu0
      %v1101 = vadd.f32 %v1027, %v1100
      %v1102 = vpop.f32.mrb[0].mxu0
      %1103 = vmatprep.mubr.f32.mxu0 0.0
      %1104 = vmatmul.mubr.f32.gmra.mrb[0].mxu0 %v478
      %v1105 = vpop.f32.mrb[0].mxu0
      %v1106 = vadd.f32 %v1027, %v1105
      %v1107 = vpop.f32.mrb[0].mxu0
      %1108 = vmatprep.mubr.f32.mxu0 0.0
      %1109 = vmatmul.mubr.f32.gmra.mrb[0].mxu0 %v481
      %v1110 = vpop.f32.mrb[0].mxu0
      %v1111 = vadd.f32 %v1027, %v1110
      %v1112 = vpop.f32.mrb[0].mxu0
      %1113 = vmatprep.mubr.f32.mxu0 0.0
      %1114 = vmatmul.mubr.f32.gmra.mrb[0].mxu0 %v484
      %v1115 = vpop.f32.mrb[0].mxu0
      %v1116 = vadd.f32 %v1027, %v1115
      %v1117 = vpop.f32.mrb[0].mxu0
      %1118 = vmatprep.mubr.f32.mxu0 0.0
      %1119 = vmatmul.mubr.f32.gmra.mrb[0].mxu0 %v487
      %v1120 = vpop.f32.mrb[0].mxu0
      %v1121 = vadd.f32 %v1027, %v1120
      %v1122 = vpop.f32.mrb[0].mxu0
      %1123 = vmatprep.mubr.f32.mxu0 0.0
      %1124 = vmatmul.mubr.f32.gmra.mrb[0].mxu0 %v490
      %v1125 = vpop.f32.mrb[0].mxu0
      %v1126 = vadd.f32 %v1027, %v1125
      %v1127 = vpop.f32.mrb[0].mxu0
      %1128 = vmatprep.mubr.f32.mxu0 0.0
      %1129 = vmatmul.mubr.f32.gmra.mrb[0].mxu0 %v493
      %v1130 = vpop.f32.mrb[0].mxu0
      %v1131 = vadd.f32 %v1027, %v1130
      %v1132 = vpop.f32.mrb[0].mxu0
      %1133 = vmatprep.mubr.f32.mxu0 0.0
      %1134 = vmatmul.mubr.f32.gmra.mrb[0].mxu0 %v496
      %v1135 = vpop.f32.mrb[0].mxu0
      %v1136 = vadd.f32 %v1027, %v1135
      %v1137 = vpop.f32.mrb[0].mxu0
      %1138 = vmatprep.mubr.f32.mxu0 0.0
      %1139 = vmatmul.mubr.f32.gmra.mrb[0].mxu0 %v499
      %v1140 = vpop.f32.mrb[0].mxu0
      %v1141 = vadd.f32 %v1027, %v1140
      %v1142 = vpop.f32.mrb[0].mxu0
      %1143 = vmatprep.mubr.f32.mxu0 0.0
      %1144 = vmatmul.mubr.f32.gmra.mrb[0].mxu0 %v502
      %v1145 = vpop.f32.mrb[0].mxu0
      %v1146 = vadd.f32 %v1027, %v1145
      %v1147 = vpop.f32.mrb[0].mxu0
      %1148 = vmatprep.mubr.f32.mxu0 0.0
      %1149 = vmatmul.mubr.f32.gmra.mrb[0].mxu0 %v505
      %v1150 = vpop.f32.mrb[0].mxu0
      %v1151 = vadd.f32 %v1027, %v1150
      %v1152 = vpop.f32.mrb[0].mxu0
      %1153 = vmatprep.mubr.f32.mxu0 0.0
      %1154 = vmatmul.mubr.f32.gmra.mrb[0].mxu0 %v508
      %v1155 = vpop.f32.mrb[0].mxu0
      %v1156 = vadd.f32 %v1027, %v1155
      %v1157 = vpop.f32.mrb[0].mxu0
      %1158 = vmatprep.mubr.f32.mxu0 0.0
      %1159 = vmatmul.mubr.f32.gmra.mrb[0].mxu0 %v511
      %v1160 = vpop.f32.mrb[0].mxu0
      %v1161 = vadd.f32 %v1027, %v1160
      %v1162 = vpop.f32.mrb[0].mxu0
      %1163 = vmatprep.mubr.f32.mxu0 0.0
      %1164 = vmatmul.mubr.f32.gmra.mrb[0].mxu0 %v514
      %v1165 = vpop.f32.mrb[0].mxu0
      %v1166 = vadd.f32 %v1027, %v1165
      %v1167 = vpop.f32.mrb[0].mxu0
      %1168 = vmatprep.mubr.f32.mxu0 0.0
      %1169 = vmatmul.mubr.f32.gmra.mrb[0].mxu0 %v517
      %v1170 = vpop.f32.mrb[0].mxu0
      %v1171 = vadd.f32 %v1027, %v1170
      %v1172 = vpop.f32.mrb[0].mxu0
      %1173 = vmatprep.mubr.f32.mxu0 0.0
      %1174 = vmatmul.mubr.f32.gmra.mrb[0].mxu0 %v520
      %v1175 = vpop.f32.mrb[0].mxu0
      %v1176 = vadd.f32 %v1027, %v1175
      %v1177 = vpop.f32.mrb[0].mxu0
      %1178 = vmatprep.mubr.f32.mxu0 0.0
      %1179 = vmatmul.mubr.f32.gmra.mrb[0].mxu0 %v523
      %v1180 = vpop.f32.mrb[0].mxu0
      %v1181 = vadd.f32 %v1027, %v1180
      %v1182 = vpop.f32.mrb[0].mxu0
      %1183 = vmatprep.mubr.f32.mxu0 0.0
      %1184 = vmatmul.mubr.f32.gmra.mrb[0].mxu0 %v526
      %v1185 = vpop.f32.mrb[0].mxu0
      %v1186 = vadd.f32 %v1027, %v1185
      %v1187 = vpop.f32.mrb[0].mxu0
      %1188 = vmatprep.mubr.f32.mxu0 0.0
      %1189 = vmatmul.mubr.f32.gmra.mrb[0].mxu0 %v529
      %v1190 = vpop.f32.mrb[0].mxu0
      %v1191 = vadd.f32 %v1027, %v1190
      %v1192 = vpop.f32.mrb[0].mxu0
      %1193 = vmatprep.mubr.f32.mxu0 0.0
      %1194 = vmatmul.mubr.f32.gmra.mrb[0].mxu0 %v532
      %v1195 = vpop.f32.mrb[0].mxu0
      %v1196 = vadd.f32 %v1027, %v1195
      %v1197 = vpop.f32.mrb[0].mxu0
      %1198 = vmatprep.mubr.f32.mxu0 0.0
      %1199 = vmatmul.mubr.f32.gmra.mrb[0].mxu0 %v535
      %v1200 = vpop.f32.mrb[0].mxu0
      %v1201 = vadd.f32 %v1027, %v1200
      %v1202 = vpop.f32.mrb[0].mxu0
      %1203 = vmatprep.mubr.f32.mxu0 0.0
      %1204 = vmatmul.mubr.f32.gmra.mrb[0].mxu0 %v538
      %v1205 = vpop.f32.mrb[0].mxu0
      %v1206 = vadd.f32 %v1027, %v1205
      %v1207 = vpop.f32.mrb[0].mxu0
      %1208 = vmatprep.mubr.f32.mxu0 0.0
      %1209 = vmatmul.mubr.f32.gmra.mrb[0].mxu0 %v541
      %v1210 = vpop.f32.mrb[0].mxu0
      %v1211 = vadd.f32 %v1027, %v1210
      %v1212 = vpop.f32.mrb[0].mxu0
      %1213 = vmatprep.mubr.f32.mxu0 0.0
      %1214 = vmatmul.mubr.f32.gmra.mrb[0].mxu0 %v544
      %v1215 = vpop.f32.mrb[0].mxu0
      %v1216 = vadd.f32 %v1027, %v1215
      %v1217 = vpop.f32.mrb[0].mxu0
      %1218 = vmatprep.mubr.f32.mxu0 0.0
      %1219 = vmatmul.mubr.f32.gmra.mrb[0].mxu0 %v547
      %v1220 = vpop.f32.mrb[0].mxu0
      %v1221 = vadd.f32 %v1027, %v1220
      %v1222 = vpop.f32.mrb[0].mxu0
      %1223 = vmatprep.mubr.f32.mxu0 0.0
      %1224 = vmatmul.mubr.f32.gmra.mrb[0].mxu0 %v550
      %v1225 = vpop.f32.mrb[0].mxu0
      %v1226 = vadd.f32 %v1027, %v1225
      %v1227 = vpop.f32.mrb[0].mxu0
      %1228 = vmatprep.mubr.f32.mxu0 0.0
      %1229 = vmatmul.mubr.f32.gmra.mrb[0].mxu0 %v553
      %v1230 = vpop.f32.mrb[0].mxu0
      %v1231 = vadd.f32 %v1027, %v1230
      %v1232 = vpop.f32.mrb[0].mxu0
      %1233 = vmatprep.mubr.f32.mxu0 0.0
      %1234 = vmatmul.mubr.f32.gmra.mrb[0].mxu0 %v556
      %v1235 = vpop.f32.mrb[0].mxu0
      %v1236 = vadd.f32 %v1027, %v1235
      %v1237 = vpop.f32.mrb[0].mxu0
      %1238 = vmatprep.mubr.f32.mxu0 0.0
      %1239 = vmatmul.mubr.f32.gmra.mrb[0].mxu0 %v559
      %v1240 = vpop.f32.mrb[0].mxu0
      %v1241 = vadd.f32 %v1027, %v1240
      %v1242 = vpop.f32.mrb[0].mxu0
      %1243 = vmatprep.mubr.f32.mxu0 0.0
      %1244 = vmatmul.mubr.f32.gmra.mrb[0].mxu0 %v562
      %v1245 = vpop.f32.mrb[0].mxu0
      %v1246 = vadd.f32 %v1027, %v1245
      %v1247 = vpop.f32.mrb[0].mxu0
      %1248 = vmatprep.mubr.f32.mxu0 0.0
      %1249 = vmatmul.mubr.f32.gmra.mrb[0].mxu0 %v565
      %v1250 = vpop.f32.mrb[0].mxu0
      %v1251 = vadd.f32 %v1027, %v1250
      %v1252 = vpop.f32.mrb[0].mxu0
      %1253 = vdwg.mxu0
      %v1255 = vsel %vm470, %v426, 0
      %v1258 = vsel %vm470, %v427, 0
      %v1261 = vsel %vm470, %v428, 0
      %v1264 = vsel %vm470, %v429, 0
      %v1267 = vsel %vm470, %v430, 0
      %v1270 = vsel %vm470, %v431, 0
      %v1273 = vsel %vm470, %v432, 0
      %v1276 = vsel %vm470, %v433, 0
      %v1279 = vsel %vm470, %v434, 0
      %v1282 = vsel %vm470, %v435, 0
      %v1285 = vsel %vm470, %v436, 0
      %v1288 = vsel %vm470, %v437, 0
      %v1291 = vsel %vm470, %v438, 0
      %v1294 = vsel %vm470, %v439, 0
      %v1297 = vsel %vm470, %v440, 0
      %v1300 = vsel %vm470, %v441, 0
      %v1303 = vsel %vm470, %v442, 0
      %v1306 = vsel %vm470, %v443, 0
      %v1309 = vsel %vm470, %v444, 0
      %v1312 = vsel %vm470, %v445, 0
      %v1315 = vsel %vm470, %v446, 0
      %v1318 = vsel %vm470, %v447, 0
      %v1321 = vsel %vm470, %v448, 0
      %v1324 = vsel %vm470, %v449, 0
      %v1327 = vsel %vm470, %v450, 0
      %v1330 = vsel %vm470, %v451, 0
      %v1333 = vsel %vm470, %v452, 0
      %v1336 = vsel %vm470, %v453, 0
      %v1339 = vsel %vm470, %v454, 0
      %v1342 = vsel %vm470, %v455, 0
      %v1345 = vsel %vm470, %v456, 0
      %v1348 = vsel %vm470, %v457, 0
      %1350 = vmatprep.subr.mxu0 0.0
      %1351 = vmatpush1.msra.mxu0 %v458
      %1352 = vmatprep.subr.mxu0 0.0
      %1353 = vmatpush1.msra.mxu0 0.0
      %1354 = vmatprep.subr.mxu0 0.0
      %1355 = vmatpush1.msra.mxu0 0.0
      %1356 = vmatprep.subr.mxu0 0.0
      %1357 = vmatpush1.msra.mxu0 0.0
      %1358 = vmatprep.subr.mxu0 0.0
      %1359 = vmatpush1.msra.mxu0 0.0
      %1360 = vmatprep.subr.mxu0 0.0
      %1361 = vmatpush1.msra.mxu0 0.0
      %1362 = vmatprep.subr.mxu0 0.0
      %1363 = vmatpush1.msra.mxu0 0.0
      %1364 = vmatprep.subr.mxu0 0.0
      %1365 = vmatpush1.msra.mxu0 0.0
      %1366 = vmatprep.subr.mxu0 0.0
      %1367 = vmatpush1.msra.mxu0 0.0
      %1368 = vmatprep.subr.mxu0 0.0
      %1369 = vmatpush1.msra.mxu0 0.0
      %1370 = vmatprep.subr.mxu0 0.0
      %1371 = vmatpush1.msra.mxu0 0.0
      %1372 = vmatprep.subr.mxu0 0.0
      %1373 = vmatpush1.msra.mxu0 0.0
      %1374 = vmatprep.subr.mxu0 0.0
      %1375 = vmatpush1.msra.mxu0 0.0
      %1376 = vmatprep.subr.mxu0 0.0
      %1377 = vmatpush1.msra.mxu0 0.0
      %1378 = vmatprep.subr.mxu0 0.0
      %1379 = vmatpush1.msra.mxu0 0.0
      %1380 = vmatprep.subr.mxu0 0.0
      %1381 = vmatpush1.msra.mxu0 0.0
      %1382 = vmatprep.subr.mxu0 0.0
      %1383 = vmatpush1.msra.mxu0 0.0
      %1384 = vmatprep.subr.mxu0 0.0
      %1385 = vmatpush1.msra.mxu0 0.0
      %1386 = vmatprep.subr.mxu0 0.0
      %1387 = vmatpush1.msra.mxu0 0.0
      %1388 = vmatprep.subr.mxu0 0.0
      %1389 = vmatpush1.msra.mxu0 0.0
      %1390 = vmatprep.subr.mxu0 0.0
      %1391 = vmatpush1.msra.mxu0 0.0
      %1392 = vmatprep.subr.mxu0 0.0
      %1393 = vmatpush1.msra.mxu0 0.0
      %1394 = vmatprep.subr.mxu0 0.0
      %1395 = vmatpush1.msra.mxu0 0.0
      %1396 = vmatprep.subr.mxu0 0.0
      %1397 = vmatpush1.msra.mxu0 0.0
      %1398 = vmatprep.subr.mxu0 0.0
      %1399 = vmatpush1.msra.mxu0 0.0
      %1400 = vmatprep.subr.mxu0 0.0
      %1401 = vmatpush1.msra.mxu0 0.0
      %1402 = vmatprep.subr.mxu0 0.0
      %1403 = vmatpush1.msra.mxu0 0.0
      %1404 = vmatprep.subr.mxu0 0.0
      %1405 = vmatpush1.msra.mxu0 0.0
      %1406 = vmatprep.subr.mxu0 0.0
      %1407 = vmatpush1.msra.mxu0 0.0
      %1408 = vmatprep.subr.mxu0 0.0
      %1409 = vmatpush1.msra.mxu0 0.0
      %1410 = vmatprep.subr.mxu0 0.0
      %1411 = vmatpush1.msra.mxu0 0.0
      %1412 = vmatprep.subr.mxu0 0.0
      %1413 = vmatpush1.msra.mxu0 0.0
      %1414 = vmatprep.mubr.f32.mxu0 0.0
      %1415 = vmatmul.mubr.f32.gmra.mrb[0].mxu0 %v1255
      %v1416 = vpop.f32.mrb[0].mxu0
      %v1417 = vadd.f32 %v468, %v1416
      %v1418 = vpop.f32.mrb[0].mxu0
      %1419 = vmatprep.mubr.f32.mxu0 0.0
      %1420 = vmatmul.mubr.f32.gmra.mrb[0].mxu0 %v1258
      %v1421 = vpop.f32.mrb[0].mxu0
      %v1422 = vadd.f32 %v468, %v1421
      %v1423 = vpop.f32.mrb[0].mxu0
      %1424 = vmatprep.mubr.f32.mxu0 0.0
      %1425 = vmatmul.mubr.f32.gmra.mrb[0].mxu0 %v1261
      %v1426 = vpop.f32.mrb[0].mxu0
      %v1427 = vadd.f32 %v468, %v1426
      %v1428 = vpop.f32.mrb[0].mxu0
      %1429 = vmatprep.mubr.f32.mxu0 0.0
      %1430 = vmatmul.mubr.f32.gmra.mrb[0].mxu0 %v1264
      %v1431 = vpop.f32.mrb[0].mxu0
      %v1432 = vadd.f32 %v468, %v1431
      %v1433 = vpop.f32.mrb[0].mxu0
      %1434 = vmatprep.mubr.f32.mxu0 0.0
      %1435 = vmatmul.mubr.f32.gmra.mrb[0].mxu0 %v1267
      %v1436 = vpop.f32.mrb[0].mxu0
      %v1437 = vadd.f32 %v468, %v1436
      %v1438 = vpop.f32.mrb[0].mxu0
      %1439 = vmatprep.mubr.f32.mxu0 0.0
      %1440 = vmatmul.mubr.f32.gmra.mrb[0].mxu0 %v1270
      %v1441 = vpop.f32.mrb[0].mxu0
      %v1442 = vadd.f32 %v468, %v1441
      %v1443 = vpop.f32.mrb[0].mxu0
      %1444 = vmatprep.mubr.f32.mxu0 0.0
      %1445 = vmatmul.mubr.f32.gmra.mrb[0].mxu0 %v1273
      %v1446 = vpop.f32.mrb[0].mxu0
      %v1447 = vadd.f32 %v468, %v1446
      %v1448 = vpop.f32.mrb[0].mxu0
      %1449 = vmatprep.mubr.f32.mxu0 0.0
      %1450 = vmatmul.mubr.f32.gmra.mrb[0].mxu0 %v1276
      %v1451 = vpop.f32.mrb[0].mxu0
      %v1452 = vadd.f32 %v468, %v1451
      %v1453 = vpop.f32.mrb[0].mxu0
      %1454 = vmatprep.mubr.f32.mxu0 0.0
      %1455 = vmatmul.mubr.f32.gmra.mrb[0].mxu0 %v1279
      %v1456 = vpop.f32.mrb[0].mxu0
      %v1457 = vadd.f32 %v468, %v1456
      %v1458 = vpop.f32.mrb[0].mxu0
      %1459 = vmatprep.mubr.f32.mxu0 0.0
      %1460 = vmatmul.mubr.f32.gmra.mrb[0].mxu0 %v1282
      %v1461 = vpop.f32.mrb[0].mxu0
      %v1462 = vadd.f32 %v468, %v1461
      %v1463 = vpop.f32.mrb[0].mxu0
      %1464 = vmatprep.mubr.f32.mxu0 0.0
      %1465 = vmatmul.mubr.f32.gmra.mrb[0].mxu0 %v1285
      %v1466 = vpop.f32.mrb[0].mxu0
      %v1467 = vadd.f32 %v468, %v1466
      %v1468 = vpop.f32.mrb[0].mxu0
      %1469 = vmatprep.mubr.f32.mxu0 0.0
      %1470 = vmatmul.mubr.f32.gmra.mrb[0].mxu0 %v1288
      %v1471 = vpop.f32.mrb[0].mxu0
      %v1472 = vadd.f32 %v468, %v1471
      %v1473 = vpop.f32.mrb[0].mxu0
      %1474 = vmatprep.mubr.f32.mxu0 0.0
      %1475 = vmatmul.mubr.f32.gmra.mrb[0].mxu0 %v1291
      %v1476 = vpop.f32.mrb[0].mxu0
      %v1477 = vadd.f32 %v468, %v1476
      %v1478 = vpop.f32.mrb[0].mxu0
      %1479 = vmatprep.mubr.f32.mxu0 0.0
      %1480 = vmatmul.mubr.f32.gmra.mrb[0].mxu0 %v1294
      %v1481 = vpop.f32.mrb[0].mxu0
      %v1482 = vadd.f32 %v468, %v1481
      %v1483 = vpop.f32.mrb[0].mxu0
      %1484 = vmatprep.mubr.f32.mxu0 0.0
      %1485 = vmatmul.mubr.f32.gmra.mrb[0].mxu0 %v1297
      %v1486 = vpop.f32.mrb[0].mxu0
      %v1487 = vadd.f32 %v468, %v1486
      %v1488 = vpop.f32.mrb[0].mxu0
      %1489 = vmatprep.mubr.f32.mxu0 0.0
      %1490 = vmatmul.mubr.f32.gmra.mrb[0].mxu0 %v1300
      %v1491 = vpop.f32.mrb[0].mxu0
      %v1492 = vadd.f32 %v468, %v1491
      %v1493 = vpop.f32.mrb[0].mxu0
      %1494 = vmatprep.mubr.f32.mxu0 0.0
      %1495 = vmatmul.mubr.f32.gmra.mrb[0].mxu0 %v1303
      %v1496 = vpop.f32.mrb[0].mxu0
      %v1497 = vadd.f32 %v468, %v1496
      %v1498 = vpop.f32.mrb[0].mxu0
      %1499 = vmatprep.mubr.f32.mxu0 0.0
      %1500 = vmatmul.mubr.f32.gmra.mrb[0].mxu0 %v1306
      %v1501 = vpop.f32.mrb[0].mxu0
      %v1502 = vadd.f32 %v468, %v1501
      %v1503 = vpop.f32.mrb[0].mxu0
      %1504 = vmatprep.mubr.f32.mxu0 0.0
      %1505 = vmatmul.mubr.f32.gmra.mrb[0].mxu0 %v1309
      %v1506 = vpop.f32.mrb[0].mxu0
      %v1507 = vadd.f32 %v468, %v1506
      %v1508 = vpop.f32.mrb[0].mxu0
      %1509 = vmatprep.mubr.f32.mxu0 0.0
      %1510 = vmatmul.mubr.f32.gmra.mrb[0].mxu0 %v1312
      %v1511 = vpop.f32.mrb[0].mxu0
      %v1512 = vadd.f32 %v468, %v1511
      %v1513 = vpop.f32.mrb[0].mxu0
      %1514 = vmatprep.mubr.f32.mxu0 0.0
      %1515 = vmatmul.mubr.f32.gmra.mrb[0].mxu0 %v1315
      %v1516 = vpop.f32.mrb[0].mxu0
      %v1517 = vadd.f32 %v468, %v1516
      %v1518 = vpop.f32.mrb[0].mxu0
      %1519 = vmatprep.mubr.f32.mxu0 0.0
      %1520 = vmatmul.mubr.f32.gmra.mrb[0].mxu0 %v1318
      %v1521 = vpop.f32.mrb[0].mxu0
      %v1522 = vadd.f32 %v468, %v1521
      %v1523 = vpop.f32.mrb[0].mxu0
      %1524 = vmatprep.mubr.f32.mxu0 0.0
      %1525 = vmatmul.mubr.f32.gmra.mrb[0].mxu0 %v1321
      %v1526 = vpop.f32.mrb[0].mxu0
      %v1527 = vadd.f32 %v468, %v1526
      %v1528 = vpop.f32.mrb[0].mxu0
      %1529 = vmatprep.mubr.f32.mxu0 0.0
      %1530 = vmatmul.mubr.f32.gmra.mrb[0].mxu0 %v1324
      %v1531 = vpop.f32.mrb[0].mxu0
      %v1532 = vadd.f32 %v468, %v1531
      %v1533 = vpop.f32.mrb[0].mxu0
      %1534 = vmatprep.mubr.f32.mxu0 0.0
      %1535 = vmatmul.mubr.f32.gmra.mrb[0].mxu0 %v1327
      %v1536 = vpop.f32.mrb[0].mxu0
      %v1537 = vadd.f32 %v468, %v1536
      %v1538 = vpop.f32.mrb[0].mxu0
      %1539 = vmatprep.mubr.f32.mxu0 0.0
      %1540 = vmatmul.mubr.f32.gmra.mrb[0].mxu0 %v1330
      %v1541 = vpop.f32.mrb[0].mxu0
      %v1542 = vadd.f32 %v468, %v1541
      %v1543 = vpop.f32.mrb[0].mxu0
      %1544 = vmatprep.mubr.f32.mxu0 0.0
      %1545 = vmatmul.mubr.f32.gmra.mrb[0].mxu0 %v1333
      %v1546 = vpop.f32.mrb[0].mxu0
      %v1547 = vadd.f32 %v468, %v1546
      %v1548 = vpop.f32.mrb[0].mxu0
      %1549 = vmatprep.mubr.f32.mxu0 0.0
      %1550 = vmatmul.mubr.f32.gmra.mrb[0].mxu0 %v1336
      %v1551 = vpop.f32.mrb[0].mxu0
      %v1552 = vadd.f32 %v468, %v1551
      %v1553 = vpop.f32.mrb[0].mxu0
      %1554 = vmatprep.mubr.f32.mxu0 0.0
      %1555 = vmatmul.mubr.f32.gmra.mrb[0].mxu0 %v1339
      %v1556 = vpop.f32.mrb[0].mxu0
      %v1557 = vadd.f32 %v468, %v1556
      %v1558 = vpop.f32.mrb[0].mxu0
      %1559 = vmatprep.mubr.f32.mxu0 0.0
      %1560 = vmatmul.mubr.f32.gmra.mrb[0].mxu0 %v1342
      %v1561 = vpop.f32.mrb[0].mxu0
      %v1562 = vadd.f32 %v468, %v1561
      %v1563 = vpop.f32.mrb[0].mxu0
      %1564 = vmatprep.mubr.f32.mxu0 0.0
      %1565 = vmatmul.mubr.f32.gmra.mrb[0].mxu0 %v1345
      %v1566 = vpop.f32.mrb[0].mxu0
      %v1567 = vadd.f32 %v468, %v1566
      %v1568 = vpop.f32.mrb[0].mxu0
      %1569 = vmatprep.mubr.f32.mxu0 0.0
      %1570 = vmatmul.mubr.f32.gmra.mrb[0].mxu0 %v1348
      %v1571 = vpop.f32.mrb[0].mxu0
      %v1572 = vadd.f32 %v468, %v1571
      %v1573 = vpop.f32.mrb[0].mxu0
      %1574 = vdwg.mxu0
      %1575 = vmatprep.subr.mxu0 0.0
      %1576 = vmatpush1.msra.mxu0 %v459
      %1577 = vmatprep.subr.mxu0 0.0
      %1578 = vmatpush1.msra.mxu0 0.0
      %1579 = vmatprep.subr.mxu0 0.0
      %1580 = vmatpush1.msra.mxu0 0.0
      %1581 = vmatprep.subr.mxu0 0.0
      %1582 = vmatpush1.msra.mxu0 0.0
      %1583 = vmatprep.subr.mxu0 0.0
      %1584 = vmatpush1.msra.mxu0 0.0
      %1585 = vmatprep.subr.mxu0 0.0
      %1586 = vmatpush1.msra.mxu0 0.0
      %1587 = vmatprep.subr.mxu0 0.0
      %1588 = vmatpush1.msra.mxu0 0.0
      %1589 = vmatprep.subr.mxu0 0.0
      %1590 = vmatpush1.msra.mxu0 0.0
      %1591 = vmatprep.subr.mxu0 0.0
      %1592 = vmatpush1.msra.mxu0 0.0
      %1593 = vmatprep.subr.mxu0 0.0
      %1594 = vmatpush1.msra.mxu0 0.0
      %1595 = vmatprep.subr.mxu0 0.0
      %1596 = vmatpush1.msra.mxu0 0.0
      %1597 = vmatprep.subr.mxu0 0.0
      %1598 = vmatpush1.msra.mxu0 0.0
      %1599 = vmatprep.subr.mxu0 0.0
      %1600 = vmatpush1.msra.mxu0 0.0
      %1601 = vmatprep.subr.mxu0 0.0
      %1602 = vmatpush1.msra.mxu0 0.0
      %1603 = vmatprep.subr.mxu0 0.0
      %1604 = vmatpush1.msra.mxu0 0.0
      %1605 = vmatprep.subr.mxu0 0.0
      %1606 = vmatpush1.msra.mxu0 0.0
      %1607 = vmatprep.subr.mxu0 0.0
      %1608 = vmatpush1.msra.mxu0 0.0
      %1609 = vmatprep.subr.mxu0 0.0
      %1610 = vmatpush1.msra.mxu0 0.0
      %1611 = vmatprep.subr.mxu0 0.0
      %1612 = vmatpush1.msra.mxu0 0.0
      %1613 = vmatprep.subr.mxu0 0.0
      %1614 = vmatpush1.msra.mxu0 0.0
      %1615 = vmatprep.subr.mxu0 0.0
      %1616 = vmatpush1.msra.mxu0 0.0
      %1617 = vmatprep.subr.mxu0 0.0
      %1618 = vmatpush1.msra.mxu0 0.0
      %1619 = vmatprep.subr.mxu0 0.0
      %1620 = vmatpush1.msra.mxu0 0.0
      %1621 = vmatprep.subr.mxu0 0.0
      %1622 = vmatpush1.msra.mxu0 0.0
      %1623 = vmatprep.subr.mxu0 0.0
      %1624 = vmatpush1.msra.mxu0 0.0
      %1625 = vmatprep.subr.mxu0 0.0
      %1626 = vmatpush1.msra.mxu0 0.0
      %1627 = vmatprep.subr.mxu0 0.0
      %1628 = vmatpush1.msra.mxu0 0.0
      %1629 = vmatprep.subr.mxu0 0.0
      %1630 = vmatpush1.msra.mxu0 0.0
      %1631 = vmatprep.subr.mxu0 0.0
      %1632 = vmatpush1.msra.mxu0 0.0
      %1633 = vmatprep.subr.mxu0 0.0
      %1634 = vmatpush1.msra.mxu0 0.0
      %1635 = vmatprep.subr.mxu0 0.0
      %1636 = vmatpush1.msra.mxu0 0.0
      %1637 = vmatprep.subr.mxu0 0.0
      %1638 = vmatpush1.msra.mxu0 0.0
      %1639 = vmatprep.mubr.f32.mxu0 0.0
      %1640 = vmatmul.mubr.f32.gmra.mrb[0].mxu0 %v1255
      %v1641 = vpop.f32.mrb[0].mxu0
      %v1642 = vadd.f32 %v796, %v1641
      %v1643 = vpop.f32.mrb[0].mxu0
      %1644 = vmatprep.mubr.f32.mxu0 0.0
      %1645 = vmatmul.mubr.f32.gmra.mrb[0].mxu0 %v1258
      %v1646 = vpop.f32.mrb[0].mxu0
      %v1647 = vadd.f32 %v796, %v1646
      %v1648 = vpop.f32.mrb[0].mxu0
      %1649 = vmatprep.mubr.f32.mxu0 0.0
      %1650 = vmatmul.mubr.f32.gmra.mrb[0].mxu0 %v1261
      %v1651 = vpop.f32.mrb[0].mxu0
      %v1652 = vadd.f32 %v796, %v1651
      %v1653 = vpop.f32.mrb[0].mxu0
      %1654 = vmatprep.mubr.f32.mxu0 0.0
      %1655 = vmatmul.mubr.f32.gmra.mrb[0].mxu0 %v1264
      %v1656 = vpop.f32.mrb[0].mxu0
      %v1657 = vadd.f32 %v796, %v1656
      %v1658 = vpop.f32.mrb[0].mxu0
      %1659 = vmatprep.mubr.f32.mxu0 0.0
      %1660 = vmatmul.mubr.f32.gmra.mrb[0].mxu0 %v1267
      %v1661 = vpop.f32.mrb[0].mxu0
      %v1662 = vadd.f32 %v796, %v1661
      %v1663 = vpop.f32.mrb[0].mxu0
      %1664 = vmatprep.mubr.f32.mxu0 0.0
      %1665 = vmatmul.mubr.f32.gmra.mrb[0].mxu0 %v1270
      %v1666 = vpop.f32.mrb[0].mxu0
      %v1667 = vadd.f32 %v796, %v1666
      %v1668 = vpop.f32.mrb[0].mxu0
      %1669 = vmatprep.mubr.f32.mxu0 0.0
      %1670 = vmatmul.mubr.f32.gmra.mrb[0].mxu0 %v1273
      %v1671 = vpop.f32.mrb[0].mxu0
      %v1672 = vadd.f32 %v796, %v1671
      %v1673 = vpop.f32.mrb[0].mxu0
      %1674 = vmatprep.mubr.f32.mxu0 0.0
      %1675 = vmatmul.mubr.f32.gmra.mrb[0].mxu0 %v1276
      %v1676 = vpop.f32.mrb[0].mxu0
      %v1677 = vadd.f32 %v796, %v1676
      %v1678 = vpop.f32.mrb[0].mxu0
      %1679 = vmatprep.mubr.f32.mxu0 0.0
      %1680 = vmatmul.mubr.f32.gmra.mrb[0].mxu0 %v1279
      %v1681 = vpop.f32.mrb[0].mxu0
      %v1682 = vadd.f32 %v796, %v1681
      %v1683 = vpop.f32.mrb[0].mxu0
      %1684 = vmatprep.mubr.f32.mxu0 0.0
      %1685 = vmatmul.mubr.f32.gmra.mrb[0].mxu0 %v1282
      %v1686 = vpop.f32.mrb[0].mxu0
      %v1687 = vadd.f32 %v796, %v1686
      %v1688 = vpop.f32.mrb[0].mxu0
      %1689 = vmatprep.mubr.f32.mxu0 0.0
      %1690 = vmatmul.mubr.f32.gmra.mrb[0].mxu0 %v1285
      %v1691 = vpop.f32.mrb[0].mxu0
      %v1692 = vadd.f32 %v796, %v1691
      %v1693 = vpop.f32.mrb[0].mxu0
      %1694 = vmatprep.mubr.f32.mxu0 0.0
      %1695 = vmatmul.mubr.f32.gmra.mrb[0].mxu0 %v1288
      %v1696 = vpop.f32.mrb[0].mxu0
      %v1697 = vadd.f32 %v796, %v1696
      %v1698 = vpop.f32.mrb[0].mxu0
      %1699 = vmatprep.mubr.f32.mxu0 0.0
      %1700 = vmatmul.mubr.f32.gmra.mrb[0].mxu0 %v1291
      %v1701 = vpop.f32.mrb[0].mxu0
      %v1702 = vadd.f32 %v796, %v1701
      %v1703 = vpop.f32.mrb[0].mxu0
      %1704 = vmatprep.mubr.f32.mxu0 0.0
      %1705 = vmatmul.mubr.f32.gmra.mrb[0].mxu0 %v1294
      %v1706 = vpop.f32.mrb[0].mxu0
      %v1707 = vadd.f32 %v796, %v1706
      %v1708 = vpop.f32.mrb[0].mxu0
      %1709 = vmatprep.mubr.f32.mxu0 0.0
      %1710 = vmatmul.mubr.f32.gmra.mrb[0].mxu0 %v1297
      %v1711 = vpop.f32.mrb[0].mxu0
      %v1712 = vadd.f32 %v796, %v1711
      %v1713 = vpop.f32.mrb[0].mxu0
      %1714 = vmatprep.mubr.f32.mxu0 0.0
      %1715 = vmatmul.mubr.f32.gmra.mrb[0].mxu0 %v1300
      %v1716 = vpop.f32.mrb[0].mxu0
      %v1717 = vadd.f32 %v796, %v1716
      %v1718 = vpop.f32.mrb[0].mxu0
      %1719 = vmatprep.mubr.f32.mxu0 0.0
      %1720 = vmatmul.mubr.f32.gmra.mrb[0].mxu0 %v1303
      %v1721 = vpop.f32.mrb[0].mxu0
      %v1722 = vadd.f32 %v796, %v1721
      %v1723 = vpop.f32.mrb[0].mxu0
      %1724 = vmatprep.mubr.f32.mxu0 0.0
      %1725 = vmatmul.mubr.f32.gmra.mrb[0].mxu0 %v1306
      %v1726 = vpop.f32.mrb[0].mxu0
      %v1727 = vadd.f32 %v796, %v1726
      %v1728 = vpop.f32.mrb[0].mxu0
      %1729 = vmatprep.mubr.f32.mxu0 0.0
      %1730 = vmatmul.mubr.f32.gmra.mrb[0].mxu0 %v1309
      %v1731 = vpop.f32.mrb[0].mxu0
      %v1732 = vadd.f32 %v796, %v1731
      %v1733 = vpop.f32.mrb[0].mxu0
      %1734 = vmatprep.mubr.f32.mxu0 0.0
      %1735 = vmatmul.mubr.f32.gmra.mrb[0].mxu0 %v1312
      %v1736 = vpop.f32.mrb[0].mxu0
      %v1737 = vadd.f32 %v796, %v1736
      %v1738 = vpop.f32.mrb[0].mxu0
      %1739 = vmatprep.mubr.f32.mxu0 0.0
      %1740 = vmatmul.mubr.f32.gmra.mrb[0].mxu0 %v1315
      %v1741 = vpop.f32.mrb[0].mxu0
      %v1742 = vadd.f32 %v796, %v1741
      %v1743 = vpop.f32.mrb[0].mxu0
      %1744 = vmatprep.mubr.f32.mxu0 0.0
      %1745 = vmatmul.mubr.f32.gmra.mrb[0].mxu0 %v1318
      %v1746 = vpop.f32.mrb[0].mxu0
      %v1747 = vadd.f32 %v796, %v1746
      %v1748 = vpop.f32.mrb[0].mxu0
      %1749 = vmatprep.mubr.f32.mxu0 0.0
      %1750 = vmatmul.mubr.f32.gmra.mrb[0].mxu0 %v1321
      %v1751 = vpop.f32.mrb[0].mxu0
      %v1752 = vadd.f32 %v796, %v1751
      %v1753 = vpop.f32.mrb[0].mxu0
      %1754 = vmatprep.mubr.f32.mxu0 0.0
      %1755 = vmatmul.mubr.f32.gmra.mrb[0].mxu0 %v1324
      %v1756 = vpop.f32.mrb[0].mxu0
      %v1757 = vadd.f32 %v796, %v1756
      %v1758 = vpop.f32.mrb[0].mxu0
      %1759 = vmatprep.mubr.f32.mxu0 0.0
      %1760 = vmatmul.mubr.f32.gmra.mrb[0].mxu0 %v1327
      %v1761 = vpop.f32.mrb[0].mxu0
      %v1762 = vadd.f32 %v796, %v1761
      %v1763 = vpop.f32.mrb[0].mxu0
      %1764 = vmatprep.mubr.f32.mxu0 0.0
      %1765 = vmatmul.mubr.f32.gmra.mrb[0].mxu0 %v1330
      %v1766 = vpop.f32.mrb[0].mxu0
      %v1767 = vadd.f32 %v796, %v1766
      %v1768 = vpop.f32.mrb[0].mxu0
      %1769 = vmatprep.mubr.f32.mxu0 0.0
      %1770 = vmatmul.mubr.f32.gmra.mrb[0].mxu0 %v1333
      %v1771 = vpop.f32.mrb[0].mxu0
      %v1772 = vadd.f32 %v796, %v1771
      %v1773 = vpop.f32.mrb[0].mxu0
      %1774 = vmatprep.mubr.f32.mxu0 0.0
      %1775 = vmatmul.mubr.f32.gmra.mrb[0].mxu0 %v1336
      %v1776 = vpop.f32.mrb[0].mxu0
      %v1777 = vadd.f32 %v796, %v1776
      %v1778 = vpop.f32.mrb[0].mxu0
      %1779 = vmatprep.mubr.f32.mxu0 0.0
      %1780 = vmatmul.mubr.f32.gmra.mrb[0].mxu0 %v1339
      %v1781 = vpop.f32.mrb[0].mxu0
      %v1782 = vadd.f32 %v796, %v1781
      %v1783 = vpop.f32.mrb[0].mxu0
      %1784 = vmatprep.mubr.f32.mxu0 0.0
      %1785 = vmatmul.mubr.f32.gmra.mrb[0].mxu0 %v1342
      %v1786 = vpop.f32.mrb[0].mxu0
      %v1787 = vadd.f32 %v796, %v1786
      %v1788 = vpop.f32.mrb[0].mxu0
      %1789 = vmatprep.mubr.f32.mxu0 0.0
      %1790 = vmatmul.mubr.f32.gmra.mrb[0].mxu0 %v1345
      %v1791 = vpop.f32.mrb[0].mxu0
      %v1792 = vadd.f32 %v796, %v1791
      %v1793 = vpop.f32.mrb[0].mxu0
      %1794 = vmatprep.mubr.f32.mxu0 0.0
      %1795 = vmatmul.mubr.f32.gmra.mrb[0].mxu0 %v1348
      %v1796 = vpop.f32.mrb[0].mxu0
      %v1797 = vadd.f32 %v796, %v1796
      %v1798 = vpop.f32.mrb[0].mxu0
      %1799 = vdwg.mxu0
      %1800 = vmatprep.subr.mxu0 0.0
      %1801 = vmatpush1.msra.mxu0 %v460
      %1802 = vmatprep.subr.mxu0 0.0
      %1803 = vmatpush1.msra.mxu0 0.0
      %1804 = vmatprep.subr.mxu0 0.0
      %1805 = vmatpush1.msra.mxu0 0.0
      %1806 = vmatprep.subr.mxu0 0.0
      %1807 = vmatpush1.msra.mxu0 0.0
      %1808 = vmatprep.subr.mxu0 0.0
      %1809 = vmatpush1.msra.mxu0 0.0
      %1810 = vmatprep.subr.mxu0 0.0
      %1811 = vmatpush1.msra.mxu0 0.0
      %1812 = vmatprep.subr.mxu0 0.0
      %1813 = vmatpush1.msra.mxu0 0.0
      %1814 = vmatprep.subr.mxu0 0.0
      %1815 = vmatpush1.msra.mxu0 0.0
      %1816 = vmatprep.subr.mxu0 0.0
      %1817 = vmatpush1.msra.mxu0 0.0
      %1818 = vmatprep.subr.mxu0 0.0
      %1819 = vmatpush1.msra.mxu0 0.0
      %1820 = vmatprep.subr.mxu0 0.0
      %1821 = vmatpush1.msra.mxu0 0.0
      %1822 = vmatprep.subr.mxu0 0.0
      %1823 = vmatpush1.msra.mxu0 0.0
      %1824 = vmatprep.subr.mxu0 0.0
      %1825 = vmatpush1.msra.mxu0 0.0
      %1826 = vmatprep.subr.mxu0 0.0
      %1827 = vmatpush1.msra.mxu0 0.0
      %1828 = vmatprep.subr.mxu0 0.0
      %1829 = vmatpush1.msra.mxu0 0.0
      %1830 = vmatprep.subr.mxu0 0.0
      %1831 = vmatpush1.msra.mxu0 0.0
      %1832 = vmatprep.subr.mxu0 0.0
      %1833 = vmatpush1.msra.mxu0 0.0
      %1834 = vmatprep.subr.mxu0 0.0
      %1835 = vmatpush1.msra.mxu0 0.0
      %1836 = vmatprep.subr.mxu0 0.0
      %1837 = vmatpush1.msra.mxu0 0.0
      %1838 = vmatprep.subr.mxu0 0.0
      %1839 = vmatpush1.msra.mxu0 0.0
      %1840 = vmatprep.subr.mxu0 0.0
      %1841 = vmatpush1.msra.mxu0 0.0
      %1842 = vmatprep.subr.mxu0 0.0
      %1843 = vmatpush1.msra.mxu0 0.0
      %1844 = vmatprep.subr.mxu0 0.0
      %1845 = vmatpush1.msra.mxu0 0.0
      %1846 = vmatprep.subr.mxu0 0.0
      %1847 = vmatpush1.msra.mxu0 0.0
      %1848 = vmatprep.subr.mxu0 0.0
      %1849 = vmatpush1.msra.mxu0 0.0
      %1850 = vmatprep.subr.mxu0 0.0
      %1851 = vmatpush1.msra.mxu0 0.0
      %1852 = vmatprep.subr.mxu0 0.0
      %1853 = vmatpush1.msra.mxu0 0.0
      %1854 = vmatprep.subr.mxu0 0.0
      %1855 = vmatpush1.msra.mxu0 0.0
      %1856 = vmatprep.subr.mxu0 0.0
      %1857 = vmatpush1.msra.mxu0 0.0
      %1858 = vmatprep.subr.mxu0 0.0
      %1859 = vmatpush1.msra.mxu0 0.0
      %1860 = vmatprep.subr.mxu0 0.0
      %1861 = vmatpush1.msra.mxu0 0.0
      %1862 = vmatprep.subr.mxu0 0.0
      %1863 = vmatpush1.msra.mxu0 0.0
      %1864 = vmatprep.mubr.f32.mxu0 0.0
      %1865 = vmatmul.mubr.f32.gmra.mrb[0].mxu0 %v1255
      %v1866 = vpop.f32.mrb[0].mxu0
      %v1867 = vadd.f32 %v1027, %v1866
      %v1868 = vpop.f32.mrb[0].mxu0
      %1869 = vmatprep.mubr.f32.mxu0 0.0
      %1870 = vmatmul.mubr.f32.gmra.mrb[0].mxu0 %v1258
      %v1871 = vpop.f32.mrb[0].mxu0
      %v1872 = vadd.f32 %v1027, %v1871
      %v1873 = vpop.f32.mrb[0].mxu0
      %1874 = vmatprep.mubr.f32.mxu0 0.0
      %1875 = vmatmul.mubr.f32.gmra.mrb[0].mxu0 %v1261
      %v1876 = vpop.f32.mrb[0].mxu0
      %v1877 = vadd.f32 %v1027, %v1876
      %v1878 = vpop.f32.mrb[0].mxu0
      %1879 = vmatprep.mubr.f32.mxu0 0.0
      %1880 = vmatmul.mubr.f32.gmra.mrb[0].mxu0 %v1264
      %v1881 = vpop.f32.mrb[0].mxu0
      %v1882 = vadd.f32 %v1027, %v1881
      %v1883 = vpop.f32.mrb[0].mxu0
      %1884 = vmatprep.mubr.f32.mxu0 0.0
      %1885 = vmatmul.mubr.f32.gmra.mrb[0].mxu0 %v1267
      %v1886 = vpop.f32.mrb[0].mxu0
      %v1887 = vadd.f32 %v1027, %v1886
      %v1888 = vpop.f32.mrb[0].mxu0
      %1889 = vmatprep.mubr.f32.mxu0 0.0
      %1890 = vmatmul.mubr.f32.gmra.mrb[0].mxu0 %v1270
      %v1891 = vpop.f32.mrb[0].mxu0
      %v1892 = vadd.f32 %v1027, %v1891
      %v1893 = vpop.f32.mrb[0].mxu0
      %1894 = vmatprep.mubr.f32.mxu0 0.0
      %1895 = vmatmul.mubr.f32.gmra.mrb[0].mxu0 %v1273
      %v1896 = vpop.f32.mrb[0].mxu0
      %v1897 = vadd.f32 %v1027, %v1896
      %v1898 = vpop.f32.mrb[0].mxu0
      %1899 = vmatprep.mubr.f32.mxu0 0.0
      %1900 = vmatmul.mubr.f32.gmra.mrb[0].mxu0 %v1276
      %v1901 = vpop.f32.mrb[0].mxu0
      %v1902 = vadd.f32 %v1027, %v1901
      %v1903 = vpop.f32.mrb[0].mxu0
      %1904 = vmatprep.mubr.f32.mxu0 0.0
      %1905 = vmatmul.mubr.f32.gmra.mrb[0].mxu0 %v1279
      %v1906 = vpop.f32.mrb[0].mxu0
      %v1907 = vadd.f32 %v1027, %v1906
      %v1908 = vpop.f32.mrb[0].mxu0
      %1909 = vmatprep.mubr.f32.mxu0 0.0
      %1910 = vmatmul.mubr.f32.gmra.mrb[0].mxu0 %v1282
      %v1911 = vpop.f32.mrb[0].mxu0
      %v1912 = vadd.f32 %v1027, %v1911
      %v1913 = vpop.f32.mrb[0].mxu0
      %1914 = vmatprep.mubr.f32.mxu0 0.0
      %1915 = vmatmul.mubr.f32.gmra.mrb[0].mxu0 %v1285
      %v1916 = vpop.f32.mrb[0].mxu0
      %v1917 = vadd.f32 %v1027, %v1916
      %v1918 = vpop.f32.mrb[0].mxu0
      %1919 = vmatprep.mubr.f32.mxu0 0.0
      %1920 = vmatmul.mubr.f32.gmra.mrb[0].mxu0 %v1288
      %v1921 = vpop.f32.mrb[0].mxu0
      %v1922 = vadd.f32 %v1027, %v1921
      %v1923 = vpop.f32.mrb[0].mxu0
      %1924 = vmatprep.mubr.f32.mxu0 0.0
      %1925 = vmatmul.mubr.f32.gmra.mrb[0].mxu0 %v1291
      %v1926 = vpop.f32.mrb[0].mxu0
      %v1927 = vadd.f32 %v1027, %v1926
      %v1928 = vpop.f32.mrb[0].mxu0
      %1929 = vmatprep.mubr.f32.mxu0 0.0
      %1930 = vmatmul.mubr.f32.gmra.mrb[0].mxu0 %v1294
      %v1931 = vpop.f32.mrb[0].mxu0
      %v1932 = vadd.f32 %v1027, %v1931
      %v1933 = vpop.f32.mrb[0].mxu0
      %1934 = vmatprep.mubr.f32.mxu0 0.0
      %1935 = vmatmul.mubr.f32.gmra.mrb[0].mxu0 %v1297
      %v1936 = vpop.f32.mrb[0].mxu0
      %v1937 = vadd.f32 %v1027, %v1936
      %v1938 = vpop.f32.mrb[0].mxu0
      %1939 = vmatprep.mubr.f32.mxu0 0.0
      %1940 = vmatmul.mubr.f32.gmra.mrb[0].mxu0 %v1300
      %v1941 = vpop.f32.mrb[0].mxu0
      %v1942 = vadd.f32 %v1027, %v1941
      %v1943 = vpop.f32.mrb[0].mxu0
      %1944 = vmatprep.mubr.f32.mxu0 0.0
      %1945 = vmatmul.mubr.f32.gmra.mrb[0].mxu0 %v1303
      %v1946 = vpop.f32.mrb[0].mxu0
      %v1947 = vadd.f32 %v1027, %v1946
      %v1948 = vpop.f32.mrb[0].mxu0
      %1949 = vmatprep.mubr.f32.mxu0 0.0
      %1950 = vmatmul.mubr.f32.gmra.mrb[0].mxu0 %v1306
      %v1951 = vpop.f32.mrb[0].mxu0
      %v1952 = vadd.f32 %v1027, %v1951
      %v1953 = vpop.f32.mrb[0].mxu0
      %1954 = vmatprep.mubr.f32.mxu0 0.0
      %1955 = vmatmul.mubr.f32.gmra.mrb[0].mxu0 %v1309
      %v1956 = vpop.f32.mrb[0].mxu0
      %v1957 = vadd.f32 %v1027, %v1956
      %v1958 = vpop.f32.mrb[0].mxu0
      %1959 = vmatprep.mubr.f32.mxu0 0.0
      %1960 = vmatmul.mubr.f32.gmra.mrb[0].mxu0 %v1312
      %v1961 = vpop.f32.mrb[0].mxu0
      %v1962 = vadd.f32 %v1027, %v1961
      %v1963 = vpop.f32.mrb[0].mxu0
      %1964 = vmatprep.mubr.f32.mxu0 0.0
      %1965 = vmatmul.mubr.f32.gmra.mrb[0].mxu0 %v1315
      %v1966 = vpop.f32.mrb[0].mxu0
      %v1967 = vadd.f32 %v1027, %v1966
      %v1968 = vpop.f32.mrb[0].mxu0
      %1969 = vmatprep.mubr.f32.mxu0 0.0
      %1970 = vmatmul.mubr.f32.gmra.mrb[0].mxu0 %v1318
      %v1971 = vpop.f32.mrb[0].mxu0
      %v1972 = vadd.f32 %v1027, %v1971
      %v1973 = vpop.f32.mrb[0].mxu0
      %1974 = vmatprep.mubr.f32.mxu0 0.0
      %1975 = vmatmul.mubr.f32.gmra.mrb[0].mxu0 %v1321
      %v1976 = vpop.f32.mrb[0].mxu0
      %v1977 = vadd.f32 %v1027, %v1976
      %v1978 = vpop.f32.mrb[0].mxu0
      %1979 = vmatprep.mubr.f32.mxu0 0.0
      %1980 = vmatmul.mubr.f32.gmra.mrb[0].mxu0 %v1324
      %v1981 = vpop.f32.mrb[0].mxu0
      %v1982 = vadd.f32 %v1027, %v1981
      %v1983 = vpop.f32.mrb[0].mxu0
      %1984 = vmatprep.mubr.f32.mxu0 0.0
      %1985 = vmatmul.mubr.f32.gmra.mrb[0].mxu0 %v1327
      %v1986 = vpop.f32.mrb[0].mxu0
      %v1987 = vadd.f32 %v1027, %v1986
      %v1988 = vpop.f32.mrb[0].mxu0
      %1989 = vmatprep.mubr.f32.mxu0 0.0
      %1990 = vmatmul.mubr.f32.gmra.mrb[0].mxu0 %v1330
      %v1991 = vpop.f32.mrb[0].mxu0
      %v1992 = vadd.f32 %v1027, %v1991
      %v1993 = vpop.f32.mrb[0].mxu0
      %1994 = vmatprep.mubr.f32.mxu0 0.0
      %1995 = vmatmul.mubr.f32.gmra.mrb[0].mxu0 %v1333
      %v1996 = vpop.f32.mrb[0].mxu0
      %v1997 = vadd.f32 %v1027, %v1996
      %v1998 = vpop.f32.mrb[0].mxu0
      %1999 = vmatprep.mubr.f32.mxu0 0.0
      %2000 = vmatmul.mubr.f32.gmra.mrb[0].mxu0 %v1336
      %v2001 = vpop.f32.mrb[0].mxu0
      %v2002 = vadd.f32 %v1027, %v2001
      %v2003 = vpop.f32.mrb[0].mxu0
      %2004 = vmatprep.mubr.f32.mxu0 0.0
      %2005 = vmatmul.mubr.f32.gmra.mrb[0].mxu0 %v1339
      %v2006 = vpop.f32.mrb[0].mxu0
      %v2007 = vadd.f32 %v1027, %v2006
      %v2008 = vpop.f32.mrb[0].mxu0
      %2009 = vmatprep.mubr.f32.mxu0 0.0
      %2010 = vmatmul.mubr.f32.gmra.mrb[0].mxu0 %v1342
      %v2011 = vpop.f32.mrb[0].mxu0
      %v2012 = vadd.f32 %v1027, %v2011
      %v2013 = vpop.f32.mrb[0].mxu0
      %2014 = vmatprep.mubr.f32.mxu0 0.0
      %2015 = vmatmul.mubr.f32.gmra.mrb[0].mxu0 %v1345
      %v2016 = vpop.f32.mrb[0].mxu0
      %v2017 = vadd.f32 %v1027, %v2016
      %v2018 = vpop.f32.mrb[0].mxu0
      %2019 = vmatprep.mubr.f32.mxu0 0.0
      %2020 = vmatmul.mubr.f32.gmra.mrb[0].mxu0 %v1348
      %v2021 = vpop.f32.mrb[0].mxu0
      %v2022 = vadd.f32 %v1027, %v2021
      %v2023 = vpop.f32.mrb[0].mxu0
      %2024 = vdwg.mxu0
      %vm2025 = vcmask 15360
      %v2027 = vsel %vm2025, %v634, 0
      %v2030 = vsel %vm2025, %v639, 0
      %v2033 = vsel %vm2025, %v865, 0
      %v2036 = vsel %vm2025, %v870, 0
      %2038 = vmatprep.subr.mxu0 0.0
      %2039 = vmatpush1.xpose.msra.mxu0 %v2033
      %2040 = vmatprep.subr.mxu0 0.0
      %2041 = vmatpush1.xpose.msra.mxu0 %v2036
      %2042 = vmatprep.subr.mxu0 0.0
      %2043 = vmatpush1.xpose.msra.mxu0 0.0
      %2044 = vmatprep.subr.mxu0 0.0
      %2045 = vmatpush1.xpose.msra.mxu0 0.0
      %2046 = vmatprep.subr.mxu0 0.0
      %2047 = vmatpush1.xpose.msra.mxu0 0.0
      %2048 = vmatprep.subr.mxu0 0.0
      %2049 = vmatpush1.xpose.msra.mxu0 0.0
      %2050 = vmatprep.subr.mxu0 0.0
      %2051 = vmatpush1.xpose.msra.mxu0 0.0
      %2052 = vmatprep.subr.mxu0 0.0
      %2053 = vmatpush1.xpose.msra.mxu0 0.0
      %2054 = vmatprep.subr.mxu0 0.0
      %2055 = vmatpush1.xpose.msra.mxu0 0.0
      %2056 = vmatprep.subr.mxu0 0.0
      %2057 = vmatpush1.xpose.msra.mxu0 0.0
      %2058 = vmatprep.subr.mxu0 0.0
      %2059 = vmatpush1.xpose.msra.mxu0 0.0
      %2060 = vmatprep.subr.mxu0 0.0
      %2061 = vmatpush1.xpose.msra.mxu0 0.0
      %2062 = vmatprep.subr.mxu0 0.0
      %2063 = vmatpush1.xpose.msra.mxu0 0.0
      %2064 = vmatprep.subr.mxu0 0.0
      %2065 = vmatpush1.xpose.msra.mxu0 0.0
      %2066 = vmatprep.subr.mxu0 0.0
      %2067 = vmatpush1.xpose.msra.mxu0 0.0
      %2068 = vmatprep.subr.mxu0 0.0
      %2069 = vmatpush1.xpose.msra.mxu0 0.0
      %2070 = vmatprep.subr.mxu0 0.0
      %2071 = vmatpush1.xpose.msra.mxu0 0.0
      %2072 = vmatprep.subr.mxu0 0.0
      %2073 = vmatpush1.xpose.msra.mxu0 0.0
      %2074 = vmatprep.subr.mxu0 0.0
      %2075 = vmatpush1.xpose.msra.mxu0 0.0
      %2076 = vmatprep.subr.mxu0 0.0
      %2077 = vmatpush1.xpose.msra.mxu0 0.0
      %2078 = vmatprep.subr.mxu0 0.0
      %2079 = vmatpush1.xpose.msra.mxu0 0.0
      %2080 = vmatprep.subr.mxu0 0.0
      %2081 = vmatpush1.xpose.msra.mxu0 0.0
      %2082 = vmatprep.subr.mxu0 0.0
      %2083 = vmatpush1.xpose.msra.mxu0 0.0
      %2084 = vmatprep.subr.mxu0 0.0
      %2085 = vmatpush1.xpose.msra.mxu0 0.0
      %2086 = vmatprep.subr.mxu0 0.0
      %2087 = vmatpush1.xpose.msra.mxu0 0.0
      %2088 = vmatprep.subr.mxu0 0.0
      %2089 = vmatpush1.xpose.msra.mxu0 0.0
      %2090 = vmatprep.subr.mxu0 0.0
      %2091 = vmatpush1.xpose.msra.mxu0 0.0
      %2092 = vmatprep.subr.mxu0 0.0
      %2093 = vmatpush1.xpose.msra.mxu0 0.0
      %2094 = vmatprep.subr.mxu0 0.0
      %2095 = vmatpush1.xpose.msra.mxu0 0.0
      %2096 = vmatprep.subr.mxu0 0.0
      %2097 = vmatpush1.xpose.msra.mxu0 0.0
      %2098 = vmatprep.subr.mxu0 0.0
      %2099 = vmatpush1.xpose.msra.mxu0 0.0
      %2100 = vmatprep.subr.mxu0 0.0
      %2101 = vmatpush1.xpose.msra.mxu0 0.0
      %2102 = vmatprep.mubr.f32.mxu0 0.0
      %2103 = vmatmul.mubr.f32.gmra.mrb[0].mxu0 %v2027
      %v2104 = vpop.f32.mrb[0].mxu0
      %v2105 = vadd.f32 0.0, %v2104
      %v2106 = vpop.f32.mrb[0].mxu0
      %2107 = vmatprep.mubr.f32.mxu0 0.0
      %2108 = vmatmul.mubr.f32.gmra.mrb[0].mxu0 %v2030
      %v2109 = vpop.f32.mrb[0].mxu0
      %v2110 = vadd.f32 0.0, %v2109
      %v2111 = vpop.f32.mrb[0].mxu0
      %2112 = vdwg.mxu0
      %v2114 = vsel %vm2025, %v644, 0
      %v2117 = vsel %vm2025, %v649, 0
      %v2120 = vsel %vm2025, %v875, 0
      %v2123 = vsel %vm2025, %v880, 0
      %2125 = vmatprep.subr.mxu0 0.0
      %2126 = vmatpush1.xpose.msra.mxu0 %v2120
      %2127 = vmatprep.subr.mxu0 0.0
      %2128 = vmatpush1.xpose.msra.mxu0 %v2123
      %2129 = vmatprep.subr.mxu0 0.0
      %2130 = vmatpush1.xpose.msra.mxu0 0.0
      %2131 = vmatprep.subr.mxu0 0.0
      %2132 = vmatpush1.xpose.msra.mxu0 0.0
      %2133 = vmatprep.subr.mxu0 0.0
      %2134 = vmatpush1.xpose.msra.mxu0 0.0
      %2135 = vmatprep.subr.mxu0 0.0
      %2136 = vmatpush1.xpose.msra.mxu0 0.0
      %2137 = vmatprep.subr.mxu0 0.0
      %2138 = vmatpush1.xpose.msra.mxu0 0.0
      %2139 = vmatprep.subr.mxu0 0.0
      %2140 = vmatpush1.xpose.msra.mxu0 0.0
      %2141 = vmatprep.subr.mxu0 0.0
      %2142 = vmatpush1.xpose.msra.mxu0 0.0
      %2143 = vmatprep.subr.mxu0 0.0
      %2144 = vmatpush1.xpose.msra.mxu0 0.0
      %2145 = vmatprep.subr.mxu0 0.0
      %2146 = vmatpush1.xpose.msra.mxu0 0.0
      %2147 = vmatprep.subr.mxu0 0.0
      %2148 = vmatpush1.xpose.msra.mxu0 0.0
      %2149 = vmatprep.subr.mxu0 0.0
      %2150 = vmatpush1.xpose.msra.mxu0 0.0
      %2151 = vmatprep.subr.mxu0 0.0
      %2152 = vmatpush1.xpose.msra.mxu0 0.0
      %2153 = vmatprep.subr.mxu0 0.0
      %2154 = vmatpush1.xpose.msra.mxu0 0.0
      %2155 = vmatprep.subr.mxu0 0.0
      %2156 = vmatpush1.xpose.msra.mxu0 0.0
      %2157 = vmatprep.subr.mxu0 0.0
      %2158 = vmatpush1.xpose.msra.mxu0 0.0
      %2159 = vmatprep.subr.mxu0 0.0
      %2160 = vmatpush1.xpose.msra.mxu0 0.0
      %2161 = vmatprep.subr.mxu0 0.0
      %2162 = vmatpush1.xpose.msra.mxu0 0.0
      %2163 = vmatprep.subr.mxu0 0.0
      %2164 = vmatpush1.xpose.msra.mxu0 0.0
      %2165 = vmatprep.subr.mxu0 0.0
      %2166 = vmatpush1.xpose.msra.mxu0 0.0
      %2167 = vmatprep.subr.mxu0 0.0
      %2168 = vmatpush1.xpose.msra.mxu0 0.0
      %2169 = vmatprep.subr.mxu0 0.0
      %2170 = vmatpush1.xpose.msra.mxu0 0.0
      %2171 = vmatprep.subr.mxu0 0.0
      %2172 = vmatpush1.xpose.msra.mxu0 0.0
      %2173 = vmatprep.subr.mxu0 0.0
      %2174 = vmatpush1.xpose.msra.mxu0 0.0
      %2175 = vmatprep.subr.mxu0 0.0
      %2176 = vmatpush1.xpose.msra.mxu0 0.0
      %2177 = vmatprep.subr.mxu0 0.0
      %2178 = vmatpush1.xpose.msra.mxu0 0.0
      %2179 = vmatprep.subr.mxu0 0.0
      %2180 = vmatpush1.xpose.msra.mxu0 0.0
      %2181 = vmatprep.subr.mxu0 0.0
      %2182 = vmatpush1.xpose.msra.mxu0 0.0
      %2183 = vmatprep.subr.mxu0 0.0
      %2184 = vmatpush1.xpose.msra.mxu0 0.0
      %2185 = vmatprep.subr.mxu0 0.0
      %2186 = vmatpush1.xpose.msra.mxu0 0.0
      %2187 = vmatprep.subr.mxu0 0.0
      %2188 = vmatpush1.xpose.msra.mxu0 0.0
      %2189 = vmatprep.mubr.f32.mxu0 0.0
      %2190 = vmatmul.mubr.f32.gmra.mrb[0].mxu0 %v2114
      %v2191 = vpop.f32.mrb[0].mxu0
      %v2192 = vadd.f32 0.0, %v2191
      %v2193 = vpop.f32.mrb[0].mxu0
      %2194 = vmatprep.mubr.f32.mxu0 0.0
      %2195 = vmatmul.mubr.f32.gmra.mrb[0].mxu0 %v2117
      %v2196 = vpop.f32.mrb[0].mxu0
      %v2197 = vadd.f32 0.0, %v2196
      %v2198 = vpop.f32.mrb[0].mxu0
      %2199 = vdwg.mxu0
      %v2201 = vsel %vm2025, %v654, 0
      %v2204 = vsel %vm2025, %v659, 0
      %v2207 = vsel %vm2025, %v885, 0
      %v2210 = vsel %vm2025, %v890, 0
      %2212 = vmatprep.subr.mxu0 0.0
      %2213 = vmatpush1.xpose.msra.mxu0 %v2207
      %2214 = vmatprep.subr.mxu0 0.0
      %2215 = vmatpush1.xpose.msra.mxu0 %v2210
      %2216 = vmatprep.subr.mxu0 0.0
      %2217 = vmatpush1.xpose.msra.mxu0 0.0
      %2218 = vmatprep.subr.mxu0 0.0
      %2219 = vmatpush1.xpose.msra.mxu0 0.0
      %2220 = vmatprep.subr.mxu0 0.0
      %2221 = vmatpush1.xpose.msra.mxu0 0.0
      %2222 = vmatprep.subr.mxu0 0.0
      %2223 = vmatpush1.xpose.msra.mxu0 0.0
      %2224 = vmatprep.subr.mxu0 0.0
      %2225 = vmatpush1.xpose.msra.mxu0 0.0
      %2226 = vmatprep.subr.mxu0 0.0
      %2227 = vmatpush1.xpose.msra.mxu0 0.0
      %2228 = vmatprep.subr.mxu0 0.0
      %2229 = vmatpush1.xpose.msra.mxu0 0.0
      %2230 = vmatprep.subr.mxu0 0.0
      %2231 = vmatpush1.xpose.msra.mxu0 0.0
      %2232 = vmatprep.subr.mxu0 0.0
      %2233 = vmatpush1.xpose.msra.mxu0 0.0
      %2234 = vmatprep.subr.mxu0 0.0
      %2235 = vmatpush1.xpose.msra.mxu0 0.0
      %2236 = vmatprep.subr.mxu0 0.0
      %2237 = vmatpush1.xpose.msra.mxu0 0.0
      %2238 = vmatprep.subr.mxu0 0.0
      %2239 = vmatpush1.xpose.msra.mxu0 0.0
      %2240 = vmatprep.subr.mxu0 0.0
      %2241 = vmatpush1.xpose.msra.mxu0 0.0
      %2242 = vmatprep.subr.mxu0 0.0
      %2243 = vmatpush1.xpose.msra.mxu0 0.0
      %2244 = vmatprep.subr.mxu0 0.0
      %2245 = vmatpush1.xpose.msra.mxu0 0.0
      %2246 = vmatprep.subr.mxu0 0.0
      %2247 = vmatpush1.xpose.msra.mxu0 0.0
      %2248 = vmatprep.subr.mxu0 0.0
      %2249 = vmatpush1.xpose.msra.mxu0 0.0
      %2250 = vmatprep.subr.mxu0 0.0
      %2251 = vmatpush1.xpose.msra.mxu0 0.0
      %2252 = vmatprep.subr.mxu0 0.0
      %2253 = vmatpush1.xpose.msra.mxu0 0.0
      %2254 = vmatprep.subr.mxu0 0.0
      %2255 = vmatpush1.xpose.msra.mxu0 0.0
      %2256 = vmatprep.subr.mxu0 0.0
      %2257 = vmatpush1.xpose.msra.mxu0 0.0
      %2258 = vmatprep.subr.mxu0 0.0
      %2259 = vmatpush1.xpose.msra.mxu0 0.0
      %2260 = vmatprep.subr.mxu0 0.0
      %2261 = vmatpush1.xpose.msra.mxu0 0.0
      %2262 = vmatprep.subr.mxu0 0.0
      %2263 = vmatpush1.xpose.msra.mxu0 0.0
      %2264 = vmatprep.subr.mxu0 0.0
      %2265 = vmatpush1.xpose.msra.mxu0 0.0
      %2266 = vmatprep.subr.mxu0 0.0
      %2267 = vmatpush1.xpose.msra.mxu0 0.0
      %2268 = vmatprep.subr.mxu0 0.0
      %2269 = vmatpush1.xpose.msra.mxu0 0.0
      %2270 = vmatprep.subr.mxu0 0.0
      %2271 = vmatpush1.xpose.msra.mxu0 0.0
      %2272 = vmatprep.subr.mxu0 0.0
      %2273 = vmatpush1.xpose.msra.mxu0 0.0
      %2274 = vmatprep.subr.mxu0 0.0
      %2275 = vmatpush1.xpose.msra.mxu0 0.0
      %2276 = vmatprep.mubr.f32.mxu0 0.0
      %2277 = vmatmul.mubr.f32.gmra.mrb[0].mxu0 %v2201
      %v2278 = vpop.f32.mrb[0].mxu0
      %v2279 = vadd.f32 0.0, %v2278
      %v2280 = vpop.f32.mrb[0].mxu0
      %2281 = vmatprep.mubr.f32.mxu0 0.0
      %2282 = vmatmul.mubr.f32.gmra.mrb[0].mxu0 %v2204
      %v2283 = vpop.f32.mrb[0].mxu0
      %v2284 = vadd.f32 0.0, %v2283
      %v2285 = vpop.f32.mrb[0].mxu0
      %2286 = vdwg.mxu0
      %v2288 = vsel %vm2025, %v664, 0
      %v2291 = vsel %vm2025, %v669, 0
      %v2294 = vsel %vm2025, %v895, 0
      %v2297 = vsel %vm2025, %v900, 0
      %2299 = vmatprep.subr.mxu0 0.0
      %2300 = vmatpush1.xpose.msra.mxu0 %v2294
      %2301 = vmatprep.subr.mxu0 0.0
      %2302 = vmatpush1.xpose.msra.mxu0 %v2297
      %2303 = vmatprep.subr.mxu0 0.0
      %2304 = vmatpush1.xpose.msra.mxu0 0.0
      %2305 = vmatprep.subr.mxu0 0.0
      %2306 = vmatpush1.xpose.msra.mxu0 0.0
      %2307 = vmatprep.subr.mxu0 0.0
      %2308 = vmatpush1.xpose.msra.mxu0 0.0
      %2309 = vmatprep.subr.mxu0 0.0
      %2310 = vmatpush1.xpose.msra.mxu0 0.0
      %2311 = vmatprep.subr.mxu0 0.0
      %2312 = vmatpush1.xpose.msra.mxu0 0.0
      %2313 = vmatprep.subr.mxu0 0.0
      %2314 = vmatpush1.xpose.msra.mxu0 0.0
      %2315 = vmatprep.subr.mxu0 0.0
      %2316 = vmatpush1.xpose.msra.mxu0 0.0
      %2317 = vmatprep.subr.mxu0 0.0
      %2318 = vmatpush1.xpose.msra.mxu0 0.0
      %2319 = vmatprep.subr.mxu0 0.0
      %2320 = vmatpush1.xpose.msra.mxu0 0.0
      %2321 = vmatprep.subr.mxu0 0.0
      %2322 = vmatpush1.xpose.msra.mxu0 0.0
      %2323 = vmatprep.subr.mxu0 0.0
      %2324 = vmatpush1.xpose.msra.mxu0 0.0
      %2325 = vmatprep.subr.mxu0 0.0
      %2326 = vmatpush1.xpose.msra.mxu0 0.0
      %2327 = vmatprep.subr.mxu0 0.0
      %2328 = vmatpush1.xpose.msra.mxu0 0.0
      %2329 = vmatprep.subr.mxu0 0.0
      %2330 = vmatpush1.xpose.msra.mxu0 0.0
      %2331 = vmatprep.subr.mxu0 0.0
      %2332 = vmatpush1.xpose.msra.mxu0 0.0
      %2333 = vmatprep.subr.mxu0 0.0
      %2334 = vmatpush1.xpose.msra.mxu0 0.0
      %2335 = vmatprep.subr.mxu0 0.0
      %2336 = vmatpush1.xpose.msra.mxu0 0.0
      %2337 = vmatprep.subr.mxu0 0.0
      %2338 = vmatpush1.xpose.msra.mxu0 0.0
      %2339 = vmatprep.subr.mxu0 0.0
      %2340 = vmatpush1.xpose.msra.mxu0 0.0
      %2341 = vmatprep.subr.mxu0 0.0
      %2342 = vmatpush1.xpose.msra.mxu0 0.0
      %2343 = vmatprep.subr.mxu0 0.0
      %2344 = vmatpush1.xpose.msra.mxu0 0.0
      %2345 = vmatprep.subr.mxu0 0.0
      %2346 = vmatpush1.xpose.msra.mxu0 0.0
      %2347 = vmatprep.subr.mxu0 0.0
      %2348 = vmatpush1.xpose.msra.mxu0 0.0
      %2349 = vmatprep.subr.mxu0 0.0
      %2350 = vmatpush1.xpose.msra.mxu0 0.0
      %2351 = vmatprep.subr.mxu0 0.0
      %2352 = vmatpush1.xpose.msra.mxu0 0.0
      %2353 = vmatprep.subr.mxu0 0.0
      %2354 = vmatpush1.xpose.msra.mxu0 0.0
      %2355 = vmatprep.subr.mxu0 0.0
      %2356 = vmatpush1.xpose.msra.mxu0 0.0
      %2357 = vmatprep.subr.mxu0 0.0
      %2358 = vmatpush1.xpose.msra.mxu0 0.0
      %2359 = vmatprep.subr.mxu0 0.0
      %2360 = vmatpush1.xpose.msra.mxu0 0.0
      %2361 = vmatprep.subr.mxu0 0.0
      %2362 = vmatpush1.xpose.msra.mxu0 0.0
      %2363 = vmatprep.mubr.f32.mxu0 0.0
      %2364 = vmatmul.mubr.f32.gmra.mrb[0].mxu0 %v2288
      %v2365 = vpop.f32.mrb[0].mxu0
      %v2366 = vadd.f32 0.0, %v2365
      %v2367 = vpop.f32.mrb[0].mxu0
      %2368 = vmatprep.mubr.f32.mxu0 0.0
      %2369 = vmatmul.mubr.f32.gmra.mrb[0].mxu0 %v2291
      %v2370 = vpop.f32.mrb[0].mxu0
      %v2371 = vadd.f32 0.0, %v2370
      %v2372 = vpop.f32.mrb[0].mxu0
      %2373 = vdwg.mxu0
      %v2375 = vsel %vm2025, %v674, 0
      %v2378 = vsel %vm2025, %v679, 0
      %v2381 = vsel %vm2025, %v905, 0
      %v2384 = vsel %vm2025, %v910, 0
      %2386 = vmatprep.subr.mxu0 0.0
      %2387 = vmatpush1.xpose.msra.mxu0 %v2381
      %2388 = vmatprep.subr.mxu0 0.0
      %2389 = vmatpush1.xpose.msra.mxu0 %v2384
      %2390 = vmatprep.subr.mxu0 0.0
      %2391 = vmatpush1.xpose.msra.mxu0 0.0
      %2392 = vmatprep.subr.mxu0 0.0
      %2393 = vmatpush1.xpose.msra.mxu0 0.0
      %2394 = vmatprep.subr.mxu0 0.0
      %2395 = vmatpush1.xpose.msra.mxu0 0.0
      %2396 = vmatprep.subr.mxu0 0.0
      %2397 = vmatpush1.xpose.msra.mxu0 0.0
      %2398 = vmatprep.subr.mxu0 0.0
      %2399 = vmatpush1.xpose.msra.mxu0 0.0
      %2400 = vmatprep.subr.mxu0 0.0
      %2401 = vmatpush1.xpose.msra.mxu0 0.0
      %2402 = vmatprep.subr.mxu0 0.0
      %2403 = vmatpush1.xpose.msra.mxu0 0.0
      %2404 = vmatprep.subr.mxu0 0.0
      %2405 = vmatpush1.xpose.msra.mxu0 0.0
      %2406 = vmatprep.subr.mxu0 0.0
      %2407 = vmatpush1.xpose.msra.mxu0 0.0
      %2408 = vmatprep.subr.mxu0 0.0
      %2409 = vmatpush1.xpose.msra.mxu0 0.0
      %2410 = vmatprep.subr.mxu0 0.0
      %2411 = vmatpush1.xpose.msra.mxu0 0.0
      %2412 = vmatprep.subr.mxu0 0.0
      %2413 = vmatpush1.xpose.msra.mxu0 0.0
      %2414 = vmatprep.subr.mxu0 0.0
      %2415 = vmatpush1.xpose.msra.mxu0 0.0
      %2416 = vmatprep.subr.mxu0 0.0
      %2417 = vmatpush1.xpose.msra.mxu0 0.0
      %2418 = vmatprep.subr.mxu0 0.0
      %2419 = vmatpush1.xpose.msra.mxu0 0.0
      %2420 = vmatprep.subr.mxu0 0.0
      %2421 = vmatpush1.xpose.msra.mxu0 0.0
      %2422 = vmatprep.subr.mxu0 0.0
      %2423 = vmatpush1.xpose.msra.mxu0 0.0
      %2424 = vmatprep.subr.mxu0 0.0
      %2425 = vmatpush1.xpose.msra.mxu0 0.0
      %2426 = vmatprep.subr.mxu0 0.0
      %2427 = vmatpush1.xpose.msra.mxu0 0.0
      %2428 = vmatprep.subr.mxu0 0.0
      %2429 = vmatpush1.xpose.msra.mxu0 0.0
      %2430 = vmatprep.subr.mxu0 0.0
      %2431 = vmatpush1.xpose.msra.mxu0 0.0
      %2432 = vmatprep.subr.mxu0 0.0
      %2433 = vmatpush1.xpose.msra.mxu0 0.0
      %2434 = vmatprep.subr.mxu0 0.0
      %2435 = vmatpush1.xpose.msra.mxu0 0.0
      %2436 = vmatprep.subr.mxu0 0.0
      %2437 = vmatpush1.xpose.msra.mxu0 0.0
      %2438 = vmatprep.subr.mxu0 0.0
      %2439 = vmatpush1.xpose.msra.mxu0 0.0
      %2440 = vmatprep.subr.mxu0 0.0
      %2441 = vmatpush1.xpose.msra.mxu0 0.0
      %2442 = vmatprep.subr.mxu0 0.0
      %2443 = vmatpush1.xpose.msra.mxu0 0.0
      %2444 = vmatprep.subr.mxu0 0.0
      %2445 = vmatpush1.xpose.msra.mxu0 0.0
      %2446 = vmatprep.subr.mxu0 0.0
      %2447 = vmatpush1.xpose.msra.mxu0 0.0
      %2448 = vmatprep.subr.mxu0 0.0
      %2449 = vmatpush1.xpose.msra.mxu0 0.0
      %2450 = vmatprep.mubr.f32.mxu0 0.0
      %2451 = vmatmul.mubr.f32.gmra.mrb[0].mxu0 %v2375
      %v2452 = vpop.f32.mrb[0].mxu0
      %v2453 = vadd.f32 0.0, %v2452
      %v2454 = vpop.f32.mrb[0].mxu0
      %2455 = vmatprep.mubr.f32.mxu0 0.0
      %2456 = vmatmul.mubr.f32.gmra.mrb[0].mxu0 %v2378
      %v2457 = vpop.f32.mrb[0].mxu0
      %v2458 = vadd.f32 0.0, %v2457
      %v2459 = vpop.f32.mrb[0].mxu0
      %2460 = vdwg.mxu0
      %v2462 = vsel %vm2025, %v684, 0
      %v2465 = vsel %vm2025, %v689, 0
      %v2468 = vsel %vm2025, %v915, 0
      %v2471 = vsel %vm2025, %v920, 0
      %2473 = vmatprep.subr.mxu0 0.0
      %2474 = vmatpush1.xpose.msra.mxu0 %v2468
      %2475 = vmatprep.subr.mxu0 0.0
      %2476 = vmatpush1.xpose.msra.mxu0 %v2471
      %2477 = vmatprep.subr.mxu0 0.0
      %2478 = vmatpush1.xpose.msra.mxu0 0.0
      %2479 = vmatprep.subr.mxu0 0.0
      %2480 = vmatpush1.xpose.msra.mxu0 0.0
      %2481 = vmatprep.subr.mxu0 0.0
      %2482 = vmatpush1.xpose.msra.mxu0 0.0
      %2483 = vmatprep.subr.mxu0 0.0
      %2484 = vmatpush1.xpose.msra.mxu0 0.0
      %2485 = vmatprep.subr.mxu0 0.0
      %2486 = vmatpush1.xpose.msra.mxu0 0.0
      %2487 = vmatprep.subr.mxu0 0.0
      %2488 = vmatpush1.xpose.msra.mxu0 0.0
      %2489 = vmatprep.subr.mxu0 0.0
      %2490 = vmatpush1.xpose.msra.mxu0 0.0
      %2491 = vmatprep.subr.mxu0 0.0
      %2492 = vmatpush1.xpose.msra.mxu0 0.0
      %2493 = vmatprep.subr.mxu0 0.0
      %2494 = vmatpush1.xpose.msra.mxu0 0.0
      %2495 = vmatprep.subr.mxu0 0.0
      %2496 = vmatpush1.xpose.msra.mxu0 0.0
      %2497 = vmatprep.subr.mxu0 0.0
      %2498 = vmatpush1.xpose.msra.mxu0 0.0
      %2499 = vmatprep.subr.mxu0 0.0
      %2500 = vmatpush1.xpose.msra.mxu0 0.0
      %2501 = vmatprep.subr.mxu0 0.0
      %2502 = vmatpush1.xpose.msra.mxu0 0.0
      %2503 = vmatprep.subr.mxu0 0.0
      %2504 = vmatpush1.xpose.msra.mxu0 0.0
      %2505 = vmatprep.subr.mxu0 0.0
      %2506 = vmatpush1.xpose.msra.mxu0 0.0
      %2507 = vmatprep.subr.mxu0 0.0
      %2508 = vmatpush1.xpose.msra.mxu0 0.0
      %2509 = vmatprep.subr.mxu0 0.0
      %2510 = vmatpush1.xpose.msra.mxu0 0.0
      %2511 = vmatprep.subr.mxu0 0.0
      %2512 = vmatpush1.xpose.msra.mxu0 0.0
      %2513 = vmatprep.subr.mxu0 0.0
      %2514 = vmatpush1.xpose.msra.mxu0 0.0
      %2515 = vmatprep.subr.mxu0 0.0
      %2516 = vmatpush1.xpose.msra.mxu0 0.0
      %2517 = vmatprep.subr.mxu0 0.0
      %2518 = vmatpush1.xpose.msra.mxu0 0.0
      %2519 = vmatprep.subr.mxu0 0.0
      %2520 = vmatpush1.xpose.msra.mxu0 0.0
      %2521 = vmatprep.subr.mxu0 0.0
      %2522 = vmatpush1.xpose.msra.mxu0 0.0
      %2523 = vmatprep.subr.mxu0 0.0
      %2524 = vmatpush1.xpose.msra.mxu0 0.0
      %2525 = vmatprep.subr.mxu0 0.0
      %2526 = vmatpush1.xpose.msra.mxu0 0.0
      %2527 = vmatprep.subr.mxu0 0.0
      %2528 = vmatpush1.xpose.msra.mxu0 0.0
      %2529 = vmatprep.subr.mxu0 0.0
      %2530 = vmatpush1.xpose.msra.mxu0 0.0
      %2531 = vmatprep.subr.mxu0 0.0
      %2532 = vmatpush1.xpose.msra.mxu0 0.0
      %2533 = vmatprep.subr.mxu0 0.0
      %2534 = vmatpush1.xpose.msra.mxu0 0.0
      %2535 = vmatprep.subr.mxu0 0.0
      %2536 = vmatpush1.xpose.msra.mxu0 0.0
      %2537 = vmatprep.mubr.f32.mxu0 0.0
      %2538 = vmatmul.mubr.f32.gmra.mrb[0].mxu0 %v2462
      %v2539 = vpop.f32.mrb[0].mxu0
      %v2540 = vadd.f32 0.0, %v2539
      %v2541 = vpop.f32.mrb[0].mxu0
      %2542 = vmatprep.mubr.f32.mxu0 0.0
      %2543 = vmatmul.mubr.f32.gmra.mrb[0].mxu0 %v2465
      %v2544 = vpop.f32.mrb[0].mxu0
      %v2545 = vadd.f32 0.0, %v2544
      %v2546 = vpop.f32.mrb[0].mxu0
      %2547 = vdwg.mxu0
      %v2549 = vsel %vm2025, %v694, 0
      %v2552 = vsel %vm2025, %v699, 0
      %v2555 = vsel %vm2025, %v925, 0
      %v2558 = vsel %vm2025, %v930, 0
      %2560 = vmatprep.subr.mxu0 0.0
      %2561 = vmatpush1.xpose.msra.mxu0 %v2555
      %2562 = vmatprep.subr.mxu0 0.0
      %2563 = vmatpush1.xpose.msra.mxu0 %v2558
      %2564 = vmatprep.subr.mxu0 0.0
      %2565 = vmatpush1.xpose.msra.mxu0 0.0
      %2566 = vmatprep.subr.mxu0 0.0
      %2567 = vmatpush1.xpose.msra.mxu0 0.0
      %2568 = vmatprep.subr.mxu0 0.0
      %2569 = vmatpush1.xpose.msra.mxu0 0.0
      %2570 = vmatprep.subr.mxu0 0.0
      %2571 = vmatpush1.xpose.msra.mxu0 0.0
      %2572 = vmatprep.subr.mxu0 0.0
      %2573 = vmatpush1.xpose.msra.mxu0 0.0
      %2574 = vmatprep.subr.mxu0 0.0
      %2575 = vmatpush1.xpose.msra.mxu0 0.0
      %2576 = vmatprep.subr.mxu0 0.0
      %2577 = vmatpush1.xpose.msra.mxu0 0.0
      %2578 = vmatprep.subr.mxu0 0.0
      %2579 = vmatpush1.xpose.msra.mxu0 0.0
      %2580 = vmatprep.subr.mxu0 0.0
      %2581 = vmatpush1.xpose.msra.mxu0 0.0
      %2582 = vmatprep.subr.mxu0 0.0
      %2583 = vmatpush1.xpose.msra.mxu0 0.0
      %2584 = vmatprep.subr.mxu0 0.0
      %2585 = vmatpush1.xpose.msra.mxu0 0.0
      %2586 = vmatprep.subr.mxu0 0.0
      %2587 = vmatpush1.xpose.msra.mxu0 0.0
      %2588 = vmatprep.subr.mxu0 0.0
      %2589 = vmatpush1.xpose.msra.mxu0 0.0
      %2590 = vmatprep.subr.mxu0 0.0
      %2591 = vmatpush1.xpose.msra.mxu0 0.0
      %2592 = vmatprep.subr.mxu0 0.0
      %2593 = vmatpush1.xpose.msra.mxu0 0.0
      %2594 = vmatprep.subr.mxu0 0.0
      %2595 = vmatpush1.xpose.msra.mxu0 0.0
      %2596 = vmatprep.subr.mxu0 0.0
      %2597 = vmatpush1.xpose.msra.mxu0 0.0
      %2598 = vmatprep.subr.mxu0 0.0
      %2599 = vmatpush1.xpose.msra.mxu0 0.0
      %2600 = vmatprep.subr.mxu0 0.0
      %2601 = vmatpush1.xpose.msra.mxu0 0.0
      %2602 = vmatprep.subr.mxu0 0.0
      %2603 = vmatpush1.xpose.msra.mxu0 0.0
      %2604 = vmatprep.subr.mxu0 0.0
      %2605 = vmatpush1.xpose.msra.mxu0 0.0
      %2606 = vmatprep.subr.mxu0 0.0
      %2607 = vmatpush1.xpose.msra.mxu0 0.0
      %2608 = vmatprep.subr.mxu0 0.0
      %2609 = vmatpush1.xpose.msra.mxu0 0.0
      %2610 = vmatprep.subr.mxu0 0.0
      %2611 = vmatpush1.xpose.msra.mxu0 0.0
      %2612 = vmatprep.subr.mxu0 0.0
      %2613 = vmatpush1.xpose.msra.mxu0 0.0
      %2614 = vmatprep.subr.mxu0 0.0
      %2615 = vmatpush1.xpose.msra.mxu0 0.0
      %2616 = vmatprep.subr.mxu0 0.0
      %2617 = vmatpush1.xpose.msra.mxu0 0.0
      %2618 = vmatprep.subr.mxu0 0.0
      %2619 = vmatpush1.xpose.msra.mxu0 0.0
      %2620 = vmatprep.subr.mxu0 0.0
      %2621 = vmatpush1.xpose.msra.mxu0 0.0
      %2622 = vmatprep.subr.mxu0 0.0
      %2623 = vmatpush1.xpose.msra.mxu0 0.0
      %2624 = vmatprep.mubr.f32.mxu0 0.0
      %2625 = vmatmul.mubr.f32.gmra.mrb[0].mxu0 %v2549
      %v2626 = vpop.f32.mrb[0].mxu0
      %v2627 = vadd.f32 0.0, %v2626
      %v2628 = vpop.f32.mrb[0].mxu0
      %2629 = vmatprep.mubr.f32.mxu0 0.0
      %2630 = vmatmul.mubr.f32.gmra.mrb[0].mxu0 %v2552
      %v2631 = vpop.f32.mrb[0].mxu0
      %v2632 = vadd.f32 0.0, %v2631
      %v2633 = vpop.f32.mrb[0].mxu0
      %2634 = vdwg.mxu0
      %v2636 = vsel %vm2025, %v704, 0
      %v2639 = vsel %vm2025, %v709, 0
      %v2642 = vsel %vm2025, %v935, 0
      %v2645 = vsel %vm2025, %v940, 0
      %2647 = vmatprep.subr.mxu0 0.0
      %2648 = vmatpush1.xpose.msra.mxu0 %v2642
      %2649 = vmatprep.subr.mxu0 0.0
      %2650 = vmatpush1.xpose.msra.mxu0 %v2645
      %2651 = vmatprep.subr.mxu0 0.0
      %2652 = vmatpush1.xpose.msra.mxu0 0.0
      %2653 = vmatprep.subr.mxu0 0.0
      %2654 = vmatpush1.xpose.msra.mxu0 0.0
      %2655 = vmatprep.subr.mxu0 0.0
      %2656 = vmatpush1.xpose.msra.mxu0 0.0
      %2657 = vmatprep.subr.mxu0 0.0
      %2658 = vmatpush1.xpose.msra.mxu0 0.0
      %2659 = vmatprep.subr.mxu0 0.0
      %2660 = vmatpush1.xpose.msra.mxu0 0.0
      %2661 = vmatprep.subr.mxu0 0.0
      %2662 = vmatpush1.xpose.msra.mxu0 0.0
      %2663 = vmatprep.subr.mxu0 0.0
      %2664 = vmatpush1.xpose.msra.mxu0 0.0
      %2665 = vmatprep.subr.mxu0 0.0
      %2666 = vmatpush1.xpose.msra.mxu0 0.0
      %2667 = vmatprep.subr.mxu0 0.0
      %2668 = vmatpush1.xpose.msra.mxu0 0.0
      %2669 = vmatprep.subr.mxu0 0.0
      %2670 = vmatpush1.xpose.msra.mxu0 0.0
      %2671 = vmatprep.subr.mxu0 0.0
      %2672 = vmatpush1.xpose.msra.mxu0 0.0
      %2673 = vmatprep.subr.mxu0 0.0
      %2674 = vmatpush1.xpose.msra.mxu0 0.0
      %2675 = vmatprep.subr.mxu0 0.0
      %2676 = vmatpush1.xpose.msra.mxu0 0.0
      %2677 = vmatprep.subr.mxu0 0.0
      %2678 = vmatpush1.xpose.msra.mxu0 0.0
      %2679 = vmatprep.subr.mxu0 0.0
      %2680 = vmatpush1.xpose.msra.mxu0 0.0
      %2681 = vmatprep.subr.mxu0 0.0
      %2682 = vmatpush1.xpose.msra.mxu0 0.0
      %2683 = vmatprep.subr.mxu0 0.0
      %2684 = vmatpush1.xpose.msra.mxu0 0.0
      %2685 = vmatprep.subr.mxu0 0.0
      %2686 = vmatpush1.xpose.msra.mxu0 0.0
      %2687 = vmatprep.subr.mxu0 0.0
      %2688 = vmatpush1.xpose.msra.mxu0 0.0
      %2689 = vmatprep.subr.mxu0 0.0
      %2690 = vmatpush1.xpose.msra.mxu0 0.0
      %2691 = vmatprep.subr.mxu0 0.0
      %2692 = vmatpush1.xpose.msra.mxu0 0.0
      %2693 = vmatprep.subr.mxu0 0.0
      %2694 = vmatpush1.xpose.msra.mxu0 0.0
      %2695 = vmatprep.subr.mxu0 0.0
      %2696 = vmatpush1.xpose.msra.mxu0 0.0
      %2697 = vmatprep.subr.mxu0 0.0
      %2698 = vmatpush1.xpose.msra.mxu0 0.0
      %2699 = vmatprep.subr.mxu0 0.0
      %2700 = vmatpush1.xpose.msra.mxu0 0.0
      %2701 = vmatprep.subr.mxu0 0.0
      %2702 = vmatpush1.xpose.msra.mxu0 0.0
      %2703 = vmatprep.subr.mxu0 0.0
      %2704 = vmatpush1.xpose.msra.mxu0 0.0
      %2705 = vmatprep.subr.mxu0 0.0
      %2706 = vmatpush1.xpose.msra.mxu0 0.0
      %2707 = vmatprep.subr.mxu0 0.0
      %2708 = vmatpush1.xpose.msra.mxu0 0.0
      %2709 = vmatprep.subr.mxu0 0.0
      %2710 = vmatpush1.xpose.msra.mxu0 0.0
      %2711 = vmatprep.mubr.f32.mxu0 0.0
      %2712 = vmatmul.mubr.f32.gmra.mrb[0].mxu0 %v2636
      %v2713 = vpop.f32.mrb[0].mxu0
      %v2714 = vadd.f32 0.0, %v2713
      %v2715 = vpop.f32.mrb[0].mxu0
      %2716 = vmatprep.mubr.f32.mxu0 0.0
      %2717 = vmatmul.mubr.f32.gmra.mrb[0].mxu0 %v2639
      %v2718 = vpop.f32.mrb[0].mxu0
      %v2719 = vadd.f32 0.0, %v2718
      %v2720 = vpop.f32.mrb[0].mxu0
      %2721 = vdwg.mxu0
      %v2723 = vsel %vm2025, %v714, 0
      %v2726 = vsel %vm2025, %v719, 0
      %v2729 = vsel %vm2025, %v945, 0
      %v2732 = vsel %vm2025, %v950, 0
      %2734 = vmatprep.subr.mxu0 0.0
      %2735 = vmatpush1.xpose.msra.mxu0 %v2729
      %2736 = vmatprep.subr.mxu0 0.0
      %2737 = vmatpush1.xpose.msra.mxu0 %v2732
      %2738 = vmatprep.subr.mxu0 0.0
      %2739 = vmatpush1.xpose.msra.mxu0 0.0
      %2740 = vmatprep.subr.mxu0 0.0
      %2741 = vmatpush1.xpose.msra.mxu0 0.0
      %2742 = vmatprep.subr.mxu0 0.0
      %2743 = vmatpush1.xpose.msra.mxu0 0.0
      %2744 = vmatprep.subr.mxu0 0.0
      %2745 = vmatpush1.xpose.msra.mxu0 0.0
      %2746 = vmatprep.subr.mxu0 0.0
      %2747 = vmatpush1.xpose.msra.mxu0 0.0
      %2748 = vmatprep.subr.mxu0 0.0
      %2749 = vmatpush1.xpose.msra.mxu0 0.0
      %2750 = vmatprep.subr.mxu0 0.0
      %2751 = vmatpush1.xpose.msra.mxu0 0.0
      %2752 = vmatprep.subr.mxu0 0.0
      %2753 = vmatpush1.xpose.msra.mxu0 0.0
      %2754 = vmatprep.subr.mxu0 0.0
      %2755 = vmatpush1.xpose.msra.mxu0 0.0
      %2756 = vmatprep.subr.mxu0 0.0
      %2757 = vmatpush1.xpose.msra.mxu0 0.0
      %2758 = vmatprep.subr.mxu0 0.0
      %2759 = vmatpush1.xpose.msra.mxu0 0.0
      %2760 = vmatprep.subr.mxu0 0.0
      %2761 = vmatpush1.xpose.msra.mxu0 0.0
      %2762 = vmatprep.subr.mxu0 0.0
      %2763 = vmatpush1.xpose.msra.mxu0 0.0
      %2764 = vmatprep.subr.mxu0 0.0
      %2765 = vmatpush1.xpose.msra.mxu0 0.0
      %2766 = vmatprep.subr.mxu0 0.0
      %2767 = vmatpush1.xpose.msra.mxu0 0.0
      %2768 = vmatprep.subr.mxu0 0.0
      %2769 = vmatpush1.xpose.msra.mxu0 0.0
      %2770 = vmatprep.subr.mxu0 0.0
      %2771 = vmatpush1.xpose.msra.mxu0 0.0
      %2772 = vmatprep.subr.mxu0 0.0
      %2773 = vmatpush1.xpose.msra.mxu0 0.0
      %2774 = vmatprep.subr.mxu0 0.0
      %2775 = vmatpush1.xpose.msra.mxu0 0.0
      %2776 = vmatprep.subr.mxu0 0.0
      %2777 = vmatpush1.xpose.msra.mxu0 0.0
      %2778 = vmatprep.subr.mxu0 0.0
      %2779 = vmatpush1.xpose.msra.mxu0 0.0
      %2780 = vmatprep.subr.mxu0 0.0
      %2781 = vmatpush1.xpose.msra.mxu0 0.0
      %2782 = vmatprep.subr.mxu0 0.0
      %2783 = vmatpush1.xpose.msra.mxu0 0.0
      %2784 = vmatprep.subr.mxu0 0.0
      %2785 = vmatpush1.xpose.msra.mxu0 0.0
      %2786 = vmatprep.subr.mxu0 0.0
      %2787 = vmatpush1.xpose.msra.mxu0 0.0
      %2788 = vmatprep.subr.mxu0 0.0
      %2789 = vmatpush1.xpose.msra.mxu0 0.0
      %2790 = vmatprep.subr.mxu0 0.0
      %2791 = vmatpush1.xpose.msra.mxu0 0.0
      %2792 = vmatprep.subr.mxu0 0.0
      %2793 = vmatpush1.xpose.msra.mxu0 0.0
      %2794 = vmatprep.subr.mxu0 0.0
      %2795 = vmatpush1.xpose.msra.mxu0 0.0
      %2796 = vmatprep.subr.mxu0 0.0
      %2797 = vmatpush1.xpose.msra.mxu0 0.0
      %2798 = vmatprep.mubr.f32.mxu0 0.0
      %2799 = vmatmul.mubr.f32.gmra.mrb[0].mxu0 %v2723
      %v2800 = vpop.f32.mrb[0].mxu0
      %v2801 = vadd.f32 0.0, %v2800
      %v2802 = vpop.f32.mrb[0].mxu0
      %2803 = vmatprep.mubr.f32.mxu0 0.0
      %2804 = vmatmul.mubr.f32.gmra.mrb[0].mxu0 %v2726
      %v2805 = vpop.f32.mrb[0].mxu0
      %v2806 = vadd.f32 0.0, %v2805
      %v2807 = vpop.f32.mrb[0].mxu0
      %2808 = vdwg.mxu0
      %v2810 = vsel %vm2025, %v724, 0
      %v2813 = vsel %vm2025, %v729, 0
      %v2816 = vsel %vm2025, %v955, 0
      %v2819 = vsel %vm2025, %v960, 0
      %2821 = vmatprep.subr.mxu0 0.0
      %2822 = vmatpush1.xpose.msra.mxu0 %v2816
      %2823 = vmatprep.subr.mxu0 0.0
      %2824 = vmatpush1.xpose.msra.mxu0 %v2819
      %2825 = vmatprep.subr.mxu0 0.0
      %2826 = vmatpush1.xpose.msra.mxu0 0.0
      %2827 = vmatprep.subr.mxu0 0.0
      %2828 = vmatpush1.xpose.msra.mxu0 0.0
      %2829 = vmatprep.subr.mxu0 0.0
      %2830 = vmatpush1.xpose.msra.mxu0 0.0
      %2831 = vmatprep.subr.mxu0 0.0
      %2832 = vmatpush1.xpose.msra.mxu0 0.0
      %2833 = vmatprep.subr.mxu0 0.0
      %2834 = vmatpush1.xpose.msra.mxu0 0.0
      %2835 = vmatprep.subr.mxu0 0.0
      %2836 = vmatpush1.xpose.msra.mxu0 0.0
      %2837 = vmatprep.subr.mxu0 0.0
      %2838 = vmatpush1.xpose.msra.mxu0 0.0
      %2839 = vmatprep.subr.mxu0 0.0
      %2840 = vmatpush1.xpose.msra.mxu0 0.0
      %2841 = vmatprep.subr.mxu0 0.0
      %2842 = vmatpush1.xpose.msra.mxu0 0.0
      %2843 = vmatprep.subr.mxu0 0.0
      %2844 = vmatpush1.xpose.msra.mxu0 0.0
      %2845 = vmatprep.subr.mxu0 0.0
      %2846 = vmatpush1.xpose.msra.mxu0 0.0
      %2847 = vmatprep.subr.mxu0 0.0
      %2848 = vmatpush1.xpose.msra.mxu0 0.0
      %2849 = vmatprep.subr.mxu0 0.0
      %2850 = vmatpush1.xpose.msra.mxu0 0.0
      %2851 = vmatprep.subr.mxu0 0.0
      %2852 = vmatpush1.xpose.msra.mxu0 0.0
      %2853 = vmatprep.subr.mxu0 0.0
      %2854 = vmatpush1.xpose.msra.mxu0 0.0
      %2855 = vmatprep.subr.mxu0 0.0
      %2856 = vmatpush1.xpose.msra.mxu0 0.0
      %2857 = vmatprep.subr.mxu0 0.0
      %2858 = vmatpush1.xpose.msra.mxu0 0.0
      %2859 = vmatprep.subr.mxu0 0.0
      %2860 = vmatpush1.xpose.msra.mxu0 0.0
      %2861 = vmatprep.subr.mxu0 0.0
      %2862 = vmatpush1.xpose.msra.mxu0 0.0
      %2863 = vmatprep.subr.mxu0 0.0
      %2864 = vmatpush1.xpose.msra.mxu0 0.0
      %2865 = vmatprep.subr.mxu0 0.0
      %2866 = vmatpush1.xpose.msra.mxu0 0.0
      %2867 = vmatprep.subr.mxu0 0.0
      %2868 = vmatpush1.xpose.msra.mxu0 0.0
      %2869 = vmatprep.subr.mxu0 0.0
      %2870 = vmatpush1.xpose.msra.mxu0 0.0
      %2871 = vmatprep.subr.mxu0 0.0
      %2872 = vmatpush1.xpose.msra.mxu0 0.0
      %2873 = vmatprep.subr.mxu0 0.0
      %2874 = vmatpush1.xpose.msra.mxu0 0.0
      %2875 = vmatprep.subr.mxu0 0.0
      %2876 = vmatpush1.xpose.msra.mxu0 0.0
      %2877 = vmatprep.subr.mxu0 0.0
      %2878 = vmatpush1.xpose.msra.mxu0 0.0
      %2879 = vmatprep.subr.mxu0 0.0
      %2880 = vmatpush1.xpose.msra.mxu0 0.0
      %2881 = vmatprep.subr.mxu0 0.0
      %2882 = vmatpush1.xpose.msra.mxu0 0.0
      %2883 = vmatprep.subr.mxu0 0.0
      %2884 = vmatpush1.xpose.msra.mxu0 0.0
      %2885 = vmatprep.mubr.f32.mxu0 0.0
      %2886 = vmatmul.mubr.f32.gmra.mrb[0].mxu0 %v2810
      %v2887 = vpop.f32.mrb[0].mxu0
      %v2888 = vadd.f32 0.0, %v2887
      %v2889 = vpop.f32.mrb[0].mxu0
      %2890 = vmatprep.mubr.f32.mxu0 0.0
      %2891 = vmatmul.mubr.f32.gmra.mrb[0].mxu0 %v2813
      %v2892 = vpop.f32.mrb[0].mxu0
      %v2893 = vadd.f32 0.0, %v2892
      %v2894 = vpop.f32.mrb[0].mxu0
      %2895 = vdwg.mxu0
      %v2897 = vsel %vm2025, %v734, 0
      %v2900 = vsel %vm2025, %v739, 0
      %v2903 = vsel %vm2025, %v965, 0
      %v2906 = vsel %vm2025, %v970, 0
      %2908 = vmatprep.subr.mxu0 0.0
      %2909 = vmatpush1.xpose.msra.mxu0 %v2903
      %2910 = vmatprep.subr.mxu0 0.0
      %2911 = vmatpush1.xpose.msra.mxu0 %v2906
      %2912 = vmatprep.subr.mxu0 0.0
      %2913 = vmatpush1.xpose.msra.mxu0 0.0
      %2914 = vmatprep.subr.mxu0 0.0
      %2915 = vmatpush1.xpose.msra.mxu0 0.0
      %2916 = vmatprep.subr.mxu0 0.0
      %2917 = vmatpush1.xpose.msra.mxu0 0.0
      %2918 = vmatprep.subr.mxu0 0.0
      %2919 = vmatpush1.xpose.msra.mxu0 0.0
      %2920 = vmatprep.subr.mxu0 0.0
      %2921 = vmatpush1.xpose.msra.mxu0 0.0
      %2922 = vmatprep.subr.mxu0 0.0
      %2923 = vmatpush1.xpose.msra.mxu0 0.0
      %2924 = vmatprep.subr.mxu0 0.0
      %2925 = vmatpush1.xpose.msra.mxu0 0.0
      %2926 = vmatprep.subr.mxu0 0.0
      %2927 = vmatpush1.xpose.msra.mxu0 0.0
      %2928 = vmatprep.subr.mxu0 0.0
      %2929 = vmatpush1.xpose.msra.mxu0 0.0
      %2930 = vmatprep.subr.mxu0 0.0
      %2931 = vmatpush1.xpose.msra.mxu0 0.0
      %2932 = vmatprep.subr.mxu0 0.0
      %2933 = vmatpush1.xpose.msra.mxu0 0.0
      %2934 = vmatprep.subr.mxu0 0.0
      %2935 = vmatpush1.xpose.msra.mxu0 0.0
      %2936 = vmatprep.subr.mxu0 0.0
      %2937 = vmatpush1.xpose.msra.mxu0 0.0
      %2938 = vmatprep.subr.mxu0 0.0
      %2939 = vmatpush1.xpose.msra.mxu0 0.0
      %2940 = vmatprep.subr.mxu0 0.0
      %2941 = vmatpush1.xpose.msra.mxu0 0.0
      %2942 = vmatprep.subr.mxu0 0.0
      %2943 = vmatpush1.xpose.msra.mxu0 0.0
      %2944 = vmatprep.subr.mxu0 0.0
      %2945 = vmatpush1.xpose.msra.mxu0 0.0
      %2946 = vmatprep.subr.mxu0 0.0
      %2947 = vmatpush1.xpose.msra.mxu0 0.0
      %2948 = vmatprep.subr.mxu0 0.0
      %2949 = vmatpush1.xpose.msra.mxu0 0.0
      %2950 = vmatprep.subr.mxu0 0.0
      %2951 = vmatpush1.xpose.msra.mxu0 0.0
      %2952 = vmatprep.subr.mxu0 0.0
      %2953 = vmatpush1.xpose.msra.mxu0 0.0
      %2954 = vmatprep.subr.mxu0 0.0
      %2955 = vmatpush1.xpose.msra.mxu0 0.0
      %2956 = vmatprep.subr.mxu0 0.0
      %2957 = vmatpush1.xpose.msra.mxu0 0.0
      %2958 = vmatprep.subr.mxu0 0.0
      %2959 = vmatpush1.xpose.msra.mxu0 0.0
      %2960 = vmatprep.subr.mxu0 0.0
      %2961 = vmatpush1.xpose.msra.mxu0 0.0
      %2962 = vmatprep.subr.mxu0 0.0
      %2963 = vmatpush1.xpose.msra.mxu0 0.0
      %2964 = vmatprep.subr.mxu0 0.0
      %2965 = vmatpush1.xpose.msra.mxu0 0.0
      %2966 = vmatprep.subr.mxu0 0.0
      %2967 = vmatpush1.xpose.msra.mxu0 0.0
      %2968 = vmatprep.subr.mxu0 0.0
      %2969 = vmatpush1.xpose.msra.mxu0 0.0
      %2970 = vmatprep.subr.mxu0 0.0
      %2971 = vmatpush1.xpose.msra.mxu0 0.0
      %2972 = vmatprep.mubr.f32.mxu0 0.0
      %2973 = vmatmul.mubr.f32.gmra.mrb[0].mxu0 %v2897
      %v2974 = vpop.f32.mrb[0].mxu0
      %v2975 = vadd.f32 0.0, %v2974
      %v2976 = vpop.f32.mrb[0].mxu0
      %2977 = vmatprep.mubr.f32.mxu0 0.0
      %2978 = vmatmul.mubr.f32.gmra.mrb[0].mxu0 %v2900
      %v2979 = vpop.f32.mrb[0].mxu0
      %v2980 = vadd.f32 0.0, %v2979
      %v2981 = vpop.f32.mrb[0].mxu0
      %2982 = vdwg.mxu0
      %v2984 = vsel %vm2025, %v744, 0
      %v2987 = vsel %vm2025, %v749, 0
      %v2990 = vsel %vm2025, %v975, 0
      %v2993 = vsel %vm2025, %v980, 0
      %2995 = vmatprep.subr.mxu0 0.0
      %2996 = vmatpush1.xpose.msra.mxu0 %v2990
      %2997 = vmatprep.subr.mxu0 0.0
      %2998 = vmatpush1.xpose.msra.mxu0 %v2993
      %2999 = vmatprep.subr.mxu0 0.0
      %3000 = vmatpush1.xpose.msra.mxu0 0.0
      %3001 = vmatprep.subr.mxu0 0.0
      %3002 = vmatpush1.xpose.msra.mxu0 0.0
      %3003 = vmatprep.subr.mxu0 0.0
      %3004 = vmatpush1.xpose.msra.mxu0 0.0
      %3005 = vmatprep.subr.mxu0 0.0
      %3006 = vmatpush1.xpose.msra.mxu0 0.0
      %3007 = vmatprep.subr.mxu0 0.0
      %3008 = vmatpush1.xpose.msra.mxu0 0.0
      %3009 = vmatprep.subr.mxu0 0.0
      %3010 = vmatpush1.xpose.msra.mxu0 0.0
      %3011 = vmatprep.subr.mxu0 0.0
      %3012 = vmatpush1.xpose.msra.mxu0 0.0
      %3013 = vmatprep.subr.mxu0 0.0
      %3014 = vmatpush1.xpose.msra.mxu0 0.0
      %3015 = vmatprep.subr.mxu0 0.0
      %3016 = vmatpush1.xpose.msra.mxu0 0.0
      %3017 = vmatprep.subr.mxu0 0.0
      %3018 = vmatpush1.xpose.msra.mxu0 0.0
      %3019 = vmatprep.subr.mxu0 0.0
      %3020 = vmatpush1.xpose.msra.mxu0 0.0
      %3021 = vmatprep.subr.mxu0 0.0
      %3022 = vmatpush1.xpose.msra.mxu0 0.0
      %3023 = vmatprep.subr.mxu0 0.0
      %3024 = vmatpush1.xpose.msra.mxu0 0.0
      %3025 = vmatprep.subr.mxu0 0.0
      %3026 = vmatpush1.xpose.msra.mxu0 0.0
      %3027 = vmatprep.subr.mxu0 0.0
      %3028 = vmatpush1.xpose.msra.mxu0 0.0
      %3029 = vmatprep.subr.mxu0 0.0
      %3030 = vmatpush1.xpose.msra.mxu0 0.0
      %3031 = vmatprep.subr.mxu0 0.0
      %3032 = vmatpush1.xpose.msra.mxu0 0.0
      %3033 = vmatprep.subr.mxu0 0.0
      %3034 = vmatpush1.xpose.msra.mxu0 0.0
      %3035 = vmatprep.subr.mxu0 0.0
      %3036 = vmatpush1.xpose.msra.mxu0 0.0
      %3037 = vmatprep.subr.mxu0 0.0
      %3038 = vmatpush1.xpose.msra.mxu0 0.0
      %3039 = vmatprep.subr.mxu0 0.0
      %3040 = vmatpush1.xpose.msra.mxu0 0.0
      %3041 = vmatprep.subr.mxu0 0.0
      %3042 = vmatpush1.xpose.msra.mxu0 0.0
      %3043 = vmatprep.subr.mxu0 0.0
      %3044 = vmatpush1.xpose.msra.mxu0 0.0
      %3045 = vmatprep.subr.mxu0 0.0
      %3046 = vmatpush1.xpose.msra.mxu0 0.0
      %3047 = vmatprep.subr.mxu0 0.0
      %3048 = vmatpush1.xpose.msra.mxu0 0.0
      %3049 = vmatprep.subr.mxu0 0.0
      %3050 = vmatpush1.xpose.msra.mxu0 0.0
      %3051 = vmatprep.subr.mxu0 0.0
      %3052 = vmatpush1.xpose.msra.mxu0 0.0
      %3053 = vmatprep.subr.mxu0 0.0
      %3054 = vmatpush1.xpose.msra.mxu0 0.0
      %3055 = vmatprep.subr.mxu0 0.0
      %3056 = vmatpush1.xpose.msra.mxu0 0.0
      %3057 = vmatprep.subr.mxu0 0.0
      %3058 = vmatpush1.xpose.msra.mxu0 0.0
      %3059 = vmatprep.mubr.f32.mxu0 0.0
      %3060 = vmatmul.mubr.f32.gmra.mrb[0].mxu0 %v2984
      %v3061 = vpop.f32.mrb[0].mxu0
      %v3062 = vadd.f32 0.0, %v3061
      %v3063 = vpop.f32.mrb[0].mxu0
      %3064 = vmatprep.mubr.f32.mxu0 0.0
      %3065 = vmatmul.mubr.f32.gmra.mrb[0].mxu0 %v2987
      %v3066 = vpop.f32.mrb[0].mxu0
      %v3067 = vadd.f32 0.0, %v3066
      %v3068 = vpop.f32.mrb[0].mxu0
      %3069 = vdwg.mxu0
      %v3071 = vsel %vm2025, %v754, 0
      %v3074 = vsel %vm2025, %v759, 0
      %v3077 = vsel %vm2025, %v985, 0
      %v3080 = vsel %vm2025, %v990, 0
      %3082 = vmatprep.subr.mxu0 0.0
      %3083 = vmatpush1.xpose.msra.mxu0 %v3077
      %3084 = vmatprep.subr.mxu0 0.0
      %3085 = vmatpush1.xpose.msra.mxu0 %v3080
      %3086 = vmatprep.subr.mxu0 0.0
      %3087 = vmatpush1.xpose.msra.mxu0 0.0
      %3088 = vmatprep.subr.mxu0 0.0
      %3089 = vmatpush1.xpose.msra.mxu0 0.0
      %3090 = vmatprep.subr.mxu0 0.0
      %3091 = vmatpush1.xpose.msra.mxu0 0.0
      %3092 = vmatprep.subr.mxu0 0.0
      %3093 = vmatpush1.xpose.msra.mxu0 0.0
      %3094 = vmatprep.subr.mxu0 0.0
      %3095 = vmatpush1.xpose.msra.mxu0 0.0
      %3096 = vmatprep.subr.mxu0 0.0
      %3097 = vmatpush1.xpose.msra.mxu0 0.0
      %3098 = vmatprep.subr.mxu0 0.0
      %3099 = vmatpush1.xpose.msra.mxu0 0.0
      %3100 = vmatprep.subr.mxu0 0.0
      %3101 = vmatpush1.xpose.msra.mxu0 0.0
      %3102 = vmatprep.subr.mxu0 0.0
      %3103 = vmatpush1.xpose.msra.mxu0 0.0
      %3104 = vmatprep.subr.mxu0 0.0
      %3105 = vmatpush1.xpose.msra.mxu0 0.0
      %3106 = vmatprep.subr.mxu0 0.0
      %3107 = vmatpush1.xpose.msra.mxu0 0.0
      %3108 = vmatprep.subr.mxu0 0.0
      %3109 = vmatpush1.xpose.msra.mxu0 0.0
      %3110 = vmatprep.subr.mxu0 0.0
      %3111 = vmatpush1.xpose.msra.mxu0 0.0
      %3112 = vmatprep.subr.mxu0 0.0
      %3113 = vmatpush1.xpose.msra.mxu0 0.0
      %3114 = vmatprep.subr.mxu0 0.0
      %3115 = vmatpush1.xpose.msra.mxu0 0.0
      %3116 = vmatprep.subr.mxu0 0.0
      %3117 = vmatpush1.xpose.msra.mxu0 0.0
      %3118 = vmatprep.subr.mxu0 0.0
      %3119 = vmatpush1.xpose.msra.mxu0 0.0
      %3120 = vmatprep.subr.mxu0 0.0
      %3121 = vmatpush1.xpose.msra.mxu0 0.0
      %3122 = vmatprep.subr.mxu0 0.0
      %3123 = vmatpush1.xpose.msra.mxu0 0.0
      %3124 = vmatprep.subr.mxu0 0.0
      %3125 = vmatpush1.xpose.msra.mxu0 0.0
      %3126 = vmatprep.subr.mxu0 0.0
      %3127 = vmatpush1.xpose.msra.mxu0 0.0
      %3128 = vmatprep.subr.mxu0 0.0
      %3129 = vmatpush1.xpose.msra.mxu0 0.0
      %3130 = vmatprep.subr.mxu0 0.0
      %3131 = vmatpush1.xpose.msra.mxu0 0.0
      %3132 = vmatprep.subr.mxu0 0.0
      %3133 = vmatpush1.xpose.msra.mxu0 0.0
      %3134 = vmatprep.subr.mxu0 0.0
      %3135 = vmatpush1.xpose.msra.mxu0 0.0
      %3136 = vmatprep.subr.mxu0 0.0
      %3137 = vmatpush1.xpose.msra.mxu0 0.0
      %3138 = vmatprep.subr.mxu0 0.0
      %3139 = vmatpush1.xpose.msra.mxu0 0.0
      %3140 = vmatprep.subr.mxu0 0.0
      %3141 = vmatpush1.xpose.msra.mxu0 0.0
      %3142 = vmatprep.subr.mxu0 0.0
      %3143 = vmatpush1.xpose.msra.mxu0 0.0
      %3144 = vmatprep.subr.mxu0 0.0
      %3145 = vmatpush1.xpose.msra.mxu0 0.0
      %3146 = vmatprep.mubr.f32.mxu0 0.0
      %3147 = vmatmul.mubr.f32.gmra.mrb[0].mxu0 %v3071
      %v3148 = vpop.f32.mrb[0].mxu0
      %v3149 = vadd.f32 0.0, %v3148
      %v3150 = vpop.f32.mrb[0].mxu0
      %3151 = vmatprep.mubr.f32.mxu0 0.0
      %3152 = vmatmul.mubr.f32.gmra.mrb[0].mxu0 %v3074
      %v3153 = vpop.f32.mrb[0].mxu0
      %v3154 = vadd.f32 0.0, %v3153
      %v3155 = vpop.f32.mrb[0].mxu0
      %3156 = vdwg.mxu0
      %v3158 = vsel %vm2025, %v764, 0
      %v3161 = vsel %vm2025, %v769, 0
      %v3164 = vsel %vm2025, %v995, 0
      %v3167 = vsel %vm2025, %v1000, 0
      %3169 = vmatprep.subr.mxu0 0.0
      %3170 = vmatpush1.xpose.msra.mxu0 %v3164
      %3171 = vmatprep.subr.mxu0 0.0
      %3172 = vmatpush1.xpose.msra.mxu0 %v3167
      %3173 = vmatprep.subr.mxu0 0.0
      %3174 = vmatpush1.xpose.msra.mxu0 0.0
      %3175 = vmatprep.subr.mxu0 0.0
      %3176 = vmatpush1.xpose.msra.mxu0 0.0
      %3177 = vmatprep.subr.mxu0 0.0
      %3178 = vmatpush1.xpose.msra.mxu0 0.0
      %3179 = vmatprep.subr.mxu0 0.0
      %3180 = vmatpush1.xpose.msra.mxu0 0.0
      %3181 = vmatprep.subr.mxu0 0.0
      %3182 = vmatpush1.xpose.msra.mxu0 0.0
      %3183 = vmatprep.subr.mxu0 0.0
      %3184 = vmatpush1.xpose.msra.mxu0 0.0
      %3185 = vmatprep.subr.mxu0 0.0
      %3186 = vmatpush1.xpose.msra.mxu0 0.0
      %3187 = vmatprep.subr.mxu0 0.0
      %3188 = vmatpush1.xpose.msra.mxu0 0.0
      %3189 = vmatprep.subr.mxu0 0.0
      %3190 = vmatpush1.xpose.msra.mxu0 0.0
      %3191 = vmatprep.subr.mxu0 0.0
      %3192 = vmatpush1.xpose.msra.mxu0 0.0
      %3193 = vmatprep.subr.mxu0 0.0
      %3194 = vmatpush1.xpose.msra.mxu0 0.0
      %3195 = vmatprep.subr.mxu0 0.0
      %3196 = vmatpush1.xpose.msra.mxu0 0.0
      %3197 = vmatprep.subr.mxu0 0.0
      %3198 = vmatpush1.xpose.msra.mxu0 0.0
      %3199 = vmatprep.subr.mxu0 0.0
      %3200 = vmatpush1.xpose.msra.mxu0 0.0
      %3201 = vmatprep.subr.mxu0 0.0
      %3202 = vmatpush1.xpose.msra.mxu0 0.0
      %3203 = vmatprep.subr.mxu0 0.0
      %3204 = vmatpush1.xpose.msra.mxu0 0.0
      %3205 = vmatprep.subr.mxu0 0.0
      %3206 = vmatpush1.xpose.msra.mxu0 0.0
      %3207 = vmatprep.subr.mxu0 0.0
      %3208 = vmatpush1.xpose.msra.mxu0 0.0
      %3209 = vmatprep.subr.mxu0 0.0
      %3210 = vmatpush1.xpose.msra.mxu0 0.0
      %3211 = vmatprep.subr.mxu0 0.0
      %3212 = vmatpush1.xpose.msra.mxu0 0.0
      %3213 = vmatprep.subr.mxu0 0.0
      %3214 = vmatpush1.xpose.msra.mxu0 0.0
      %3215 = vmatprep.subr.mxu0 0.0
      %3216 = vmatpush1.xpose.msra.mxu0 0.0
      %3217 = vmatprep.subr.mxu0 0.0
      %3218 = vmatpush1.xpose.msra.mxu0 0.0
      %3219 = vmatprep.subr.mxu0 0.0
      %3220 = vmatpush1.xpose.msra.mxu0 0.0
      %3221 = vmatprep.subr.mxu0 0.0
      %3222 = vmatpush1.xpose.msra.mxu0 0.0
      %3223 = vmatprep.subr.mxu0 0.0
      %3224 = vmatpush1.xpose.msra.mxu0 0.0
      %3225 = vmatprep.subr.mxu0 0.0
      %3226 = vmatpush1.xpose.msra.mxu0 0.0
      %3227 = vmatprep.subr.mxu0 0.0
      %3228 = vmatpush1.xpose.msra.mxu0 0.0
      %3229 = vmatprep.subr.mxu0 0.0
      %3230 = vmatpush1.xpose.msra.mxu0 0.0
      %3231 = vmatprep.subr.mxu0 0.0
      %3232 = vmatpush1.xpose.msra.mxu0 0.0
      %3233 = vmatprep.mubr.f32.mxu0 0.0
      %3234 = vmatmul.mubr.f32.gmra.mrb[0].mxu0 %v3158
      %v3235 = vpop.f32.mrb[0].mxu0
      %v3236 = vadd.f32 0.0, %v3235
      %v3237 = vpop.f32.mrb[0].mxu0
      %3238 = vmatprep.mubr.f32.mxu0 0.0
      %3239 = vmatmul.mubr.f32.gmra.mrb[0].mxu0 %v3161
      %v3240 = vpop.f32.mrb[0].mxu0
      %v3241 = vadd.f32 0.0, %v3240
      %v3242 = vpop.f32.mrb[0].mxu0
      %3243 = vdwg.mxu0
      %v3245 = vsel %vm2025, %v774, 0
      %v3248 = vsel %vm2025, %v779, 0
      %v3251 = vsel %vm2025, %v1005, 0
      %v3254 = vsel %vm2025, %v1010, 0
      %3256 = vmatprep.subr.mxu0 0.0
      %3257 = vmatpush1.xpose.msra.mxu0 %v3251
      %3258 = vmatprep.subr.mxu0 0.0
      %3259 = vmatpush1.xpose.msra.mxu0 %v3254
      %3260 = vmatprep.subr.mxu0 0.0
      %3261 = vmatpush1.xpose.msra.mxu0 0.0
      %3262 = vmatprep.subr.mxu0 0.0
      %3263 = vmatpush1.xpose.msra.mxu0 0.0
      %3264 = vmatprep.subr.mxu0 0.0
      %3265 = vmatpush1.xpose.msra.mxu0 0.0
      %3266 = vmatprep.subr.mxu0 0.0
      %3267 = vmatpush1.xpose.msra.mxu0 0.0
      %3268 = vmatprep.subr.mxu0 0.0
      %3269 = vmatpush1.xpose.msra.mxu0 0.0
      %3270 = vmatprep.subr.mxu0 0.0
      %3271 = vmatpush1.xpose.msra.mxu0 0.0
      %3272 = vmatprep.subr.mxu0 0.0
      %3273 = vmatpush1.xpose.msra.mxu0 0.0
      %3274 = vmatprep.subr.mxu0 0.0
      %3275 = vmatpush1.xpose.msra.mxu0 0.0
      %3276 = vmatprep.subr.mxu0 0.0
      %3277 = vmatpush1.xpose.msra.mxu0 0.0
      %3278 = vmatprep.subr.mxu0 0.0
      %3279 = vmatpush1.xpose.msra.mxu0 0.0
      %3280 = vmatprep.subr.mxu0 0.0
      %3281 = vmatpush1.xpose.msra.mxu0 0.0
      %3282 = vmatprep.subr.mxu0 0.0
      %3283 = vmatpush1.xpose.msra.mxu0 0.0
      %3284 = vmatprep.subr.mxu0 0.0
      %3285 = vmatpush1.xpose.msra.mxu0 0.0
      %3286 = vmatprep.subr.mxu0 0.0
      %3287 = vmatpush1.xpose.msra.mxu0 0.0
      %3288 = vmatprep.subr.mxu0 0.0
      %3289 = vmatpush1.xpose.msra.mxu0 0.0
      %3290 = vmatprep.subr.mxu0 0.0
      %3291 = vmatpush1.xpose.msra.mxu0 0.0
      %3292 = vmatprep.subr.mxu0 0.0
      %3293 = vmatpush1.xpose.msra.mxu0 0.0
      %3294 = vmatprep.subr.mxu0 0.0
      %3295 = vmatpush1.xpose.msra.mxu0 0.0
      %3296 = vmatprep.subr.mxu0 0.0
      %3297 = vmatpush1.xpose.msra.mxu0 0.0
      %3298 = vmatprep.subr.mxu0 0.0
      %3299 = vmatpush1.xpose.msra.mxu0 0.0
      %3300 = vmatprep.subr.mxu0 0.0
      %3301 = vmatpush1.xpose.msra.mxu0 0.0
      %3302 = vmatprep.subr.mxu0 0.0
      %3303 = vmatpush1.xpose.msra.mxu0 0.0
      %3304 = vmatprep.subr.mxu0 0.0
      %3305 = vmatpush1.xpose.msra.mxu0 0.0
      %3306 = vmatprep.subr.mxu0 0.0
      %3307 = vmatpush1.xpose.msra.mxu0 0.0
      %3308 = vmatprep.subr.mxu0 0.0
      %3309 = vmatpush1.xpose.msra.mxu0 0.0
      %3310 = vmatprep.subr.mxu0 0.0
      %3311 = vmatpush1.xpose.msra.mxu0 0.0
      %3312 = vmatprep.subr.mxu0 0.0
      %3313 = vmatpush1.xpose.msra.mxu0 0.0
      %3314 = vmatprep.subr.mxu0 0.0
      %3315 = vmatpush1.xpose.msra.mxu0 0.0
      %3316 = vmatprep.subr.mxu0 0.0
      %3317 = vmatpush1.xpose.msra.mxu0 0.0
      %3318 = vmatprep.subr.mxu0 0.0
      %3319 = vmatpush1.xpose.msra.mxu0 0.0
      %3320 = vmatprep.mubr.f32.mxu0 0.0
      %3321 = vmatmul.mubr.f32.gmra.mrb[0].mxu0 %v3245
      %v3322 = vpop.f32.mrb[0].mxu0
      %v3323 = vadd.f32 0.0, %v3322
      %v3324 = vpop.f32.mrb[0].mxu0
      %3325 = vmatprep.mubr.f32.mxu0 0.0
      %3326 = vmatmul.mubr.f32.gmra.mrb[0].mxu0 %v3248
      %v3327 = vpop.f32.mrb[0].mxu0
      %v3328 = vadd.f32 0.0, %v3327
      %v3329 = vpop.f32.mrb[0].mxu0
      %3330 = vdwg.mxu0
      %v3332 = vsel %vm2025, %v784, 0
      %v3335 = vsel %vm2025, %v789, 0
      %v3338 = vsel %vm2025, %v1015, 0
      %v3341 = vsel %vm2025, %v1020, 0
      %3343 = vmatprep.subr.mxu0 0.0
      %3344 = vmatpush1.xpose.msra.mxu0 %v3338
      %3345 = vmatprep.subr.mxu0 0.0
      %3346 = vmatpush1.xpose.msra.mxu0 %v3341
      %3347 = vmatprep.subr.mxu0 0.0
      %3348 = vmatpush1.xpose.msra.mxu0 0.0
      %3349 = vmatprep.subr.mxu0 0.0
      %3350 = vmatpush1.xpose.msra.mxu0 0.0
      %3351 = vmatprep.subr.mxu0 0.0
      %3352 = vmatpush1.xpose.msra.mxu0 0.0
      %3353 = vmatprep.subr.mxu0 0.0
      %3354 = vmatpush1.xpose.msra.mxu0 0.0
      %3355 = vmatprep.subr.mxu0 0.0
      %3356 = vmatpush1.xpose.msra.mxu0 0.0
      %3357 = vmatprep.subr.mxu0 0.0
      %3358 = vmatpush1.xpose.msra.mxu0 0.0
      %3359 = vmatprep.subr.mxu0 0.0
      %3360 = vmatpush1.xpose.msra.mxu0 0.0
      %3361 = vmatprep.subr.mxu0 0.0
      %3362 = vmatpush1.xpose.msra.mxu0 0.0
      %3363 = vmatprep.subr.mxu0 0.0
      %3364 = vmatpush1.xpose.msra.mxu0 0.0
      %3365 = vmatprep.subr.mxu0 0.0
      %3366 = vmatpush1.xpose.msra.mxu0 0.0
      %3367 = vmatprep.subr.mxu0 0.0
      %3368 = vmatpush1.xpose.msra.mxu0 0.0
      %3369 = vmatprep.subr.mxu0 0.0
      %3370 = vmatpush1.xpose.msra.mxu0 0.0
      %3371 = vmatprep.subr.mxu0 0.0
      %3372 = vmatpush1.xpose.msra.mxu0 0.0
      %3373 = vmatprep.subr.mxu0 0.0
      %3374 = vmatpush1.xpose.msra.mxu0 0.0
      %3375 = vmatprep.subr.mxu0 0.0
      %3376 = vmatpush1.xpose.msra.mxu0 0.0
      %3377 = vmatprep.subr.mxu0 0.0
      %3378 = vmatpush1.xpose.msra.mxu0 0.0
      %3379 = vmatprep.subr.mxu0 0.0
      %3380 = vmatpush1.xpose.msra.mxu0 0.0
      %3381 = vmatprep.subr.mxu0 0.0
      %3382 = vmatpush1.xpose.msra.mxu0 0.0
      %3383 = vmatprep.subr.mxu0 0.0
      %3384 = vmatpush1.xpose.msra.mxu0 0.0
      %3385 = vmatprep.subr.mxu0 0.0
      %3386 = vmatpush1.xpose.msra.mxu0 0.0
      %3387 = vmatprep.subr.mxu0 0.0
      %3388 = vmatpush1.xpose.msra.mxu0 0.0
      %3389 = vmatprep.subr.mxu0 0.0
      %3390 = vmatpush1.xpose.msra.mxu0 0.0
      %3391 = vmatprep.subr.mxu0 0.0
      %3392 = vmatpush1.xpose.msra.mxu0 0.0
      %3393 = vmatprep.subr.mxu0 0.0
      %3394 = vmatpush1.xpose.msra.mxu0 0.0
      %3395 = vmatprep.subr.mxu0 0.0
      %3396 = vmatpush1.xpose.msra.mxu0 0.0
      %3397 = vmatprep.subr.mxu0 0.0
      %3398 = vmatpush1.xpose.msra.mxu0 0.0
      %3399 = vmatprep.subr.mxu0 0.0
      %3400 = vmatpush1.xpose.msra.mxu0 0.0
      %3401 = vmatprep.subr.mxu0 0.0
      %3402 = vmatpush1.xpose.msra.mxu0 0.0
      %3403 = vmatprep.subr.mxu0 0.0
      %3404 = vmatpush1.xpose.msra.mxu0 0.0
      %3405 = vmatprep.subr.mxu0 0.0
      %3406 = vmatpush1.xpose.msra.mxu0 0.0
      %3407 = vmatprep.mubr.f32.mxu0 0.0
      %3408 = vmatmul.mubr.f32.gmra.mrb[0].mxu0 %v3332
      %v3409 = vpop.f32.mrb[0].mxu0
      %v3410 = vadd.f32 0.0, %v3409
      %v3411 = vpop.f32.mrb[0].mxu0
      %3412 = vmatprep.mubr.f32.mxu0 0.0
      %3413 = vmatmul.mubr.f32.gmra.mrb[0].mxu0 %v3335
      %v3414 = vpop.f32.mrb[0].mxu0
      %v3415 = vadd.f32 0.0, %v3414
      %v3416 = vpop.f32.mrb[0].mxu0
      %3417 = vdwg.mxu0
      %v3419 = vsel %vm2025, %v1417, 0
      %v3422 = vsel %vm2025, %v1422, 0
      %v3425 = vsel %vm2025, %v1642, 0
      %v3428 = vsel %vm2025, %v1647, 0
      %3430 = vmatprep.subr.mxu0 0.0
      %3431 = vmatpush1.xpose.msra.mxu0 %v3425
      %3432 = vmatprep.subr.mxu0 0.0
      %3433 = vmatpush1.xpose.msra.mxu0 %v3428
      %3434 = vmatprep.subr.mxu0 0.0
      %3435 = vmatpush1.xpose.msra.mxu0 0.0
      %3436 = vmatprep.subr.mxu0 0.0
      %3437 = vmatpush1.xpose.msra.mxu0 0.0
      %3438 = vmatprep.subr.mxu0 0.0
      %3439 = vmatpush1.xpose.msra.mxu0 0.0
      %3440 = vmatprep.subr.mxu0 0.0
      %3441 = vmatpush1.xpose.msra.mxu0 0.0
      %3442 = vmatprep.subr.mxu0 0.0
      %3443 = vmatpush1.xpose.msra.mxu0 0.0
      %3444 = vmatprep.subr.mxu0 0.0
      %3445 = vmatpush1.xpose.msra.mxu0 0.0
      %3446 = vmatprep.subr.mxu0 0.0
      %3447 = vmatpush1.xpose.msra.mxu0 0.0
      %3448 = vmatprep.subr.mxu0 0.0
      %3449 = vmatpush1.xpose.msra.mxu0 0.0
      %3450 = vmatprep.subr.mxu0 0.0
      %3451 = vmatpush1.xpose.msra.mxu0 0.0
      %3452 = vmatprep.subr.mxu0 0.0
      %3453 = vmatpush1.xpose.msra.mxu0 0.0
      %3454 = vmatprep.subr.mxu0 0.0
      %3455 = vmatpush1.xpose.msra.mxu0 0.0
      %3456 = vmatprep.subr.mxu0 0.0
      %3457 = vmatpush1.xpose.msra.mxu0 0.0
      %3458 = vmatprep.subr.mxu0 0.0
      %3459 = vmatpush1.xpose.msra.mxu0 0.0
      %3460 = vmatprep.subr.mxu0 0.0
      %3461 = vmatpush1.xpose.msra.mxu0 0.0
      %3462 = vmatprep.subr.mxu0 0.0
      %3463 = vmatpush1.xpose.msra.mxu0 0.0
      %3464 = vmatprep.subr.mxu0 0.0
      %3465 = vmatpush1.xpose.msra.mxu0 0.0
      %3466 = vmatprep.subr.mxu0 0.0
      %3467 = vmatpush1.xpose.msra.mxu0 0.0
      %3468 = vmatprep.subr.mxu0 0.0
      %3469 = vmatpush1.xpose.msra.mxu0 0.0
      %3470 = vmatprep.subr.mxu0 0.0
      %3471 = vmatpush1.xpose.msra.mxu0 0.0
      %3472 = vmatprep.subr.mxu0 0.0
      %3473 = vmatpush1.xpose.msra.mxu0 0.0
      %3474 = vmatprep.subr.mxu0 0.0
      %3475 = vmatpush1.xpose.msra.mxu0 0.0
      %3476 = vmatprep.subr.mxu0 0.0
      %3477 = vmatpush1.xpose.msra.mxu0 0.0
      %3478 = vmatprep.subr.mxu0 0.0
      %3479 = vmatpush1.xpose.msra.mxu0 0.0
      %3480 = vmatprep.subr.mxu0 0.0
      %3481 = vmatpush1.xpose.msra.mxu0 0.0
      %3482 = vmatprep.subr.mxu0 0.0
      %3483 = vmatpush1.xpose.msra.mxu0 0.0
      %3484 = vmatprep.subr.mxu0 0.0
      %3485 = vmatpush1.xpose.msra.mxu0 0.0
      %3486 = vmatprep.subr.mxu0 0.0
      %3487 = vmatpush1.xpose.msra.mxu0 0.0
      %3488 = vmatprep.subr.mxu0 0.0
      %3489 = vmatpush1.xpose.msra.mxu0 0.0
      %3490 = vmatprep.subr.mxu0 0.0
      %3491 = vmatpush1.xpose.msra.mxu0 0.0
      %3492 = vmatprep.subr.mxu0 0.0
      %3493 = vmatpush1.xpose.msra.mxu0 0.0
      %3494 = vmatprep.mubr.f32.mxu0 0.0
      %3495 = vmatmul.mubr.f32.gmra.mrb[0].mxu0 %v3419
      %v3496 = vpop.f32.mrb[0].mxu0
      %v3497 = vadd.f32 0.0, %v3496
      %v3498 = vpop.f32.mrb[0].mxu0
      %3499 = vmatprep.mubr.f32.mxu0 0.0
      %3500 = vmatmul.mubr.f32.gmra.mrb[0].mxu0 %v3422
      %v3501 = vpop.f32.mrb[0].mxu0
      %v3502 = vadd.f32 0.0, %v3501
      %v3503 = vpop.f32.mrb[0].mxu0
      %3504 = vdwg.mxu0
      %v3506 = vsel %vm2025, %v1427, 0
      %v3509 = vsel %vm2025, %v1432, 0
      %v3512 = vsel %vm2025, %v1652, 0
      %v3515 = vsel %vm2025, %v1657, 0
      %3517 = vmatprep.subr.mxu0 0.0
      %3518 = vmatpush1.xpose.msra.mxu0 %v3512
      %3519 = vmatprep.subr.mxu0 0.0
      %3520 = vmatpush1.xpose.msra.mxu0 %v3515
      %3521 = vmatprep.subr.mxu0 0.0
      %3522 = vmatpush1.xpose.msra.mxu0 0.0
      %3523 = vmatprep.subr.mxu0 0.0
      %3524 = vmatpush1.xpose.msra.mxu0 0.0
      %3525 = vmatprep.subr.mxu0 0.0
      %3526 = vmatpush1.xpose.msra.mxu0 0.0
      %3527 = vmatprep.subr.mxu0 0.0
      %3528 = vmatpush1.xpose.msra.mxu0 0.0
      %3529 = vmatprep.subr.mxu0 0.0
      %3530 = vmatpush1.xpose.msra.mxu0 0.0
      %3531 = vmatprep.subr.mxu0 0.0
      %3532 = vmatpush1.xpose.msra.mxu0 0.0
      %3533 = vmatprep.subr.mxu0 0.0
      %3534 = vmatpush1.xpose.msra.mxu0 0.0
      %3535 = vmatprep.subr.mxu0 0.0
      %3536 = vmatpush1.xpose.msra.mxu0 0.0
      %3537 = vmatprep.subr.mxu0 0.0
      %3538 = vmatpush1.xpose.msra.mxu0 0.0
      %3539 = vmatprep.subr.mxu0 0.0
      %3540 = vmatpush1.xpose.msra.mxu0 0.0
      %3541 = vmatprep.subr.mxu0 0.0
      %3542 = vmatpush1.xpose.msra.mxu0 0.0
      %3543 = vmatprep.subr.mxu0 0.0
      %3544 = vmatpush1.xpose.msra.mxu0 0.0
      %3545 = vmatprep.subr.mxu0 0.0
      %3546 = vmatpush1.xpose.msra.mxu0 0.0
      %3547 = vmatprep.subr.mxu0 0.0
      %3548 = vmatpush1.xpose.msra.mxu0 0.0
      %3549 = vmatprep.subr.mxu0 0.0
      %3550 = vmatpush1.xpose.msra.mxu0 0.0
      %3551 = vmatprep.subr.mxu0 0.0
      %3552 = vmatpush1.xpose.msra.mxu0 0.0
      %3553 = vmatprep.subr.mxu0 0.0
      %3554 = vmatpush1.xpose.msra.mxu0 0.0
      %3555 = vmatprep.subr.mxu0 0.0
      %3556 = vmatpush1.xpose.msra.mxu0 0.0
      %3557 = vmatprep.subr.mxu0 0.0
      %3558 = vmatpush1.xpose.msra.mxu0 0.0
      %3559 = vmatprep.subr.mxu0 0.0
      %3560 = vmatpush1.xpose.msra.mxu0 0.0
      %3561 = vmatprep.subr.mxu0 0.0
      %3562 = vmatpush1.xpose.msra.mxu0 0.0
      %3563 = vmatprep.subr.mxu0 0.0
      %3564 = vmatpush1.xpose.msra.mxu0 0.0
      %3565 = vmatprep.subr.mxu0 0.0
      %3566 = vmatpush1.xpose.msra.mxu0 0.0
      %3567 = vmatprep.subr.mxu0 0.0
      %3568 = vmatpush1.xpose.msra.mxu0 0.0
      %3569 = vmatprep.subr.mxu0 0.0
      %3570 = vmatpush1.xpose.msra.mxu0 0.0
      %3571 = vmatprep.subr.mxu0 0.0
      %3572 = vmatpush1.xpose.msra.mxu0 0.0
      %3573 = vmatprep.subr.mxu0 0.0
      %3574 = vmatpush1.xpose.msra.mxu0 0.0
      %3575 = vmatprep.subr.mxu0 0.0
      %3576 = vmatpush1.xpose.msra.mxu0 0.0
      %3577 = vmatprep.subr.mxu0 0.0
      %3578 = vmatpush1.xpose.msra.mxu0 0.0
      %3579 = vmatprep.subr.mxu0 0.0
      %3580 = vmatpush1.xpose.msra.mxu0 0.0
      %3581 = vmatprep.mubr.f32.mxu0 0.0
      %3582 = vmatmul.mubr.f32.gmra.mrb[0].mxu0 %v3506
      %v3583 = vpop.f32.mrb[0].mxu0
      %v3584 = vadd.f32 0.0, %v3583
      %v3585 = vpop.f32.mrb[0].mxu0
      %3586 = vmatprep.mubr.f32.mxu0 0.0
      %3587 = vmatmul.mubr.f32.gmra.mrb[0].mxu0 %v3509
      %v3588 = vpop.f32.mrb[0].mxu0
      %v3589 = vadd.f32 0.0, %v3588
      %v3590 = vpop.f32.mrb[0].mxu0
      %3591 = vdwg.mxu0
      %v3593 = vsel %vm2025, %v1437, 0
      %v3596 = vsel %vm2025, %v1442, 0
      %v3599 = vsel %vm2025, %v1662, 0
      %v3602 = vsel %vm2025, %v1667, 0
      %3604 = vmatprep.subr.mxu0 0.0
      %3605 = vmatpush1.xpose.msra.mxu0 %v3599
      %3606 = vmatprep.subr.mxu0 0.0
      %3607 = vmatpush1.xpose.msra.mxu0 %v3602
      %3608 = vmatprep.subr.mxu0 0.0
      %3609 = vmatpush1.xpose.msra.mxu0 0.0
      %3610 = vmatprep.subr.mxu0 0.0
      %3611 = vmatpush1.xpose.msra.mxu0 0.0
      %3612 = vmatprep.subr.mxu0 0.0
      %3613 = vmatpush1.xpose.msra.mxu0 0.0
      %3614 = vmatprep.subr.mxu0 0.0
      %3615 = vmatpush1.xpose.msra.mxu0 0.0
      %3616 = vmatprep.subr.mxu0 0.0
      %3617 = vmatpush1.xpose.msra.mxu0 0.0
      %3618 = vmatprep.subr.mxu0 0.0
      %3619 = vmatpush1.xpose.msra.mxu0 0.0
      %3620 = vmatprep.subr.mxu0 0.0
      %3621 = vmatpush1.xpose.msra.mxu0 0.0
      %3622 = vmatprep.subr.mxu0 0.0
      %3623 = vmatpush1.xpose.msra.mxu0 0.0
      %3624 = vmatprep.subr.mxu0 0.0
      %3625 = vmatpush1.xpose.msra.mxu0 0.0
      %3626 = vmatprep.subr.mxu0 0.0
      %3627 = vmatpush1.xpose.msra.mxu0 0.0
      %3628 = vmatprep.subr.mxu0 0.0
      %3629 = vmatpush1.xpose.msra.mxu0 0.0
      %3630 = vmatprep.subr.mxu0 0.0
      %3631 = vmatpush1.xpose.msra.mxu0 0.0
      %3632 = vmatprep.subr.mxu0 0.0
      %3633 = vmatpush1.xpose.msra.mxu0 0.0
      %3634 = vmatprep.subr.mxu0 0.0
      %3635 = vmatpush1.xpose.msra.mxu0 0.0
      %3636 = vmatprep.subr.mxu0 0.0
      %3637 = vmatpush1.xpose.msra.mxu0 0.0
      %3638 = vmatprep.subr.mxu0 0.0
      %3639 = vmatpush1.xpose.msra.mxu0 0.0
      %3640 = vmatprep.subr.mxu0 0.0
      %3641 = vmatpush1.xpose.msra.mxu0 0.0
      %3642 = vmatprep.subr.mxu0 0.0
      %3643 = vmatpush1.xpose.msra.mxu0 0.0
      %3644 = vmatprep.subr.mxu0 0.0
      %3645 = vmatpush1.xpose.msra.mxu0 0.0
      %3646 = vmatprep.subr.mxu0 0.0
      %3647 = vmatpush1.xpose.msra.mxu0 0.0
      %3648 = vmatprep.subr.mxu0 0.0
      %3649 = vmatpush1.xpose.msra.mxu0 0.0
      %3650 = vmatprep.subr.mxu0 0.0
      %3651 = vmatpush1.xpose.msra.mxu0 0.0
      %3652 = vmatprep.subr.mxu0 0.0
      %3653 = vmatpush1.xpose.msra.mxu0 0.0
      %3654 = vmatprep.subr.mxu0 0.0
      %3655 = vmatpush1.xpose.msra.mxu0 0.0
      %3656 = vmatprep.subr.mxu0 0.0
      %3657 = vmatpush1.xpose.msra.mxu0 0.0
      %3658 = vmatprep.subr.mxu0 0.0
      %3659 = vmatpush1.xpose.msra.mxu0 0.0
      %3660 = vmatprep.subr.mxu0 0.0
      %3661 = vmatpush1.xpose.msra.mxu0 0.0
      %3662 = vmatprep.subr.mxu0 0.0
      %3663 = vmatpush1.xpose.msra.mxu0 0.0
      %3664 = vmatprep.subr.mxu0 0.0
      %3665 = vmatpush1.xpose.msra.mxu0 0.0
      %3666 = vmatprep.subr.mxu0 0.0
      %3667 = vmatpush1.xpose.msra.mxu0 0.0
      %3668 = vmatprep.mubr.f32.mxu0 0.0
      %3669 = vmatmul.mubr.f32.gmra.mrb[0].mxu0 %v3593
      %v3670 = vpop.f32.mrb[0].mxu0
      %v3671 = vadd.f32 0.0, %v3670
      %v3672 = vpop.f32.mrb[0].mxu0
      %3673 = vmatprep.mubr.f32.mxu0 0.0
      %3674 = vmatmul.mubr.f32.gmra.mrb[0].mxu0 %v3596
      %v3675 = vpop.f32.mrb[0].mxu0
      %v3676 = vadd.f32 0.0, %v3675
      %v3677 = vpop.f32.mrb[0].mxu0
      %3678 = vdwg.mxu0
      %v3680 = vsel %vm2025, %v1447, 0
      %v3683 = vsel %vm2025, %v1452, 0
      %v3686 = vsel %vm2025, %v1672, 0
      %v3689 = vsel %vm2025, %v1677, 0
      %3691 = vmatprep.subr.mxu0 0.0
      %3692 = vmatpush1.xpose.msra.mxu0 %v3686
      %3693 = vmatprep.subr.mxu0 0.0
      %3694 = vmatpush1.xpose.msra.mxu0 %v3689
      %3695 = vmatprep.subr.mxu0 0.0
      %3696 = vmatpush1.xpose.msra.mxu0 0.0
      %3697 = vmatprep.subr.mxu0 0.0
      %3698 = vmatpush1.xpose.msra.mxu0 0.0
      %3699 = vmatprep.subr.mxu0 0.0
      %3700 = vmatpush1.xpose.msra.mxu0 0.0
      %3701 = vmatprep.subr.mxu0 0.0
      %3702 = vmatpush1.xpose.msra.mxu0 0.0
      %3703 = vmatprep.subr.mxu0 0.0
      %3704 = vmatpush1.xpose.msra.mxu0 0.0
      %3705 = vmatprep.subr.mxu0 0.0
      %3706 = vmatpush1.xpose.msra.mxu0 0.0
      %3707 = vmatprep.subr.mxu0 0.0
      %3708 = vmatpush1.xpose.msra.mxu0 0.0
      %3709 = vmatprep.subr.mxu0 0.0
      %3710 = vmatpush1.xpose.msra.mxu0 0.0
      %3711 = vmatprep.subr.mxu0 0.0
      %3712 = vmatpush1.xpose.msra.mxu0 0.0
      %3713 = vmatprep.subr.mxu0 0.0
      %3714 = vmatpush1.xpose.msra.mxu0 0.0
      %3715 = vmatprep.subr.mxu0 0.0
      %3716 = vmatpush1.xpose.msra.mxu0 0.0
      %3717 = vmatprep.subr.mxu0 0.0
      %3718 = vmatpush1.xpose.msra.mxu0 0.0
      %3719 = vmatprep.subr.mxu0 0.0
      %3720 = vmatpush1.xpose.msra.mxu0 0.0
      %3721 = vmatprep.subr.mxu0 0.0
      %3722 = vmatpush1.xpose.msra.mxu0 0.0
      %3723 = vmatprep.subr.mxu0 0.0
      %3724 = vmatpush1.xpose.msra.mxu0 0.0
      %3725 = vmatprep.subr.mxu0 0.0
      %3726 = vmatpush1.xpose.msra.mxu0 0.0
      %3727 = vmatprep.subr.mxu0 0.0
      %3728 = vmatpush1.xpose.msra.mxu0 0.0
      %3729 = vmatprep.subr.mxu0 0.0
      %3730 = vmatpush1.xpose.msra.mxu0 0.0
      %3731 = vmatprep.subr.mxu0 0.0
      %3732 = vmatpush1.xpose.msra.mxu0 0.0
      %3733 = vmatprep.subr.mxu0 0.0
      %3734 = vmatpush1.xpose.msra.mxu0 0.0
      %3735 = vmatprep.subr.mxu0 0.0
      %3736 = vmatpush1.xpose.msra.mxu0 0.0
      %3737 = vmatprep.subr.mxu0 0.0
      %3738 = vmatpush1.xpose.msra.mxu0 0.0
      %3739 = vmatprep.subr.mxu0 0.0
      %3740 = vmatpush1.xpose.msra.mxu0 0.0
      %3741 = vmatprep.subr.mxu0 0.0
      %3742 = vmatpush1.xpose.msra.mxu0 0.0
      %3743 = vmatprep.subr.mxu0 0.0
      %3744 = vmatpush1.xpose.msra.mxu0 0.0
      %3745 = vmatprep.subr.mxu0 0.0
      %3746 = vmatpush1.xpose.msra.mxu0 0.0
      %3747 = vmatprep.subr.mxu0 0.0
      %3748 = vmatpush1.xpose.msra.mxu0 0.0
      %3749 = vmatprep.subr.mxu0 0.0
      %3750 = vmatpush1.xpose.msra.mxu0 0.0
      %3751 = vmatprep.subr.mxu0 0.0
      %3752 = vmatpush1.xpose.msra.mxu0 0.0
      %3753 = vmatprep.subr.mxu0 0.0
      %3754 = vmatpush1.xpose.msra.mxu0 0.0
      %3755 = vmatprep.mubr.f32.mxu0 0.0
      %3756 = vmatmul.mubr.f32.gmra.mrb[0].mxu0 %v3680
      %v3757 = vpop.f32.mrb[0].mxu0
      %v3758 = vadd.f32 0.0, %v3757
      %v3759 = vpop.f32.mrb[0].mxu0
      %3760 = vmatprep.mubr.f32.mxu0 0.0
      %3761 = vmatmul.mubr.f32.gmra.mrb[0].mxu0 %v3683
      %v3762 = vpop.f32.mrb[0].mxu0
      %v3763 = vadd.f32 0.0, %v3762
      %v3764 = vpop.f32.mrb[0].mxu0
      %3765 = vdwg.mxu0
      %v3767 = vsel %vm2025, %v1457, 0
      %v3770 = vsel %vm2025, %v1462, 0
      %v3773 = vsel %vm2025, %v1682, 0
      %v3776 = vsel %vm2025, %v1687, 0
      %3778 = vmatprep.subr.mxu0 0.0
      %3779 = vmatpush1.xpose.msra.mxu0 %v3773
      %3780 = vmatprep.subr.mxu0 0.0
      %3781 = vmatpush1.xpose.msra.mxu0 %v3776
      %3782 = vmatprep.subr.mxu0 0.0
      %3783 = vmatpush1.xpose.msra.mxu0 0.0
      %3784 = vmatprep.subr.mxu0 0.0
      %3785 = vmatpush1.xpose.msra.mxu0 0.0
      %3786 = vmatprep.subr.mxu0 0.0
      %3787 = vmatpush1.xpose.msra.mxu0 0.0
      %3788 = vmatprep.subr.mxu0 0.0
      %3789 = vmatpush1.xpose.msra.mxu0 0.0
      %3790 = vmatprep.subr.mxu0 0.0
      %3791 = vmatpush1.xpose.msra.mxu0 0.0
      %3792 = vmatprep.subr.mxu0 0.0
      %3793 = vmatpush1.xpose.msra.mxu0 0.0
      %3794 = vmatprep.subr.mxu0 0.0
      %3795 = vmatpush1.xpose.msra.mxu0 0.0
      %3796 = vmatprep.subr.mxu0 0.0
      %3797 = vmatpush1.xpose.msra.mxu0 0.0
      %3798 = vmatprep.subr.mxu0 0.0
      %3799 = vmatpush1.xpose.msra.mxu0 0.0
      %3800 = vmatprep.subr.mxu0 0.0
      %3801 = vmatpush1.xpose.msra.mxu0 0.0
      %3802 = vmatprep.subr.mxu0 0.0
      %3803 = vmatpush1.xpose.msra.mxu0 0.0
      %3804 = vmatprep.subr.mxu0 0.0
      %3805 = vmatpush1.xpose.msra.mxu0 0.0
      %3806 = vmatprep.subr.mxu0 0.0
      %3807 = vmatpush1.xpose.msra.mxu0 0.0
      %3808 = vmatprep.subr.mxu0 0.0
      %3809 = vmatpush1.xpose.msra.mxu0 0.0
      %3810 = vmatprep.subr.mxu0 0.0
      %3811 = vmatpush1.xpose.msra.mxu0 0.0
      %3812 = vmatprep.subr.mxu0 0.0
      %3813 = vmatpush1.xpose.msra.mxu0 0.0
      %3814 = vmatprep.subr.mxu0 0.0
      %3815 = vmatpush1.xpose.msra.mxu0 0.0
      %3816 = vmatprep.subr.mxu0 0.0
      %3817 = vmatpush1.xpose.msra.mxu0 0.0
      %3818 = vmatprep.subr.mxu0 0.0
      %3819 = vmatpush1.xpose.msra.mxu0 0.0
      %3820 = vmatprep.subr.mxu0 0.0
      %3821 = vmatpush1.xpose.msra.mxu0 0.0
      %3822 = vmatprep.subr.mxu0 0.0
      %3823 = vmatpush1.xpose.msra.mxu0 0.0
      %3824 = vmatprep.subr.mxu0 0.0
      %3825 = vmatpush1.xpose.msra.mxu0 0.0
      %3826 = vmatprep.subr.mxu0 0.0
      %3827 = vmatpush1.xpose.msra.mxu0 0.0
      %3828 = vmatprep.subr.mxu0 0.0
      %3829 = vmatpush1.xpose.msra.mxu0 0.0
      %3830 = vmatprep.subr.mxu0 0.0
      %3831 = vmatpush1.xpose.msra.mxu0 0.0
      %3832 = vmatprep.subr.mxu0 0.0
      %3833 = vmatpush1.xpose.msra.mxu0 0.0
      %3834 = vmatprep.subr.mxu0 0.0
      %3835 = vmatpush1.xpose.msra.mxu0 0.0
      %3836 = vmatprep.subr.mxu0 0.0
      %3837 = vmatpush1.xpose.msra.mxu0 0.0
      %3838 = vmatprep.subr.mxu0 0.0
      %3839 = vmatpush1.xpose.msra.mxu0 0.0
      %3840 = vmatprep.subr.mxu0 0.0
      %3841 = vmatpush1.xpose.msra.mxu0 0.0
      %3842 = vmatprep.mubr.f32.mxu0 0.0
      %3843 = vmatmul.mubr.f32.gmra.mrb[0].mxu0 %v3767
      %v3844 = vpop.f32.mrb[0].mxu0
      %v3845 = vadd.f32 0.0, %v3844
      %v3846 = vpop.f32.mrb[0].mxu0
      %3847 = vmatprep.mubr.f32.mxu0 0.0
      %3848 = vmatmul.mubr.f32.gmra.mrb[0].mxu0 %v3770
      %v3849 = vpop.f32.mrb[0].mxu0
      %v3850 = vadd.f32 0.0, %v3849
      %v3851 = vpop.f32.mrb[0].mxu0
      %3852 = vdwg.mxu0
      %v3854 = vsel %vm2025, %v1467, 0
      %v3857 = vsel %vm2025, %v1472, 0
      %v3860 = vsel %vm2025, %v1692, 0
      %v3863 = vsel %vm2025, %v1697, 0
      %3865 = vmatprep.subr.mxu0 0.0
      %3866 = vmatpush1.xpose.msra.mxu0 %v3860
      %3867 = vmatprep.subr.mxu0 0.0
      %3868 = vmatpush1.xpose.msra.mxu0 %v3863
      %3869 = vmatprep.subr.mxu0 0.0
      %3870 = vmatpush1.xpose.msra.mxu0 0.0
      %3871 = vmatprep.subr.mxu0 0.0
      %3872 = vmatpush1.xpose.msra.mxu0 0.0
      %3873 = vmatprep.subr.mxu0 0.0
      %3874 = vmatpush1.xpose.msra.mxu0 0.0
      %3875 = vmatprep.subr.mxu0 0.0
      %3876 = vmatpush1.xpose.msra.mxu0 0.0
      %3877 = vmatprep.subr.mxu0 0.0
      %3878 = vmatpush1.xpose.msra.mxu0 0.0
      %3879 = vmatprep.subr.mxu0 0.0
      %3880 = vmatpush1.xpose.msra.mxu0 0.0
      %3881 = vmatprep.subr.mxu0 0.0
      %3882 = vmatpush1.xpose.msra.mxu0 0.0
      %3883 = vmatprep.subr.mxu0 0.0
      %3884 = vmatpush1.xpose.msra.mxu0 0.0
      %3885 = vmatprep.subr.mxu0 0.0
      %3886 = vmatpush1.xpose.msra.mxu0 0.0
      %3887 = vmatprep.subr.mxu0 0.0
      %3888 = vmatpush1.xpose.msra.mxu0 0.0
      %3889 = vmatprep.subr.mxu0 0.0
      %3890 = vmatpush1.xpose.msra.mxu0 0.0
      %3891 = vmatprep.subr.mxu0 0.0
      %3892 = vmatpush1.xpose.msra.mxu0 0.0
      %3893 = vmatprep.subr.mxu0 0.0
      %3894 = vmatpush1.xpose.msra.mxu0 0.0
      %3895 = vmatprep.subr.mxu0 0.0
      %3896 = vmatpush1.xpose.msra.mxu0 0.0
      %3897 = vmatprep.subr.mxu0 0.0
      %3898 = vmatpush1.xpose.msra.mxu0 0.0
      %3899 = vmatprep.subr.mxu0 0.0
      %3900 = vmatpush1.xpose.msra.mxu0 0.0
      %3901 = vmatprep.subr.mxu0 0.0
      %3902 = vmatpush1.xpose.msra.mxu0 0.0
      %3903 = vmatprep.subr.mxu0 0.0
      %3904 = vmatpush1.xpose.msra.mxu0 0.0
      %3905 = vmatprep.subr.mxu0 0.0
      %3906 = vmatpush1.xpose.msra.mxu0 0.0
      %3907 = vmatprep.subr.mxu0 0.0
      %3908 = vmatpush1.xpose.msra.mxu0 0.0
      %3909 = vmatprep.subr.mxu0 0.0
      %3910 = vmatpush1.xpose.msra.mxu0 0.0
      %3911 = vmatprep.subr.mxu0 0.0
      %3912 = vmatpush1.xpose.msra.mxu0 0.0
      %3913 = vmatprep.subr.mxu0 0.0
      %3914 = vmatpush1.xpose.msra.mxu0 0.0
      %3915 = vmatprep.subr.mxu0 0.0
      %3916 = vmatpush1.xpose.msra.mxu0 0.0
      %3917 = vmatprep.subr.mxu0 0.0
      %3918 = vmatpush1.xpose.msra.mxu0 0.0
      %3919 = vmatprep.subr.mxu0 0.0
      %3920 = vmatpush1.xpose.msra.mxu0 0.0
      %3921 = vmatprep.subr.mxu0 0.0
      %3922 = vmatpush1.xpose.msra.mxu0 0.0
      %3923 = vmatprep.subr.mxu0 0.0
      %3924 = vmatpush1.xpose.msra.mxu0 0.0
      %3925 = vmatprep.subr.mxu0 0.0
      %3926 = vmatpush1.xpose.msra.mxu0 0.0
      %3927 = vmatprep.subr.mxu0 0.0
      %3928 = vmatpush1.xpose.msra.mxu0 0.0
      %3929 = vmatprep.mubr.f32.mxu0 0.0
      %3930 = vmatmul.mubr.f32.gmra.mrb[0].mxu0 %v3854
      %v3931 = vpop.f32.mrb[0].mxu0
      %v3932 = vadd.f32 0.0, %v3931
      %v3933 = vpop.f32.mrb[0].mxu0
      %3934 = vmatprep.mubr.f32.mxu0 0.0
      %3935 = vmatmul.mubr.f32.gmra.mrb[0].mxu0 %v3857
      %v3936 = vpop.f32.mrb[0].mxu0
      %v3937 = vadd.f32 0.0, %v3936
      %v3938 = vpop.f32.mrb[0].mxu0
      %3939 = vdwg.mxu0
      %v3941 = vsel %vm2025, %v1477, 0
      %v3944 = vsel %vm2025, %v1482, 0
      %v3947 = vsel %vm2025, %v1702, 0
      %v3950 = vsel %vm2025, %v1707, 0
      %3952 = vmatprep.subr.mxu0 0.0
      %3953 = vmatpush1.xpose.msra.mxu0 %v3947
      %3954 = vmatprep.subr.mxu0 0.0
      %3955 = vmatpush1.xpose.msra.mxu0 %v3950
      %3956 = vmatprep.subr.mxu0 0.0
      %3957 = vmatpush1.xpose.msra.mxu0 0.0
      %3958 = vmatprep.subr.mxu0 0.0
      %3959 = vmatpush1.xpose.msra.mxu0 0.0
      %3960 = vmatprep.subr.mxu0 0.0
      %3961 = vmatpush1.xpose.msra.mxu0 0.0
      %3962 = vmatprep.subr.mxu0 0.0
      %3963 = vmatpush1.xpose.msra.mxu0 0.0
      %3964 = vmatprep.subr.mxu0 0.0
      %3965 = vmatpush1.xpose.msra.mxu0 0.0
      %3966 = vmatprep.subr.mxu0 0.0
      %3967 = vmatpush1.xpose.msra.mxu0 0.0
      %3968 = vmatprep.subr.mxu0 0.0
      %3969 = vmatpush1.xpose.msra.mxu0 0.0
      %3970 = vmatprep.subr.mxu0 0.0
      %3971 = vmatpush1.xpose.msra.mxu0 0.0
      %3972 = vmatprep.subr.mxu0 0.0
      %3973 = vmatpush1.xpose.msra.mxu0 0.0
      %3974 = vmatprep.subr.mxu0 0.0
      %3975 = vmatpush1.xpose.msra.mxu0 0.0
      %3976 = vmatprep.subr.mxu0 0.0
      %3977 = vmatpush1.xpose.msra.mxu0 0.0
      %3978 = vmatprep.subr.mxu0 0.0
      %3979 = vmatpush1.xpose.msra.mxu0 0.0
      %3980 = vmatprep.subr.mxu0 0.0
      %3981 = vmatpush1.xpose.msra.mxu0 0.0
      %3982 = vmatprep.subr.mxu0 0.0
      %3983 = vmatpush1.xpose.msra.mxu0 0.0
      %3984 = vmatprep.subr.mxu0 0.0
      %3985 = vmatpush1.xpose.msra.mxu0 0.0
      %3986 = vmatprep.subr.mxu0 0.0
      %3987 = vmatpush1.xpose.msra.mxu0 0.0
      %3988 = vmatprep.subr.mxu0 0.0
      %3989 = vmatpush1.xpose.msra.mxu0 0.0
      %3990 = vmatprep.subr.mxu0 0.0
      %3991 = vmatpush1.xpose.msra.mxu0 0.0
      %3992 = vmatprep.subr.mxu0 0.0
      %3993 = vmatpush1.xpose.msra.mxu0 0.0
      %3994 = vmatprep.subr.mxu0 0.0
      %3995 = vmatpush1.xpose.msra.mxu0 0.0
      %3996 = vmatprep.subr.mxu0 0.0
      %3997 = vmatpush1.xpose.msra.mxu0 0.0
      %3998 = vmatprep.subr.mxu0 0.0
      %3999 = vmatpush1.xpose.msra.mxu0 0.0
      %4000 = vmatprep.subr.mxu0 0.0
      %4001 = vmatpush1.xpose.msra.mxu0 0.0
      %4002 = vmatprep.subr.mxu0 0.0
      %4003 = vmatpush1.xpose.msra.mxu0 0.0
      %4004 = vmatprep.subr.mxu0 0.0
      %4005 = vmatpush1.xpose.msra.mxu0 0.0
      %4006 = vmatprep.subr.mxu0 0.0
      %4007 = vmatpush1.xpose.msra.mxu0 0.0
      %4008 = vmatprep.subr.mxu0 0.0
      %4009 = vmatpush1.xpose.msra.mxu0 0.0
      %4010 = vmatprep.subr.mxu0 0.0
      %4011 = vmatpush1.xpose.msra.mxu0 0.0
      %4012 = vmatprep.subr.mxu0 0.0
      %4013 = vmatpush1.xpose.msra.mxu0 0.0
      %4014 = vmatprep.subr.mxu0 0.0
      %4015 = vmatpush1.xpose.msra.mxu0 0.0
      %4016 = vmatprep.mubr.f32.mxu0 0.0
      %4017 = vmatmul.mubr.f32.gmra.mrb[0].mxu0 %v3941
      %v4018 = vpop.f32.mrb[0].mxu0
      %v4019 = vadd.f32 0.0, %v4018
      %v4020 = vpop.f32.mrb[0].mxu0
      %4021 = vmatprep.mubr.f32.mxu0 0.0
      %4022 = vmatmul.mubr.f32.gmra.mrb[0].mxu0 %v3944
      %v4023 = vpop.f32.mrb[0].mxu0
      %v4024 = vadd.f32 0.0, %v4023
      %v4025 = vpop.f32.mrb[0].mxu0
      %4026 = vdwg.mxu0
      %v4028 = vsel %vm2025, %v1487, 0
      %v4031 = vsel %vm2025, %v1492, 0
      %v4034 = vsel %vm2025, %v1712, 0
      %v4037 = vsel %vm2025, %v1717, 0
      %4039 = vmatprep.subr.mxu0 0.0
      %4040 = vmatpush1.xpose.msra.mxu0 %v4034
      %4041 = vmatprep.subr.mxu0 0.0
      %4042 = vmatpush1.xpose.msra.mxu0 %v4037
      %4043 = vmatprep.subr.mxu0 0.0
      %4044 = vmatpush1.xpose.msra.mxu0 0.0
      %4045 = vmatprep.subr.mxu0 0.0
      %4046 = vmatpush1.xpose.msra.mxu0 0.0
      %4047 = vmatprep.subr.mxu0 0.0
      %4048 = vmatpush1.xpose.msra.mxu0 0.0
      %4049 = vmatprep.subr.mxu0 0.0
      %4050 = vmatpush1.xpose.msra.mxu0 0.0
      %4051 = vmatprep.subr.mxu0 0.0
      %4052 = vmatpush1.xpose.msra.mxu0 0.0
      %4053 = vmatprep.subr.mxu0 0.0
      %4054 = vmatpush1.xpose.msra.mxu0 0.0
      %4055 = vmatprep.subr.mxu0 0.0
      %4056 = vmatpush1.xpose.msra.mxu0 0.0
      %4057 = vmatprep.subr.mxu0 0.0
      %4058 = vmatpush1.xpose.msra.mxu0 0.0
      %4059 = vmatprep.subr.mxu0 0.0
      %4060 = vmatpush1.xpose.msra.mxu0 0.0
      %4061 = vmatprep.subr.mxu0 0.0
      %4062 = vmatpush1.xpose.msra.mxu0 0.0
      %4063 = vmatprep.subr.mxu0 0.0
      %4064 = vmatpush1.xpose.msra.mxu0 0.0
      %4065 = vmatprep.subr.mxu0 0.0
      %4066 = vmatpush1.xpose.msra.mxu0 0.0
      %4067 = vmatprep.subr.mxu0 0.0
      %4068 = vmatpush1.xpose.msra.mxu0 0.0
      %4069 = vmatprep.subr.mxu0 0.0
      %4070 = vmatpush1.xpose.msra.mxu0 0.0
      %4071 = vmatprep.subr.mxu0 0.0
      %4072 = vmatpush1.xpose.msra.mxu0 0.0
      %4073 = vmatprep.subr.mxu0 0.0
      %4074 = vmatpush1.xpose.msra.mxu0 0.0
      %4075 = vmatprep.subr.mxu0 0.0
      %4076 = vmatpush1.xpose.msra.mxu0 0.0
      %4077 = vmatprep.subr.mxu0 0.0
      %4078 = vmatpush1.xpose.msra.mxu0 0.0
      %4079 = vmatprep.subr.mxu0 0.0
      %4080 = vmatpush1.xpose.msra.mxu0 0.0
      %4081 = vmatprep.subr.mxu0 0.0
      %4082 = vmatpush1.xpose.msra.mxu0 0.0
      %4083 = vmatprep.subr.mxu0 0.0
      %4084 = vmatpush1.xpose.msra.mxu0 0.0
      %4085 = vmatprep.subr.mxu0 0.0
      %4086 = vmatpush1.xpose.msra.mxu0 0.0
      %4087 = vmatprep.subr.mxu0 0.0
      %4088 = vmatpush1.xpose.msra.mxu0 0.0
      %4089 = vmatprep.subr.mxu0 0.0
      %4090 = vmatpush1.xpose.msra.mxu0 0.0
      %4091 = vmatprep.subr.mxu0 0.0
      %4092 = vmatpush1.xpose.msra.mxu0 0.0
      %4093 = vmatprep.subr.mxu0 0.0
      %4094 = vmatpush1.xpose.msra.mxu0 0.0
      %4095 = vmatprep.subr.mxu0 0.0
      %4096 = vmatpush1.xpose.msra.mxu0 0.0
      %4097 = vmatprep.subr.mxu0 0.0
      %4098 = vmatpush1.xpose.msra.mxu0 0.0
      %4099 = vmatprep.subr.mxu0 0.0
      %4100 = vmatpush1.xpose.msra.mxu0 0.0
      %4101 = vmatprep.subr.mxu0 0.0
      %4102 = vmatpush1.xpose.msra.mxu0 0.0
      %4103 = vmatprep.mubr.f32.mxu0 0.0
      %4104 = vmatmul.mubr.f32.gmra.mrb[0].mxu0 %v4028
      %v4105 = vpop.f32.mrb[0].mxu0
      %v4106 = vadd.f32 0.0, %v4105
      %v4107 = vpop.f32.mrb[0].mxu0
      %4108 = vmatprep.mubr.f32.mxu0 0.0
      %4109 = vmatmul.mubr.f32.gmra.mrb[0].mxu0 %v4031
      %v4110 = vpop.f32.mrb[0].mxu0
      %v4111 = vadd.f32 0.0, %v4110
      %v4112 = vpop.f32.mrb[0].mxu0
      %4113 = vdwg.mxu0
      %v4115 = vsel %vm2025, %v1497, 0
      %v4118 = vsel %vm2025, %v1502, 0
      %v4121 = vsel %vm2025, %v1722, 0
      %v4124 = vsel %vm2025, %v1727, 0
      %4126 = vmatprep.subr.mxu0 0.0
      %4127 = vmatpush1.xpose.msra.mxu0 %v4121
      %4128 = vmatprep.subr.mxu0 0.0
      %4129 = vmatpush1.xpose.msra.mxu0 %v4124
      %4130 = vmatprep.subr.mxu0 0.0
      %4131 = vmatpush1.xpose.msra.mxu0 0.0
      %4132 = vmatprep.subr.mxu0 0.0
      %4133 = vmatpush1.xpose.msra.mxu0 0.0
      %4134 = vmatprep.subr.mxu0 0.0
      %4135 = vmatpush1.xpose.msra.mxu0 0.0
      %4136 = vmatprep.subr.mxu0 0.0
      %4137 = vmatpush1.xpose.msra.mxu0 0.0
      %4138 = vmatprep.subr.mxu0 0.0
      %4139 = vmatpush1.xpose.msra.mxu0 0.0
      %4140 = vmatprep.subr.mxu0 0.0
      %4141 = vmatpush1.xpose.msra.mxu0 0.0
      %4142 = vmatprep.subr.mxu0 0.0
      %4143 = vmatpush1.xpose.msra.mxu0 0.0
      %4144 = vmatprep.subr.mxu0 0.0
      %4145 = vmatpush1.xpose.msra.mxu0 0.0
      %4146 = vmatprep.subr.mxu0 0.0
      %4147 = vmatpush1.xpose.msra.mxu0 0.0
      %4148 = vmatprep.subr.mxu0 0.0
      %4149 = vmatpush1.xpose.msra.mxu0 0.0
      %4150 = vmatprep.subr.mxu0 0.0
      %4151 = vmatpush1.xpose.msra.mxu0 0.0
      %4152 = vmatprep.subr.mxu0 0.0
      %4153 = vmatpush1.xpose.msra.mxu0 0.0
      %4154 = vmatprep.subr.mxu0 0.0
      %4155 = vmatpush1.xpose.msra.mxu0 0.0
      %4156 = vmatprep.subr.mxu0 0.0
      %4157 = vmatpush1.xpose.msra.mxu0 0.0
      %4158 = vmatprep.subr.mxu0 0.0
      %4159 = vmatpush1.xpose.msra.mxu0 0.0
      %4160 = vmatprep.subr.mxu0 0.0
      %4161 = vmatpush1.xpose.msra.mxu0 0.0
      %4162 = vmatprep.subr.mxu0 0.0
      %4163 = vmatpush1.xpose.msra.mxu0 0.0
      %4164 = vmatprep.subr.mxu0 0.0
      %4165 = vmatpush1.xpose.msra.mxu0 0.0
      %4166 = vmatprep.subr.mxu0 0.0
      %4167 = vmatpush1.xpose.msra.mxu0 0.0
      %4168 = vmatprep.subr.mxu0 0.0
      %4169 = vmatpush1.xpose.msra.mxu0 0.0
      %4170 = vmatprep.subr.mxu0 0.0
      %4171 = vmatpush1.xpose.msra.mxu0 0.0
      %4172 = vmatprep.subr.mxu0 0.0
      %4173 = vmatpush1.xpose.msra.mxu0 0.0
      %4174 = vmatprep.subr.mxu0 0.0
      %4175 = vmatpush1.xpose.msra.mxu0 0.0
      %4176 = vmatprep.subr.mxu0 0.0
      %4177 = vmatpush1.xpose.msra.mxu0 0.0
      %4178 = vmatprep.subr.mxu0 0.0
      %4179 = vmatpush1.xpose.msra.mxu0 0.0
      %4180 = vmatprep.subr.mxu0 0.0
      %4181 = vmatpush1.xpose.msra.mxu0 0.0
      %4182 = vmatprep.subr.mxu0 0.0
      %4183 = vmatpush1.xpose.msra.mxu0 0.0
      %4184 = vmatprep.subr.mxu0 0.0
      %4185 = vmatpush1.xpose.msra.mxu0 0.0
      %4186 = vmatprep.subr.mxu0 0.0
      %4187 = vmatpush1.xpose.msra.mxu0 0.0
      %4188 = vmatprep.subr.mxu0 0.0
      %4189 = vmatpush1.xpose.msra.mxu0 0.0
      %4190 = vmatprep.mubr.f32.mxu0 0.0
      %4191 = vmatmul.mubr.f32.gmra.mrb[0].mxu0 %v4115
      %v4192 = vpop.f32.mrb[0].mxu0
      %v4193 = vadd.f32 0.0, %v4192
      %v4194 = vpop.f32.mrb[0].mxu0
      %4195 = vmatprep.mubr.f32.mxu0 0.0
      %4196 = vmatmul.mubr.f32.gmra.mrb[0].mxu0 %v4118
      %v4197 = vpop.f32.mrb[0].mxu0
      %v4198 = vadd.f32 0.0, %v4197
      %v4199 = vpop.f32.mrb[0].mxu0
      %4200 = vdwg.mxu0
      %v4202 = vsel %vm2025, %v1507, 0
      %v4205 = vsel %vm2025, %v1512, 0
      %v4208 = vsel %vm2025, %v1732, 0
      %v4211 = vsel %vm2025, %v1737, 0
      %4213 = vmatprep.subr.mxu0 0.0
      %4214 = vmatpush1.xpose.msra.mxu0 %v4208
      %4215 = vmatprep.subr.mxu0 0.0
      %4216 = vmatpush1.xpose.msra.mxu0 %v4211
      %4217 = vmatprep.subr.mxu0 0.0
      %4218 = vmatpush1.xpose.msra.mxu0 0.0
      %4219 = vmatprep.subr.mxu0 0.0
      %4220 = vmatpush1.xpose.msra.mxu0 0.0
      %4221 = vmatprep.subr.mxu0 0.0
      %4222 = vmatpush1.xpose.msra.mxu0 0.0
      %4223 = vmatprep.subr.mxu0 0.0
      %4224 = vmatpush1.xpose.msra.mxu0 0.0
      %4225 = vmatprep.subr.mxu0 0.0
      %4226 = vmatpush1.xpose.msra.mxu0 0.0
      %4227 = vmatprep.subr.mxu0 0.0
      %4228 = vmatpush1.xpose.msra.mxu0 0.0
      %4229 = vmatprep.subr.mxu0 0.0
      %4230 = vmatpush1.xpose.msra.mxu0 0.0
      %4231 = vmatprep.subr.mxu0 0.0
      %4232 = vmatpush1.xpose.msra.mxu0 0.0
      %4233 = vmatprep.subr.mxu0 0.0
      %4234 = vmatpush1.xpose.msra.mxu0 0.0
      %4235 = vmatprep.subr.mxu0 0.0
      %4236 = vmatpush1.xpose.msra.mxu0 0.0
      %4237 = vmatprep.subr.mxu0 0.0
      %4238 = vmatpush1.xpose.msra.mxu0 0.0
      %4239 = vmatprep.subr.mxu0 0.0
      %4240 = vmatpush1.xpose.msra.mxu0 0.0
      %4241 = vmatprep.subr.mxu0 0.0
      %4242 = vmatpush1.xpose.msra.mxu0 0.0
      %4243 = vmatprep.subr.mxu0 0.0
      %4244 = vmatpush1.xpose.msra.mxu0 0.0
      %4245 = vmatprep.subr.mxu0 0.0
      %4246 = vmatpush1.xpose.msra.mxu0 0.0
      %4247 = vmatprep.subr.mxu0 0.0
      %4248 = vmatpush1.xpose.msra.mxu0 0.0
      %4249 = vmatprep.subr.mxu0 0.0
      %4250 = vmatpush1.xpose.msra.mxu0 0.0
      %4251 = vmatprep.subr.mxu0 0.0
      %4252 = vmatpush1.xpose.msra.mxu0 0.0
      %4253 = vmatprep.subr.mxu0 0.0
      %4254 = vmatpush1.xpose.msra.mxu0 0.0
      %4255 = vmatprep.subr.mxu0 0.0
      %4256 = vmatpush1.xpose.msra.mxu0 0.0
      %4257 = vmatprep.subr.mxu0 0.0
      %4258 = vmatpush1.xpose.msra.mxu0 0.0
      %4259 = vmatprep.subr.mxu0 0.0
      %4260 = vmatpush1.xpose.msra.mxu0 0.0
      %4261 = vmatprep.subr.mxu0 0.0
      %4262 = vmatpush1.xpose.msra.mxu0 0.0
      %4263 = vmatprep.subr.mxu0 0.0
      %4264 = vmatpush1.xpose.msra.mxu0 0.0
      %4265 = vmatprep.subr.mxu0 0.0
      %4266 = vmatpush1.xpose.msra.mxu0 0.0
      %4267 = vmatprep.subr.mxu0 0.0
      %4268 = vmatpush1.xpose.msra.mxu0 0.0
      %4269 = vmatprep.subr.mxu0 0.0
      %4270 = vmatpush1.xpose.msra.mxu0 0.0
      %4271 = vmatprep.subr.mxu0 0.0
      %4272 = vmatpush1.xpose.msra.mxu0 0.0
      %4273 = vmatprep.subr.mxu0 0.0
      %4274 = vmatpush1.xpose.msra.mxu0 0.0
      %4275 = vmatprep.subr.mxu0 0.0
      %4276 = vmatpush1.xpose.msra.mxu0 0.0
      %4277 = vmatprep.mubr.f32.mxu0 0.0
      %4278 = vmatmul.mubr.f32.gmra.mrb[0].mxu0 %v4202
      %v4279 = vpop.f32.mrb[0].mxu0
      %v4280 = vadd.f32 0.0, %v4279
      %v4281 = vpop.f32.mrb[0].mxu0
      %4282 = vmatprep.mubr.f32.mxu0 0.0
      %4283 = vmatmul.mubr.f32.gmra.mrb[0].mxu0 %v4205
      %v4284 = vpop.f32.mrb[0].mxu0
      %v4285 = vadd.f32 0.0, %v4284
      %v4286 = vpop.f32.mrb[0].mxu0
      %4287 = vdwg.mxu0
      %v4289 = vsel %vm2025, %v1517, 0
      %v4292 = vsel %vm2025, %v1522, 0
      %v4295 = vsel %vm2025, %v1742, 0
      %v4298 = vsel %vm2025, %v1747, 0
      %4300 = vmatprep.subr.mxu0 0.0
      %4301 = vmatpush1.xpose.msra.mxu0 %v4295
      %4302 = vmatprep.subr.mxu0 0.0
      %4303 = vmatpush1.xpose.msra.mxu0 %v4298
      %4304 = vmatprep.subr.mxu0 0.0
      %4305 = vmatpush1.xpose.msra.mxu0 0.0
      %4306 = vmatprep.subr.mxu0 0.0
      %4307 = vmatpush1.xpose.msra.mxu0 0.0
      %4308 = vmatprep.subr.mxu0 0.0
      %4309 = vmatpush1.xpose.msra.mxu0 0.0
      %4310 = vmatprep.subr.mxu0 0.0
      %4311 = vmatpush1.xpose.msra.mxu0 0.0
      %4312 = vmatprep.subr.mxu0 0.0
      %4313 = vmatpush1.xpose.msra.mxu0 0.0
      %4314 = vmatprep.subr.mxu0 0.0
      %4315 = vmatpush1.xpose.msra.mxu0 0.0
      %4316 = vmatprep.subr.mxu0 0.0
      %4317 = vmatpush1.xpose.msra.mxu0 0.0
      %4318 = vmatprep.subr.mxu0 0.0
      %4319 = vmatpush1.xpose.msra.mxu0 0.0
      %4320 = vmatprep.subr.mxu0 0.0
      %4321 = vmatpush1.xpose.msra.mxu0 0.0
      %4322 = vmatprep.subr.mxu0 0.0
      %4323 = vmatpush1.xpose.msra.mxu0 0.0
      %4324 = vmatprep.subr.mxu0 0.0
      %4325 = vmatpush1.xpose.msra.mxu0 0.0
      %4326 = vmatprep.subr.mxu0 0.0
      %4327 = vmatpush1.xpose.msra.mxu0 0.0
      %4328 = vmatprep.subr.mxu0 0.0
      %4329 = vmatpush1.xpose.msra.mxu0 0.0
      %4330 = vmatprep.subr.mxu0 0.0
      %4331 = vmatpush1.xpose.msra.mxu0 0.0
      %4332 = vmatprep.subr.mxu0 0.0
      %4333 = vmatpush1.xpose.msra.mxu0 0.0
      %4334 = vmatprep.subr.mxu0 0.0
      %4335 = vmatpush1.xpose.msra.mxu0 0.0
      %4336 = vmatprep.subr.mxu0 0.0
      %4337 = vmatpush1.xpose.msra.mxu0 0.0
      %4338 = vmatprep.subr.mxu0 0.0
      %4339 = vmatpush1.xpose.msra.mxu0 0.0
      %4340 = vmatprep.subr.mxu0 0.0
      %4341 = vmatpush1.xpose.msra.mxu0 0.0
      %4342 = vmatprep.subr.mxu0 0.0
      %4343 = vmatpush1.xpose.msra.mxu0 0.0
      %4344 = vmatprep.subr.mxu0 0.0
      %4345 = vmatpush1.xpose.msra.mxu0 0.0
      %4346 = vmatprep.subr.mxu0 0.0
      %4347 = vmatpush1.xpose.msra.mxu0 0.0
      %4348 = vmatprep.subr.mxu0 0.0
      %4349 = vmatpush1.xpose.msra.mxu0 0.0
      %4350 = vmatprep.subr.mxu0 0.0
      %4351 = vmatpush1.xpose.msra.mxu0 0.0
      %4352 = vmatprep.subr.mxu0 0.0
      %4353 = vmatpush1.xpose.msra.mxu0 0.0
      %4354 = vmatprep.subr.mxu0 0.0
      %4355 = vmatpush1.xpose.msra.mxu0 0.0
      %4356 = vmatprep.subr.mxu0 0.0
      %4357 = vmatpush1.xpose.msra.mxu0 0.0
      %4358 = vmatprep.subr.mxu0 0.0
      %4359 = vmatpush1.xpose.msra.mxu0 0.0
      %4360 = vmatprep.subr.mxu0 0.0
      %4361 = vmatpush1.xpose.msra.mxu0 0.0
      %4362 = vmatprep.subr.mxu0 0.0
      %4363 = vmatpush1.xpose.msra.mxu0 0.0
      %4364 = vmatprep.mubr.f32.mxu0 0.0
      %4365 = vmatmul.mubr.f32.gmra.mrb[0].mxu0 %v4289
      %v4366 = vpop.f32.mrb[0].mxu0
      %v4367 = vadd.f32 0.0, %v4366
      %v4368 = vpop.f32.mrb[0].mxu0
      %4369 = vmatprep.mubr.f32.mxu0 0.0
      %4370 = vmatmul.mubr.f32.gmra.mrb[0].mxu0 %v4292
      %v4371 = vpop.f32.mrb[0].mxu0
      %v4372 = vadd.f32 0.0, %v4371
      %v4373 = vpop.f32.mrb[0].mxu0
      %4374 = vdwg.mxu0
      %v4376 = vsel %vm2025, %v1527, 0
      %v4379 = vsel %vm2025, %v1532, 0
      %v4382 = vsel %vm2025, %v1752, 0
      %v4385 = vsel %vm2025, %v1757, 0
      %4387 = vmatprep.subr.mxu0 0.0
      %4388 = vmatpush1.xpose.msra.mxu0 %v4382
      %4389 = vmatprep.subr.mxu0 0.0
      %4390 = vmatpush1.xpose.msra.mxu0 %v4385
      %4391 = vmatprep.subr.mxu0 0.0
      %4392 = vmatpush1.xpose.msra.mxu0 0.0
      %4393 = vmatprep.subr.mxu0 0.0
      %4394 = vmatpush1.xpose.msra.mxu0 0.0
      %4395 = vmatprep.subr.mxu0 0.0
      %4396 = vmatpush1.xpose.msra.mxu0 0.0
      %4397 = vmatprep.subr.mxu0 0.0
      %4398 = vmatpush1.xpose.msra.mxu0 0.0
      %4399 = vmatprep.subr.mxu0 0.0
      %4400 = vmatpush1.xpose.msra.mxu0 0.0
      %4401 = vmatprep.subr.mxu0 0.0
      %4402 = vmatpush1.xpose.msra.mxu0 0.0
      %4403 = vmatprep.subr.mxu0 0.0
      %4404 = vmatpush1.xpose.msra.mxu0 0.0
      %4405 = vmatprep.subr.mxu0 0.0
      %4406 = vmatpush1.xpose.msra.mxu0 0.0
      %4407 = vmatprep.subr.mxu0 0.0
      %4408 = vmatpush1.xpose.msra.mxu0 0.0
      %4409 = vmatprep.subr.mxu0 0.0
      %4410 = vmatpush1.xpose.msra.mxu0 0.0
      %4411 = vmatprep.subr.mxu0 0.0
      %4412 = vmatpush1.xpose.msra.mxu0 0.0
      %4413 = vmatprep.subr.mxu0 0.0
      %4414 = vmatpush1.xpose.msra.mxu0 0.0
      %4415 = vmatprep.subr.mxu0 0.0
      %4416 = vmatpush1.xpose.msra.mxu0 0.0
      %4417 = vmatprep.subr.mxu0 0.0
      %4418 = vmatpush1.xpose.msra.mxu0 0.0
      %4419 = vmatprep.subr.mxu0 0.0
      %4420 = vmatpush1.xpose.msra.mxu0 0.0
      %4421 = vmatprep.subr.mxu0 0.0
      %4422 = vmatpush1.xpose.msra.mxu0 0.0
      %4423 = vmatprep.subr.mxu0 0.0
      %4424 = vmatpush1.xpose.msra.mxu0 0.0
      %4425 = vmatprep.subr.mxu0 0.0
      %4426 = vmatpush1.xpose.msra.mxu0 0.0
      %4427 = vmatprep.subr.mxu0 0.0
      %4428 = vmatpush1.xpose.msra.mxu0 0.0
      %4429 = vmatprep.subr.mxu0 0.0
      %4430 = vmatpush1.xpose.msra.mxu0 0.0
      %4431 = vmatprep.subr.mxu0 0.0
      %4432 = vmatpush1.xpose.msra.mxu0 0.0
      %4433 = vmatprep.subr.mxu0 0.0
      %4434 = vmatpush1.xpose.msra.mxu0 0.0
      %4435 = vmatprep.subr.mxu0 0.0
      %4436 = vmatpush1.xpose.msra.mxu0 0.0
      %4437 = vmatprep.subr.mxu0 0.0
      %4438 = vmatpush1.xpose.msra.mxu0 0.0
      %4439 = vmatprep.subr.mxu0 0.0
      %4440 = vmatpush1.xpose.msra.mxu0 0.0
      %4441 = vmatprep.subr.mxu0 0.0
      %4442 = vmatpush1.xpose.msra.mxu0 0.0
      %4443 = vmatprep.subr.mxu0 0.0
      %4444 = vmatpush1.xpose.msra.mxu0 0.0
      %4445 = vmatprep.subr.mxu0 0.0
      %4446 = vmatpush1.xpose.msra.mxu0 0.0
      %4447 = vmatprep.subr.mxu0 0.0
      %4448 = vmatpush1.xpose.msra.mxu0 0.0
      %4449 = vmatprep.subr.mxu0 0.0
      %4450 = vmatpush1.xpose.msra.mxu0 0.0
      %4451 = vmatprep.mubr.f32.mxu0 0.0
      %4452 = vmatmul.mubr.f32.gmra.mrb[0].mxu0 %v4376
      %v4453 = vpop.f32.mrb[0].mxu0
      %v4454 = vadd.f32 0.0, %v4453
      %v4455 = vpop.f32.mrb[0].mxu0
      %4456 = vmatprep.mubr.f32.mxu0 0.0
      %4457 = vmatmul.mubr.f32.gmra.mrb[0].mxu0 %v4379
      %v4458 = vpop.f32.mrb[0].mxu0
      %v4459 = vadd.f32 0.0, %v4458
      %v4460 = vpop.f32.mrb[0].mxu0
      %4461 = vdwg.mxu0
      %v4463 = vsel %vm2025, %v1537, 0
      %v4466 = vsel %vm2025, %v1542, 0
      %v4469 = vsel %vm2025, %v1762, 0
      %v4472 = vsel %vm2025, %v1767, 0
      %4474 = vmatprep.subr.mxu0 0.0
      %4475 = vmatpush1.xpose.msra.mxu0 %v4469
      %4476 = vmatprep.subr.mxu0 0.0
      %4477 = vmatpush1.xpose.msra.mxu0 %v4472
      %4478 = vmatprep.subr.mxu0 0.0
      %4479 = vmatpush1.xpose.msra.mxu0 0.0
      %4480 = vmatprep.subr.mxu0 0.0
      %4481 = vmatpush1.xpose.msra.mxu0 0.0
      %4482 = vmatprep.subr.mxu0 0.0
      %4483 = vmatpush1.xpose.msra.mxu0 0.0
      %4484 = vmatprep.subr.mxu0 0.0
      %4485 = vmatpush1.xpose.msra.mxu0 0.0
      %4486 = vmatprep.subr.mxu0 0.0
      %4487 = vmatpush1.xpose.msra.mxu0 0.0
      %4488 = vmatprep.subr.mxu0 0.0
      %4489 = vmatpush1.xpose.msra.mxu0 0.0
      %4490 = vmatprep.subr.mxu0 0.0
      %4491 = vmatpush1.xpose.msra.mxu0 0.0
      %4492 = vmatprep.subr.mxu0 0.0
      %4493 = vmatpush1.xpose.msra.mxu0 0.0
      %4494 = vmatprep.subr.mxu0 0.0
      %4495 = vmatpush1.xpose.msra.mxu0 0.0
      %4496 = vmatprep.subr.mxu0 0.0
      %4497 = vmatpush1.xpose.msra.mxu0 0.0
      %4498 = vmatprep.subr.mxu0 0.0
      %4499 = vmatpush1.xpose.msra.mxu0 0.0
      %4500 = vmatprep.subr.mxu0 0.0
      %4501 = vmatpush1.xpose.msra.mxu0 0.0
      %4502 = vmatprep.subr.mxu0 0.0
      %4503 = vmatpush1.xpose.msra.mxu0 0.0
      %4504 = vmatprep.subr.mxu0 0.0
      %4505 = vmatpush1.xpose.msra.mxu0 0.0
      %4506 = vmatprep.subr.mxu0 0.0
      %4507 = vmatpush1.xpose.msra.mxu0 0.0
      %4508 = vmatprep.subr.mxu0 0.0
      %4509 = vmatpush1.xpose.msra.mxu0 0.0
      %4510 = vmatprep.subr.mxu0 0.0
      %4511 = vmatpush1.xpose.msra.mxu0 0.0
      %4512 = vmatprep.subr.mxu0 0.0
      %4513 = vmatpush1.xpose.msra.mxu0 0.0
      %4514 = vmatprep.subr.mxu0 0.0
      %4515 = vmatpush1.xpose.msra.mxu0 0.0
      %4516 = vmatprep.subr.mxu0 0.0
      %4517 = vmatpush1.xpose.msra.mxu0 0.0
      %4518 = vmatprep.subr.mxu0 0.0
      %4519 = vmatpush1.xpose.msra.mxu0 0.0
      %4520 = vmatprep.subr.mxu0 0.0
      %4521 = vmatpush1.xpose.msra.mxu0 0.0
      %4522 = vmatprep.subr.mxu0 0.0
      %4523 = vmatpush1.xpose.msra.mxu0 0.0
      %4524 = vmatprep.subr.mxu0 0.0
      %4525 = vmatpush1.xpose.msra.mxu0 0.0
      %4526 = vmatprep.subr.mxu0 0.0
      %4527 = vmatpush1.xpose.msra.mxu0 0.0
      %4528 = vmatprep.subr.mxu0 0.0
      %4529 = vmatpush1.xpose.msra.mxu0 0.0
      %4530 = vmatprep.subr.mxu0 0.0
      %4531 = vmatpush1.xpose.msra.mxu0 0.0
      %4532 = vmatprep.subr.mxu0 0.0
      %4533 = vmatpush1.xpose.msra.mxu0 0.0
      %4534 = vmatprep.subr.mxu0 0.0
      %4535 = vmatpush1.xpose.msra.mxu0 0.0
      %4536 = vmatprep.subr.mxu0 0.0
      %4537 = vmatpush1.xpose.msra.mxu0 0.0
      %4538 = vmatprep.mubr.f32.mxu0 0.0
      %4539 = vmatmul.mubr.f32.gmra.mrb[0].mxu0 %v4463
      %v4540 = vpop.f32.mrb[0].mxu0
      %v4541 = vadd.f32 0.0, %v4540
      %v4542 = vpop.f32.mrb[0].mxu0
      %4543 = vmatprep.mubr.f32.mxu0 0.0
      %4544 = vmatmul.mubr.f32.gmra.mrb[0].mxu0 %v4466
      %v4545 = vpop.f32.mrb[0].mxu0
      %v4546 = vadd.f32 0.0, %v4545
      %v4547 = vpop.f32.mrb[0].mxu0
      %4548 = vdwg.mxu0
      %v4550 = vsel %vm2025, %v1547, 0
      %v4553 = vsel %vm2025, %v1552, 0
      %v4556 = vsel %vm2025, %v1772, 0
      %v4559 = vsel %vm2025, %v1777, 0
      %4561 = vmatprep.subr.mxu0 0.0
      %4562 = vmatpush1.xpose.msra.mxu0 %v4556
      %4563 = vmatprep.subr.mxu0 0.0
      %4564 = vmatpush1.xpose.msra.mxu0 %v4559
      %4565 = vmatprep.subr.mxu0 0.0
      %4566 = vmatpush1.xpose.msra.mxu0 0.0
      %4567 = vmatprep.subr.mxu0 0.0
      %4568 = vmatpush1.xpose.msra.mxu0 0.0
      %4569 = vmatprep.subr.mxu0 0.0
      %4570 = vmatpush1.xpose.msra.mxu0 0.0
      %4571 = vmatprep.subr.mxu0 0.0
      %4572 = vmatpush1.xpose.msra.mxu0 0.0
      %4573 = vmatprep.subr.mxu0 0.0
      %4574 = vmatpush1.xpose.msra.mxu0 0.0
      %4575 = vmatprep.subr.mxu0 0.0
      %4576 = vmatpush1.xpose.msra.mxu0 0.0
      %4577 = vmatprep.subr.mxu0 0.0
      %4578 = vmatpush1.xpose.msra.mxu0 0.0
      %4579 = vmatprep.subr.mxu0 0.0
      %4580 = vmatpush1.xpose.msra.mxu0 0.0
      %4581 = vmatprep.subr.mxu0 0.0
      %4582 = vmatpush1.xpose.msra.mxu0 0.0
      %4583 = vmatprep.subr.mxu0 0.0
      %4584 = vmatpush1.xpose.msra.mxu0 0.0
      %4585 = vmatprep.subr.mxu0 0.0
      %4586 = vmatpush1.xpose.msra.mxu0 0.0
      %4587 = vmatprep.subr.mxu0 0.0
      %4588 = vmatpush1.xpose.msra.mxu0 0.0
      %4589 = vmatprep.subr.mxu0 0.0
      %4590 = vmatpush1.xpose.msra.mxu0 0.0
      %4591 = vmatprep.subr.mxu0 0.0
      %4592 = vmatpush1.xpose.msra.mxu0 0.0
      %4593 = vmatprep.subr.mxu0 0.0
      %4594 = vmatpush1.xpose.msra.mxu0 0.0
      %4595 = vmatprep.subr.mxu0 0.0
      %4596 = vmatpush1.xpose.msra.mxu0 0.0
      %4597 = vmatprep.subr.mxu0 0.0
      %4598 = vmatpush1.xpose.msra.mxu0 0.0
      %4599 = vmatprep.subr.mxu0 0.0
      %4600 = vmatpush1.xpose.msra.mxu0 0.0
      %4601 = vmatprep.subr.mxu0 0.0
      %4602 = vmatpush1.xpose.msra.mxu0 0.0
      %4603 = vmatprep.subr.mxu0 0.0
      %4604 = vmatpush1.xpose.msra.mxu0 0.0
      %4605 = vmatprep.subr.mxu0 0.0
      %4606 = vmatpush1.xpose.msra.mxu0 0.0
      %4607 = vmatprep.subr.mxu0 0.0
      %4608 = vmatpush1.xpose.msra.mxu0 0.0
      %4609 = vmatprep.subr.mxu0 0.0
      %4610 = vmatpush1.xpose.msra.mxu0 0.0
      %4611 = vmatprep.subr.mxu0 0.0
      %4612 = vmatpush1.xpose.msra.mxu0 0.0
      %4613 = vmatprep.subr.mxu0 0.0
      %4614 = vmatpush1.xpose.msra.mxu0 0.0
      %4615 = vmatprep.subr.mxu0 0.0
      %4616 = vmatpush1.xpose.msra.mxu0 0.0
      %4617 = vmatprep.subr.mxu0 0.0
      %4618 = vmatpush1.xpose.msra.mxu0 0.0
      %4619 = vmatprep.subr.mxu0 0.0
      %4620 = vmatpush1.xpose.msra.mxu0 0.0
      %4621 = vmatprep.subr.mxu0 0.0
      %4622 = vmatpush1.xpose.msra.mxu0 0.0
      %4623 = vmatprep.subr.mxu0 0.0
      %4624 = vmatpush1.xpose.msra.mxu0 0.0
      %4625 = vmatprep.mubr.f32.mxu0 0.0
      %4626 = vmatmul.mubr.f32.gmra.mrb[0].mxu0 %v4550
      %v4627 = vpop.f32.mrb[0].mxu0
      %v4628 = vadd.f32 0.0, %v4627
      %v4629 = vpop.f32.mrb[0].mxu0
      %4630 = vmatprep.mubr.f32.mxu0 0.0
      %4631 = vmatmul.mubr.f32.gmra.mrb[0].mxu0 %v4553
      %v4632 = vpop.f32.mrb[0].mxu0
      %v4633 = vadd.f32 0.0, %v4632
      %v4634 = vpop.f32.mrb[0].mxu0
      %4635 = vdwg.mxu0
      %v4637 = vsel %vm2025, %v1557, 0
      %v4640 = vsel %vm2025, %v1562, 0
      %v4643 = vsel %vm2025, %v1782, 0
      %v4646 = vsel %vm2025, %v1787, 0
      %4648 = vmatprep.subr.mxu0 0.0
      %4649 = vmatpush1.xpose.msra.mxu0 %v4643
      %4650 = vmatprep.subr.mxu0 0.0
      %4651 = vmatpush1.xpose.msra.mxu0 %v4646
      %4652 = vmatprep.subr.mxu0 0.0
      %4653 = vmatpush1.xpose.msra.mxu0 0.0
      %4654 = vmatprep.subr.mxu0 0.0
      %4655 = vmatpush1.xpose.msra.mxu0 0.0
      %4656 = vmatprep.subr.mxu0 0.0
      %4657 = vmatpush1.xpose.msra.mxu0 0.0
      %4658 = vmatprep.subr.mxu0 0.0
      %4659 = vmatpush1.xpose.msra.mxu0 0.0
      %4660 = vmatprep.subr.mxu0 0.0
      %4661 = vmatpush1.xpose.msra.mxu0 0.0
      %4662 = vmatprep.subr.mxu0 0.0
      %4663 = vmatpush1.xpose.msra.mxu0 0.0
      %4664 = vmatprep.subr.mxu0 0.0
      %4665 = vmatpush1.xpose.msra.mxu0 0.0
      %4666 = vmatprep.subr.mxu0 0.0
      %4667 = vmatpush1.xpose.msra.mxu0 0.0
      %4668 = vmatprep.subr.mxu0 0.0
      %4669 = vmatpush1.xpose.msra.mxu0 0.0
      %4670 = vmatprep.subr.mxu0 0.0
      %4671 = vmatpush1.xpose.msra.mxu0 0.0
      %4672 = vmatprep.subr.mxu0 0.0
      %4673 = vmatpush1.xpose.msra.mxu0 0.0
      %4674 = vmatprep.subr.mxu0 0.0
      %4675 = vmatpush1.xpose.msra.mxu0 0.0
      %4676 = vmatprep.subr.mxu0 0.0
      %4677 = vmatpush1.xpose.msra.mxu0 0.0
      %4678 = vmatprep.subr.mxu0 0.0
      %4679 = vmatpush1.xpose.msra.mxu0 0.0
      %4680 = vmatprep.subr.mxu0 0.0
      %4681 = vmatpush1.xpose.msra.mxu0 0.0
      %4682 = vmatprep.subr.mxu0 0.0
      %4683 = vmatpush1.xpose.msra.mxu0 0.0
      %4684 = vmatprep.subr.mxu0 0.0
      %4685 = vmatpush1.xpose.msra.mxu0 0.0
      %4686 = vmatprep.subr.mxu0 0.0
      %4687 = vmatpush1.xpose.msra.mxu0 0.0
      %4688 = vmatprep.subr.mxu0 0.0
      %4689 = vmatpush1.xpose.msra.mxu0 0.0
      %4690 = vmatprep.subr.mxu0 0.0
      %4691 = vmatpush1.xpose.msra.mxu0 0.0
      %4692 = vmatprep.subr.mxu0 0.0
      %4693 = vmatpush1.xpose.msra.mxu0 0.0
      %4694 = vmatprep.subr.mxu0 0.0
      %4695 = vmatpush1.xpose.msra.mxu0 0.0
      %4696 = vmatprep.subr.mxu0 0.0
      %4697 = vmatpush1.xpose.msra.mxu0 0.0
      %4698 = vmatprep.subr.mxu0 0.0
      %4699 = vmatpush1.xpose.msra.mxu0 0.0
      %4700 = vmatprep.subr.mxu0 0.0
      %4701 = vmatpush1.xpose.msra.mxu0 0.0
      %4702 = vmatprep.subr.mxu0 0.0
      %4703 = vmatpush1.xpose.msra.mxu0 0.0
      %4704 = vmatprep.subr.mxu0 0.0
      %4705 = vmatpush1.xpose.msra.mxu0 0.0
      %4706 = vmatprep.subr.mxu0 0.0
      %4707 = vmatpush1.xpose.msra.mxu0 0.0
      %4708 = vmatprep.subr.mxu0 0.0
      %4709 = vmatpush1.xpose.msra.mxu0 0.0
      %4710 = vmatprep.subr.mxu0 0.0
      %4711 = vmatpush1.xpose.msra.mxu0 0.0
      %4712 = vmatprep.mubr.f32.mxu0 0.0
      %4713 = vmatmul.mubr.f32.gmra.mrb[0].mxu0 %v4637
      %v4714 = vpop.f32.mrb[0].mxu0
      %v4715 = vadd.f32 0.0, %v4714
      %v4716 = vpop.f32.mrb[0].mxu0
      %4717 = vmatprep.mubr.f32.mxu0 0.0
      %4718 = vmatmul.mubr.f32.gmra.mrb[0].mxu0 %v4640
      %v4719 = vpop.f32.mrb[0].mxu0
      %v4720 = vadd.f32 0.0, %v4719
      %v4721 = vpop.f32.mrb[0].mxu0
      %4722 = vdwg.mxu0
      %v4724 = vsel %vm2025, %v1567, 0
      %v4727 = vsel %vm2025, %v1572, 0
      %v4730 = vsel %vm2025, %v1792, 0
      %v4733 = vsel %vm2025, %v1797, 0
      %4735 = vmatprep.subr.mxu0 0.0
      %4736 = vmatpush1.xpose.msra.mxu0 %v4730
      %4737 = vmatprep.subr.mxu0 0.0
      %4738 = vmatpush1.xpose.msra.mxu0 %v4733
      %4739 = vmatprep.subr.mxu0 0.0
      %4740 = vmatpush1.xpose.msra.mxu0 0.0
      %4741 = vmatprep.subr.mxu0 0.0
      %4742 = vmatpush1.xpose.msra.mxu0 0.0
      %4743 = vmatprep.subr.mxu0 0.0
      %4744 = vmatpush1.xpose.msra.mxu0 0.0
      %4745 = vmatprep.subr.mxu0 0.0
      %4746 = vmatpush1.xpose.msra.mxu0 0.0
      %4747 = vmatprep.subr.mxu0 0.0
      %4748 = vmatpush1.xpose.msra.mxu0 0.0
      %4749 = vmatprep.subr.mxu0 0.0
      %4750 = vmatpush1.xpose.msra.mxu0 0.0
      %4751 = vmatprep.subr.mxu0 0.0
      %4752 = vmatpush1.xpose.msra.mxu0 0.0
      %4753 = vmatprep.subr.mxu0 0.0
      %4754 = vmatpush1.xpose.msra.mxu0 0.0
      %4755 = vmatprep.subr.mxu0 0.0
      %4756 = vmatpush1.xpose.msra.mxu0 0.0
      %4757 = vmatprep.subr.mxu0 0.0
      %4758 = vmatpush1.xpose.msra.mxu0 0.0
      %4759 = vmatprep.subr.mxu0 0.0
      %4760 = vmatpush1.xpose.msra.mxu0 0.0
      %4761 = vmatprep.subr.mxu0 0.0
      %4762 = vmatpush1.xpose.msra.mxu0 0.0
      %4763 = vmatprep.subr.mxu0 0.0
      %4764 = vmatpush1.xpose.msra.mxu0 0.0
      %4765 = vmatprep.subr.mxu0 0.0
      %4766 = vmatpush1.xpose.msra.mxu0 0.0
      %4767 = vmatprep.subr.mxu0 0.0
      %4768 = vmatpush1.xpose.msra.mxu0 0.0
      %4769 = vmatprep.subr.mxu0 0.0
      %4770 = vmatpush1.xpose.msra.mxu0 0.0
      %4771 = vmatprep.subr.mxu0 0.0
      %4772 = vmatpush1.xpose.msra.mxu0 0.0
      %4773 = vmatprep.subr.mxu0 0.0
      %4774 = vmatpush1.xpose.msra.mxu0 0.0
      %4775 = vmatprep.subr.mxu0 0.0
      %4776 = vmatpush1.xpose.msra.mxu0 0.0
      %4777 = vmatprep.subr.mxu0 0.0
      %4778 = vmatpush1.xpose.msra.mxu0 0.0
      %4779 = vmatprep.subr.mxu0 0.0
      %4780 = vmatpush1.xpose.msra.mxu0 0.0
      %4781 = vmatprep.subr.mxu0 0.0
      %4782 = vmatpush1.xpose.msra.mxu0 0.0
      %4783 = vmatprep.subr.mxu0 0.0
      %4784 = vmatpush1.xpose.msra.mxu0 0.0
      %4785 = vmatprep.subr.mxu0 0.0
      %4786 = vmatpush1.xpose.msra.mxu0 0.0
      %4787 = vmatprep.subr.mxu0 0.0
      %4788 = vmatpush1.xpose.msra.mxu0 0.0
      %4789 = vmatprep.subr.mxu0 0.0
      %4790 = vmatpush1.xpose.msra.mxu0 0.0
      %4791 = vmatprep.subr.mxu0 0.0
      %4792 = vmatpush1.xpose.msra.mxu0 0.0
      %4793 = vmatprep.subr.mxu0 0.0
      %4794 = vmatpush1.xpose.msra.mxu0 0.0
      %4795 = vmatprep.subr.mxu0 0.0
      %4796 = vmatpush1.xpose.msra.mxu0 0.0
      %4797 = vmatprep.subr.mxu0 0.0
      %4798 = vmatpush1.xpose.msra.mxu0 0.0
      %4799 = vmatprep.mubr.f32.mxu0 0.0
      %4800 = vmatmul.mubr.f32.gmra.mrb[0].mxu0 %v4724
      %v4801 = vpop.f32.mrb[0].mxu0
      %v4802 = vadd.f32 0.0, %v4801
      %v4803 = vpop.f32.mrb[0].mxu0
      %4804 = vmatprep.mubr.f32.mxu0 0.0
      %4805 = vmatmul.mubr.f32.gmra.mrb[0].mxu0 %v4727
      %v4806 = vpop.f32.mrb[0].mxu0
      %v4807 = vadd.f32 0.0, %v4806
      %v4808 = vpop.f32.mrb[0].mxu0
      %4809 = vdwg.mxu0
      %vm4810 = vcmask 130048
      %v4811 = vsel %vm4810, %v2105, -inf
      %4812 = vmax.xlane.f32.xlu0 %v4811
      %v4813 = vpop.xlane.xlu0 %4812
      %v4814 = vsel %vm4810, %v2110, -inf
      %4815 = vmax.xlane.f32.xlu0 %v4814
      %v4816 = vpop.xlane.xlu0 %4815
      %v4817 = vsel %vm4810, %v2192, -inf
      %4818 = vmax.xlane.f32.xlu0 %v4817
      %v4819 = vpop.xlane.xlu0 %4818
      %v4820 = vsel %vm4810, %v2197, -inf
      %4821 = vmax.xlane.f32.xlu0 %v4820
      %v4822 = vpop.xlane.xlu0 %4821
      %v4823 = vsel %vm4810, %v2279, -inf
      %4824 = vmax.xlane.f32.xlu0 %v4823
      %v4825 = vpop.xlane.xlu0 %4824
      %v4826 = vsel %vm4810, %v2284, -inf
      %4827 = vmax.xlane.f32.xlu0 %v4826
      %v4828 = vpop.xlane.xlu0 %4827
      %v4829 = vsel %vm4810, %v2366, -inf
      %4830 = vmax.xlane.f32.xlu0 %v4829
      %v4831 = vpop.xlane.xlu0 %4830
      %v4832 = vsel %vm4810, %v2371, -inf
      %4833 = vmax.xlane.f32.xlu0 %v4832
      %v4834 = vpop.xlane.xlu0 %4833
      %v4835 = vsel %vm4810, %v2453, -inf
      %4836 = vmax.xlane.f32.xlu0 %v4835
      %v4837 = vpop.xlane.xlu0 %4836
      %v4838 = vsel %vm4810, %v2458, -inf
      %4839 = vmax.xlane.f32.xlu0 %v4838
      %v4840 = vpop.xlane.xlu0 %4839
      %v4841 = vsel %vm4810, %v2540, -inf
      %4842 = vmax.xlane.f32.xlu0 %v4841
      %v4843 = vpop.xlane.xlu0 %4842
      %v4844 = vsel %vm4810, %v2545, -inf
      %4845 = vmax.xlane.f32.xlu0 %v4844
      %v4846 = vpop.xlane.xlu0 %4845
      %v4847 = vsel %vm4810, %v2627, -inf
      %4848 = vmax.xlane.f32.xlu0 %v4847
      %v4849 = vpop.xlane.xlu0 %4848
      %v4850 = vsel %vm4810, %v2632, -inf
      %4851 = vmax.xlane.f32.xlu0 %v4850
      %v4852 = vpop.xlane.xlu0 %4851
      %v4853 = vsel %vm4810, %v2714, -inf
      %4854 = vmax.xlane.f32.xlu0 %v4853
      %v4855 = vpop.xlane.xlu0 %4854
      %v4856 = vsel %vm4810, %v2719, -inf
      %4857 = vmax.xlane.f32.xlu0 %v4856
      %v4858 = vpop.xlane.xlu0 %4857
      %v4859 = vsel %vm4810, %v2801, -inf
      %4860 = vmax.xlane.f32.xlu0 %v4859
      %v4861 = vpop.xlane.xlu0 %4860
      %v4862 = vsel %vm4810, %v2806, -inf
      %4863 = vmax.xlane.f32.xlu0 %v4862
      %v4864 = vpop.xlane.xlu0 %4863
      %v4865 = vsel %vm4810, %v2888, -inf
      %4866 = vmax.xlane.f32.xlu0 %v4865
      %v4867 = vpop.xlane.xlu0 %4866
      %v4868 = vsel %vm4810, %v2893, -inf
      %4869 = vmax.xlane.f32.xlu0 %v4868
      %v4870 = vpop.xlane.xlu0 %4869
      %v4871 = vsel %vm4810, %v2975, -inf
      %4872 = vmax.xlane.f32.xlu0 %v4871
      %v4873 = vpop.xlane.xlu0 %4872
      %v4874 = vsel %vm4810, %v2980, -inf
      %4875 = vmax.xlane.f32.xlu0 %v4874
      %v4876 = vpop.xlane.xlu0 %4875
      %v4877 = vsel %vm4810, %v3062, -inf
      %4878 = vmax.xlane.f32.xlu0 %v4877
      %v4879 = vpop.xlane.xlu0 %4878
      %v4880 = vsel %vm4810, %v3067, -inf
      %4881 = vmax.xlane.f32.xlu0 %v4880
      %v4882 = vpop.xlane.xlu0 %4881
      %v4883 = vsel %vm4810, %v3149, -inf
      %4884 = vmax.xlane.f32.xlu0 %v4883
      %v4885 = vpop.xlane.xlu0 %4884
      %v4886 = vsel %vm4810, %v3154, -inf
      %4887 = vmax.xlane.f32.xlu0 %v4886
      %v4888 = vpop.xlane.xlu0 %4887
      %v4889 = vsel %vm4810, %v3236, -inf
      %4890 = vmax.xlane.f32.xlu0 %v4889
      %v4891 = vpop.xlane.xlu0 %4890
      %v4892 = vsel %vm4810, %v3241, -inf
      %4893 = vmax.xlane.f32.xlu0 %v4892
      %v4894 = vpop.xlane.xlu0 %4893
      %v4895 = vsel %vm4810, %v3323, -inf
      %4896 = vmax.xlane.f32.xlu0 %v4895
      %v4897 = vpop.xlane.xlu0 %4896
      %v4898 = vsel %vm4810, %v3328, -inf
      %4899 = vmax.xlane.f32.xlu0 %v4898
      %v4900 = vpop.xlane.xlu0 %4899
      %v4901 = vsel %vm4810, %v3410, -inf
      %4902 = vmax.xlane.f32.xlu0 %v4901
      %v4903 = vpop.xlane.xlu0 %4902
      %v4904 = vsel %vm4810, %v3415, -inf
      %4905 = vmax.xlane.f32.xlu0 %v4904
      %v4906 = vpop.xlane.xlu0 %4905
      %v4907 = vsel %vm4810, %v3497, -inf
      %4908 = vmax.xlane.f32.xlu0 %v4907
      %v4909 = vpop.xlane.xlu0 %4908
      %v4910 = vsel %vm4810, %v3502, -inf
      %4911 = vmax.xlane.f32.xlu0 %v4910
      %v4912 = vpop.xlane.xlu0 %4911
      %v4913 = vsel %vm4810, %v3584, -inf
      %4914 = vmax.xlane.f32.xlu0 %v4913
      %v4915 = vpop.xlane.xlu0 %4914
      %v4916 = vsel %vm4810, %v3589, -inf
      %4917 = vmax.xlane.f32.xlu0 %v4916
      %v4918 = vpop.xlane.xlu0 %4917
      %v4919 = vsel %vm4810, %v3671, -inf
      %4920 = vmax.xlane.f32.xlu0 %v4919
      %v4921 = vpop.xlane.xlu0 %4920
      %v4922 = vsel %vm4810, %v3676, -inf
      %4923 = vmax.xlane.f32.xlu0 %v4922
      %v4924 = vpop.xlane.xlu0 %4923
      %v4925 = vsel %vm4810, %v3758, -inf
      %4926 = vmax.xlane.f32.xlu0 %v4925
      %v4927 = vpop.xlane.xlu0 %4926
      %v4928 = vsel %vm4810, %v3763, -inf
      %4929 = vmax.xlane.f32.xlu0 %v4928
      %v4930 = vpop.xlane.xlu0 %4929
      %v4931 = vsel %vm4810, %v3845, -inf
      %4932 = vmax.xlane.f32.xlu0 %v4931
      %v4933 = vpop.xlane.xlu0 %4932
      %v4934 = vsel %vm4810, %v3850, -inf
      %4935 = vmax.xlane.f32.xlu0 %v4934
      %v4936 = vpop.xlane.xlu0 %4935
      %v4937 = vsel %vm4810, %v3932, -inf
      %4938 = vmax.xlane.f32.xlu0 %v4937
      %v4939 = vpop.xlane.xlu0 %4938
      %v4940 = vsel %vm4810, %v3937, -inf
      %4941 = vmax.xlane.f32.xlu0 %v4940
      %v4942 = vpop.xlane.xlu0 %4941
      %v4943 = vsel %vm4810, %v4019, -inf
      %4944 = vmax.xlane.f32.xlu0 %v4943
      %v4945 = vpop.xlane.xlu0 %4944
      %v4946 = vsel %vm4810, %v4024, -inf
      %4947 = vmax.xlane.f32.xlu0 %v4946
      %v4948 = vpop.xlane.xlu0 %4947
      %v4949 = vsel %vm4810, %v4106, -inf
      %4950 = vmax.xlane.f32.xlu0 %v4949
      %v4951 = vpop.xlane.xlu0 %4950
      %v4952 = vsel %vm4810, %v4111, -inf
      %4953 = vmax.xlane.f32.xlu0 %v4952
      %v4954 = vpop.xlane.xlu0 %4953
      %v4955 = vsel %vm4810, %v4193, -inf
      %4956 = vmax.xlane.f32.xlu0 %v4955
      %v4957 = vpop.xlane.xlu0 %4956
      %v4958 = vsel %vm4810, %v4198, -inf
      %4959 = vmax.xlane.f32.xlu0 %v4958
      %v4960 = vpop.xlane.xlu0 %4959
      %v4961 = vsel %vm4810, %v4280, -inf
      %4962 = vmax.xlane.f32.xlu0 %v4961
      %v4963 = vpop.xlane.xlu0 %4962
      %v4964 = vsel %vm4810, %v4285, -inf
      %4965 = vmax.xlane.f32.xlu0 %v4964
      %v4966 = vpop.xlane.xlu0 %4965
      %v4967 = vsel %vm4810, %v4367, -inf
      %4968 = vmax.xlane.f32.xlu0 %v4967
      %v4969 = vpop.xlane.xlu0 %4968
      %v4970 = vsel %vm4810, %v4372, -inf
      %4971 = vmax.xlane.f32.xlu0 %v4970
      %v4972 = vpop.xlane.xlu0 %4971
      %v4973 = vsel %vm4810, %v4454, -inf
      %4974 = vmax.xlane.f32.xlu0 %v4973
      %v4975 = vpop.xlane.xlu0 %4974
      %v4976 = vsel %vm4810, %v4459, -inf
      %4977 = vmax.xlane.f32.xlu0 %v4976
      %v4978 = vpop.xlane.xlu0 %4977
      %v4979 = vsel %vm4810, %v4541, -inf
      %4980 = vmax.xlane.f32.xlu0 %v4979
      %v4981 = vpop.xlane.xlu0 %4980
      %v4982 = vsel %vm4810, %v4546, -inf
      %4983 = vmax.xlane.f32.xlu0 %v4982
      %v4984 = vpop.xlane.xlu0 %4983
      %v4985 = vsel %vm4810, %v4628, -inf
      %4986 = vmax.xlane.f32.xlu0 %v4985
      %v4987 = vpop.xlane.xlu0 %4986
      %v4988 = vsel %vm4810, %v4633, -inf
      %4989 = vmax.xlane.f32.xlu0 %v4988
      %v4990 = vpop.xlane.xlu0 %4989
      %v4991 = vsel %vm4810, %v4715, -inf
      %4992 = vmax.xlane.f32.xlu0 %v4991
      %v4993 = vpop.xlane.xlu0 %4992
      %v4994 = vsel %vm4810, %v4720, -inf
      %4995 = vmax.xlane.f32.xlu0 %v4994
      %v4996 = vpop.xlane.xlu0 %4995
      %v4997 = vsel %vm4810, %v4802, -inf
      %4998 = vmax.xlane.f32.xlu0 %v4997
      %v4999 = vpop.xlane.xlu0 %4998
      %v5000 = vsel %vm4810, %v4807, -inf
      %5001 = vmax.xlane.f32.xlu0 %v5000
      %v5002 = vpop.xlane.xlu0 %5001
      %v5035 = vlaneseq
      %v5036 = vand.u32 %v5035, 127
      %v5037 = vlaneseq
      %v5038 = vshrl.u32 %v5037, 7
      %v5039 = vsub.s32 %v5036, %v5038
      %v5040 = vrot.slane %v4909, %v5039
      %v5041 = vadd.s32 %v5036, 4294967288
      %v5042 = vlaneseq
      %v5043 = vshrl.u32 %v5042, 7
      %v5044 = vsub.s32 %v5041, %v5043
      %v5045 = vrot.slane %v4912, %v5044
      %vm5046 = vcmask 130112
      %v5047 = vsel %vm5046, %v5045, %v5040
      %v5048 = vlaneseq
      %v5049 = vshrl.u32 %v5048, 7
      %v5050 = vsub.s32 %v5036, %v5049
      %v5051 = vrot.slane %v4915, %v5050
      %v5052 = vlaneseq
      %v5053 = vshrl.u32 %v5052, 7
      %v5054 = vsub.s32 %v5041, %v5053
      %v5055 = vrot.slane %v4918, %v5054
      %v5056 = vsel %vm5046, %v5055, %v5051
      %v5057 = vlaneseq
      %v5058 = vshrl.u32 %v5057, 7
      %v5059 = vsub.s32 %v5036, %v5058
      %v5060 = vrot.slane %v4921, %v5059
      %v5061 = vlaneseq
      %v5062 = vshrl.u32 %v5061, 7
      %v5063 = vsub.s32 %v5041, %v5062
      %v5064 = vrot.slane %v4924, %v5063
      %v5065 = vsel %vm5046, %v5064, %v5060
      %v5066 = vlaneseq
      %v5067 = vshrl.u32 %v5066, 7
      %v5068 = vsub.s32 %v5036, %v5067
      %v5069 = vrot.slane %v4927, %v5068
      %v5070 = vlaneseq
      %v5071 = vshrl.u32 %v5070, 7
      %v5072 = vsub.s32 %v5041, %v5071
      %v5073 = vrot.slane %v4930, %v5072
      %v5074 = vsel %vm5046, %v5073, %v5069
      %v5075 = vlaneseq
      %v5076 = vshrl.u32 %v5075, 7
      %v5077 = vsub.s32 %v5036, %v5076
      %v5078 = vrot.slane %v4933, %v5077
      %v5079 = vlaneseq
      %v5080 = vshrl.u32 %v5079, 7
      %v5081 = vsub.s32 %v5041, %v5080
      %v5082 = vrot.slane %v4936, %v5081
      %v5083 = vsel %vm5046, %v5082, %v5078
      %v5084 = vlaneseq
      %v5085 = vshrl.u32 %v5084, 7
      %v5086 = vsub.s32 %v5036, %v5085
      %v5087 = vrot.slane %v4939, %v5086
      %v5088 = vlaneseq
      %v5089 = vshrl.u32 %v5088, 7
      %v5090 = vsub.s32 %v5041, %v5089
      %v5091 = vrot.slane %v4942, %v5090
      %v5092 = vsel %vm5046, %v5091, %v5087
      %v5093 = vlaneseq
      %v5094 = vshrl.u32 %v5093, 7
      %v5095 = vsub.s32 %v5036, %v5094
      %v5096 = vrot.slane %v4945, %v5095
      %v5097 = vlaneseq
      %v5098 = vshrl.u32 %v5097, 7
      %v5099 = vsub.s32 %v5041, %v5098
      %v5100 = vrot.slane %v4948, %v5099
      %v5101 = vsel %vm5046, %v5100, %v5096
      %v5102 = vlaneseq
      %v5103 = vshrl.u32 %v5102, 7
      %v5104 = vsub.s32 %v5036, %v5103
      %v5105 = vrot.slane %v4951, %v5104
      %v5106 = vlaneseq
      %v5107 = vshrl.u32 %v5106, 7
      %v5108 = vsub.s32 %v5041, %v5107
      %v5109 = vrot.slane %v4954, %v5108
      %v5110 = vsel %vm5046, %v5109, %v5105
      %v5111 = vlaneseq
      %v5112 = vshrl.u32 %v5111, 7
      %v5113 = vsub.s32 %v5036, %v5112
      %v5114 = vrot.slane %v4957, %v5113
      %v5115 = vlaneseq
      %v5116 = vshrl.u32 %v5115, 7
      %v5117 = vsub.s32 %v5041, %v5116
      %v5118 = vrot.slane %v4960, %v5117
      %v5119 = vsel %vm5046, %v5118, %v5114
      %v5120 = vlaneseq
      %v5121 = vshrl.u32 %v5120, 7
      %v5122 = vsub.s32 %v5036, %v5121
      %v5123 = vrot.slane %v4963, %v5122
      %v5124 = vlaneseq
      %v5125 = vshrl.u32 %v5124, 7
      %v5126 = vsub.s32 %v5041, %v5125
      %v5127 = vrot.slane %v4966, %v5126
      %v5128 = vsel %vm5046, %v5127, %v5123
      %v5129 = vlaneseq
      %v5130 = vshrl.u32 %v5129, 7
      %v5131 = vsub.s32 %v5036, %v5130
      %v5132 = vrot.slane %v4969, %v5131
      %v5133 = vlaneseq
      %v5134 = vshrl.u32 %v5133, 7
      %v5135 = vsub.s32 %v5041, %v5134
      %v5136 = vrot.slane %v4972, %v5135
      %v5137 = vsel %vm5046, %v5136, %v5132
      %v5138 = vlaneseq
      %v5139 = vshrl.u32 %v5138, 7
      %v5140 = vsub.s32 %v5036, %v5139
      %v5141 = vrot.slane %v4975, %v5140
      %v5142 = vlaneseq
      %v5143 = vshrl.u32 %v5142, 7
      %v5144 = vsub.s32 %v5041, %v5143
      %v5145 = vrot.slane %v4978, %v5144
      %v5146 = vsel %vm5046, %v5145, %v5141
      %v5147 = vlaneseq
      %v5148 = vshrl.u32 %v5147, 7
      %v5149 = vsub.s32 %v5036, %v5148
      %v5150 = vrot.slane %v4981, %v5149
      %v5151 = vlaneseq
      %v5152 = vshrl.u32 %v5151, 7
      %v5153 = vsub.s32 %v5041, %v5152
      %v5154 = vrot.slane %v4984, %v5153
      %v5155 = vsel %vm5046, %v5154, %v5150
      %v5156 = vlaneseq
      %v5157 = vshrl.u32 %v5156, 7
      %v5158 = vsub.s32 %v5036, %v5157
      %v5159 = vrot.slane %v4987, %v5158
      %v5160 = vlaneseq
      %v5161 = vshrl.u32 %v5160, 7
      %v5162 = vsub.s32 %v5041, %v5161
      %v5163 = vrot.slane %v4990, %v5162
      %v5164 = vsel %vm5046, %v5163, %v5159
      %v5165 = vlaneseq
      %v5166 = vshrl.u32 %v5165, 7
      %v5167 = vsub.s32 %v5036, %v5166
      %v5168 = vrot.slane %v4993, %v5167
      %v5169 = vlaneseq
      %v5170 = vshrl.u32 %v5169, 7
      %v5171 = vsub.s32 %v5041, %v5170
      %v5172 = vrot.slane %v4996, %v5171
      %v5173 = vsel %vm5046, %v5172, %v5168
      %v5174 = vlaneseq
      %v5175 = vshrl.u32 %v5174, 7
      %v5176 = vsub.s32 %v5036, %v5175
      %v5177 = vrot.slane %v4999, %v5176
      %v5178 = vlaneseq
      %v5179 = vshrl.u32 %v5178, 7
      %v5180 = vsub.s32 %v5041, %v5179
      %v5181 = vrot.slane %v5002, %v5180
      %v5182 = vsel %vm5046, %v5181, %v5177
      %vm5183 = vcmask 1041409
      %v5184 = vsel %vm5183, %v5056, %v5047
      %vm5185 = vcmask 1042434
      %v5186 = vsel %vm5185, %v5065, %v5184
      %vm5187 = vcmask 1043459
      %v5188 = vsel %vm5187, %v5074, %v5186
      %vm5189 = vcmask 1044484
      %v5190 = vsel %vm5189, %v5083, %v5188
      %vm5191 = vcmask 1045509
      %v5192 = vsel %vm5191, %v5092, %v5190
      %vm5193 = vcmask 1046534
      %v5194 = vsel %vm5193, %v5101, %v5192
      %vm5195 = vcmask 1047559
      %v5196 = vsel %vm5195, %v5110, %v5194
      %v5197 = vsel %vm5183, %v5128, %v5119
      %v5198 = vsel %vm5185, %v5137, %v5197
      %v5199 = vsel %vm5187, %v5146, %v5198
      %v5200 = vsel %vm5189, %v5155, %v5199
      %v5201 = vsel %vm5191, %v5164, %v5200
      %v5202 = vsel %vm5193, %v5173, %v5201
      %v5203 = vsel %vm5195, %v5182, %v5202
      %5206 = vxpose.xlu0.b32.start [1/16] %v5196, 128
      %5207 = vxpose.xlu0.b32.cont [2/16] %v5203, 128
      %5208 = vxpose.xlu0.b32.cont [3/16] 0.0, 128
      %5209 = vxpose.xlu0.b32.cont [4/16] 0.0, 128
      %5210 = vxpose.xlu0.b32.cont [5/16] 0.0, 128
      %5211 = vxpose.xlu0.b32.cont [6/16] 0.0, 128
      %5212 = vxpose.xlu0.b32.cont [7/16] 0.0, 128
      %5213 = vxpose.xlu0.b32.cont [8/16] 0.0, 128
      %5214 = vxpose.xlu0.b32.cont [9/16] 0.0, 128
      %5215 = vxpose.xlu0.b32.cont [10/16] 0.0, 128
      %5216 = vxpose.xlu0.b32.cont [11/16] 0.0, 128
      %5217 = vxpose.xlu0.b32.cont [12/16] 0.0, 128
      %5218 = vxpose.xlu0.b32.cont [13/16] 0.0, 128
      %5219 = vxpose.xlu0.b32.cont [14/16] 0.0, 128
      %5220 = vxpose.xlu0.b32.cont [15/16] 0.0, 128
      %5221 = vxpose.xlu0.b32.end [16/16] 0.0, 128
      %v5222 = vpop.trf.xlu0
      %v5223 = vpop.trf.xlu0
      %v5224 = vpop.trf.xlu0
      %v5225 = vpop.trf.xlu0
      %v5226 = vpop.trf.xlu0
      %v5227 = vpop.trf.xlu0
      %v5228 = vpop.trf.xlu0
      %v5229 = vpop.trf.xlu0
      %v5230 = vpop.trf.xlu0
      %v5231 = vpop.trf.xlu0
      %v5232 = vpop.trf.xlu0
      %v5233 = vpop.trf.xlu0
      %v5234 = vpop.trf.xlu0
      %v5235 = vpop.trf.xlu0
      %v5236 = vpop.trf.xlu0
      %v5237 = vpop.trf.xlu0
      %v5240 = vlaneseq
      %v5241 = vshrl.u32 %v5240, 7
      %v5242 = vsub.s32 0, %v5241
      %v5243 = vrot.slane %v5222, %v5242
      %5245 = vbcast.lane.b32.xlu0 %v5243, 256
      %v5246 = vpop.permute.xlu0 %5245
      %s5248 = sor.u32 256, 8
      %5249 = vbcast.lane.b32.xlu0 %v5243, %s5248
      %v5250 = vpop.permute.xlu0 %5249
      %v5251 = vlaneseq
      %v5252 = vshrl.u32 %v5251, 7
      %v5253 = vsub.s32 1, %v5252
      %v5254 = vrot.slane %v5222, %v5253
      %5256 = vbcast.lane.b32.xlu0 %v5254, 256
      %v5257 = vpop.permute.xlu0 %5256
      %s5259 = sor.u32 256, 8
      %5260 = vbcast.lane.b32.xlu0 %v5254, %s5259
      %v5261 = vpop.permute.xlu0 %5260
      %v5262 = vlaneseq
      %v5263 = vshrl.u32 %v5262, 7
      %v5264 = vsub.s32 2, %v5263
      %v5265 = vrot.slane %v5222, %v5264
      %5267 = vbcast.lane.b32.xlu0 %v5265, 256
      %v5268 = vpop.permute.xlu0 %5267
      %s5270 = sor.u32 256, 8
      %5271 = vbcast.lane.b32.xlu0 %v5265, %s5270
      %v5272 = vpop.permute.xlu0 %5271
      %v5273 = vlaneseq
      %v5274 = vshrl.u32 %v5273, 7
      %v5275 = vsub.s32 3, %v5274
      %v5276 = vrot.slane %v5222, %v5275
      %5278 = vbcast.lane.b32.xlu0 %v5276, 256
      %v5279 = vpop.permute.xlu0 %5278
      %s5281 = sor.u32 256, 8
      %5282 = vbcast.lane.b32.xlu0 %v5276, %s5281
      %v5283 = vpop.permute.xlu0 %5282
      %v5284 = vlaneseq
      %v5285 = vshrl.u32 %v5284, 7
      %v5286 = vsub.s32 4, %v5285
      %v5287 = vrot.slane %v5222, %v5286
      %5289 = vbcast.lane.b32.xlu0 %v5287, 256
      %v5290 = vpop.permute.xlu0 %5289
      %s5292 = sor.u32 256, 8
      %5293 = vbcast.lane.b32.xlu0 %v5287, %s5292
      %v5294 = vpop.permute.xlu0 %5293
      %v5295 = vlaneseq
      %v5296 = vshrl.u32 %v5295, 7
      %v5297 = vsub.s32 5, %v5296
      %v5298 = vrot.slane %v5222, %v5297
      %5300 = vbcast.lane.b32.xlu0 %v5298, 256
      %v5301 = vpop.permute.xlu0 %5300
      %s5303 = sor.u32 256, 8
      %5304 = vbcast.lane.b32.xlu0 %v5298, %s5303
      %v5305 = vpop.permute.xlu0 %5304
      %v5306 = vlaneseq
      %v5307 = vshrl.u32 %v5306, 7
      %v5308 = vsub.s32 6, %v5307
      %v5309 = vrot.slane %v5222, %v5308
      %5311 = vbcast.lane.b32.xlu0 %v5309, 256
      %v5312 = vpop.permute.xlu0 %5311
      %s5314 = sor.u32 256, 8
      %5315 = vbcast.lane.b32.xlu0 %v5309, %s5314
      %v5316 = vpop.permute.xlu0 %5315
      %v5317 = vlaneseq
      %v5318 = vshrl.u32 %v5317, 7
      %v5319 = vsub.s32 7, %v5318
      %v5320 = vrot.slane %v5222, %v5319
      %5322 = vbcast.lane.b32.xlu0 %v5320, 256
      %v5323 = vpop.permute.xlu0 %5322
      %s5325 = sor.u32 256, 8
      %5326 = vbcast.lane.b32.xlu0 %v5320, %s5325
      %v5327 = vpop.permute.xlu0 %5326
      %v5328 = vlaneseq
      %v5329 = vshrl.u32 %v5328, 7
      %v5330 = vsub.s32 0, %v5329
      %v5331 = vrot.slane %v5223, %v5330
      %5333 = vbcast.lane.b32.xlu0 %v5331, 256
      %v5334 = vpop.permute.xlu0 %5333
      %s5336 = sor.u32 256, 8
      %5337 = vbcast.lane.b32.xlu0 %v5331, %s5336
      %v5338 = vpop.permute.xlu0 %5337
      %v5339 = vlaneseq
      %v5340 = vshrl.u32 %v5339, 7
      %v5341 = vsub.s32 1, %v5340
      %v5342 = vrot.slane %v5223, %v5341
      %5344 = vbcast.lane.b32.xlu0 %v5342, 256
      %v5345 = vpop.permute.xlu0 %5344
      %s5347 = sor.u32 256, 8
      %5348 = vbcast.lane.b32.xlu0 %v5342, %s5347
      %v5349 = vpop.permute.xlu0 %5348
      %v5350 = vlaneseq
      %v5351 = vshrl.u32 %v5350, 7
      %v5352 = vsub.s32 2, %v5351
      %v5353 = vrot.slane %v5223, %v5352
      %5355 = vbcast.lane.b32.xlu0 %v5353, 256
      %v5356 = vpop.permute.xlu0 %5355
      %s5358 = sor.u32 256, 8
      %5359 = vbcast.lane.b32.xlu0 %v5353, %s5358
      %v5360 = vpop.permute.xlu0 %5359
      %v5361 = vlaneseq
      %v5362 = vshrl.u32 %v5361, 7
      %v5363 = vsub.s32 3, %v5362
      %v5364 = vrot.slane %v5223, %v5363
      %5366 = vbcast.lane.b32.xlu0 %v5364, 256
      %v5367 = vpop.permute.xlu0 %5366
      %s5369 = sor.u32 256, 8
      %5370 = vbcast.lane.b32.xlu0 %v5364, %s5369
      %v5371 = vpop.permute.xlu0 %5370
      %v5372 = vlaneseq
      %v5373 = vshrl.u32 %v5372, 7
      %v5374 = vsub.s32 4, %v5373
      %v5375 = vrot.slane %v5223, %v5374
      %5377 = vbcast.lane.b32.xlu0 %v5375, 256
      %v5378 = vpop.permute.xlu0 %5377
      %s5380 = sor.u32 256, 8
      %5381 = vbcast.lane.b32.xlu0 %v5375, %s5380
      %v5382 = vpop.permute.xlu0 %5381
      %v5383 = vlaneseq
      %v5384 = vshrl.u32 %v5383, 7
      %v5385 = vsub.s32 5, %v5384
      %v5386 = vrot.slane %v5223, %v5385
      %5388 = vbcast.lane.b32.xlu0 %v5386, 256
      %v5389 = vpop.permute.xlu0 %5388
      %s5391 = sor.u32 256, 8
      %5392 = vbcast.lane.b32.xlu0 %v5386, %s5391
      %v5393 = vpop.permute.xlu0 %5392
      %v5394 = vlaneseq
      %v5395 = vshrl.u32 %v5394, 7
      %v5396 = vsub.s32 6, %v5395
      %v5397 = vrot.slane %v5223, %v5396
      %5399 = vbcast.lane.b32.xlu0 %v5397, 256
      %v5400 = vpop.permute.xlu0 %5399
      %s5402 = sor.u32 256, 8
      %5403 = vbcast.lane.b32.xlu0 %v5397, %s5402
      %v5404 = vpop.permute.xlu0 %5403
      %v5405 = vlaneseq
      %v5406 = vshrl.u32 %v5405, 7
      %v5407 = vsub.s32 7, %v5406
      %v5408 = vrot.slane %v5223, %v5407
      %5410 = vbcast.lane.b32.xlu0 %v5408, 256
      %v5411 = vpop.permute.xlu0 %5410
      %s5413 = sor.u32 256, 8
      %5414 = vbcast.lane.b32.xlu0 %v5408, %s5413
      %v5415 = vpop.permute.xlu0 %5414
      %v5448 = vmax.f32 %v4813, %v5246
      %v5449 = vmax.f32 %v4816, %v5250
      %v5450 = vmax.f32 %v4819, %v5257
      %v5451 = vmax.f32 %v4822, %v5261
      %v5452 = vmax.f32 %v4825, %v5268
      %v5453 = vmax.f32 %v4828, %v5272
      %v5454 = vmax.f32 %v4831, %v5279
      %v5455 = vmax.f32 %v4834, %v5283
      %v5456 = vmax.f32 %v4837, %v5290
      %v5457 = vmax.f32 %v4840, %v5294
      %v5458 = vmax.f32 %v4843, %v5301
      %v5459 = vmax.f32 %v4846, %v5305
      %v5460 = vmax.f32 %v4849, %v5312
      %v5461 = vmax.f32 %v4852, %v5316
      %v5462 = vmax.f32 %v4855, %v5323
      %v5463 = vmax.f32 %v4858, %v5327
      %v5464 = vmax.f32 %v4861, %v5334
      %v5465 = vmax.f32 %v4864, %v5338
      %v5466 = vmax.f32 %v4867, %v5345
      %v5467 = vmax.f32 %v4870, %v5349
      %v5468 = vmax.f32 %v4873, %v5356
      %v5469 = vmax.f32 %v4876, %v5360
      %v5470 = vmax.f32 %v4879, %v5367
      %v5471 = vmax.f32 %v4882, %v5371
      %v5472 = vmax.f32 %v4885, %v5378
      %v5473 = vmax.f32 %v4888, %v5382
      %v5474 = vmax.f32 %v4891, %v5389
      %v5475 = vmax.f32 %v4894, %v5393
      %v5476 = vmax.f32 %v4897, %v5400
      %v5477 = vmax.f32 %v4900, %v5404
      %v5478 = vmax.f32 %v4903, %v5411
      %v5479 = vmax.f32 %v4906, %v5415
      %5481 = vset.pattern.permute.xlu0 0
      %5482 = vperm.xlu0 %5481, %v5448
      %v5483 = vpop.permute.xlu0 %5482
      %5486 = vset.pattern.permute.xlu0 0
      %5487 = vperm.xlu0 %5486, %v5449
      %v5488 = vpop.permute.xlu0 %5487
      %5491 = vset.pattern.permute.xlu0 0
      %5492 = vperm.xlu0 %5491, %v5450
      %v5493 = vpop.permute.xlu0 %5492
      %5496 = vset.pattern.permute.xlu0 0
      %5497 = vperm.xlu0 %5496, %v5451
      %v5498 = vpop.permute.xlu0 %5497
      %5501 = vset.pattern.permute.xlu0 0
      %5502 = vperm.xlu0 %5501, %v5452
      %v5503 = vpop.permute.xlu0 %5502
      %5506 = vset.pattern.permute.xlu0 0
      %5507 = vperm.xlu0 %5506, %v5453
      %v5508 = vpop.permute.xlu0 %5507
      %5511 = vset.pattern.permute.xlu0 0
      %5512 = vperm.xlu0 %5511, %v5454
      %v5513 = vpop.permute.xlu0 %5512
      %5516 = vset.pattern.permute.xlu0 0
      %5517 = vperm.xlu0 %5516, %v5455
      %v5518 = vpop.permute.xlu0 %5517
      %5521 = vset.pattern.permute.xlu0 0
      %5522 = vperm.xlu0 %5521, %v5456
      %v5523 = vpop.permute.xlu0 %5522
      %5526 = vset.pattern.permute.xlu0 0
      %5527 = vperm.xlu0 %5526, %v5457
      %v5528 = vpop.permute.xlu0 %5527
      %5531 = vset.pattern.permute.xlu0 0
      %5532 = vperm.xlu0 %5531, %v5458
      %v5533 = vpop.permute.xlu0 %5532
      %5536 = vset.pattern.permute.xlu0 0
      %5537 = vperm.xlu0 %5536, %v5459
      %v5538 = vpop.permute.xlu0 %5537
      %5541 = vset.pattern.permute.xlu0 0
      %5542 = vperm.xlu0 %5541, %v5460
      %v5543 = vpop.permute.xlu0 %5542
      %5546 = vset.pattern.permute.xlu0 0
      %5547 = vperm.xlu0 %5546, %v5461
      %v5548 = vpop.permute.xlu0 %5547
      %5551 = vset.pattern.permute.xlu0 0
      %5552 = vperm.xlu0 %5551, %v5462
      %v5553 = vpop.permute.xlu0 %5552
      %5556 = vset.pattern.permute.xlu0 0
      %5557 = vperm.xlu0 %5556, %v5463
      %v5558 = vpop.permute.xlu0 %5557
      %5561 = vset.pattern.permute.xlu0 0
      %5562 = vperm.xlu0 %5561, %v5464
      %v5563 = vpop.permute.xlu0 %5562
      %5566 = vset.pattern.permute.xlu0 0
      %5567 = vperm.xlu0 %5566, %v5465
      %v5568 = vpop.permute.xlu0 %5567
      %5571 = vset.pattern.permute.xlu0 0
      %5572 = vperm.xlu0 %5571, %v5466
      %v5573 = vpop.permute.xlu0 %5572
      %5576 = vset.pattern.permute.xlu0 0
      %5577 = vperm.xlu0 %5576, %v5467
      %v5578 = vpop.permute.xlu0 %5577
      %5581 = vset.pattern.permute.xlu0 0
      %5582 = vperm.xlu0 %5581, %v5468
      %v5583 = vpop.permute.xlu0 %5582
      %5586 = vset.pattern.permute.xlu0 0
      %5587 = vperm.xlu0 %5586, %v5469
      %v5588 = vpop.permute.xlu0 %5587
      %5591 = vset.pattern.permute.xlu0 0
      %5592 = vperm.xlu0 %5591, %v5470
      %v5593 = vpop.permute.xlu0 %5592
      %5596 = vset.pattern.permute.xlu0 0
      %5597 = vperm.xlu0 %5596, %v5471
      %v5598 = vpop.permute.xlu0 %5597
      %5601 = vset.pattern.permute.xlu0 0
      %5602 = vperm.xlu0 %5601, %v5472
      %v5603 = vpop.permute.xlu0 %5602
      %5606 = vset.pattern.permute.xlu0 0
      %5607 = vperm.xlu0 %5606, %v5473
      %v5608 = vpop.permute.xlu0 %5607
      %5611 = vset.pattern.permute.xlu0 0
      %5612 = vperm.xlu0 %5611, %v5474
      %v5613 = vpop.permute.xlu0 %5612
      %5616 = vset.pattern.permute.xlu0 0
      %5617 = vperm.xlu0 %5616, %v5475
      %v5618 = vpop.permute.xlu0 %5617
      %5621 = vset.pattern.permute.xlu0 0
      %5622 = vperm.xlu0 %5621, %v5476
      %v5623 = vpop.permute.xlu0 %5622
      %5626 = vset.pattern.permute.xlu0 0
      %5627 = vperm.xlu0 %5626, %v5477
      %v5628 = vpop.permute.xlu0 %5627
      %5631 = vset.pattern.permute.xlu0 0
      %5632 = vperm.xlu0 %5631, %v5478
      %v5633 = vpop.permute.xlu0 %5632
      %5636 = vset.pattern.permute.xlu0 0
      %5637 = vperm.xlu0 %5636, %v5479
      %v5638 = vpop.permute.xlu0 %5637
      %v5640 = vsub.f32 %v2105, %v5483
      %v5641 = vsub.f32 %v2110, %v5488
      %v5642 = vsub.f32 %v2192, %v5493
      %v5643 = vsub.f32 %v2197, %v5498
      %v5644 = vsub.f32 %v2279, %v5503
      %v5645 = vsub.f32 %v2284, %v5508
      %v5646 = vsub.f32 %v2366, %v5513
      %v5647 = vsub.f32 %v2371, %v5518
      %v5648 = vsub.f32 %v2453, %v5523
      %v5649 = vsub.f32 %v2458, %v5528
      %v5650 = vsub.f32 %v2540, %v5533
      %v5651 = vsub.f32 %v2545, %v5538
      %v5652 = vsub.f32 %v2627, %v5543
      %v5653 = vsub.f32 %v2632, %v5548
      %v5654 = vsub.f32 %v2714, %v5553
      %v5655 = vsub.f32 %v2719, %v5558
      %v5656 = vsub.f32 %v2801, %v5563
      %v5657 = vsub.f32 %v2806, %v5568
      %v5658 = vsub.f32 %v2888, %v5573
      %v5659 = vsub.f32 %v2893, %v5578
      %v5660 = vsub.f32 %v2975, %v5583
      %v5661 = vsub.f32 %v2980, %v5588
      %v5662 = vsub.f32 %v3062, %v5593
      %v5663 = vsub.f32 %v3067, %v5598
      %v5664 = vsub.f32 %v3149, %v5603
      %v5665 = vsub.f32 %v3154, %v5608
      %v5666 = vsub.f32 %v3236, %v5613
      %v5667 = vsub.f32 %v3241, %v5618
      %v5668 = vsub.f32 %v3323, %v5623
      %v5669 = vsub.f32 %v3328, %v5628
      %v5670 = vsub.f32 %v3410, %v5633
      %v5671 = vsub.f32 %v3415, %v5638
      %v5672 = vmul.f32 %v5640, 1.442695
      %v5673 = vpow.pop %v5672
      %v5674 = vmul.f32 %v5641, 1.442695
      %v5675 = vpow.pop %v5674
      %v5676 = vmul.f32 %v5642, 1.442695
      %v5677 = vpow.pop %v5676
      %v5678 = vmul.f32 %v5643, 1.442695
      %v5679 = vpow.pop %v5678
      %v5680 = vmul.f32 %v5644, 1.442695
      %v5681 = vpow.pop %v5680
      %v5682 = vmul.f32 %v5645, 1.442695
      %v5683 = vpow.pop %v5682
      %v5684 = vmul.f32 %v5646, 1.442695
      %v5685 = vpow.pop %v5684
      %v5686 = vmul.f32 %v5647, 1.442695
      %v5687 = vpow.pop %v5686
      %v5688 = vmul.f32 %v5648, 1.442695
      %v5689 = vpow.pop %v5688
      %v5690 = vmul.f32 %v5649, 1.442695
      %v5691 = vpow.pop %v5690
      %v5692 = vmul.f32 %v5650, 1.442695
      %v5693 = vpow.pop %v5692
      %v5694 = vmul.f32 %v5651, 1.442695
      %v5695 = vpow.pop %v5694
      %v5696 = vmul.f32 %v5652, 1.442695
      %v5697 = vpow.pop %v5696
      %v5698 = vmul.f32 %v5653, 1.442695
      %v5699 = vpow.pop %v5698
      %v5700 = vmul.f32 %v5654, 1.442695
      %v5701 = vpow.pop %v5700
      %v5702 = vmul.f32 %v5655, 1.442695
      %v5703 = vpow.pop %v5702
      %v5704 = vmul.f32 %v5656, 1.442695
      %v5705 = vpow.pop %v5704
      %v5706 = vmul.f32 %v5657, 1.442695
      %v5707 = vpow.pop %v5706
      %v5708 = vmul.f32 %v5658, 1.442695
      %v5709 = vpow.pop %v5708
      %v5710 = vmul.f32 %v5659, 1.442695
      %v5711 = vpow.pop %v5710
      %v5712 = vmul.f32 %v5660, 1.442695
      %v5713 = vpow.pop %v5712
      %v5714 = vmul.f32 %v5661, 1.442695
      %v5715 = vpow.pop %v5714
      %v5716 = vmul.f32 %v5662, 1.442695
      %v5717 = vpow.pop %v5716
      %v5718 = vmul.f32 %v5663, 1.442695
      %v5719 = vpow.pop %v5718
      %v5720 = vmul.f32 %v5664, 1.442695
      %v5721 = vpow.pop %v5720
      %v5722 = vmul.f32 %v5665, 1.442695
      %v5723 = vpow.pop %v5722
      %v5724 = vmul.f32 %v5666, 1.442695
      %v5725 = vpow.pop %v5724
      %v5726 = vmul.f32 %v5667, 1.442695
      %v5727 = vpow.pop %v5726
      %v5728 = vmul.f32 %v5668, 1.442695
      %v5729 = vpow.pop %v5728
      %v5730 = vmul.f32 %v5669, 1.442695
      %v5731 = vpow.pop %v5730
      %v5732 = vmul.f32 %v5670, 1.442695
      %v5733 = vpow.pop %v5732
      %v5734 = vmul.f32 %v5671, 1.442695
      %v5735 = vpow.pop %v5734
      %v5736 = vlaneseq
      %v5737 = vshrl.u32 %v5736, 7
      %v5738 = vsub.s32 %v5036, %v5737
      %v5739 = vrot.slane %v5483, %v5738
      %v5740 = vlaneseq
      %v5741 = vshrl.u32 %v5740, 7
      %v5742 = vsub.s32 %v5041, %v5741
      %v5743 = vrot.slane %v5488, %v5742
      %v5744 = vsel %vm5046, %v5743, %v5739
      %v5745 = vlaneseq
      %v5746 = vshrl.u32 %v5745, 7
      %v5747 = vsub.s32 %v5036, %v5746
      %v5748 = vrot.slane %v5493, %v5747
      %v5749 = vlaneseq
      %v5750 = vshrl.u32 %v5749, 7
      %v5751 = vsub.s32 %v5041, %v5750
      %v5752 = vrot.slane %v5498, %v5751
      %v5753 = vsel %vm5046, %v5752, %v5748
      %v5754 = vlaneseq
      %v5755 = vshrl.u32 %v5754, 7
      %v5756 = vsub.s32 %v5036, %v5755
      %v5757 = vrot.slane %v5503, %v5756
      %v5758 = vlaneseq
      %v5759 = vshrl.u32 %v5758, 7
      %v5760 = vsub.s32 %v5041, %v5759
      %v5761 = vrot.slane %v5508, %v5760
      %v5762 = vsel %vm5046, %v5761, %v5757
      %v5763 = vlaneseq
      %v5764 = vshrl.u32 %v5763, 7
      %v5765 = vsub.s32 %v5036, %v5764
      %v5766 = vrot.slane %v5513, %v5765
      %v5767 = vlaneseq
      %v5768 = vshrl.u32 %v5767, 7
      %v5769 = vsub.s32 %v5041, %v5768
      %v5770 = vrot.slane %v5518, %v5769
      %v5771 = vsel %vm5046, %v5770, %v5766
      %v5772 = vlaneseq
      %v5773 = vshrl.u32 %v5772, 7
      %v5774 = vsub.s32 %v5036, %v5773
      %v5775 = vrot.slane %v5523, %v5774
      %v5776 = vlaneseq
      %v5777 = vshrl.u32 %v5776, 7
      %v5778 = vsub.s32 %v5041, %v5777
      %v5779 = vrot.slane %v5528, %v5778
      %v5780 = vsel %vm5046, %v5779, %v5775
      %v5781 = vlaneseq
      %v5782 = vshrl.u32 %v5781, 7
      %v5783 = vsub.s32 %v5036, %v5782
      %v5784 = vrot.slane %v5533, %v5783
      %v5785 = vlaneseq
      %v5786 = vshrl.u32 %v5785, 7
      %v5787 = vsub.s32 %v5041, %v5786
      %v5788 = vrot.slane %v5538, %v5787
      %v5789 = vsel %vm5046, %v5788, %v5784
      %v5790 = vlaneseq
      %v5791 = vshrl.u32 %v5790, 7
      %v5792 = vsub.s32 %v5036, %v5791
      %v5793 = vrot.slane %v5543, %v5792
      %v5794 = vlaneseq
      %v5795 = vshrl.u32 %v5794, 7
      %v5796 = vsub.s32 %v5041, %v5795
      %v5797 = vrot.slane %v5548, %v5796
      %v5798 = vsel %vm5046, %v5797, %v5793
      %v5799 = vlaneseq
      %v5800 = vshrl.u32 %v5799, 7
      %v5801 = vsub.s32 %v5036, %v5800
      %v5802 = vrot.slane %v5553, %v5801
      %v5803 = vlaneseq
      %v5804 = vshrl.u32 %v5803, 7
      %v5805 = vsub.s32 %v5041, %v5804
      %v5806 = vrot.slane %v5558, %v5805
      %v5807 = vsel %vm5046, %v5806, %v5802
      %v5808 = vlaneseq
      %v5809 = vshrl.u32 %v5808, 7
      %v5810 = vsub.s32 %v5036, %v5809
      %v5811 = vrot.slane %v5563, %v5810
      %v5812 = vlaneseq
      %v5813 = vshrl.u32 %v5812, 7
      %v5814 = vsub.s32 %v5041, %v5813
      %v5815 = vrot.slane %v5568, %v5814
      %v5816 = vsel %vm5046, %v5815, %v5811
      %v5817 = vlaneseq
      %v5818 = vshrl.u32 %v5817, 7
      %v5819 = vsub.s32 %v5036, %v5818
      %v5820 = vrot.slane %v5573, %v5819
      %v5821 = vlaneseq
      %v5822 = vshrl.u32 %v5821, 7
      %v5823 = vsub.s32 %v5041, %v5822
      %v5824 = vrot.slane %v5578, %v5823
      %v5825 = vsel %vm5046, %v5824, %v5820
      %v5826 = vlaneseq
      %v5827 = vshrl.u32 %v5826, 7
      %v5828 = vsub.s32 %v5036, %v5827
      %v5829 = vrot.slane %v5583, %v5828
      %v5830 = vlaneseq
      %v5831 = vshrl.u32 %v5830, 7
      %v5832 = vsub.s32 %v5041, %v5831
      %v5833 = vrot.slane %v5588, %v5832
      %v5834 = vsel %vm5046, %v5833, %v5829
      %v5835 = vlaneseq
      %v5836 = vshrl.u32 %v5835, 7
      %v5837 = vsub.s32 %v5036, %v5836
      %v5838 = vrot.slane %v5593, %v5837
      %v5839 = vlaneseq
      %v5840 = vshrl.u32 %v5839, 7
      %v5841 = vsub.s32 %v5041, %v5840
      %v5842 = vrot.slane %v5598, %v5841
      %v5843 = vsel %vm5046, %v5842, %v5838
      %v5844 = vlaneseq
      %v5845 = vshrl.u32 %v5844, 7
      %v5846 = vsub.s32 %v5036, %v5845
      %v5847 = vrot.slane %v5603, %v5846
      %v5848 = vlaneseq
      %v5849 = vshrl.u32 %v5848, 7
      %v5850 = vsub.s32 %v5041, %v5849
      %v5851 = vrot.slane %v5608, %v5850
      %v5852 = vsel %vm5046, %v5851, %v5847
      %v5853 = vlaneseq
      %v5854 = vshrl.u32 %v5853, 7
      %v5855 = vsub.s32 %v5036, %v5854
      %v5856 = vrot.slane %v5613, %v5855
      %v5857 = vlaneseq
      %v5858 = vshrl.u32 %v5857, 7
      %v5859 = vsub.s32 %v5041, %v5858
      %v5860 = vrot.slane %v5618, %v5859
      %v5861 = vsel %vm5046, %v5860, %v5856
      %v5862 = vlaneseq
      %v5863 = vshrl.u32 %v5862, 7
      %v5864 = vsub.s32 %v5036, %v5863
      %v5865 = vrot.slane %v5623, %v5864
      %v5866 = vlaneseq
      %v5867 = vshrl.u32 %v5866, 7
      %v5868 = vsub.s32 %v5041, %v5867
      %v5869 = vrot.slane %v5628, %v5868
      %v5870 = vsel %vm5046, %v5869, %v5865
      %v5871 = vlaneseq
      %v5872 = vshrl.u32 %v5871, 7
      %v5873 = vsub.s32 %v5036, %v5872
      %v5874 = vrot.slane %v5633, %v5873
      %v5875 = vlaneseq
      %v5876 = vshrl.u32 %v5875, 7
      %v5877 = vsub.s32 %v5041, %v5876
      %v5878 = vrot.slane %v5638, %v5877
      %v5879 = vsel %vm5046, %v5878, %v5874
      %v5880 = vsel %vm5183, %v5753, %v5744
      %v5881 = vsel %vm5185, %v5762, %v5880
      %v5882 = vsel %vm5187, %v5771, %v5881
      %v5883 = vsel %vm5189, %v5780, %v5882
      %v5884 = vsel %vm5191, %v5789, %v5883
      %v5885 = vsel %vm5193, %v5798, %v5884
      %v5886 = vsel %vm5195, %v5807, %v5885
      %v5887 = vsel %vm5183, %v5825, %v5816
      %v5888 = vsel %vm5185, %v5834, %v5887
      %v5889 = vsel %vm5187, %v5843, %v5888
      %v5890 = vsel %vm5189, %v5852, %v5889
      %v5891 = vsel %vm5191, %v5861, %v5890
      %v5892 = vsel %vm5193, %v5870, %v5891
      %v5893 = vsel %vm5195, %v5879, %v5892
      %5896 = vxpose.xlu0.b32.start [1/16] %v5886, 128
      %5897 = vxpose.xlu0.b32.cont [2/16] %v5893, 128
      %5898 = vxpose.xlu0.b32.cont [3/16] 0.0, 128
      %5899 = vxpose.xlu0.b32.cont [4/16] 0.0, 128
      %5900 = vxpose.xlu0.b32.cont [5/16] 0.0, 128
      %5901 = vxpose.xlu0.b32.cont [6/16] 0.0, 128
      %5902 = vxpose.xlu0.b32.cont [7/16] 0.0, 128
      %5903 = vxpose.xlu0.b32.cont [8/16] 0.0, 128
      %5904 = vxpose.xlu0.b32.cont [9/16] 0.0, 128
      %5905 = vxpose.xlu0.b32.cont [10/16] 0.0, 128
      %5906 = vxpose.xlu0.b32.cont [11/16] 0.0, 128
      %5907 = vxpose.xlu0.b32.cont [12/16] 0.0, 128
      %5908 = vxpose.xlu0.b32.cont [13/16] 0.0, 128
      %5909 = vxpose.xlu0.b32.cont [14/16] 0.0, 128
      %5910 = vxpose.xlu0.b32.cont [15/16] 0.0, 128
      %5911 = vxpose.xlu0.b32.end [16/16] 0.0, 128
      %v5912 = vpop.trf.xlu0
      %v5913 = vpop.trf.xlu0
      %v5914 = vpop.trf.xlu0
      %v5915 = vpop.trf.xlu0
      %v5916 = vpop.trf.xlu0
      %v5917 = vpop.trf.xlu0
      %v5918 = vpop.trf.xlu0
      %v5919 = vpop.trf.xlu0
      %v5920 = vpop.trf.xlu0
      %v5921 = vpop.trf.xlu0
      %v5922 = vpop.trf.xlu0
      %v5923 = vpop.trf.xlu0
      %v5924 = vpop.trf.xlu0
      %v5925 = vpop.trf.xlu0
      %v5926 = vpop.trf.xlu0
      %v5927 = vpop.trf.xlu0
      %v5928 = vlaneseq
      %v5929 = vshrl.u32 %v5928, 7
      %v5930 = vsub.s32 0, %v5929
      %v5931 = vrot.slane %v5912, %v5930
      %5933 = vbcast.lane.b32.xlu0 %v5931, 256
      %v5934 = vpop.permute.xlu0 %5933
      %s5936 = sor.u32 256, 8
      %5937 = vbcast.lane.b32.xlu0 %v5931, %s5936
      %v5938 = vpop.permute.xlu0 %5937
      %v5939 = vlaneseq
      %v5940 = vshrl.u32 %v5939, 7
      %v5941 = vsub.s32 1, %v5940
      %v5942 = vrot.slane %v5912, %v5941
      %5944 = vbcast.lane.b32.xlu0 %v5942, 256
      %v5945 = vpop.permute.xlu0 %5944
      %s5947 = sor.u32 256, 8
      %5948 = vbcast.lane.b32.xlu0 %v5942, %s5947
      %v5949 = vpop.permute.xlu0 %5948
      %v5950 = vlaneseq
      %v5951 = vshrl.u32 %v5950, 7
      %v5952 = vsub.s32 2, %v5951
      %v5953 = vrot.slane %v5912, %v5952
      %5955 = vbcast.lane.b32.xlu0 %v5953, 256
      %v5956 = vpop.permute.xlu0 %5955
      %s5958 = sor.u32 256, 8
      %5959 = vbcast.lane.b32.xlu0 %v5953, %s5958
      %v5960 = vpop.permute.xlu0 %5959
      %v5961 = vlaneseq
      %v5962 = vshrl.u32 %v5961, 7
      %v5963 = vsub.s32 3, %v5962
      %v5964 = vrot.slane %v5912, %v5963
      %5966 = vbcast.lane.b32.xlu0 %v5964, 256
      %v5967 = vpop.permute.xlu0 %5966
      %s5969 = sor.u32 256, 8
      %5970 = vbcast.lane.b32.xlu0 %v5964, %s5969
      %v5971 = vpop.permute.xlu0 %5970
      %v5972 = vlaneseq
      %v5973 = vshrl.u32 %v5972, 7
      %v5974 = vsub.s32 4, %v5973
      %v5975 = vrot.slane %v5912, %v5974
      %5977 = vbcast.lane.b32.xlu0 %v5975, 256
      %v5978 = vpop.permute.xlu0 %5977
      %s5980 = sor.u32 256, 8
      %5981 = vbcast.lane.b32.xlu0 %v5975, %s5980
      %v5982 = vpop.permute.xlu0 %5981
      %v5983 = vlaneseq
      %v5984 = vshrl.u32 %v5983, 7
      %v5985 = vsub.s32 5, %v5984
      %v5986 = vrot.slane %v5912, %v5985
      %5988 = vbcast.lane.b32.xlu0 %v5986, 256
      %v5989 = vpop.permute.xlu0 %5988
      %s5991 = sor.u32 256, 8
      %5992 = vbcast.lane.b32.xlu0 %v5986, %s5991
      %v5993 = vpop.permute.xlu0 %5992
      %v5994 = vlaneseq
      %v5995 = vshrl.u32 %v5994, 7
      %v5996 = vsub.s32 6, %v5995
      %v5997 = vrot.slane %v5912, %v5996
      %5999 = vbcast.lane.b32.xlu0 %v5997, 256
      %v6000 = vpop.permute.xlu0 %5999
      %s6002 = sor.u32 256, 8
      %6003 = vbcast.lane.b32.xlu0 %v5997, %s6002
      %v6004 = vpop.permute.xlu0 %6003
      %v6005 = vlaneseq
      %v6006 = vshrl.u32 %v6005, 7
      %v6007 = vsub.s32 7, %v6006
      %v6008 = vrot.slane %v5912, %v6007
      %6010 = vbcast.lane.b32.xlu0 %v6008, 256
      %v6011 = vpop.permute.xlu0 %6010
      %s6013 = sor.u32 256, 8
      %6014 = vbcast.lane.b32.xlu0 %v6008, %s6013
      %v6015 = vpop.permute.xlu0 %6014
      %v6016 = vlaneseq
      %v6017 = vshrl.u32 %v6016, 7
      %v6018 = vsub.s32 0, %v6017
      %v6019 = vrot.slane %v5913, %v6018
      %6021 = vbcast.lane.b32.xlu0 %v6019, 256
      %v6022 = vpop.permute.xlu0 %6021
      %s6024 = sor.u32 256, 8
      %6025 = vbcast.lane.b32.xlu0 %v6019, %s6024
      %v6026 = vpop.permute.xlu0 %6025
      %v6027 = vlaneseq
      %v6028 = vshrl.u32 %v6027, 7
      %v6029 = vsub.s32 1, %v6028
      %v6030 = vrot.slane %v5913, %v6029
      %6032 = vbcast.lane.b32.xlu0 %v6030, 256
      %v6033 = vpop.permute.xlu0 %6032
      %s6035 = sor.u32 256, 8
      %6036 = vbcast.lane.b32.xlu0 %v6030, %s6035
      %v6037 = vpop.permute.xlu0 %6036
      %v6038 = vlaneseq
      %v6039 = vshrl.u32 %v6038, 7
      %v6040 = vsub.s32 2, %v6039
      %v6041 = vrot.slane %v5913, %v6040
      %6043 = vbcast.lane.b32.xlu0 %v6041, 256
      %v6044 = vpop.permute.xlu0 %6043
      %s6046 = sor.u32 256, 8
      %6047 = vbcast.lane.b32.xlu0 %v6041, %s6046
      %v6048 = vpop.permute.xlu0 %6047
      %v6049 = vlaneseq
      %v6050 = vshrl.u32 %v6049, 7
      %v6051 = vsub.s32 3, %v6050
      %v6052 = vrot.slane %v5913, %v6051
      %6054 = vbcast.lane.b32.xlu0 %v6052, 256
      %v6055 = vpop.permute.xlu0 %6054
      %s6057 = sor.u32 256, 8
      %6058 = vbcast.lane.b32.xlu0 %v6052, %s6057
      %v6059 = vpop.permute.xlu0 %6058
      %v6060 = vlaneseq
      %v6061 = vshrl.u32 %v6060, 7
      %v6062 = vsub.s32 4, %v6061
      %v6063 = vrot.slane %v5913, %v6062
      %6065 = vbcast.lane.b32.xlu0 %v6063, 256
      %v6066 = vpop.permute.xlu0 %6065
      %s6068 = sor.u32 256, 8
      %6069 = vbcast.lane.b32.xlu0 %v6063, %s6068
      %v6070 = vpop.permute.xlu0 %6069
      %v6071 = vlaneseq
      %v6072 = vshrl.u32 %v6071, 7
      %v6073 = vsub.s32 5, %v6072
      %v6074 = vrot.slane %v5913, %v6073
      %6076 = vbcast.lane.b32.xlu0 %v6074, 256
      %v6077 = vpop.permute.xlu0 %6076
      %s6079 = sor.u32 256, 8
      %6080 = vbcast.lane.b32.xlu0 %v6074, %s6079
      %v6081 = vpop.permute.xlu0 %6080
      %v6082 = vlaneseq
      %v6083 = vshrl.u32 %v6082, 7
      %v6084 = vsub.s32 6, %v6083
      %v6085 = vrot.slane %v5913, %v6084
      %6087 = vbcast.lane.b32.xlu0 %v6085, 256
      %v6088 = vpop.permute.xlu0 %6087
      %s6090 = sor.u32 256, 8
      %6091 = vbcast.lane.b32.xlu0 %v6085, %s6090
      %v6092 = vpop.permute.xlu0 %6091
      %v6093 = vlaneseq
      %v6094 = vshrl.u32 %v6093, 7
      %v6095 = vsub.s32 7, %v6094
      %v6096 = vrot.slane %v5913, %v6095
      %6098 = vbcast.lane.b32.xlu0 %v6096, 256
      %v6099 = vpop.permute.xlu0 %6098
      %s6101 = sor.u32 256, 8
      %6102 = vbcast.lane.b32.xlu0 %v6096, %s6101
      %v6103 = vpop.permute.xlu0 %6102
      %v6104 = vsub.f32 %v3497, %v5934
      %v6105 = vsub.f32 %v3502, %v5938
      %v6106 = vsub.f32 %v3584, %v5945
      %v6107 = vsub.f32 %v3589, %v5949
      %v6108 = vsub.f32 %v3671, %v5956
      %v6109 = vsub.f32 %v3676, %v5960
      %v6110 = vsub.f32 %v3758, %v5967
      %v6111 = vsub.f32 %v3763, %v5971
      %v6112 = vsub.f32 %v3845, %v5978
      %v6113 = vsub.f32 %v3850, %v5982
      %v6114 = vsub.f32 %v3932, %v5989
      %v6115 = vsub.f32 %v3937, %v5993
      %v6116 = vsub.f32 %v4019, %v6000
      %v6117 = vsub.f32 %v4024, %v6004
      %v6118 = vsub.f32 %v4106, %v6011
      %v6119 = vsub.f32 %v4111, %v6015
      %v6120 = vsub.f32 %v4193, %v6022
      %v6121 = vsub.f32 %v4198, %v6026
      %v6122 = vsub.f32 %v4280, %v6033
      %v6123 = vsub.f32 %v4285, %v6037
      %v6124 = vsub.f32 %v4367, %v6044
      %v6125 = vsub.f32 %v4372, %v6048
      %v6126 = vsub.f32 %v4454, %v6055
      %v6127 = vsub.f32 %v4459, %v6059
      %v6128 = vsub.f32 %v4541, %v6066
      %v6129 = vsub.f32 %v4546, %v6070
      %v6130 = vsub.f32 %v4628, %v6077
      %v6131 = vsub.f32 %v4633, %v6081
      %v6132 = vsub.f32 %v4715, %v6088
      %v6133 = vsub.f32 %v4720, %v6092
      %v6134 = vsub.f32 %v4802, %v6099
      %v6135 = vsub.f32 %v4807, %v6103
      %v6136 = vmul.f32 %v6104, 1.442695
      %v6137 = vpow.pop %v6136
      %v6138 = vmul.f32 %v6105, 1.442695
      %v6139 = vpow.pop %v6138
      %v6140 = vmul.f32 %v6106, 1.442695
      %v6141 = vpow.pop %v6140
      %v6142 = vmul.f32 %v6107, 1.442695
      %v6143 = vpow.pop %v6142
      %v6144 = vmul.f32 %v6108, 1.442695
      %v6145 = vpow.pop %v6144
      %v6146 = vmul.f32 %v6109, 1.442695
      %v6147 = vpow.pop %v6146
      %v6148 = vmul.f32 %v6110, 1.442695
      %v6149 = vpow.pop %v6148
      %v6150 = vmul.f32 %v6111, 1.442695
      %v6151 = vpow.pop %v6150
      %v6152 = vmul.f32 %v6112, 1.442695
      %v6153 = vpow.pop %v6152
      %v6154 = vmul.f32 %v6113, 1.442695
      %v6155 = vpow.pop %v6154
      %v6156 = vmul.f32 %v6114, 1.442695
      %v6157 = vpow.pop %v6156
      %v6158 = vmul.f32 %v6115, 1.442695
      %v6159 = vpow.pop %v6158
      %v6160 = vmul.f32 %v6116, 1.442695
      %v6161 = vpow.pop %v6160
      %v6162 = vmul.f32 %v6117, 1.442695
      %v6163 = vpow.pop %v6162
      %v6164 = vmul.f32 %v6118, 1.442695
      %v6165 = vpow.pop %v6164
      %v6166 = vmul.f32 %v6119, 1.442695
      %v6167 = vpow.pop %v6166
      %v6168 = vmul.f32 %v6120, 1.442695
      %v6169 = vpow.pop %v6168
      %v6170 = vmul.f32 %v6121, 1.442695
      %v6171 = vpow.pop %v6170
      %v6172 = vmul.f32 %v6122, 1.442695
      %v6173 = vpow.pop %v6172
      %v6174 = vmul.f32 %v6123, 1.442695
      %v6175 = vpow.pop %v6174
      %v6176 = vmul.f32 %v6124, 1.442695
      %v6177 = vpow.pop %v6176
      %v6178 = vmul.f32 %v6125, 1.442695
      %v6179 = vpow.pop %v6178
      %v6180 = vmul.f32 %v6126, 1.442695
      %v6181 = vpow.pop %v6180
      %v6182 = vmul.f32 %v6127, 1.442695
      %v6183 = vpow.pop %v6182
      %v6184 = vmul.f32 %v6128, 1.442695
      %v6185 = vpow.pop %v6184
      %v6186 = vmul.f32 %v6129, 1.442695
      %v6187 = vpow.pop %v6186
      %v6188 = vmul.f32 %v6130, 1.442695
      %v6189 = vpow.pop %v6188
      %v6190 = vmul.f32 %v6131, 1.442695
      %v6191 = vpow.pop %v6190
      %v6192 = vmul.f32 %v6132, 1.442695
      %v6193 = vpow.pop %v6192
      %v6194 = vmul.f32 %v6133, 1.442695
      %v6195 = vpow.pop %v6194
      %v6196 = vmul.f32 %v6134, 1.442695
      %v6197 = vpow.pop %v6196
      %v6198 = vmul.f32 %v6135, 1.442695
      %v6199 = vpow.pop %v6198
      %v6200 = vsel %vm4810, %v5673, 0.0
      %6201 = vadd.xlane.f32.xlu0 %v6200
      %v6202 = vpop.xlane.xlu0 %6201
      %v6203 = vsel %vm4810, %v5675, 0.0
      %6204 = vadd.xlane.f32.xlu0 %v6203
      %v6205 = vpop.xlane.xlu0 %6204
      %v6206 = vsel %vm4810, %v5677, 0.0
      %6207 = vadd.xlane.f32.xlu0 %v6206
      %v6208 = vpop.xlane.xlu0 %6207
      %v6209 = vsel %vm4810, %v5679, 0.0
      %6210 = vadd.xlane.f32.xlu0 %v6209
      %v6211 = vpop.xlane.xlu0 %6210
      %v6212 = vsel %vm4810, %v5681, 0.0
      %6213 = vadd.xlane.f32.xlu0 %v6212
      %v6214 = vpop.xlane.xlu0 %6213
      %v6215 = vsel %vm4810, %v5683, 0.0
      %6216 = vadd.xlane.f32.xlu0 %v6215
      %v6217 = vpop.xlane.xlu0 %6216
      %v6218 = vsel %vm4810, %v5685, 0.0
      %6219 = vadd.xlane.f32.xlu0 %v6218
      %v6220 = vpop.xlane.xlu0 %6219
      %v6221 = vsel %vm4810, %v5687, 0.0
      %6222 = vadd.xlane.f32.xlu0 %v6221
      %v6223 = vpop.xlane.xlu0 %6222
      %v6224 = vsel %vm4810, %v5689, 0.0
      %6225 = vadd.xlane.f32.xlu0 %v6224
      %v6226 = vpop.xlane.xlu0 %6225
      %v6227 = vsel %vm4810, %v5691, 0.0
      %6228 = vadd.xlane.f32.xlu0 %v6227
      %v6229 = vpop.xlane.xlu0 %6228
      %v6230 = vsel %vm4810, %v5693, 0.0
      %6231 = vadd.xlane.f32.xlu0 %v6230
      %v6232 = vpop.xlane.xlu0 %6231
      %v6233 = vsel %vm4810, %v5695, 0.0
      %6234 = vadd.xlane.f32.xlu0 %v6233
      %v6235 = vpop.xlane.xlu0 %6234
      %v6236 = vsel %vm4810, %v5697, 0.0
      %6237 = vadd.xlane.f32.xlu0 %v6236
      %v6238 = vpop.xlane.xlu0 %6237
      %v6239 = vsel %vm4810, %v5699, 0.0
      %6240 = vadd.xlane.f32.xlu0 %v6239
      %v6241 = vpop.xlane.xlu0 %6240
      %v6242 = vsel %vm4810, %v5701, 0.0
      %6243 = vadd.xlane.f32.xlu0 %v6242
      %v6244 = vpop.xlane.xlu0 %6243
      %v6245 = vsel %vm4810, %v5703, 0.0
      %6246 = vadd.xlane.f32.xlu0 %v6245
      %v6247 = vpop.xlane.xlu0 %6246
      %v6248 = vsel %vm4810, %v5705, 0.0
      %6249 = vadd.xlane.f32.xlu0 %v6248
      %v6250 = vpop.xlane.xlu0 %6249
      %v6251 = vsel %vm4810, %v5707, 0.0
      %6252 = vadd.xlane.f32.xlu0 %v6251
      %v6253 = vpop.xlane.xlu0 %6252
      %v6254 = vsel %vm4810, %v5709, 0.0
      %6255 = vadd.xlane.f32.xlu0 %v6254
      %v6256 = vpop.xlane.xlu0 %6255
      %v6257 = vsel %vm4810, %v5711, 0.0
      %6258 = vadd.xlane.f32.xlu0 %v6257
      %v6259 = vpop.xlane.xlu0 %6258
      %v6260 = vsel %vm4810, %v5713, 0.0
      %6261 = vadd.xlane.f32.xlu0 %v6260
      %v6262 = vpop.xlane.xlu0 %6261
      %v6263 = vsel %vm4810, %v5715, 0.0
      %6264 = vadd.xlane.f32.xlu0 %v6263
      %v6265 = vpop.xlane.xlu0 %6264
      %v6266 = vsel %vm4810, %v5717, 0.0
      %6267 = vadd.xlane.f32.xlu0 %v6266
      %v6268 = vpop.xlane.xlu0 %6267
      %v6269 = vsel %vm4810, %v5719, 0.0
      %6270 = vadd.xlane.f32.xlu0 %v6269
      %v6271 = vpop.xlane.xlu0 %6270
      %v6272 = vsel %vm4810, %v5721, 0.0
      %6273 = vadd.xlane.f32.xlu0 %v6272
      %v6274 = vpop.xlane.xlu0 %6273
      %v6275 = vsel %vm4810, %v5723, 0.0
      %6276 = vadd.xlane.f32.xlu0 %v6275
      %v6277 = vpop.xlane.xlu0 %6276
      %v6278 = vsel %vm4810, %v5725, 0.0
      %6279 = vadd.xlane.f32.xlu0 %v6278
      %v6280 = vpop.xlane.xlu0 %6279
      %v6281 = vsel %vm4810, %v5727, 0.0
      %6282 = vadd.xlane.f32.xlu0 %v6281
      %v6283 = vpop.xlane.xlu0 %6282
      %v6284 = vsel %vm4810, %v5729, 0.0
      %6285 = vadd.xlane.f32.xlu0 %v6284
      %v6286 = vpop.xlane.xlu0 %6285
      %v6287 = vsel %vm4810, %v5731, 0.0
      %6288 = vadd.xlane.f32.xlu0 %v6287
      %v6289 = vpop.xlane.xlu0 %6288
      %v6290 = vsel %vm4810, %v5733, 0.0
      %6291 = vadd.xlane.f32.xlu0 %v6290
      %v6292 = vpop.xlane.xlu0 %6291
      %v6293 = vsel %vm4810, %v5735, 0.0
      %6294 = vadd.xlane.f32.xlu0 %v6293
      %v6295 = vpop.xlane.xlu0 %6294
      %v6296 = vsel %vm4810, %v6137, 0.0
      %6297 = vadd.xlane.f32.xlu0 %v6296
      %v6298 = vpop.xlane.xlu0 %6297
      %v6299 = vsel %vm4810, %v6139, 0.0
      %6300 = vadd.xlane.f32.xlu0 %v6299
      %v6301 = vpop.xlane.xlu0 %6300
      %v6302 = vsel %vm4810, %v6141, 0.0
      %6303 = vadd.xlane.f32.xlu0 %v6302
      %v6304 = vpop.xlane.xlu0 %6303
      %v6305 = vsel %vm4810, %v6143, 0.0
      %6306 = vadd.xlane.f32.xlu0 %v6305
      %v6307 = vpop.xlane.xlu0 %6306
      %v6308 = vsel %vm4810, %v6145, 0.0
      %6309 = vadd.xlane.f32.xlu0 %v6308
      %v6310 = vpop.xlane.xlu0 %6309
      %v6311 = vsel %vm4810, %v6147, 0.0
      %6312 = vadd.xlane.f32.xlu0 %v6311
      %v6313 = vpop.xlane.xlu0 %6312
      %v6314 = vsel %vm4810, %v6149, 0.0
      %6315 = vadd.xlane.f32.xlu0 %v6314
      %v6316 = vpop.xlane.xlu0 %6315
      %v6317 = vsel %vm4810, %v6151, 0.0
      %6318 = vadd.xlane.f32.xlu0 %v6317
      %v6319 = vpop.xlane.xlu0 %6318
      %v6320 = vsel %vm4810, %v6153, 0.0
      %6321 = vadd.xlane.f32.xlu0 %v6320
      %v6322 = vpop.xlane.xlu0 %6321
      %v6323 = vsel %vm4810, %v6155, 0.0
      %6324 = vadd.xlane.f32.xlu0 %v6323
      %v6325 = vpop.xlane.xlu0 %6324
      %v6326 = vsel %vm4810, %v6157, 0.0
      %6327 = vadd.xlane.f32.xlu0 %v6326
      %v6328 = vpop.xlane.xlu0 %6327
      %v6329 = vsel %vm4810, %v6159, 0.0
      %6330 = vadd.xlane.f32.xlu0 %v6329
      %v6331 = vpop.xlane.xlu0 %6330
      %v6332 = vsel %vm4810, %v6161, 0.0
      %6333 = vadd.xlane.f32.xlu0 %v6332
      %v6334 = vpop.xlane.xlu0 %6333
      %v6335 = vsel %vm4810, %v6163, 0.0
      %6336 = vadd.xlane.f32.xlu0 %v6335
      %v6337 = vpop.xlane.xlu0 %6336
      %v6338 = vsel %vm4810, %v6165, 0.0
      %6339 = vadd.xlane.f32.xlu0 %v6338
      %v6340 = vpop.xlane.xlu0 %6339
      %v6341 = vsel %vm4810, %v6167, 0.0
      %6342 = vadd.xlane.f32.xlu0 %v6341
      %v6343 = vpop.xlane.xlu0 %6342
      %v6344 = vsel %vm4810, %v6169, 0.0
      %6345 = vadd.xlane.f32.xlu0 %v6344
      %v6346 = vpop.xlane.xlu0 %6345
      %v6347 = vsel %vm4810, %v6171, 0.0
      %6348 = vadd.xlane.f32.xlu0 %v6347
      %v6349 = vpop.xlane.xlu0 %6348
      %v6350 = vsel %vm4810, %v6173, 0.0
      %6351 = vadd.xlane.f32.xlu0 %v6350
      %v6352 = vpop.xlane.xlu0 %6351
      %v6353 = vsel %vm4810, %v6175, 0.0
      %6354 = vadd.xlane.f32.xlu0 %v6353
      %v6355 = vpop.xlane.xlu0 %6354
      %v6356 = vsel %vm4810, %v6177, 0.0
      %6357 = vadd.xlane.f32.xlu0 %v6356
      %v6358 = vpop.xlane.xlu0 %6357
      %v6359 = vsel %vm4810, %v6179, 0.0
      %6360 = vadd.xlane.f32.xlu0 %v6359
      %v6361 = vpop.xlane.xlu0 %6360
      %v6362 = vsel %vm4810, %v6181, 0.0
      %6363 = vadd.xlane.f32.xlu0 %v6362
      %v6364 = vpop.xlane.xlu0 %6363
      %v6365 = vsel %vm4810, %v6183, 0.0
      %6366 = vadd.xlane.f32.xlu0 %v6365
      %v6367 = vpop.xlane.xlu0 %6366
      %v6368 = vsel %vm4810, %v6185, 0.0
      %6369 = vadd.xlane.f32.xlu0 %v6368
      %v6370 = vpop.xlane.xlu0 %6369
      %v6371 = vsel %vm4810, %v6187, 0.0
      %6372 = vadd.xlane.f32.xlu0 %v6371
      %v6373 = vpop.xlane.xlu0 %6372
      %v6374 = vsel %vm4810, %v6189, 0.0
      %6375 = vadd.xlane.f32.xlu0 %v6374
      %v6376 = vpop.xlane.xlu0 %6375
      %v6377 = vsel %vm4810, %v6191, 0.0
      %6378 = vadd.xlane.f32.xlu0 %v6377
      %v6379 = vpop.xlane.xlu0 %6378
      %v6380 = vsel %vm4810, %v6193, 0.0
      %6381 = vadd.xlane.f32.xlu0 %v6380
      %v6382 = vpop.xlane.xlu0 %6381
      %v6383 = vsel %vm4810, %v6195, 0.0
      %6384 = vadd.xlane.f32.xlu0 %v6383
      %v6385 = vpop.xlane.xlu0 %6384
      %v6386 = vsel %vm4810, %v6197, 0.0
      %6387 = vadd.xlane.f32.xlu0 %v6386
      %v6388 = vpop.xlane.xlu0 %6387
      %v6389 = vsel %vm4810, %v6199, 0.0
      %6390 = vadd.xlane.f32.xlu0 %v6389
      %v6391 = vpop.xlane.xlu0 %6390
      %v6424 = vlaneseq
      %v6425 = vshrl.u32 %v6424, 7
      %v6426 = vsub.s32 %v5036, %v6425
      %v6427 = vrot.slane %v6298, %v6426
      %v6428 = vlaneseq
      %v6429 = vshrl.u32 %v6428, 7
      %v6430 = vsub.s32 %v5041, %v6429
      %v6431 = vrot.slane %v6301, %v6430
      %v6432 = vsel %vm5046, %v6431, %v6427
      %v6433 = vlaneseq
      %v6434 = vshrl.u32 %v6433, 7
      %v6435 = vsub.s32 %v5036, %v6434
      %v6436 = vrot.slane %v6304, %v6435
      %v6437 = vlaneseq
      %v6438 = vshrl.u32 %v6437, 7
      %v6439 = vsub.s32 %v5041, %v6438
      %v6440 = vrot.slane %v6307, %v6439
      %v6441 = vsel %vm5046, %v6440, %v6436
      %v6442 = vlaneseq
      %v6443 = vshrl.u32 %v6442, 7
      %v6444 = vsub.s32 %v5036, %v6443
      %v6445 = vrot.slane %v6310, %v6444
      %v6446 = vlaneseq
      %v6447 = vshrl.u32 %v6446, 7
      %v6448 = vsub.s32 %v5041, %v6447
      %v6449 = vrot.slane %v6313, %v6448
      %v6450 = vsel %vm5046, %v6449, %v6445
      %v6451 = vlaneseq
      %v6452 = vshrl.u32 %v6451, 7
      %v6453 = vsub.s32 %v5036, %v6452
      %v6454 = vrot.slane %v6316, %v6453
      %v6455 = vlaneseq
      %v6456 = vshrl.u32 %v6455, 7
      %v6457 = vsub.s32 %v5041, %v6456
      %v6458 = vrot.slane %v6319, %v6457
      %v6459 = vsel %vm5046, %v6458, %v6454
      %v6460 = vlaneseq
      %v6461 = vshrl.u32 %v6460, 7
      %v6462 = vsub.s32 %v5036, %v6461
      %v6463 = vrot.slane %v6322, %v6462
      %v6464 = vlaneseq
      %v6465 = vshrl.u32 %v6464, 7
      %v6466 = vsub.s32 %v5041, %v6465
      %v6467 = vrot.slane %v6325, %v6466
      %v6468 = vsel %vm5046, %v6467, %v6463
      %v6469 = vlaneseq
      %v6470 = vshrl.u32 %v6469, 7
      %v6471 = vsub.s32 %v5036, %v6470
      %v6472 = vrot.slane %v6328, %v6471
      %v6473 = vlaneseq
      %v6474 = vshrl.u32 %v6473, 7
      %v6475 = vsub.s32 %v5041, %v6474
      %v6476 = vrot.slane %v6331, %v6475
      %v6477 = vsel %vm5046, %v6476, %v6472
      %v6478 = vlaneseq
      %v6479 = vshrl.u32 %v6478, 7
      %v6480 = vsub.s32 %v5036, %v6479
      %v6481 = vrot.slane %v6334, %v6480
      %v6482 = vlaneseq
      %v6483 = vshrl.u32 %v6482, 7
      %v6484 = vsub.s32 %v5041, %v6483
      %v6485 = vrot.slane %v6337, %v6484
      %v6486 = vsel %vm5046, %v6485, %v6481
      %v6487 = vlaneseq
      %v6488 = vshrl.u32 %v6487, 7
      %v6489 = vsub.s32 %v5036, %v6488
      %v6490 = vrot.slane %v6340, %v6489
      %v6491 = vlaneseq
      %v6492 = vshrl.u32 %v6491, 7
      %v6493 = vsub.s32 %v5041, %v6492
      %v6494 = vrot.slane %v6343, %v6493
      %v6495 = vsel %vm5046, %v6494, %v6490
      %v6496 = vlaneseq
      %v6497 = vshrl.u32 %v6496, 7
      %v6498 = vsub.s32 %v5036, %v6497
      %v6499 = vrot.slane %v6346, %v6498
      %v6500 = vlaneseq
      %v6501 = vshrl.u32 %v6500, 7
      %v6502 = vsub.s32 %v5041, %v6501
      %v6503 = vrot.slane %v6349, %v6502
      %v6504 = vsel %vm5046, %v6503, %v6499
      %v6505 = vlaneseq
      %v6506 = vshrl.u32 %v6505, 7
      %v6507 = vsub.s32 %v5036, %v6506
      %v6508 = vrot.slane %v6352, %v6507
      %v6509 = vlaneseq
      %v6510 = vshrl.u32 %v6509, 7
      %v6511 = vsub.s32 %v5041, %v6510
      %v6512 = vrot.slane %v6355, %v6511
      %v6513 = vsel %vm5046, %v6512, %v6508
      %v6514 = vlaneseq
      %v6515 = vshrl.u32 %v6514, 7
      %v6516 = vsub.s32 %v5036, %v6515
      %v6517 = vrot.slane %v6358, %v6516
      %v6518 = vlaneseq
      %v6519 = vshrl.u32 %v6518, 7
      %v6520 = vsub.s32 %v5041, %v6519
      %v6521 = vrot.slane %v6361, %v6520
      %v6522 = vsel %vm5046, %v6521, %v6517
      %v6523 = vlaneseq
      %v6524 = vshrl.u32 %v6523, 7
      %v6525 = vsub.s32 %v5036, %v6524
      %v6526 = vrot.slane %v6364, %v6525
      %v6527 = vlaneseq
      %v6528 = vshrl.u32 %v6527, 7
      %v6529 = vsub.s32 %v5041, %v6528
      %v6530 = vrot.slane %v6367, %v6529
      %v6531 = vsel %vm5046, %v6530, %v6526
      %v6532 = vlaneseq
      %v6533 = vshrl.u32 %v6532, 7
      %v6534 = vsub.s32 %v5036, %v6533
      %v6535 = vrot.slane %v6370, %v6534
      %v6536 = vlaneseq
      %v6537 = vshrl.u32 %v6536, 7
      %v6538 = vsub.s32 %v5041, %v6537
      %v6539 = vrot.slane %v6373, %v6538
      %v6540 = vsel %vm5046, %v6539, %v6535
      %v6541 = vlaneseq
      %v6542 = vshrl.u32 %v6541, 7
      %v6543 = vsub.s32 %v5036, %v6542
      %v6544 = vrot.slane %v6376, %v6543
      %v6545 = vlaneseq
      %v6546 = vshrl.u32 %v6545, 7
      %v6547 = vsub.s32 %v5041, %v6546
      %v6548 = vrot.slane %v6379, %v6547
      %v6549 = vsel %vm5046, %v6548, %v6544
      %v6550 = vlaneseq
      %v6551 = vshrl.u32 %v6550, 7
      %v6552 = vsub.s32 %v5036, %v6551
      %v6553 = vrot.slane %v6382, %v6552
      %v6554 = vlaneseq
      %v6555 = vshrl.u32 %v6554, 7
      %v6556 = vsub.s32 %v5041, %v6555
      %v6557 = vrot.slane %v6385, %v6556
      %v6558 = vsel %vm5046, %v6557, %v6553
      %v6559 = vlaneseq
      %v6560 = vshrl.u32 %v6559, 7
      %v6561 = vsub.s32 %v5036, %v6560
      %v6562 = vrot.slane %v6388, %v6561
      %v6563 = vlaneseq
      %v6564 = vshrl.u32 %v6563, 7
      %v6565 = vsub.s32 %v5041, %v6564
      %v6566 = vrot.slane %v6391, %v6565
      %v6567 = vsel %vm5046, %v6566, %v6562
      %v6568 = vsel %vm5183, %v6441, %v6432
      %v6569 = vsel %vm5185, %v6450, %v6568
      %v6570 = vsel %vm5187, %v6459, %v6569
      %v6571 = vsel %vm5189, %v6468, %v6570
      %v6572 = vsel %vm5191, %v6477, %v6571
      %v6573 = vsel %vm5193, %v6486, %v6572
      %v6574 = vsel %vm5195, %v6495, %v6573
      %v6575 = vsel %vm5183, %v6513, %v6504
      %v6576 = vsel %vm5185, %v6522, %v6575
      %v6577 = vsel %vm5187, %v6531, %v6576
      %v6578 = vsel %vm5189, %v6540, %v6577
      %v6579 = vsel %vm5191, %v6549, %v6578
      %v6580 = vsel %vm5193, %v6558, %v6579
      %v6581 = vsel %vm5195, %v6567, %v6580
      %6584 = vxpose.xlu0.b32.start [1/16] %v6574, 128
      %6585 = vxpose.xlu0.b32.cont [2/16] %v6581, 128
      %6586 = vxpose.xlu0.b32.cont [3/16] 0.0, 128
      %6587 = vxpose.xlu0.b32.cont [4/16] 0.0, 128
      %6588 = vxpose.xlu0.b32.cont [5/16] 0.0, 128
      %6589 = vxpose.xlu0.b32.cont [6/16] 0.0, 128
      %6590 = vxpose.xlu0.b32.cont [7/16] 0.0, 128
      %6591 = vxpose.xlu0.b32.cont [8/16] 0.0, 128
      %6592 = vxpose.xlu0.b32.cont [9/16] 0.0, 128
      %6593 = vxpose.xlu0.b32.cont [10/16] 0.0, 128
      %6594 = vxpose.xlu0.b32.cont [11/16] 0.0, 128
      %6595 = vxpose.xlu0.b32.cont [12/16] 0.0, 128
      %6596 = vxpose.xlu0.b32.cont [13/16] 0.0, 128
      %6597 = vxpose.xlu0.b32.cont [14/16] 0.0, 128
      %6598 = vxpose.xlu0.b32.cont [15/16] 0.0, 128
      %6599 = vxpose.xlu0.b32.end [16/16] 0.0, 128
      %v6600 = vpop.trf.xlu0
      %v6601 = vpop.trf.xlu0
      %v6602 = vpop.trf.xlu0
      %v6603 = vpop.trf.xlu0
      %v6604 = vpop.trf.xlu0
      %v6605 = vpop.trf.xlu0
      %v6606 = vpop.trf.xlu0
      %v6607 = vpop.trf.xlu0
      %v6608 = vpop.trf.xlu0
      %v6609 = vpop.trf.xlu0
      %v6610 = vpop.trf.xlu0
      %v6611 = vpop.trf.xlu0
      %v6612 = vpop.trf.xlu0
      %v6613 = vpop.trf.xlu0
      %v6614 = vpop.trf.xlu0
      %v6615 = vpop.trf.xlu0
      %v6618 = vlaneseq
      %v6619 = vshrl.u32 %v6618, 7
      %v6620 = vsub.s32 0, %v6619
      %v6621 = vrot.slane %v6600, %v6620
      %6623 = vbcast.lane.b32.xlu0 %v6621, 256
      %v6624 = vpop.permute.xlu0 %6623
      %s6626 = sor.u32 256, 8
      %6627 = vbcast.lane.b32.xlu0 %v6621, %s6626
      %v6628 = vpop.permute.xlu0 %6627
      %v6629 = vlaneseq
      %v6630 = vshrl.u32 %v6629, 7
      %v6631 = vsub.s32 1, %v6630
      %v6632 = vrot.slane %v6600, %v6631
      %6634 = vbcast.lane.b32.xlu0 %v6632, 256
      %v6635 = vpop.permute.xlu0 %6634
      %s6637 = sor.u32 256, 8
      %6638 = vbcast.lane.b32.xlu0 %v6632, %s6637
      %v6639 = vpop.permute.xlu0 %6638
      %v6640 = vlaneseq
      %v6641 = vshrl.u32 %v6640, 7
      %v6642 = vsub.s32 2, %v6641
      %v6643 = vrot.slane %v6600, %v6642
      %6645 = vbcast.lane.b32.xlu0 %v6643, 256
      %v6646 = vpop.permute.xlu0 %6645
      %s6648 = sor.u32 256, 8
      %6649 = vbcast.lane.b32.xlu0 %v6643, %s6648
      %v6650 = vpop.permute.xlu0 %6649
      %v6651 = vlaneseq
      %v6652 = vshrl.u32 %v6651, 7
      %v6653 = vsub.s32 3, %v6652
      %v6654 = vrot.slane %v6600, %v6653
      %6656 = vbcast.lane.b32.xlu0 %v6654, 256
      %v6657 = vpop.permute.xlu0 %6656
      %s6659 = sor.u32 256, 8
      %6660 = vbcast.lane.b32.xlu0 %v6654, %s6659
      %v6661 = vpop.permute.xlu0 %6660
      %v6662 = vlaneseq
      %v6663 = vshrl.u32 %v6662, 7
      %v6664 = vsub.s32 4, %v6663
      %v6665 = vrot.slane %v6600, %v6664
      %6667 = vbcast.lane.b32.xlu0 %v6665, 256
      %v6668 = vpop.permute.xlu0 %6667
      %s6670 = sor.u32 256, 8
      %6671 = vbcast.lane.b32.xlu0 %v6665, %s6670
      %v6672 = vpop.permute.xlu0 %6671
      %v6673 = vlaneseq
      %v6674 = vshrl.u32 %v6673, 7
      %v6675 = vsub.s32 5, %v6674
      %v6676 = vrot.slane %v6600, %v6675
      %6678 = vbcast.lane.b32.xlu0 %v6676, 256
      %v6679 = vpop.permute.xlu0 %6678
      %s6681 = sor.u32 256, 8
      %6682 = vbcast.lane.b32.xlu0 %v6676, %s6681
      %v6683 = vpop.permute.xlu0 %6682
      %v6684 = vlaneseq
      %v6685 = vshrl.u32 %v6684, 7
      %v6686 = vsub.s32 6, %v6685
      %v6687 = vrot.slane %v6600, %v6686
      %6689 = vbcast.lane.b32.xlu0 %v6687, 256
      %v6690 = vpop.permute.xlu0 %6689
      %s6692 = sor.u32 256, 8
      %6693 = vbcast.lane.b32.xlu0 %v6687, %s6692
      %v6694 = vpop.permute.xlu0 %6693
      %v6695 = vlaneseq
      %v6696 = vshrl.u32 %v6695, 7
      %v6697 = vsub.s32 7, %v6696
      %v6698 = vrot.slane %v6600, %v6697
      %6700 = vbcast.lane.b32.xlu0 %v6698, 256
      %v6701 = vpop.permute.xlu0 %6700
      %s6703 = sor.u32 256, 8
      %6704 = vbcast.lane.b32.xlu0 %v6698, %s6703
      %v6705 = vpop.permute.xlu0 %6704
      %v6706 = vlaneseq
      %v6707 = vshrl.u32 %v6706, 7
      %v6708 = vsub.s32 0, %v6707
      %v6709 = vrot.slane %v6601, %v6708
      %6711 = vbcast.lane.b32.xlu0 %v6709, 256
      %v6712 = vpop.permute.xlu0 %6711
      %s6714 = sor.u32 256, 8
      %6715 = vbcast.lane.b32.xlu0 %v6709, %s6714
      %v6716 = vpop.permute.xlu0 %6715
      %v6717 = vlaneseq
      %v6718 = vshrl.u32 %v6717, 7
      %v6719 = vsub.s32 1, %v6718
      %v6720 = vrot.slane %v6601, %v6719
      %6722 = vbcast.lane.b32.xlu0 %v6720, 256
      %v6723 = vpop.permute.xlu0 %6722
      %s6725 = sor.u32 256, 8
      %6726 = vbcast.lane.b32.xlu0 %v6720, %s6725
      %v6727 = vpop.permute.xlu0 %6726
      %v6728 = vlaneseq
      %v6729 = vshrl.u32 %v6728, 7
      %v6730 = vsub.s32 2, %v6729
      %v6731 = vrot.slane %v6601, %v6730
      %6733 = vbcast.lane.b32.xlu0 %v6731, 256
      %v6734 = vpop.permute.xlu0 %6733
      %s6736 = sor.u32 256, 8
      %6737 = vbcast.lane.b32.xlu0 %v6731, %s6736
      %v6738 = vpop.permute.xlu0 %6737
      %v6739 = vlaneseq
      %v6740 = vshrl.u32 %v6739, 7
      %v6741 = vsub.s32 3, %v6740
      %v6742 = vrot.slane %v6601, %v6741
      %6744 = vbcast.lane.b32.xlu0 %v6742, 256
      %v6745 = vpop.permute.xlu0 %6744
      %s6747 = sor.u32 256, 8
      %6748 = vbcast.lane.b32.xlu0 %v6742, %s6747
      %v6749 = vpop.permute.xlu0 %6748
      %v6750 = vlaneseq
      %v6751 = vshrl.u32 %v6750, 7
      %v6752 = vsub.s32 4, %v6751
      %v6753 = vrot.slane %v6601, %v6752
      %6755 = vbcast.lane.b32.xlu0 %v6753, 256
      %v6756 = vpop.permute.xlu0 %6755
      %s6758 = sor.u32 256, 8
      %6759 = vbcast.lane.b32.xlu0 %v6753, %s6758
      %v6760 = vpop.permute.xlu0 %6759
      %v6761 = vlaneseq
      %v6762 = vshrl.u32 %v6761, 7
      %v6763 = vsub.s32 5, %v6762
      %v6764 = vrot.slane %v6601, %v6763
      %6766 = vbcast.lane.b32.xlu0 %v6764, 256
      %v6767 = vpop.permute.xlu0 %6766
      %s6769 = sor.u32 256, 8
      %6770 = vbcast.lane.b32.xlu0 %v6764, %s6769
      %v6771 = vpop.permute.xlu0 %6770
      %v6772 = vlaneseq
      %v6773 = vshrl.u32 %v6772, 7
      %v6774 = vsub.s32 6, %v6773
      %v6775 = vrot.slane %v6601, %v6774
      %6777 = vbcast.lane.b32.xlu0 %v6775, 256
      %v6778 = vpop.permute.xlu0 %6777
      %s6780 = sor.u32 256, 8
      %6781 = vbcast.lane.b32.xlu0 %v6775, %s6780
      %v6782 = vpop.permute.xlu0 %6781
      %v6783 = vlaneseq
      %v6784 = vshrl.u32 %v6783, 7
      %v6785 = vsub.s32 7, %v6784
      %v6786 = vrot.slane %v6601, %v6785
      %6788 = vbcast.lane.b32.xlu0 %v6786, 256
      %v6789 = vpop.permute.xlu0 %6788
      %s6791 = sor.u32 256, 8
      %6792 = vbcast.lane.b32.xlu0 %v6786, %s6791
      %v6793 = vpop.permute.xlu0 %6792
      %v6826 = vadd.f32 %v6202, %v6624
      %v6827 = vadd.f32 %v6205, %v6628
      %v6828 = vadd.f32 %v6208, %v6635
      %v6829 = vadd.f32 %v6211, %v6639
      %v6830 = vadd.f32 %v6214, %v6646
      %v6831 = vadd.f32 %v6217, %v6650
      %v6832 = vadd.f32 %v6220, %v6657
      %v6833 = vadd.f32 %v6223, %v6661
      %v6834 = vadd.f32 %v6226, %v6668
      %v6835 = vadd.f32 %v6229, %v6672
      %v6836 = vadd.f32 %v6232, %v6679
      %v6837 = vadd.f32 %v6235, %v6683
      %v6838 = vadd.f32 %v6238, %v6690
      %v6839 = vadd.f32 %v6241, %v6694
      %v6840 = vadd.f32 %v6244, %v6701
      %v6841 = vadd.f32 %v6247, %v6705
      %v6842 = vadd.f32 %v6250, %v6712
      %v6843 = vadd.f32 %v6253, %v6716
      %v6844 = vadd.f32 %v6256, %v6723
      %v6845 = vadd.f32 %v6259, %v6727
      %v6846 = vadd.f32 %v6262, %v6734
      %v6847 = vadd.f32 %v6265, %v6738
      %v6848 = vadd.f32 %v6268, %v6745
      %v6849 = vadd.f32 %v6271, %v6749
      %v6850 = vadd.f32 %v6274, %v6756
      %v6851 = vadd.f32 %v6277, %v6760
      %v6852 = vadd.f32 %v6280, %v6767
      %v6853 = vadd.f32 %v6283, %v6771
      %v6854 = vadd.f32 %v6286, %v6778
      %v6855 = vadd.f32 %v6289, %v6782
      %v6856 = vadd.f32 %v6292, %v6789
      %v6857 = vadd.f32 %v6295, %v6793
      %s6858 = sld [smem:[#allocation2]]
      %v6859 = vstv %s6858
      %v6860 = vrcp.pop %v6826
      %v6861 = vmul.f32 %v6859, %v6860
      %v6862 = vrcp.pop %v6827
      %v6863 = vmul.f32 %v6859, %v6862
      %v6864 = vrcp.pop %v6828
      %v6865 = vmul.f32 %v6859, %v6864
      %v6866 = vrcp.pop %v6829
      %v6867 = vmul.f32 %v6859, %v6866
      %v6868 = vrcp.pop %v6830
      %v6869 = vmul.f32 %v6859, %v6868
      %v6870 = vrcp.pop %v6831
      %v6871 = vmul.f32 %v6859, %v6870
      %v6872 = vrcp.pop %v6832
      %v6873 = vmul.f32 %v6859, %v6872
      %v6874 = vrcp.pop %v6833
      %v6875 = vmul.f32 %v6859, %v6874
      %v6876 = vrcp.pop %v6834
      %v6877 = vmul.f32 %v6859, %v6876
      %v6878 = vrcp.pop %v6835
      %v6879 = vmul.f32 %v6859, %v6878
      %v6880 = vrcp.pop %v6836
      %v6881 = vmul.f32 %v6859, %v6880
      %v6882 = vrcp.pop %v6837
      %v6883 = vmul.f32 %v6859, %v6882
      %v6884 = vrcp.pop %v6838
      %v6885 = vmul.f32 %v6859, %v6884
      %v6886 = vrcp.pop %v6839
      %v6887 = vmul.f32 %v6859, %v6886
      %v6888 = vrcp.pop %v6840
      %v6889 = vmul.f32 %v6859, %v6888
      %v6890 = vrcp.pop %v6841
      %v6891 = vmul.f32 %v6859, %v6890
      %v6892 = vrcp.pop %v6842
      %v6893 = vmul.f32 %v6859, %v6892
      %v6894 = vrcp.pop %v6843
      %v6895 = vmul.f32 %v6859, %v6894
      %v6896 = vrcp.pop %v6844
      %v6897 = vmul.f32 %v6859, %v6896
      %v6898 = vrcp.pop %v6845
      %v6899 = vmul.f32 %v6859, %v6898
      %v6900 = vrcp.pop %v6846
      %v6901 = vmul.f32 %v6859, %v6900
      %v6902 = vrcp.pop %v6847
      %v6903 = vmul.f32 %v6859, %v6902
      %v6904 = vrcp.pop %v6848
      %v6905 = vmul.f32 %v6859, %v6904
      %v6906 = vrcp.pop %v6849
      %v6907 = vmul.f32 %v6859, %v6906
      %v6908 = vrcp.pop %v6850
      %v6909 = vmul.f32 %v6859, %v6908
      %v6910 = vrcp.pop %v6851
      %v6911 = vmul.f32 %v6859, %v6910
      %v6912 = vrcp.pop %v6852
      %v6913 = vmul.f32 %v6859, %v6912
      %v6914 = vrcp.pop %v6853
      %v6915 = vmul.f32 %v6859, %v6914
      %v6916 = vrcp.pop %v6854
      %v6917 = vmul.f32 %v6859, %v6916
      %v6918 = vrcp.pop %v6855
      %v6919 = vmul.f32 %v6859, %v6918
      %v6920 = vrcp.pop %v6856
      %v6921 = vmul.f32 %v6859, %v6920
      %v6922 = vrcp.pop %v6857
      %v6923 = vmul.f32 %v6859, %v6922
      %v6925 = vsel %vm4810, %v5673, 0
      %v6928 = vsel %vm4810, %v5675, 0
      %6930 = vmatprep.subr.mxu0 0.0
      %6931 = vmatpush1.msra.mxu0 %v1096
      %6932 = vmatprep.subr.mxu0 0.0
      %6933 = vmatpush1.msra.mxu0 %v1101
      %6934 = vmatprep.subr.mxu0 0.0
      %6935 = vmatpush1.msra.mxu0 0.0
      %6936 = vmatprep.subr.mxu0 0.0
      %6937 = vmatpush1.msra.mxu0 0.0
      %6938 = vmatprep.subr.mxu0 0.0
      %6939 = vmatpush1.msra.mxu0 0.0
      %6940 = vmatprep.subr.mxu0 0.0
      %6941 = vmatpush1.msra.mxu0 0.0
      %6942 = vmatprep.subr.mxu0 0.0
      %6943 = vmatpush1.msra.mxu0 0.0
      %6944 = vmatprep.subr.mxu0 0.0
      %6945 = vmatpush1.msra.mxu0 0.0
      %6946 = vmatprep.subr.mxu0 0.0
      %6947 = vmatpush1.msra.mxu0 0.0
      %6948 = vmatprep.subr.mxu0 0.0
      %6949 = vmatpush1.msra.mxu0 0.0
      %6950 = vmatprep.subr.mxu0 0.0
      %6951 = vmatpush1.msra.mxu0 0.0
      %6952 = vmatprep.subr.mxu0 0.0
      %6953 = vmatpush1.msra.mxu0 0.0
      %6954 = vmatprep.subr.mxu0 0.0
      %6955 = vmatpush1.msra.mxu0 0.0
      %6956 = vmatprep.subr.mxu0 0.0
      %6957 = vmatpush1.msra.mxu0 0.0
      %6958 = vmatprep.subr.mxu0 0.0
      %6959 = vmatpush1.msra.mxu0 0.0
      %6960 = vmatprep.subr.mxu0 0.0
      %6961 = vmatpush1.msra.mxu0 0.0
      %6962 = vmatprep.subr.mxu0 0.0
      %6963 = vmatpush1.msra.mxu0 0.0
      %6964 = vmatprep.subr.mxu0 0.0
      %6965 = vmatpush1.msra.mxu0 0.0
      %6966 = vmatprep.subr.mxu0 0.0
      %6967 = vmatpush1.msra.mxu0 0.0
      %6968 = vmatprep.subr.mxu0 0.0
      %6969 = vmatpush1.msra.mxu0 0.0
      %6970 = vmatprep.subr.mxu0 0.0
      %6971 = vmatpush1.msra.mxu0 0.0
      %6972 = vmatprep.subr.mxu0 0.0
      %6973 = vmatpush1.msra.mxu0 0.0
      %6974 = vmatprep.subr.mxu0 0.0
      %6975 = vmatpush1.msra.mxu0 0.0
      %6976 = vmatprep.subr.mxu0 0.0
      %6977 = vmatpush1.msra.mxu0 0.0
      %6978 = vmatprep.subr.mxu0 0.0
      %6979 = vmatpush1.msra.mxu0 0.0
      %6980 = vmatprep.subr.mxu0 0.0
      %6981 = vmatpush1.msra.mxu0 0.0
      %6982 = vmatprep.subr.mxu0 0.0
      %6983 = vmatpush1.msra.mxu0 0.0
      %6984 = vmatprep.subr.mxu0 0.0
      %6985 = vmatpush1.msra.mxu0 0.0
      %6986 = vmatprep.subr.mxu0 0.0
      %6987 = vmatpush1.msra.mxu0 0.0
      %6988 = vmatprep.subr.mxu0 0.0
      %6989 = vmatpush1.msra.mxu0 0.0
      %6990 = vmatprep.subr.mxu0 0.0
      %6991 = vmatpush1.msra.mxu0 0.0
      %6992 = vmatprep.subr.mxu0 0.0
      %6993 = vmatpush1.msra.mxu0 0.0
      %6994 = vmatprep.mubr.f32.mxu0 0.0
      %6995 = vmatmul.mubr.f32.gmra.mrb[0].mxu0 %v6925
      %v6996 = vpop.f32.mrb[0].mxu0
      %v6997 = vadd.f32 0.0, %v6996
      %v6998 = vpop.f32.mrb[0].mxu0
      %6999 = vmatprep.mubr.f32.mxu0 0.0
      %7000 = vmatmul.mubr.f32.gmra.mrb[0].mxu0 %v6928
      %v7001 = vpop.f32.mrb[0].mxu0
      %v7002 = vadd.f32 0.0, %v7001
      %v7003 = vpop.f32.mrb[0].mxu0
      %7004 = vdwg.mxu0
      %v7006 = vsel %vm4810, %v5677, 0
      %v7009 = vsel %vm4810, %v5679, 0
      %7011 = vmatprep.subr.mxu0 0.0
      %7012 = vmatpush1.msra.mxu0 %v1106
      %7013 = vmatprep.subr.mxu0 0.0
      %7014 = vmatpush1.msra.mxu0 %v1111
      %7015 = vmatprep.subr.mxu0 0.0
      %7016 = vmatpush1.msra.mxu0 0.0
      %7017 = vmatprep.subr.mxu0 0.0
      %7018 = vmatpush1.msra.mxu0 0.0
      %7019 = vmatprep.subr.mxu0 0.0
      %7020 = vmatpush1.msra.mxu0 0.0
      %7021 = vmatprep.subr.mxu0 0.0
      %7022 = vmatpush1.msra.mxu0 0.0
      %7023 = vmatprep.subr.mxu0 0.0
      %7024 = vmatpush1.msra.mxu0 0.0
      %7025 = vmatprep.subr.mxu0 0.0
      %7026 = vmatpush1.msra.mxu0 0.0
      %7027 = vmatprep.subr.mxu0 0.0
      %7028 = vmatpush1.msra.mxu0 0.0
      %7029 = vmatprep.subr.mxu0 0.0
      %7030 = vmatpush1.msra.mxu0 0.0
      %7031 = vmatprep.subr.mxu0 0.0
      %7032 = vmatpush1.msra.mxu0 0.0
      %7033 = vmatprep.subr.mxu0 0.0
      %7034 = vmatpush1.msra.mxu0 0.0
      %7035 = vmatprep.subr.mxu0 0.0
      %7036 = vmatpush1.msra.mxu0 0.0
      %7037 = vmatprep.subr.mxu0 0.0
      %7038 = vmatpush1.msra.mxu0 0.0
      %7039 = vmatprep.subr.mxu0 0.0
      %7040 = vmatpush1.msra.mxu0 0.0
      %7041 = vmatprep.subr.mxu0 0.0
      %7042 = vmatpush1.msra.mxu0 0.0
      %7043 = vmatprep.subr.mxu0 0.0
      %7044 = vmatpush1.msra.mxu0 0.0
      %7045 = vmatprep.subr.mxu0 0.0
      %7046 = vmatpush1.msra.mxu0 0.0
      %7047 = vmatprep.subr.mxu0 0.0
      %7048 = vmatpush1.msra.mxu0 0.0
      %7049 = vmatprep.subr.mxu0 0.0
      %7050 = vmatpush1.msra.mxu0 0.0
      %7051 = vmatprep.subr.mxu0 0.0
      %7052 = vmatpush1.msra.mxu0 0.0
      %7053 = vmatprep.subr.mxu0 0.0
      %7054 = vmatpush1.msra.mxu0 0.0
      %7055 = vmatprep.subr.mxu0 0.0
      %7056 = vmatpush1.msra.mxu0 0.0
      %7057 = vmatprep.subr.mxu0 0.0
      %7058 = vmatpush1.msra.mxu0 0.0
      %7059 = vmatprep.subr.mxu0 0.0
      %7060 = vmatpush1.msra.mxu0 0.0
      %7061 = vmatprep.subr.mxu0 0.0
      %7062 = vmatpush1.msra.mxu0 0.0
      %7063 = vmatprep.subr.mxu0 0.0
      %7064 = vmatpush1.msra.mxu0 0.0
      %7065 = vmatprep.subr.mxu0 0.0
      %7066 = vmatpush1.msra.mxu0 0.0
      %7067 = vmatprep.subr.mxu0 0.0
      %7068 = vmatpush1.msra.mxu0 0.0
      %7069 = vmatprep.subr.mxu0 0.0
      %7070 = vmatpush1.msra.mxu0 0.0
      %7071 = vmatprep.subr.mxu0 0.0
      %7072 = vmatpush1.msra.mxu0 0.0
      %7073 = vmatprep.subr.mxu0 0.0
      %7074 = vmatpush1.msra.mxu0 0.0
      %7075 = vmatprep.mubr.f32.mxu0 0.0
      %7076 = vmatmul.mubr.f32.gmra.mrb[0].mxu0 %v7006
      %v7077 = vpop.f32.mrb[0].mxu0
      %v7078 = vadd.f32 0.0, %v7077
      %v7079 = vpop.f32.mrb[0].mxu0
      %7080 = vmatprep.mubr.f32.mxu0 0.0
      %7081 = vmatmul.mubr.f32.gmra.mrb[0].mxu0 %v7009
      %v7082 = vpop.f32.mrb[0].mxu0
      %v7083 = vadd.f32 0.0, %v7082
      %v7084 = vpop.f32.mrb[0].mxu0
      %7085 = vdwg.mxu0
      %v7087 = vsel %vm4810, %v5681, 0
      %v7090 = vsel %vm4810, %v5683, 0
      %7092 = vmatprep.subr.mxu0 0.0
      %7093 = vmatpush1.msra.mxu0 %v1116
      %7094 = vmatprep.subr.mxu0 0.0
      %7095 = vmatpush1.msra.mxu0 %v1121
      %7096 = vmatprep.subr.mxu0 0.0
      %7097 = vmatpush1.msra.mxu0 0.0
      %7098 = vmatprep.subr.mxu0 0.0
      %7099 = vmatpush1.msra.mxu0 0.0
      %7100 = vmatprep.subr.mxu0 0.0
      %7101 = vmatpush1.msra.mxu0 0.0
      %7102 = vmatprep.subr.mxu0 0.0
      %7103 = vmatpush1.msra.mxu0 0.0
      %7104 = vmatprep.subr.mxu0 0.0
      %7105 = vmatpush1.msra.mxu0 0.0
      %7106 = vmatprep.subr.mxu0 0.0
      %7107 = vmatpush1.msra.mxu0 0.0
      %7108 = vmatprep.subr.mxu0 0.0
      %7109 = vmatpush1.msra.mxu0 0.0
      %7110 = vmatprep.subr.mxu0 0.0
      %7111 = vmatpush1.msra.mxu0 0.0
      %7112 = vmatprep.subr.mxu0 0.0
      %7113 = vmatpush1.msra.mxu0 0.0
      %7114 = vmatprep.subr.mxu0 0.0
      %7115 = vmatpush1.msra.mxu0 0.0
      %7116 = vmatprep.subr.mxu0 0.0
      %7117 = vmatpush1.msra.mxu0 0.0
      %7118 = vmatprep.subr.mxu0 0.0
      %7119 = vmatpush1.msra.mxu0 0.0
      %7120 = vmatprep.subr.mxu0 0.0
      %7121 = vmatpush1.msra.mxu0 0.0
      %7122 = vmatprep.subr.mxu0 0.0
      %7123 = vmatpush1.msra.mxu0 0.0
      %7124 = vmatprep.subr.mxu0 0.0
      %7125 = vmatpush1.msra.mxu0 0.0
      %7126 = vmatprep.subr.mxu0 0.0
      %7127 = vmatpush1.msra.mxu0 0.0
      %7128 = vmatprep.subr.mxu0 0.0
      %7129 = vmatpush1.msra.mxu0 0.0
      %7130 = vmatprep.subr.mxu0 0.0
      %7131 = vmatpush1.msra.mxu0 0.0
      %7132 = vmatprep.subr.mxu0 0.0
      %7133 = vmatpush1.msra.mxu0 0.0
      %7134 = vmatprep.subr.mxu0 0.0
      %7135 = vmatpush1.msra.mxu0 0.0
      %7136 = vmatprep.subr.mxu0 0.0
      %7137 = vmatpush1.msra.mxu0 0.0
      %7138 = vmatprep.subr.mxu0 0.0
      %7139 = vmatpush1.msra.mxu0 0.0
      %7140 = vmatprep.subr.mxu0 0.0
      %7141 = vmatpush1.msra.mxu0 0.0
      %7142 = vmatprep.subr.mxu0 0.0
      %7143 = vmatpush1.msra.mxu0 0.0
      %7144 = vmatprep.subr.mxu0 0.0
      %7145 = vmatpush1.msra.mxu0 0.0
      %7146 = vmatprep.subr.mxu0 0.0
      %7147 = vmatpush1.msra.mxu0 0.0
      %7148 = vmatprep.subr.mxu0 0.0
      %7149 = vmatpush1.msra.mxu0 0.0
      %7150 = vmatprep.subr.mxu0 0.0
      %7151 = vmatpush1.msra.mxu0 0.0
      %7152 = vmatprep.subr.mxu0 0.0
      %7153 = vmatpush1.msra.mxu0 0.0
      %7154 = vmatprep.subr.mxu0 0.0
      %7155 = vmatpush1.msra.mxu0 0.0
      %7156 = vmatprep.mubr.f32.mxu0 0.0
      %7157 = vmatmul.mubr.f32.gmra.mrb[0].mxu0 %v7087
      %v7158 = vpop.f32.mrb[0].mxu0
      %v7159 = vadd.f32 0.0, %v7158
      %v7160 = vpop.f32.mrb[0].mxu0
      %7161 = vmatprep.mubr.f32.mxu0 0.0
      %7162 = vmatmul.mubr.f32.gmra.mrb[0].mxu0 %v7090
      %v7163 = vpop.f32.mrb[0].mxu0
      %v7164 = vadd.f32 0.0, %v7163
      %v7165 = vpop.f32.mrb[0].mxu0
      %7166 = vdwg.mxu0
      %v7168 = vsel %vm4810, %v5685, 0
      %v7171 = vsel %vm4810, %v5687, 0
      %7173 = vmatprep.subr.mxu0 0.0
      %7174 = vmatpush1.msra.mxu0 %v1126
      %7175 = vmatprep.subr.mxu0 0.0
      %7176 = vmatpush1.msra.mxu0 %v1131
      %7177 = vmatprep.subr.mxu0 0.0
      %7178 = vmatpush1.msra.mxu0 0.0
      %7179 = vmatprep.subr.mxu0 0.0
      %7180 = vmatpush1.msra.mxu0 0.0
      %7181 = vmatprep.subr.mxu0 0.0
      %7182 = vmatpush1.msra.mxu0 0.0
      %7183 = vmatprep.subr.mxu0 0.0
      %7184 = vmatpush1.msra.mxu0 0.0
      %7185 = vmatprep.subr.mxu0 0.0
      %7186 = vmatpush1.msra.mxu0 0.0
      %7187 = vmatprep.subr.mxu0 0.0
      %7188 = vmatpush1.msra.mxu0 0.0
      %7189 = vmatprep.subr.mxu0 0.0
      %7190 = vmatpush1.msra.mxu0 0.0
      %7191 = vmatprep.subr.mxu0 0.0
      %7192 = vmatpush1.msra.mxu0 0.0
      %7193 = vmatprep.subr.mxu0 0.0
      %7194 = vmatpush1.msra.mxu0 0.0
      %7195 = vmatprep.subr.mxu0 0.0
      %7196 = vmatpush1.msra.mxu0 0.0
      %7197 = vmatprep.subr.mxu0 0.0
      %7198 = vmatpush1.msra.mxu0 0.0
      %7199 = vmatprep.subr.mxu0 0.0
      %7200 = vmatpush1.msra.mxu0 0.0
      %7201 = vmatprep.subr.mxu0 0.0
      %7202 = vmatpush1.msra.mxu0 0.0
      %7203 = vmatprep.subr.mxu0 0.0
      %7204 = vmatpush1.msra.mxu0 0.0
      %7205 = vmatprep.subr.mxu0 0.0
      %7206 = vmatpush1.msra.mxu0 0.0
      %7207 = vmatprep.subr.mxu0 0.0
      %7208 = vmatpush1.msra.mxu0 0.0
      %7209 = vmatprep.subr.mxu0 0.0
      %7210 = vmatpush1.msra.mxu0 0.0
      %7211 = vmatprep.subr.mxu0 0.0
      %7212 = vmatpush1.msra.mxu0 0.0
      %7213 = vmatprep.subr.mxu0 0.0
      %7214 = vmatpush1.msra.mxu0 0.0
      %7215 = vmatprep.subr.mxu0 0.0
      %7216 = vmatpush1.msra.mxu0 0.0
      %7217 = vmatprep.subr.mxu0 0.0
      %7218 = vmatpush1.msra.mxu0 0.0
      %7219 = vmatprep.subr.mxu0 0.0
      %7220 = vmatpush1.msra.mxu0 0.0
      %7221 = vmatprep.subr.mxu0 0.0
      %7222 = vmatpush1.msra.mxu0 0.0
      %7223 = vmatprep.subr.mxu0 0.0
      %7224 = vmatpush1.msra.mxu0 0.0
      %7225 = vmatprep.subr.mxu0 0.0
      %7226 = vmatpush1.msra.mxu0 0.0
      %7227 = vmatprep.subr.mxu0 0.0
      %7228 = vmatpush1.msra.mxu0 0.0
      %7229 = vmatprep.subr.mxu0 0.0
      %7230 = vmatpush1.msra.mxu0 0.0
      %7231 = vmatprep.subr.mxu0 0.0
      %7232 = vmatpush1.msra.mxu0 0.0
      %7233 = vmatprep.subr.mxu0 0.0
      %7234 = vmatpush1.msra.mxu0 0.0
      %7235 = vmatprep.subr.mxu0 0.0
      %7236 = vmatpush1.msra.mxu0 0.0
      %7237 = vmatprep.mubr.f32.mxu0 0.0
      %7238 = vmatmul.mubr.f32.gmra.mrb[0].mxu0 %v7168
      %v7239 = vpop.f32.mrb[0].mxu0
      %v7240 = vadd.f32 0.0, %v7239
      %v7241 = vpop.f32.mrb[0].mxu0
      %7242 = vmatprep.mubr.f32.mxu0 0.0
      %7243 = vmatmul.mubr.f32.gmra.mrb[0].mxu0 %v7171
      %v7244 = vpop.f32.mrb[0].mxu0
      %v7245 = vadd.f32 0.0, %v7244
      %v7246 = vpop.f32.mrb[0].mxu0
      %7247 = vdwg.mxu0
      %v7249 = vsel %vm4810, %v5689, 0
      %v7252 = vsel %vm4810, %v5691, 0
      %7254 = vmatprep.subr.mxu0 0.0
      %7255 = vmatpush1.msra.mxu0 %v1136
      %7256 = vmatprep.subr.mxu0 0.0
      %7257 = vmatpush1.msra.mxu0 %v1141
      %7258 = vmatprep.subr.mxu0 0.0
      %7259 = vmatpush1.msra.mxu0 0.0
      %7260 = vmatprep.subr.mxu0 0.0
      %7261 = vmatpush1.msra.mxu0 0.0
      %7262 = vmatprep.subr.mxu0 0.0
      %7263 = vmatpush1.msra.mxu0 0.0
      %7264 = vmatprep.subr.mxu0 0.0
      %7265 = vmatpush1.msra.mxu0 0.0
      %7266 = vmatprep.subr.mxu0 0.0
      %7267 = vmatpush1.msra.mxu0 0.0
      %7268 = vmatprep.subr.mxu0 0.0
      %7269 = vmatpush1.msra.mxu0 0.0
      %7270 = vmatprep.subr.mxu0 0.0
      %7271 = vmatpush1.msra.mxu0 0.0
      %7272 = vmatprep.subr.mxu0 0.0
      %7273 = vmatpush1.msra.mxu0 0.0
      %7274 = vmatprep.subr.mxu0 0.0
      %7275 = vmatpush1.msra.mxu0 0.0
      %7276 = vmatprep.subr.mxu0 0.0
      %7277 = vmatpush1.msra.mxu0 0.0
      %7278 = vmatprep.subr.mxu0 0.0
      %7279 = vmatpush1.msra.mxu0 0.0
      %7280 = vmatprep.subr.mxu0 0.0
      %7281 = vmatpush1.msra.mxu0 0.0
      %7282 = vmatprep.subr.mxu0 0.0
      %7283 = vmatpush1.msra.mxu0 0.0
      %7284 = vmatprep.subr.mxu0 0.0
      %7285 = vmatpush1.msra.mxu0 0.0
      %7286 = vmatprep.subr.mxu0 0.0
      %7287 = vmatpush1.msra.mxu0 0.0
      %7288 = vmatprep.subr.mxu0 0.0
      %7289 = vmatpush1.msra.mxu0 0.0
      %7290 = vmatprep.subr.mxu0 0.0
      %7291 = vmatpush1.msra.mxu0 0.0
      %7292 = vmatprep.subr.mxu0 0.0
      %7293 = vmatpush1.msra.mxu0 0.0
      %7294 = vmatprep.subr.mxu0 0.0
      %7295 = vmatpush1.msra.mxu0 0.0
      %7296 = vmatprep.subr.mxu0 0.0
      %7297 = vmatpush1.msra.mxu0 0.0
      %7298 = vmatprep.subr.mxu0 0.0
      %7299 = vmatpush1.msra.mxu0 0.0
      %7300 = vmatprep.subr.mxu0 0.0
      %7301 = vmatpush1.msra.mxu0 0.0
      %7302 = vmatprep.subr.mxu0 0.0
      %7303 = vmatpush1.msra.mxu0 0.0
      %7304 = vmatprep.subr.mxu0 0.0
      %7305 = vmatpush1.msra.mxu0 0.0
      %7306 = vmatprep.subr.mxu0 0.0
      %7307 = vmatpush1.msra.mxu0 0.0
      %7308 = vmatprep.subr.mxu0 0.0
      %7309 = vmatpush1.msra.mxu0 0.0
      %7310 = vmatprep.subr.mxu0 0.0
      %7311 = vmatpush1.msra.mxu0 0.0
      %7312 = vmatprep.subr.mxu0 0.0
      %7313 = vmatpush1.msra.mxu0 0.0
      %7314 = vmatprep.subr.mxu0 0.0
      %7315 = vmatpush1.msra.mxu0 0.0
      %7316 = vmatprep.subr.mxu0 0.0
      %7317 = vmatpush1.msra.mxu0 0.0
      %7318 = vmatprep.mubr.f32.mxu0 0.0
      %7319 = vmatmul.mubr.f32.gmra.mrb[0].mxu0 %v7249
      %v7320 = vpop.f32.mrb[0].mxu0
      %v7321 = vadd.f32 0.0, %v7320
      %v7322 = vpop.f32.mrb[0].mxu0
      %7323 = vmatprep.mubr.f32.mxu0 0.0
      %7324 = vmatmul.mubr.f32.gmra.mrb[0].mxu0 %v7252
      %v7325 = vpop.f32.mrb[0].mxu0
      %v7326 = vadd.f32 0.0, %v7325
      %v7327 = vpop.f32.mrb[0].mxu0
      %7328 = vdwg.mxu0
      %v7330 = vsel %vm4810, %v5693, 0
      %v7333 = vsel %vm4810, %v5695, 0
      %7335 = vmatprep.subr.mxu0 0.0
      %7336 = vmatpush1.msra.mxu0 %v1146
      %7337 = vmatprep.subr.mxu0 0.0
      %7338 = vmatpush1.msra.mxu0 %v1151
      %7339 = vmatprep.subr.mxu0 0.0
      %7340 = vmatpush1.msra.mxu0 0.0
      %7341 = vmatprep.subr.mxu0 0.0
      %7342 = vmatpush1.msra.mxu0 0.0
      %7343 = vmatprep.subr.mxu0 0.0
      %7344 = vmatpush1.msra.mxu0 0.0
      %7345 = vmatprep.subr.mxu0 0.0
      %7346 = vmatpush1.msra.mxu0 0.0
      %7347 = vmatprep.subr.mxu0 0.0
      %7348 = vmatpush1.msra.mxu0 0.0
      %7349 = vmatprep.subr.mxu0 0.0
      %7350 = vmatpush1.msra.mxu0 0.0
      %7351 = vmatprep.subr.mxu0 0.0
      %7352 = vmatpush1.msra.mxu0 0.0
      %7353 = vmatprep.subr.mxu0 0.0
      %7354 = vmatpush1.msra.mxu0 0.0
      %7355 = vmatprep.subr.mxu0 0.0
      %7356 = vmatpush1.msra.mxu0 0.0
      %7357 = vmatprep.subr.mxu0 0.0
      %7358 = vmatpush1.msra.mxu0 0.0
      %7359 = vmatprep.subr.mxu0 0.0
      %7360 = vmatpush1.msra.mxu0 0.0
      %7361 = vmatprep.subr.mxu0 0.0
      %7362 = vmatpush1.msra.mxu0 0.0
      %7363 = vmatprep.subr.mxu0 0.0
      %7364 = vmatpush1.msra.mxu0 0.0
      %7365 = vmatprep.subr.mxu0 0.0
      %7366 = vmatpush1.msra.mxu0 0.0
      %7367 = vmatprep.subr.mxu0 0.0
      %7368 = vmatpush1.msra.mxu0 0.0
      %7369 = vmatprep.subr.mxu0 0.0
      %7370 = vmatpush1.msra.mxu0 0.0
      %7371 = vmatprep.subr.mxu0 0.0
      %7372 = vmatpush1.msra.mxu0 0.0
      %7373 = vmatprep.subr.mxu0 0.0
      %7374 = vmatpush1.msra.mxu0 0.0
      %7375 = vmatprep.subr.mxu0 0.0
      %7376 = vmatpush1.msra.mxu0 0.0
      %7377 = vmatprep.subr.mxu0 0.0
      %7378 = vmatpush1.msra.mxu0 0.0
      %7379 = vmatprep.subr.mxu0 0.0
      %7380 = vmatpush1.msra.mxu0 0.0
      %7381 = vmatprep.subr.mxu0 0.0
      %7382 = vmatpush1.msra.mxu0 0.0
      %7383 = vmatprep.subr.mxu0 0.0
      %7384 = vmatpush1.msra.mxu0 0.0
      %7385 = vmatprep.subr.mxu0 0.0
      %7386 = vmatpush1.msra.mxu0 0.0
      %7387 = vmatprep.subr.mxu0 0.0
      %7388 = vmatpush1.msra.mxu0 0.0
      %7389 = vmatprep.subr.mxu0 0.0
      %7390 = vmatpush1.msra.mxu0 0.0
      %7391 = vmatprep.subr.mxu0 0.0
      %7392 = vmatpush1.msra.mxu0 0.0
      %7393 = vmatprep.subr.mxu0 0.0
      %7394 = vmatpush1.msra.mxu0 0.0
      %7395 = vmatprep.subr.mxu0 0.0
      %7396 = vmatpush1.msra.mxu0 0.0
      %7397 = vmatprep.subr.mxu0 0.0
      %7398 = vmatpush1.msra.mxu0 0.0
      %7399 = vmatprep.mubr.f32.mxu0 0.0
      %7400 = vmatmul.mubr.f32.gmra.mrb[0].mxu0 %v7330
      %v7401 = vpop.f32.mrb[0].mxu0
      %v7402 = vadd.f32 0.0, %v7401
      %v7403 = vpop.f32.mrb[0].mxu0
      %7404 = vmatprep.mubr.f32.mxu0 0.0
      %7405 = vmatmul.mubr.f32.gmra.mrb[0].mxu0 %v7333
      %v7406 = vpop.f32.mrb[0].mxu0
      %v7407 = vadd.f32 0.0, %v7406
      %v7408 = vpop.f32.mrb[0].mxu0
      %7409 = vdwg.mxu0
      %v7411 = vsel %vm4810, %v5697, 0
      %v7414 = vsel %vm4810, %v5699, 0
      %7416 = vmatprep.subr.mxu0 0.0
      %7417 = vmatpush1.msra.mxu0 %v1156
      %7418 = vmatprep.subr.mxu0 0.0
      %7419 = vmatpush1.msra.mxu0 %v1161
      %7420 = vmatprep.subr.mxu0 0.0
      %7421 = vmatpush1.msra.mxu0 0.0
      %7422 = vmatprep.subr.mxu0 0.0
      %7423 = vmatpush1.msra.mxu0 0.0
      %7424 = vmatprep.subr.mxu0 0.0
      %7425 = vmatpush1.msra.mxu0 0.0
      %7426 = vmatprep.subr.mxu0 0.0
      %7427 = vmatpush1.msra.mxu0 0.0
      %7428 = vmatprep.subr.mxu0 0.0
      %7429 = vmatpush1.msra.mxu0 0.0
      %7430 = vmatprep.subr.mxu0 0.0
      %7431 = vmatpush1.msra.mxu0 0.0
      %7432 = vmatprep.subr.mxu0 0.0
      %7433 = vmatpush1.msra.mxu0 0.0
      %7434 = vmatprep.subr.mxu0 0.0
      %7435 = vmatpush1.msra.mxu0 0.0
      %7436 = vmatprep.subr.mxu0 0.0
      %7437 = vmatpush1.msra.mxu0 0.0
      %7438 = vmatprep.subr.mxu0 0.0
      %7439 = vmatpush1.msra.mxu0 0.0
      %7440 = vmatprep.subr.mxu0 0.0
      %7441 = vmatpush1.msra.mxu0 0.0
      %7442 = vmatprep.subr.mxu0 0.0
      %7443 = vmatpush1.msra.mxu0 0.0
      %7444 = vmatprep.subr.mxu0 0.0
      %7445 = vmatpush1.msra.mxu0 0.0
      %7446 = vmatprep.subr.mxu0 0.0
      %7447 = vmatpush1.msra.mxu0 0.0
      %7448 = vmatprep.subr.mxu0 0.0
      %7449 = vmatpush1.msra.mxu0 0.0
      %7450 = vmatprep.subr.mxu0 0.0
      %7451 = vmatpush1.msra.mxu0 0.0
      %7452 = vmatprep.subr.mxu0 0.0
      %7453 = vmatpush1.msra.mxu0 0.0
      %7454 = vmatprep.subr.mxu0 0.0
      %7455 = vmatpush1.msra.mxu0 0.0
      %7456 = vmatprep.subr.mxu0 0.0
      %7457 = vmatpush1.msra.mxu0 0.0
      %7458 = vmatprep.subr.mxu0 0.0
      %7459 = vmatpush1.msra.mxu0 0.0
      %7460 = vmatprep.subr.mxu0 0.0
      %7461 = vmatpush1.msra.mxu0 0.0
      %7462 = vmatprep.subr.mxu0 0.0
      %7463 = vmatpush1.msra.mxu0 0.0
      %7464 = vmatprep.subr.mxu0 0.0
      %7465 = vmatpush1.msra.mxu0 0.0
      %7466 = vmatprep.subr.mxu0 0.0
      %7467 = vmatpush1.msra.mxu0 0.0
      %7468 = vmatprep.subr.mxu0 0.0
      %7469 = vmatpush1.msra.mxu0 0.0
      %7470 = vmatprep.subr.mxu0 0.0
      %7471 = vmatpush1.msra.mxu0 0.0
      %7472 = vmatprep.subr.mxu0 0.0
      %7473 = vmatpush1.msra.mxu0 0.0
      %7474 = vmatprep.subr.mxu0 0.0
      %7475 = vmatpush1.msra.mxu0 0.0
      %7476 = vmatprep.subr.mxu0 0.0
      %7477 = vmatpush1.msra.mxu0 0.0
      %7478 = vmatprep.subr.mxu0 0.0
      %7479 = vmatpush1.msra.mxu0 0.0
      %7480 = vmatprep.mubr.f32.mxu0 0.0
      %7481 = vmatmul.mubr.f32.gmra.mrb[0].mxu0 %v7411
      %v7482 = vpop.f32.mrb[0].mxu0
      %v7483 = vadd.f32 0.0, %v7482
      %v7484 = vpop.f32.mrb[0].mxu0
      %7485 = vmatprep.mubr.f32.mxu0 0.0
      %7486 = vmatmul.mubr.f32.gmra.mrb[0].mxu0 %v7414
      %v7487 = vpop.f32.mrb[0].mxu0
      %v7488 = vadd.f32 0.0, %v7487
      %v7489 = vpop.f32.mrb[0].mxu0
      %7490 = vdwg.mxu0
      %v7492 = vsel %vm4810, %v5701, 0
      %v7495 = vsel %vm4810, %v5703, 0
      %7497 = vmatprep.subr.mxu0 0.0
      %7498 = vmatpush1.msra.mxu0 %v1166
      %7499 = vmatprep.subr.mxu0 0.0
      %7500 = vmatpush1.msra.mxu0 %v1171
      %7501 = vmatprep.subr.mxu0 0.0
      %7502 = vmatpush1.msra.mxu0 0.0
      %7503 = vmatprep.subr.mxu0 0.0
      %7504 = vmatpush1.msra.mxu0 0.0
      %7505 = vmatprep.subr.mxu0 0.0
      %7506 = vmatpush1.msra.mxu0 0.0
      %7507 = vmatprep.subr.mxu0 0.0
      %7508 = vmatpush1.msra.mxu0 0.0
      %7509 = vmatprep.subr.mxu0 0.0
      %7510 = vmatpush1.msra.mxu0 0.0
      %7511 = vmatprep.subr.mxu0 0.0
      %7512 = vmatpush1.msra.mxu0 0.0
      %7513 = vmatprep.subr.mxu0 0.0
      %7514 = vmatpush1.msra.mxu0 0.0
      %7515 = vmatprep.subr.mxu0 0.0
      %7516 = vmatpush1.msra.mxu0 0.0
      %7517 = vmatprep.subr.mxu0 0.0
      %7518 = vmatpush1.msra.mxu0 0.0
      %7519 = vmatprep.subr.mxu0 0.0
      %7520 = vmatpush1.msra.mxu0 0.0
      %7521 = vmatprep.subr.mxu0 0.0
      %7522 = vmatpush1.msra.mxu0 0.0
      %7523 = vmatprep.subr.mxu0 0.0
      %7524 = vmatpush1.msra.mxu0 0.0
      %7525 = vmatprep.subr.mxu0 0.0
      %7526 = vmatpush1.msra.mxu0 0.0
      %7527 = vmatprep.subr.mxu0 0.0
      %7528 = vmatpush1.msra.mxu0 0.0
      %7529 = vmatprep.subr.mxu0 0.0
      %7530 = vmatpush1.msra.mxu0 0.0
      %7531 = vmatprep.subr.mxu0 0.0
      %7532 = vmatpush1.msra.mxu0 0.0
      %7533 = vmatprep.subr.mxu0 0.0
      %7534 = vmatpush1.msra.mxu0 0.0
      %7535 = vmatprep.subr.mxu0 0.0
      %7536 = vmatpush1.msra.mxu0 0.0
      %7537 = vmatprep.subr.mxu0 0.0
      %7538 = vmatpush1.msra.mxu0 0.0
      %7539 = vmatprep.subr.mxu0 0.0
      %7540 = vmatpush1.msra.mxu0 0.0
      %7541 = vmatprep.subr.mxu0 0.0
      %7542 = vmatpush1.msra.mxu0 0.0
      %7543 = vmatprep.subr.mxu0 0.0
      %7544 = vmatpush1.msra.mxu0 0.0
      %7545 = vmatprep.subr.mxu0 0.0
      %7546 = vmatpush1.msra.mxu0 0.0
      %7547 = vmatprep.subr.mxu0 0.0
      %7548 = vmatpush1.msra.mxu0 0.0
      %7549 = vmatprep.subr.mxu0 0.0
      %7550 = vmatpush1.msra.mxu0 0.0
      %7551 = vmatprep.subr.mxu0 0.0
      %7552 = vmatpush1.msra.mxu0 0.0
      %7553 = vmatprep.subr.mxu0 0.0
      %7554 = vmatpush1.msra.mxu0 0.0
      %7555 = vmatprep.subr.mxu0 0.0
      %7556 = vmatpush1.msra.mxu0 0.0
      %7557 = vmatprep.subr.mxu0 0.0
      %7558 = vmatpush1.msra.mxu0 0.0
      %7559 = vmatprep.subr.mxu0 0.0
      %7560 = vmatpush1.msra.mxu0 0.0
      %7561 = vmatprep.mubr.f32.mxu0 0.0
      %7562 = vmatmul.mubr.f32.gmra.mrb[0].mxu0 %v7492
      %v7563 = vpop.f32.mrb[0].mxu0
      %v7564 = vadd.f32 0.0, %v7563
      %v7565 = vpop.f32.mrb[0].mxu0
      %7566 = vmatprep.mubr.f32.mxu0 0.0
      %7567 = vmatmul.mubr.f32.gmra.mrb[0].mxu0 %v7495
      %v7568 = vpop.f32.mrb[0].mxu0
      %v7569 = vadd.f32 0.0, %v7568
      %v7570 = vpop.f32.mrb[0].mxu0
      %7571 = vdwg.mxu0
      %v7573 = vsel %vm4810, %v5705, 0
      %v7576 = vsel %vm4810, %v5707, 0
      %7578 = vmatprep.subr.mxu0 0.0
      %7579 = vmatpush1.msra.mxu0 %v1176
      %7580 = vmatprep.subr.mxu0 0.0
      %7581 = vmatpush1.msra.mxu0 %v1181
      %7582 = vmatprep.subr.mxu0 0.0
      %7583 = vmatpush1.msra.mxu0 0.0
      %7584 = vmatprep.subr.mxu0 0.0
      %7585 = vmatpush1.msra.mxu0 0.0
      %7586 = vmatprep.subr.mxu0 0.0
      %7587 = vmatpush1.msra.mxu0 0.0
      %7588 = vmatprep.subr.mxu0 0.0
      %7589 = vmatpush1.msra.mxu0 0.0
      %7590 = vmatprep.subr.mxu0 0.0
      %7591 = vmatpush1.msra.mxu0 0.0
      %7592 = vmatprep.subr.mxu0 0.0
      %7593 = vmatpush1.msra.mxu0 0.0
      %7594 = vmatprep.subr.mxu0 0.0
      %7595 = vmatpush1.msra.mxu0 0.0
      %7596 = vmatprep.subr.mxu0 0.0
      %7597 = vmatpush1.msra.mxu0 0.0
      %7598 = vmatprep.subr.mxu0 0.0
      %7599 = vmatpush1.msra.mxu0 0.0
      %7600 = vmatprep.subr.mxu0 0.0
      %7601 = vmatpush1.msra.mxu0 0.0
      %7602 = vmatprep.subr.mxu0 0.0
      %7603 = vmatpush1.msra.mxu0 0.0
      %7604 = vmatprep.subr.mxu0 0.0
      %7605 = vmatpush1.msra.mxu0 0.0
      %7606 = vmatprep.subr.mxu0 0.0
      %7607 = vmatpush1.msra.mxu0 0.0
      %7608 = vmatprep.subr.mxu0 0.0
      %7609 = vmatpush1.msra.mxu0 0.0
      %7610 = vmatprep.subr.mxu0 0.0
      %7611 = vmatpush1.msra.mxu0 0.0
      %7612 = vmatprep.subr.mxu0 0.0
      %7613 = vmatpush1.msra.mxu0 0.0
      %7614 = vmatprep.subr.mxu0 0.0
      %7615 = vmatpush1.msra.mxu0 0.0
      %7616 = vmatprep.subr.mxu0 0.0
      %7617 = vmatpush1.msra.mxu0 0.0
      %7618 = vmatprep.subr.mxu0 0.0
      %7619 = vmatpush1.msra.mxu0 0.0
      %7620 = vmatprep.subr.mxu0 0.0
      %7621 = vmatpush1.msra.mxu0 0.0
      %7622 = vmatprep.subr.mxu0 0.0
      %7623 = vmatpush1.msra.mxu0 0.0
      %7624 = vmatprep.subr.mxu0 0.0
      %7625 = vmatpush1.msra.mxu0 0.0
      %7626 = vmatprep.subr.mxu0 0.0
      %7627 = vmatpush1.msra.mxu0 0.0
      %7628 = vmatprep.subr.mxu0 0.0
      %7629 = vmatpush1.msra.mxu0 0.0
      %7630 = vmatprep.subr.mxu0 0.0
      %7631 = vmatpush1.msra.mxu0 0.0
      %7632 = vmatprep.subr.mxu0 0.0
      %7633 = vmatpush1.msra.mxu0 0.0
      %7634 = vmatprep.subr.mxu0 0.0
      %7635 = vmatpush1.msra.mxu0 0.0
      %7636 = vmatprep.subr.mxu0 0.0
      %7637 = vmatpush1.msra.mxu0 0.0
      %7638 = vmatprep.subr.mxu0 0.0
      %7639 = vmatpush1.msra.mxu0 0.0
      %7640 = vmatprep.subr.mxu0 0.0
      %7641 = vmatpush1.msra.mxu0 0.0
      %7642 = vmatprep.mubr.f32.mxu0 0.0
      %7643 = vmatmul.mubr.f32.gmra.mrb[0].mxu0 %v7573
      %v7644 = vpop.f32.mrb[0].mxu0
      %v7645 = vadd.f32 0.0, %v7644
      %v7646 = vpop.f32.mrb[0].mxu0
      %7647 = vmatprep.mubr.f32.mxu0 0.0
      %7648 = vmatmul.mubr.f32.gmra.mrb[0].mxu0 %v7576
      %v7649 = vpop.f32.mrb[0].mxu0
      %v7650 = vadd.f32 0.0, %v7649
      %v7651 = vpop.f32.mrb[0].mxu0
      %7652 = vdwg.mxu0
      %v7654 = vsel %vm4810, %v5709, 0
      %v7657 = vsel %vm4810, %v5711, 0
      %7659 = vmatprep.subr.mxu0 0.0
      %7660 = vmatpush1.msra.mxu0 %v1186
      %7661 = vmatprep.subr.mxu0 0.0
      %7662 = vmatpush1.msra.mxu0 %v1191
      %7663 = vmatprep.subr.mxu0 0.0
      %7664 = vmatpush1.msra.mxu0 0.0
      %7665 = vmatprep.subr.mxu0 0.0
      %7666 = vmatpush1.msra.mxu0 0.0
      %7667 = vmatprep.subr.mxu0 0.0
      %7668 = vmatpush1.msra.mxu0 0.0
      %7669 = vmatprep.subr.mxu0 0.0
      %7670 = vmatpush1.msra.mxu0 0.0
      %7671 = vmatprep.subr.mxu0 0.0
      %7672 = vmatpush1.msra.mxu0 0.0
      %7673 = vmatprep.subr.mxu0 0.0
      %7674 = vmatpush1.msra.mxu0 0.0
      %7675 = vmatprep.subr.mxu0 0.0
      %7676 = vmatpush1.msra.mxu0 0.0
      %7677 = vmatprep.subr.mxu0 0.0
      %7678 = vmatpush1.msra.mxu0 0.0
      %7679 = vmatprep.subr.mxu0 0.0
      %7680 = vmatpush1.msra.mxu0 0.0
      %7681 = vmatprep.subr.mxu0 0.0
      %7682 = vmatpush1.msra.mxu0 0.0
      %7683 = vmatprep.subr.mxu0 0.0
      %7684 = vmatpush1.msra.mxu0 0.0
      %7685 = vmatprep.subr.mxu0 0.0
      %7686 = vmatpush1.msra.mxu0 0.0
      %7687 = vmatprep.subr.mxu0 0.0
      %7688 = vmatpush1.msra.mxu0 0.0
      %7689 = vmatprep.subr.mxu0 0.0
      %7690 = vmatpush1.msra.mxu0 0.0
      %7691 = vmatprep.subr.mxu0 0.0
      %7692 = vmatpush1.msra.mxu0 0.0
      %7693 = vmatprep.subr.mxu0 0.0
      %7694 = vmatpush1.msra.mxu0 0.0
      %7695 = vmatprep.subr.mxu0 0.0
      %7696 = vmatpush1.msra.mxu0 0.0
      %7697 = vmatprep.subr.mxu0 0.0
      %7698 = vmatpush1.msra.mxu0 0.0
      %7699 = vmatprep.subr.mxu0 0.0
      %7700 = vmatpush1.msra.mxu0 0.0
      %7701 = vmatprep.subr.mxu0 0.0
      %7702 = vmatpush1.msra.mxu0 0.0
      %7703 = vmatprep.subr.mxu0 0.0
      %7704 = vmatpush1.msra.mxu0 0.0
      %7705 = vmatprep.subr.mxu0 0.0
      %7706 = vmatpush1.msra.mxu0 0.0
      %7707 = vmatprep.subr.mxu0 0.0
      %7708 = vmatpush1.msra.mxu0 0.0
      %7709 = vmatprep.subr.mxu0 0.0
      %7710 = vmatpush1.msra.mxu0 0.0
      %7711 = vmatprep.subr.mxu0 0.0
      %7712 = vmatpush1.msra.mxu0 0.0
      %7713 = vmatprep.subr.mxu0 0.0
      %7714 = vmatpush1.msra.mxu0 0.0
      %7715 = vmatprep.subr.mxu0 0.0
      %7716 = vmatpush1.msra.mxu0 0.0
      %7717 = vmatprep.subr.mxu0 0.0
      %7718 = vmatpush1.msra.mxu0 0.0
      %7719 = vmatprep.subr.mxu0 0.0
      %7720 = vmatpush1.msra.mxu0 0.0
      %7721 = vmatprep.subr.mxu0 0.0
      %7722 = vmatpush1.msra.mxu0 0.0
      %7723 = vmatprep.mubr.f32.mxu0 0.0
      %7724 = vmatmul.mubr.f32.gmra.mrb[0].mxu0 %v7654
      %v7725 = vpop.f32.mrb[0].mxu0
      %v7726 = vadd.f32 0.0, %v7725
      %v7727 = vpop.f32.mrb[0].mxu0
      %7728 = vmatprep.mubr.f32.mxu0 0.0
      %7729 = vmatmul.mubr.f32.gmra.mrb[0].mxu0 %v7657
      %v7730 = vpop.f32.mrb[0].mxu0
      %v7731 = vadd.f32 0.0, %v7730
      %v7732 = vpop.f32.mrb[0].mxu0
      %7733 = vdwg.mxu0
      %v7735 = vsel %vm4810, %v5713, 0
      %v7738 = vsel %vm4810, %v5715, 0
      %7740 = vmatprep.subr.mxu0 0.0
      %7741 = vmatpush1.msra.mxu0 %v1196
      %7742 = vmatprep.subr.mxu0 0.0
      %7743 = vmatpush1.msra.mxu0 %v1201
      %7744 = vmatprep.subr.mxu0 0.0
      %7745 = vmatpush1.msra.mxu0 0.0
      %7746 = vmatprep.subr.mxu0 0.0
      %7747 = vmatpush1.msra.mxu0 0.0
      %7748 = vmatprep.subr.mxu0 0.0
      %7749 = vmatpush1.msra.mxu0 0.0
      %7750 = vmatprep.subr.mxu0 0.0
      %7751 = vmatpush1.msra.mxu0 0.0
      %7752 = vmatprep.subr.mxu0 0.0
      %7753 = vmatpush1.msra.mxu0 0.0
      %7754 = vmatprep.subr.mxu0 0.0
      %7755 = vmatpush1.msra.mxu0 0.0
      %7756 = vmatprep.subr.mxu0 0.0
      %7757 = vmatpush1.msra.mxu0 0.0
      %7758 = vmatprep.subr.mxu0 0.0
      %7759 = vmatpush1.msra.mxu0 0.0
      %7760 = vmatprep.subr.mxu0 0.0
      %7761 = vmatpush1.msra.mxu0 0.0
      %7762 = vmatprep.subr.mxu0 0.0
      %7763 = vmatpush1.msra.mxu0 0.0
      %7764 = vmatprep.subr.mxu0 0.0
      %7765 = vmatpush1.msra.mxu0 0.0
      %7766 = vmatprep.subr.mxu0 0.0
      %7767 = vmatpush1.msra.mxu0 0.0
      %7768 = vmatprep.subr.mxu0 0.0
      %7769 = vmatpush1.msra.mxu0 0.0
      %7770 = vmatprep.subr.mxu0 0.0
      %7771 = vmatpush1.msra.mxu0 0.0
      %7772 = vmatprep.subr.mxu0 0.0
      %7773 = vmatpush1.msra.mxu0 0.0
      %7774 = vmatprep.subr.mxu0 0.0
      %7775 = vmatpush1.msra.mxu0 0.0
      %7776 = vmatprep.subr.mxu0 0.0
      %7777 = vmatpush1.msra.mxu0 0.0
      %7778 = vmatprep.subr.mxu0 0.0
      %7779 = vmatpush1.msra.mxu0 0.0
      %7780 = vmatprep.subr.mxu0 0.0
      %7781 = vmatpush1.msra.mxu0 0.0
      %7782 = vmatprep.subr.mxu0 0.0
      %7783 = vmatpush1.msra.mxu0 0.0
      %7784 = vmatprep.subr.mxu0 0.0
      %7785 = vmatpush1.msra.mxu0 0.0
      %7786 = vmatprep.subr.mxu0 0.0
      %7787 = vmatpush1.msra.mxu0 0.0
      %7788 = vmatprep.subr.mxu0 0.0
      %7789 = vmatpush1.msra.mxu0 0.0
      %7790 = vmatprep.subr.mxu0 0.0
      %7791 = vmatpush1.msra.mxu0 0.0
      %7792 = vmatprep.subr.mxu0 0.0
      %7793 = vmatpush1.msra.mxu0 0.0
      %7794 = vmatprep.subr.mxu0 0.0
      %7795 = vmatpush1.msra.mxu0 0.0
      %7796 = vmatprep.subr.mxu0 0.0
      %7797 = vmatpush1.msra.mxu0 0.0
      %7798 = vmatprep.subr.mxu0 0.0
      %7799 = vmatpush1.msra.mxu0 0.0
      %7800 = vmatprep.subr.mxu0 0.0
      %7801 = vmatpush1.msra.mxu0 0.0
      %7802 = vmatprep.subr.mxu0 0.0
      %7803 = vmatpush1.msra.mxu0 0.0
      %7804 = vmatprep.mubr.f32.mxu0 0.0
      %7805 = vmatmul.mubr.f32.gmra.mrb[0].mxu0 %v7735
      %v7806 = vpop.f32.mrb[0].mxu0
      %v7807 = vadd.f32 0.0, %v7806
      %v7808 = vpop.f32.mrb[0].mxu0
      %7809 = vmatprep.mubr.f32.mxu0 0.0
      %7810 = vmatmul.mubr.f32.gmra.mrb[0].mxu0 %v7738
      %v7811 = vpop.f32.mrb[0].mxu0
      %v7812 = vadd.f32 0.0, %v7811
      %v7813 = vpop.f32.mrb[0].mxu0
      %7814 = vdwg.mxu0
      %v7816 = vsel %vm4810, %v5717, 0
      %v7819 = vsel %vm4810, %v5719, 0
      %7821 = vmatprep.subr.mxu0 0.0
      %7822 = vmatpush1.msra.mxu0 %v1206
      %7823 = vmatprep.subr.mxu0 0.0
      %7824 = vmatpush1.msra.mxu0 %v1211
      %7825 = vmatprep.subr.mxu0 0.0
      %7826 = vmatpush1.msra.mxu0 0.0
      %7827 = vmatprep.subr.mxu0 0.0
      %7828 = vmatpush1.msra.mxu0 0.0
      %7829 = vmatprep.subr.mxu0 0.0
      %7830 = vmatpush1.msra.mxu0 0.0
      %7831 = vmatprep.subr.mxu0 0.0
      %7832 = vmatpush1.msra.mxu0 0.0
      %7833 = vmatprep.subr.mxu0 0.0
      %7834 = vmatpush1.msra.mxu0 0.0
      %7835 = vmatprep.subr.mxu0 0.0
      %7836 = vmatpush1.msra.mxu0 0.0
      %7837 = vmatprep.subr.mxu0 0.0
      %7838 = vmatpush1.msra.mxu0 0.0
      %7839 = vmatprep.subr.mxu0 0.0
      %7840 = vmatpush1.msra.mxu0 0.0
      %7841 = vmatprep.subr.mxu0 0.0
      %7842 = vmatpush1.msra.mxu0 0.0
      %7843 = vmatprep.subr.mxu0 0.0
      %7844 = vmatpush1.msra.mxu0 0.0
      %7845 = vmatprep.subr.mxu0 0.0
      %7846 = vmatpush1.msra.mxu0 0.0
      %7847 = vmatprep.subr.mxu0 0.0
      %7848 = vmatpush1.msra.mxu0 0.0
      %7849 = vmatprep.subr.mxu0 0.0
      %7850 = vmatpush1.msra.mxu0 0.0
      %7851 = vmatprep.subr.mxu0 0.0
      %7852 = vmatpush1.msra.mxu0 0.0
      %7853 = vmatprep.subr.mxu0 0.0
      %7854 = vmatpush1.msra.mxu0 0.0
      %7855 = vmatprep.subr.mxu0 0.0
      %7856 = vmatpush1.msra.mxu0 0.0
      %7857 = vmatprep.subr.mxu0 0.0
      %7858 = vmatpush1.msra.mxu0 0.0
      %7859 = vmatprep.subr.mxu0 0.0
      %7860 = vmatpush1.msra.mxu0 0.0
      %7861 = vmatprep.subr.mxu0 0.0
      %7862 = vmatpush1.msra.mxu0 0.0
      %7863 = vmatprep.subr.mxu0 0.0
      %7864 = vmatpush1.msra.mxu0 0.0
      %7865 = vmatprep.subr.mxu0 0.0
      %7866 = vmatpush1.msra.mxu0 0.0
      %7867 = vmatprep.subr.mxu0 0.0
      %7868 = vmatpush1.msra.mxu0 0.0
      %7869 = vmatprep.subr.mxu0 0.0
      %7870 = vmatpush1.msra.mxu0 0.0
      %7871 = vmatprep.subr.mxu0 0.0
      %7872 = vmatpush1.msra.mxu0 0.0
      %7873 = vmatprep.subr.mxu0 0.0
      %7874 = vmatpush1.msra.mxu0 0.0
      %7875 = vmatprep.subr.mxu0 0.0
      %7876 = vmatpush1.msra.mxu0 0.0
      %7877 = vmatprep.subr.mxu0 0.0
      %7878 = vmatpush1.msra.mxu0 0.0
      %7879 = vmatprep.subr.mxu0 0.0
      %7880 = vmatpush1.msra.mxu0 0.0
      %7881 = vmatprep.subr.mxu0 0.0
      %7882 = vmatpush1.msra.mxu0 0.0
      %7883 = vmatprep.subr.mxu0 0.0
      %7884 = vmatpush1.msra.mxu0 0.0
      %7885 = vmatprep.mubr.f32.mxu0 0.0
      %7886 = vmatmul.mubr.f32.gmra.mrb[0].mxu0 %v7816
      %v7887 = vpop.f32.mrb[0].mxu0
      %v7888 = vadd.f32 0.0, %v7887
      %v7889 = vpop.f32.mrb[0].mxu0
      %7890 = vmatprep.mubr.f32.mxu0 0.0
      %7891 = vmatmul.mubr.f32.gmra.mrb[0].mxu0 %v7819
      %v7892 = vpop.f32.mrb[0].mxu0
      %v7893 = vadd.f32 0.0, %v7892
      %v7894 = vpop.f32.mrb[0].mxu0
      %7895 = vdwg.mxu0
      %v7897 = vsel %vm4810, %v5721, 0
      %v7900 = vsel %vm4810, %v5723, 0
      %7902 = vmatprep.subr.mxu0 0.0
      %7903 = vmatpush1.msra.mxu0 %v1216
      %7904 = vmatprep.subr.mxu0 0.0
      %7905 = vmatpush1.msra.mxu0 %v1221
      %7906 = vmatprep.subr.mxu0 0.0
      %7907 = vmatpush1.msra.mxu0 0.0
      %7908 = vmatprep.subr.mxu0 0.0
      %7909 = vmatpush1.msra.mxu0 0.0
      %7910 = vmatprep.subr.mxu0 0.0
      %7911 = vmatpush1.msra.mxu0 0.0
      %7912 = vmatprep.subr.mxu0 0.0
      %7913 = vmatpush1.msra.mxu0 0.0
      %7914 = vmatprep.subr.mxu0 0.0
      %7915 = vmatpush1.msra.mxu0 0.0
      %7916 = vmatprep.subr.mxu0 0.0
      %7917 = vmatpush1.msra.mxu0 0.0
      %7918 = vmatprep.subr.mxu0 0.0
      %7919 = vmatpush1.msra.mxu0 0.0
      %7920 = vmatprep.subr.mxu0 0.0
      %7921 = vmatpush1.msra.mxu0 0.0
      %7922 = vmatprep.subr.mxu0 0.0
      %7923 = vmatpush1.msra.mxu0 0.0
      %7924 = vmatprep.subr.mxu0 0.0
      %7925 = vmatpush1.msra.mxu0 0.0
      %7926 = vmatprep.subr.mxu0 0.0
      %7927 = vmatpush1.msra.mxu0 0.0
      %7928 = vmatprep.subr.mxu0 0.0
      %7929 = vmatpush1.msra.mxu0 0.0
      %7930 = vmatprep.subr.mxu0 0.0
      %7931 = vmatpush1.msra.mxu0 0.0
      %7932 = vmatprep.subr.mxu0 0.0
      %7933 = vmatpush1.msra.mxu0 0.0
      %7934 = vmatprep.subr.mxu0 0.0
      %7935 = vmatpush1.msra.mxu0 0.0
      %7936 = vmatprep.subr.mxu0 0.0
      %7937 = vmatpush1.msra.mxu0 0.0
      %7938 = vmatprep.subr.mxu0 0.0
      %7939 = vmatpush1.msra.mxu0 0.0
      %7940 = vmatprep.subr.mxu0 0.0
      %7941 = vmatpush1.msra.mxu0 0.0
      %7942 = vmatprep.subr.mxu0 0.0
      %7943 = vmatpush1.msra.mxu0 0.0
      %7944 = vmatprep.subr.mxu0 0.0
      %7945 = vmatpush1.msra.mxu0 0.0
      %7946 = vmatprep.subr.mxu0 0.0
      %7947 = vmatpush1.msra.mxu0 0.0
      %7948 = vmatprep.subr.mxu0 0.0
      %7949 = vmatpush1.msra.mxu0 0.0
      %7950 = vmatprep.subr.mxu0 0.0
      %7951 = vmatpush1.msra.mxu0 0.0
      %7952 = vmatprep.subr.mxu0 0.0
      %7953 = vmatpush1.msra.mxu0 0.0
      %7954 = vmatprep.subr.mxu0 0.0
      %7955 = vmatpush1.msra.mxu0 0.0
      %7956 = vmatprep.subr.mxu0 0.0
      %7957 = vmatpush1.msra.mxu0 0.0
      %7958 = vmatprep.subr.mxu0 0.0
      %7959 = vmatpush1.msra.mxu0 0.0
      %7960 = vmatprep.subr.mxu0 0.0
      %7961 = vmatpush1.msra.mxu0 0.0
      %7962 = vmatprep.subr.mxu0 0.0
      %7963 = vmatpush1.msra.mxu0 0.0
      %7964 = vmatprep.subr.mxu0 0.0
      %7965 = vmatpush1.msra.mxu0 0.0
      %7966 = vmatprep.mubr.f32.mxu0 0.0
      %7967 = vmatmul.mubr.f32.gmra.mrb[0].mxu0 %v7897
      %v7968 = vpop.f32.mrb[0].mxu0
      %v7969 = vadd.f32 0.0, %v7968
      %v7970 = vpop.f32.mrb[0].mxu0
      %7971 = vmatprep.mubr.f32.mxu0 0.0
      %7972 = vmatmul.mubr.f32.gmra.mrb[0].mxu0 %v7900
      %v7973 = vpop.f32.mrb[0].mxu0
      %v7974 = vadd.f32 0.0, %v7973
      %v7975 = vpop.f32.mrb[0].mxu0
      %7976 = vdwg.mxu0
      %v7978 = vsel %vm4810, %v5725, 0
      %v7981 = vsel %vm4810, %v5727, 0
      %7983 = vmatprep.subr.mxu0 0.0
      %7984 = vmatpush1.msra.mxu0 %v1226
      %7985 = vmatprep.subr.mxu0 0.0
      %7986 = vmatpush1.msra.mxu0 %v1231
      %7987 = vmatprep.subr.mxu0 0.0
      %7988 = vmatpush1.msra.mxu0 0.0
      %7989 = vmatprep.subr.mxu0 0.0
      %7990 = vmatpush1.msra.mxu0 0.0
      %7991 = vmatprep.subr.mxu0 0.0
      %7992 = vmatpush1.msra.mxu0 0.0
      %7993 = vmatprep.subr.mxu0 0.0
      %7994 = vmatpush1.msra.mxu0 0.0
      %7995 = vmatprep.subr.mxu0 0.0
      %7996 = vmatpush1.msra.mxu0 0.0
      %7997 = vmatprep.subr.mxu0 0.0
      %7998 = vmatpush1.msra.mxu0 0.0
      %7999 = vmatprep.subr.mxu0 0.0
      %8000 = vmatpush1.msra.mxu0 0.0
      %8001 = vmatprep.subr.mxu0 0.0
      %8002 = vmatpush1.msra.mxu0 0.0
      %8003 = vmatprep.subr.mxu0 0.0
      %8004 = vmatpush1.msra.mxu0 0.0
      %8005 = vmatprep.subr.mxu0 0.0
      %8006 = vmatpush1.msra.mxu0 0.0
      %8007 = vmatprep.subr.mxu0 0.0
      %8008 = vmatpush1.msra.mxu0 0.0
      %8009 = vmatprep.subr.mxu0 0.0
      %8010 = vmatpush1.msra.mxu0 0.0
      %8011 = vmatprep.subr.mxu0 0.0
      %8012 = vmatpush1.msra.mxu0 0.0
      %8013 = vmatprep.subr.mxu0 0.0
      %8014 = vmatpush1.msra.mxu0 0.0
      %8015 = vmatprep.subr.mxu0 0.0
      %8016 = vmatpush1.msra.mxu0 0.0
      %8017 = vmatprep.subr.mxu0 0.0
      %8018 = vmatpush1.msra.mxu0 0.0
      %8019 = vmatprep.subr.mxu0 0.0
      %8020 = vmatpush1.msra.mxu0 0.0
      %8021 = vmatprep.subr.mxu0 0.0
      %8022 = vmatpush1.msra.mxu0 0.0
      %8023 = vmatprep.subr.mxu0 0.0
      %8024 = vmatpush1.msra.mxu0 0.0
      %8025 = vmatprep.subr.mxu0 0.0
      %8026 = vmatpush1.msra.mxu0 0.0
      %8027 = vmatprep.subr.mxu0 0.0
      %8028 = vmatpush1.msra.mxu0 0.0
      %8029 = vmatprep.subr.mxu0 0.0
      %8030 = vmatpush1.msra.mxu0 0.0
      %8031 = vmatprep.subr.mxu0 0.0
      %8032 = vmatpush1.msra.mxu0 0.0
      %8033 = vmatprep.subr.mxu0 0.0
      %8034 = vmatpush1.msra.mxu0 0.0
      %8035 = vmatprep.subr.mxu0 0.0
      %8036 = vmatpush1.msra.mxu0 0.0
      %8037 = vmatprep.subr.mxu0 0.0
      %8038 = vmatpush1.msra.mxu0 0.0
      %8039 = vmatprep.subr.mxu0 0.0
      %8040 = vmatpush1.msra.mxu0 0.0
      %8041 = vmatprep.subr.mxu0 0.0
      %8042 = vmatpush1.msra.mxu0 0.0
      %8043 = vmatprep.subr.mxu0 0.0
      %8044 = vmatpush1.msra.mxu0 0.0
      %8045 = vmatprep.subr.mxu0 0.0
      %8046 = vmatpush1.msra.mxu0 0.0
      %8047 = vmatprep.mubr.f32.mxu0 0.0
      %8048 = vmatmul.mubr.f32.gmra.mrb[0].mxu0 %v7978
      %v8049 = vpop.f32.mrb[0].mxu0
      %v8050 = vadd.f32 0.0, %v8049
      %v8051 = vpop.f32.mrb[0].mxu0
      %8052 = vmatprep.mubr.f32.mxu0 0.0
      %8053 = vmatmul.mubr.f32.gmra.mrb[0].mxu0 %v7981
      %v8054 = vpop.f32.mrb[0].mxu0
      %v8055 = vadd.f32 0.0, %v8054
      %v8056 = vpop.f32.mrb[0].mxu0
      %8057 = vdwg.mxu0
      %v8059 = vsel %vm4810, %v5729, 0
      %v8062 = vsel %vm4810, %v5731, 0
      %8064 = vmatprep.subr.mxu0 0.0
      %8065 = vmatpush1.msra.mxu0 %v1236
      %8066 = vmatprep.subr.mxu0 0.0
      %8067 = vmatpush1.msra.mxu0 %v1241
      %8068 = vmatprep.subr.mxu0 0.0
      %8069 = vmatpush1.msra.mxu0 0.0
      %8070 = vmatprep.subr.mxu0 0.0
      %8071 = vmatpush1.msra.mxu0 0.0
      %8072 = vmatprep.subr.mxu0 0.0
      %8073 = vmatpush1.msra.mxu0 0.0
      %8074 = vmatprep.subr.mxu0 0.0
      %8075 = vmatpush1.msra.mxu0 0.0
      %8076 = vmatprep.subr.mxu0 0.0
      %8077 = vmatpush1.msra.mxu0 0.0
      %8078 = vmatprep.subr.mxu0 0.0
      %8079 = vmatpush1.msra.mxu0 0.0
      %8080 = vmatprep.subr.mxu0 0.0
      %8081 = vmatpush1.msra.mxu0 0.0
      %8082 = vmatprep.subr.mxu0 0.0
      %8083 = vmatpush1.msra.mxu0 0.0
      %8084 = vmatprep.subr.mxu0 0.0
      %8085 = vmatpush1.msra.mxu0 0.0
      %8086 = vmatprep.subr.mxu0 0.0
      %8087 = vmatpush1.msra.mxu0 0.0
      %8088 = vmatprep.subr.mxu0 0.0
      %8089 = vmatpush1.msra.mxu0 0.0
      %8090 = vmatprep.subr.mxu0 0.0
      %8091 = vmatpush1.msra.mxu0 0.0
      %8092 = vmatprep.subr.mxu0 0.0
      %8093 = vmatpush1.msra.mxu0 0.0
      %8094 = vmatprep.subr.mxu0 0.0
      %8095 = vmatpush1.msra.mxu0 0.0
      %8096 = vmatprep.subr.mxu0 0.0
      %8097 = vmatpush1.msra.mxu0 0.0
      %8098 = vmatprep.subr.mxu0 0.0
      %8099 = vmatpush1.msra.mxu0 0.0
      %8100 = vmatprep.subr.mxu0 0.0
      %8101 = vmatpush1.msra.mxu0 0.0
      %8102 = vmatprep.subr.mxu0 0.0
      %8103 = vmatpush1.msra.mxu0 0.0
      %8104 = vmatprep.subr.mxu0 0.0
      %8105 = vmatpush1.msra.mxu0 0.0
      %8106 = vmatprep.subr.mxu0 0.0
      %8107 = vmatpush1.msra.mxu0 0.0
      %8108 = vmatprep.subr.mxu0 0.0
      %8109 = vmatpush1.msra.mxu0 0.0
      %8110 = vmatprep.subr.mxu0 0.0
      %8111 = vmatpush1.msra.mxu0 0.0
      %8112 = vmatprep.subr.mxu0 0.0
      %8113 = vmatpush1.msra.mxu0 0.0
      %8114 = vmatprep.subr.mxu0 0.0
      %8115 = vmatpush1.msra.mxu0 0.0
      %8116 = vmatprep.subr.mxu0 0.0
      %8117 = vmatpush1.msra.mxu0 0.0
      %8118 = vmatprep.subr.mxu0 0.0
      %8119 = vmatpush1.msra.mxu0 0.0
      %8120 = vmatprep.subr.mxu0 0.0
      %8121 = vmatpush1.msra.mxu0 0.0
      %8122 = vmatprep.subr.mxu0 0.0
      %8123 = vmatpush1.msra.mxu0 0.0
      %8124 = vmatprep.subr.mxu0 0.0
      %8125 = vmatpush1.msra.mxu0 0.0
      %8126 = vmatprep.subr.mxu0 0.0
      %8127 = vmatpush1.msra.mxu0 0.0
      %8128 = vmatprep.mubr.f32.mxu0 0.0
      %8129 = vmatmul.mubr.f32.gmra.mrb[0].mxu0 %v8059
      %v8130 = vpop.f32.mrb[0].mxu0
      %v8131 = vadd.f32 0.0, %v8130
      %v8132 = vpop.f32.mrb[0].mxu0
      %8133 = vmatprep.mubr.f32.mxu0 0.0
      %8134 = vmatmul.mubr.f32.gmra.mrb[0].mxu0 %v8062
      %v8135 = vpop.f32.mrb[0].mxu0
      %v8136 = vadd.f32 0.0, %v8135
      %v8137 = vpop.f32.mrb[0].mxu0
      %8138 = vdwg.mxu0
      %v8140 = vsel %vm4810, %v5733, 0
      %v8143 = vsel %vm4810, %v5735, 0
      %8145 = vmatprep.subr.mxu0 0.0
      %8146 = vmatpush1.msra.mxu0 %v1246
      %8147 = vmatprep.subr.mxu0 0.0
      %8148 = vmatpush1.msra.mxu0 %v1251
      %8149 = vmatprep.subr.mxu0 0.0
      %8150 = vmatpush1.msra.mxu0 0.0
      %8151 = vmatprep.subr.mxu0 0.0
      %8152 = vmatpush1.msra.mxu0 0.0
      %8153 = vmatprep.subr.mxu0 0.0
      %8154 = vmatpush1.msra.mxu0 0.0
      %8155 = vmatprep.subr.mxu0 0.0
      %8156 = vmatpush1.msra.mxu0 0.0
      %8157 = vmatprep.subr.mxu0 0.0
      %8158 = vmatpush1.msra.mxu0 0.0
      %8159 = vmatprep.subr.mxu0 0.0
      %8160 = vmatpush1.msra.mxu0 0.0
      %8161 = vmatprep.subr.mxu0 0.0
      %8162 = vmatpush1.msra.mxu0 0.0
      %8163 = vmatprep.subr.mxu0 0.0
      %8164 = vmatpush1.msra.mxu0 0.0
      %8165 = vmatprep.subr.mxu0 0.0
      %8166 = vmatpush1.msra.mxu0 0.0
      %8167 = vmatprep.subr.mxu0 0.0
      %8168 = vmatpush1.msra.mxu0 0.0
      %8169 = vmatprep.subr.mxu0 0.0
      %8170 = vmatpush1.msra.mxu0 0.0
      %8171 = vmatprep.subr.mxu0 0.0
      %8172 = vmatpush1.msra.mxu0 0.0
      %8173 = vmatprep.subr.mxu0 0.0
      %8174 = vmatpush1.msra.mxu0 0.0
      %8175 = vmatprep.subr.mxu0 0.0
      %8176 = vmatpush1.msra.mxu0 0.0
      %8177 = vmatprep.subr.mxu0 0.0
      %8178 = vmatpush1.msra.mxu0 0.0
      %8179 = vmatprep.subr.mxu0 0.0
      %8180 = vmatpush1.msra.mxu0 0.0
      %8181 = vmatprep.subr.mxu0 0.0
      %8182 = vmatpush1.msra.mxu0 0.0
      %8183 = vmatprep.subr.mxu0 0.0
      %8184 = vmatpush1.msra.mxu0 0.0
      %8185 = vmatprep.subr.mxu0 0.0
      %8186 = vmatpush1.msra.mxu0 0.0
      %8187 = vmatprep.subr.mxu0 0.0
      %8188 = vmatpush1.msra.mxu0 0.0
      %8189 = vmatprep.subr.mxu0 0.0
      %8190 = vmatpush1.msra.mxu0 0.0
      %8191 = vmatprep.subr.mxu0 0.0
      %8192 = vmatpush1.msra.mxu0 0.0
      %8193 = vmatprep.subr.mxu0 0.0
      %8194 = vmatpush1.msra.mxu0 0.0
      %8195 = vmatprep.subr.mxu0 0.0
      %8196 = vmatpush1.msra.mxu0 0.0
      %8197 = vmatprep.subr.mxu0 0.0
      %8198 = vmatpush1.msra.mxu0 0.0
      %8199 = vmatprep.subr.mxu0 0.0
      %8200 = vmatpush1.msra.mxu0 0.0
      %8201 = vmatprep.subr.mxu0 0.0
      %8202 = vmatpush1.msra.mxu0 0.0
      %8203 = vmatprep.subr.mxu0 0.0
      %8204 = vmatpush1.msra.mxu0 0.0
      %8205 = vmatprep.subr.mxu0 0.0
      %8206 = vmatpush1.msra.mxu0 0.0
      %8207 = vmatprep.subr.mxu0 0.0
      %8208 = vmatpush1.msra.mxu0 0.0
      %8209 = vmatprep.mubr.f32.mxu0 0.0
      %8210 = vmatmul.mubr.f32.gmra.mrb[0].mxu0 %v8140
      %v8211 = vpop.f32.mrb[0].mxu0
      %v8212 = vadd.f32 0.0, %v8211
      %v8213 = vpop.f32.mrb[0].mxu0
      %8214 = vmatprep.mubr.f32.mxu0 0.0
      %8215 = vmatmul.mubr.f32.gmra.mrb[0].mxu0 %v8143
      %v8216 = vpop.f32.mrb[0].mxu0
      %v8217 = vadd.f32 0.0, %v8216
      %v8218 = vpop.f32.mrb[0].mxu0
      %8219 = vdwg.mxu0
      %v8221 = vsel %vm4810, %v6137, 0
      %v8224 = vsel %vm4810, %v6139, 0
      %8226 = vmatprep.subr.mxu0 0.0
      %8227 = vmatpush1.msra.mxu0 %v1867
      %8228 = vmatprep.subr.mxu0 0.0
      %8229 = vmatpush1.msra.mxu0 %v1872
      %8230 = vmatprep.subr.mxu0 0.0
      %8231 = vmatpush1.msra.mxu0 0.0
      %8232 = vmatprep.subr.mxu0 0.0
      %8233 = vmatpush1.msra.mxu0 0.0
      %8234 = vmatprep.subr.mxu0 0.0
      %8235 = vmatpush1.msra.mxu0 0.0
      %8236 = vmatprep.subr.mxu0 0.0
      %8237 = vmatpush1.msra.mxu0 0.0
      %8238 = vmatprep.subr.mxu0 0.0
      %8239 = vmatpush1.msra.mxu0 0.0
      %8240 = vmatprep.subr.mxu0 0.0
      %8241 = vmatpush1.msra.mxu0 0.0
      %8242 = vmatprep.subr.mxu0 0.0
      %8243 = vmatpush1.msra.mxu0 0.0
      %8244 = vmatprep.subr.mxu0 0.0
      %8245 = vmatpush1.msra.mxu0 0.0
      %8246 = vmatprep.subr.mxu0 0.0
      %8247 = vmatpush1.msra.mxu0 0.0
      %8248 = vmatprep.subr.mxu0 0.0
      %8249 = vmatpush1.msra.mxu0 0.0
      %8250 = vmatprep.subr.mxu0 0.0
      %8251 = vmatpush1.msra.mxu0 0.0
      %8252 = vmatprep.subr.mxu0 0.0
      %8253 = vmatpush1.msra.mxu0 0.0
      %8254 = vmatprep.subr.mxu0 0.0
      %8255 = vmatpush1.msra.mxu0 0.0
      %8256 = vmatprep.subr.mxu0 0.0
      %8257 = vmatpush1.msra.mxu0 0.0
      %8258 = vmatprep.subr.mxu0 0.0
      %8259 = vmatpush1.msra.mxu0 0.0
      %8260 = vmatprep.subr.mxu0 0.0
      %8261 = vmatpush1.msra.mxu0 0.0
      %8262 = vmatprep.subr.mxu0 0.0
      %8263 = vmatpush1.msra.mxu0 0.0
      %8264 = vmatprep.subr.mxu0 0.0
      %8265 = vmatpush1.msra.mxu0 0.0
      %8266 = vmatprep.subr.mxu0 0.0
      %8267 = vmatpush1.msra.mxu0 0.0
      %8268 = vmatprep.subr.mxu0 0.0
      %8269 = vmatpush1.msra.mxu0 0.0
      %8270 = vmatprep.subr.mxu0 0.0
      %8271 = vmatpush1.msra.mxu0 0.0
      %8272 = vmatprep.subr.mxu0 0.0
      %8273 = vmatpush1.msra.mxu0 0.0
      %8274 = vmatprep.subr.mxu0 0.0
      %8275 = vmatpush1.msra.mxu0 0.0
      %8276 = vmatprep.subr.mxu0 0.0
      %8277 = vmatpush1.msra.mxu0 0.0
      %8278 = vmatprep.subr.mxu0 0.0
      %8279 = vmatpush1.msra.mxu0 0.0
      %8280 = vmatprep.subr.mxu0 0.0
      %8281 = vmatpush1.msra.mxu0 0.0
      %8282 = vmatprep.subr.mxu0 0.0
      %8283 = vmatpush1.msra.mxu0 0.0
      %8284 = vmatprep.subr.mxu0 0.0
      %8285 = vmatpush1.msra.mxu0 0.0
      %8286 = vmatprep.subr.mxu0 0.0
      %8287 = vmatpush1.msra.mxu0 0.0
      %8288 = vmatprep.subr.mxu0 0.0
      %8289 = vmatpush1.msra.mxu0 0.0
      %8290 = vmatprep.mubr.f32.mxu0 0.0
      %8291 = vmatmul.mubr.f32.gmra.mrb[0].mxu0 %v8221
      %v8292 = vpop.f32.mrb[0].mxu0
      %v8293 = vadd.f32 0.0, %v8292
      %v8294 = vpop.f32.mrb[0].mxu0
      %8295 = vmatprep.mubr.f32.mxu0 0.0
      %8296 = vmatmul.mubr.f32.gmra.mrb[0].mxu0 %v8224
      %v8297 = vpop.f32.mrb[0].mxu0
      %v8298 = vadd.f32 0.0, %v8297
      %v8299 = vpop.f32.mrb[0].mxu0
      %8300 = vdwg.mxu0
      %v8302 = vsel %vm4810, %v6141, 0
      %v8305 = vsel %vm4810, %v6143, 0
      %8307 = vmatprep.subr.mxu0 0.0
      %8308 = vmatpush1.msra.mxu0 %v1877
      %8309 = vmatprep.subr.mxu0 0.0
      %8310 = vmatpush1.msra.mxu0 %v1882
      %8311 = vmatprep.subr.mxu0 0.0
      %8312 = vmatpush1.msra.mxu0 0.0
      %8313 = vmatprep.subr.mxu0 0.0
      %8314 = vmatpush1.msra.mxu0 0.0
      %8315 = vmatprep.subr.mxu0 0.0
      %8316 = vmatpush1.msra.mxu0 0.0
      %8317 = vmatprep.subr.mxu0 0.0
      %8318 = vmatpush1.msra.mxu0 0.0
      %8319 = vmatprep.subr.mxu0 0.0
      %8320 = vmatpush1.msra.mxu0 0.0
      %8321 = vmatprep.subr.mxu0 0.0
      %8322 = vmatpush1.msra.mxu0 0.0
      %8323 = vmatprep.subr.mxu0 0.0
      %8324 = vmatpush1.msra.mxu0 0.0
      %8325 = vmatprep.subr.mxu0 0.0
      %8326 = vmatpush1.msra.mxu0 0.0
      %8327 = vmatprep.subr.mxu0 0.0
      %8328 = vmatpush1.msra.mxu0 0.0
      %8329 = vmatprep.subr.mxu0 0.0
      %8330 = vmatpush1.msra.mxu0 0.0
      %8331 = vmatprep.subr.mxu0 0.0
      %8332 = vmatpush1.msra.mxu0 0.0
      %8333 = vmatprep.subr.mxu0 0.0
      %8334 = vmatpush1.msra.mxu0 0.0
      %8335 = vmatprep.subr.mxu0 0.0
      %8336 = vmatpush1.msra.mxu0 0.0
      %8337 = vmatprep.subr.mxu0 0.0
      %8338 = vmatpush1.msra.mxu0 0.0
      %8339 = vmatprep.subr.mxu0 0.0
      %8340 = vmatpush1.msra.mxu0 0.0
      %8341 = vmatprep.subr.mxu0 0.0
      %8342 = vmatpush1.msra.mxu0 0.0
      %8343 = vmatprep.subr.mxu0 0.0
      %8344 = vmatpush1.msra.mxu0 0.0
      %8345 = vmatprep.subr.mxu0 0.0
      %8346 = vmatpush1.msra.mxu0 0.0
      %8347 = vmatprep.subr.mxu0 0.0
      %8348 = vmatpush1.msra.mxu0 0.0
      %8349 = vmatprep.subr.mxu0 0.0
      %8350 = vmatpush1.msra.mxu0 0.0
      %8351 = vmatprep.subr.mxu0 0.0
      %8352 = vmatpush1.msra.mxu0 0.0
      %8353 = vmatprep.subr.mxu0 0.0
      %8354 = vmatpush1.msra.mxu0 0.0
      %8355 = vmatprep.subr.mxu0 0.0
      %8356 = vmatpush1.msra.mxu0 0.0
      %8357 = vmatprep.subr.mxu0 0.0
      %8358 = vmatpush1.msra.mxu0 0.0
      %8359 = vmatprep.subr.mxu0 0.0
      %8360 = vmatpush1.msra.mxu0 0.0
      %8361 = vmatprep.subr.mxu0 0.0
      %8362 = vmatpush1.msra.mxu0 0.0
      %8363 = vmatprep.subr.mxu0 0.0
      %8364 = vmatpush1.msra.mxu0 0.0
      %8365 = vmatprep.subr.mxu0 0.0
      %8366 = vmatpush1.msra.mxu0 0.0
      %8367 = vmatprep.subr.mxu0 0.0
      %8368 = vmatpush1.msra.mxu0 0.0
      %8369 = vmatprep.subr.mxu0 0.0
      %8370 = vmatpush1.msra.mxu0 0.0
      %8371 = vmatprep.mubr.f32.mxu0 0.0
      %8372 = vmatmul.mubr.f32.gmra.mrb[0].mxu0 %v8302
      %v8373 = vpop.f32.mrb[0].mxu0
      %v8374 = vadd.f32 0.0, %v8373
      %v8375 = vpop.f32.mrb[0].mxu0
      %8376 = vmatprep.mubr.f32.mxu0 0.0
      %8377 = vmatmul.mubr.f32.gmra.mrb[0].mxu0 %v8305
      %v8378 = vpop.f32.mrb[0].mxu0
      %v8379 = vadd.f32 0.0, %v8378
      %v8380 = vpop.f32.mrb[0].mxu0
      %8381 = vdwg.mxu0
      %v8383 = vsel %vm4810, %v6145, 0
      %v8386 = vsel %vm4810, %v6147, 0
      %8388 = vmatprep.subr.mxu0 0.0
      %8389 = vmatpush1.msra.mxu0 %v1887
      %8390 = vmatprep.subr.mxu0 0.0
      %8391 = vmatpush1.msra.mxu0 %v1892
      %8392 = vmatprep.subr.mxu0 0.0
      %8393 = vmatpush1.msra.mxu0 0.0
      %8394 = vmatprep.subr.mxu0 0.0
      %8395 = vmatpush1.msra.mxu0 0.0
      %8396 = vmatprep.subr.mxu0 0.0
      %8397 = vmatpush1.msra.mxu0 0.0
      %8398 = vmatprep.subr.mxu0 0.0
      %8399 = vmatpush1.msra.mxu0 0.0
      %8400 = vmatprep.subr.mxu0 0.0
      %8401 = vmatpush1.msra.mxu0 0.0
      %8402 = vmatprep.subr.mxu0 0.0
      %8403 = vmatpush1.msra.mxu0 0.0
      %8404 = vmatprep.subr.mxu0 0.0
      %8405 = vmatpush1.msra.mxu0 0.0
      %8406 = vmatprep.subr.mxu0 0.0
      %8407 = vmatpush1.msra.mxu0 0.0
      %8408 = vmatprep.subr.mxu0 0.0
      %8409 = vmatpush1.msra.mxu0 0.0
      %8410 = vmatprep.subr.mxu0 0.0
      %8411 = vmatpush1.msra.mxu0 0.0
      %8412 = vmatprep.subr.mxu0 0.0
      %8413 = vmatpush1.msra.mxu0 0.0
      %8414 = vmatprep.subr.mxu0 0.0
      %8415 = vmatpush1.msra.mxu0 0.0
      %8416 = vmatprep.subr.mxu0 0.0
      %8417 = vmatpush1.msra.mxu0 0.0
      %8418 = vmatprep.subr.mxu0 0.0
      %8419 = vmatpush1.msra.mxu0 0.0
      %8420 = vmatprep.subr.mxu0 0.0
      %8421 = vmatpush1.msra.mxu0 0.0
      %8422 = vmatprep.subr.mxu0 0.0
      %8423 = vmatpush1.msra.mxu0 0.0
      %8424 = vmatprep.subr.mxu0 0.0
      %8425 = vmatpush1.msra.mxu0 0.0
      %8426 = vmatprep.subr.mxu0 0.0
      %8427 = vmatpush1.msra.mxu0 0.0
      %8428 = vmatprep.subr.mxu0 0.0
      %8429 = vmatpush1.msra.mxu0 0.0
      %8430 = vmatprep.subr.mxu0 0.0
      %8431 = vmatpush1.msra.mxu0 0.0
      %8432 = vmatprep.subr.mxu0 0.0
      %8433 = vmatpush1.msra.mxu0 0.0
      %8434 = vmatprep.subr.mxu0 0.0
      %8435 = vmatpush1.msra.mxu0 0.0
      %8436 = vmatprep.subr.mxu0 0.0
      %8437 = vmatpush1.msra.mxu0 0.0
      %8438 = vmatprep.subr.mxu0 0.0
      %8439 = vmatpush1.msra.mxu0 0.0
      %8440 = vmatprep.subr.mxu0 0.0
      %8441 = vmatpush1.msra.mxu0 0.0
      %8442 = vmatprep.subr.mxu0 0.0
      %8443 = vmatpush1.msra.mxu0 0.0
      %8444 = vmatprep.subr.mxu0 0.0
      %8445 = vmatpush1.msra.mxu0 0.0
      %8446 = vmatprep.subr.mxu0 0.0
      %8447 = vmatpush1.msra.mxu0 0.0
      %8448 = vmatprep.subr.mxu0 0.0
      %8449 = vmatpush1.msra.mxu0 0.0
      %8450 = vmatprep.subr.mxu0 0.0
      %8451 = vmatpush1.msra.mxu0 0.0
      %8452 = vmatprep.mubr.f32.mxu0 0.0
      %8453 = vmatmul.mubr.f32.gmra.mrb[0].mxu0 %v8383
      %v8454 = vpop.f32.mrb[0].mxu0
      %v8455 = vadd.f32 0.0, %v8454
      %v8456 = vpop.f32.mrb[0].mxu0
      %8457 = vmatprep.mubr.f32.mxu0 0.0
      %8458 = vmatmul.mubr.f32.gmra.mrb[0].mxu0 %v8386
      %v8459 = vpop.f32.mrb[0].mxu0
      %v8460 = vadd.f32 0.0, %v8459
      %v8461 = vpop.f32.mrb[0].mxu0
      %8462 = vdwg.mxu0
      %v8464 = vsel %vm4810, %v6149, 0
      %v8467 = vsel %vm4810, %v6151, 0
      %8469 = vmatprep.subr.mxu0 0.0
      %8470 = vmatpush1.msra.mxu0 %v1897
      %8471 = vmatprep.subr.mxu0 0.0
      %8472 = vmatpush1.msra.mxu0 %v1902
      %8473 = vmatprep.subr.mxu0 0.0
      %8474 = vmatpush1.msra.mxu0 0.0
      %8475 = vmatprep.subr.mxu0 0.0
      %8476 = vmatpush1.msra.mxu0 0.0
      %8477 = vmatprep.subr.mxu0 0.0
      %8478 = vmatpush1.msra.mxu0 0.0
      %8479 = vmatprep.subr.mxu0 0.0
      %8480 = vmatpush1.msra.mxu0 0.0
      %8481 = vmatprep.subr.mxu0 0.0
      %8482 = vmatpush1.msra.mxu0 0.0
      %8483 = vmatprep.subr.mxu0 0.0
      %8484 = vmatpush1.msra.mxu0 0.0
      %8485 = vmatprep.subr.mxu0 0.0
      %8486 = vmatpush1.msra.mxu0 0.0
      %8487 = vmatprep.subr.mxu0 0.0
      %8488 = vmatpush1.msra.mxu0 0.0
      %8489 = vmatprep.subr.mxu0 0.0
      %8490 = vmatpush1.msra.mxu0 0.0
      %8491 = vmatprep.subr.mxu0 0.0
      %8492 = vmatpush1.msra.mxu0 0.0
      %8493 = vmatprep.subr.mxu0 0.0
      %8494 = vmatpush1.msra.mxu0 0.0
      %8495 = vmatprep.subr.mxu0 0.0
      %8496 = vmatpush1.msra.mxu0 0.0
      %8497 = vmatprep.subr.mxu0 0.0
      %8498 = vmatpush1.msra.mxu0 0.0
      %8499 = vmatprep.subr.mxu0 0.0
      %8500 = vmatpush1.msra.mxu0 0.0
      %8501 = vmatprep.subr.mxu0 0.0
      %8502 = vmatpush1.msra.mxu0 0.0
      %8503 = vmatprep.subr.mxu0 0.0
      %8504 = vmatpush1.msra.mxu0 0.0
      %8505 = vmatprep.subr.mxu0 0.0
      %8506 = vmatpush1.msra.mxu0 0.0
      %8507 = vmatprep.subr.mxu0 0.0
      %8508 = vmatpush1.msra.mxu0 0.0
      %8509 = vmatprep.subr.mxu0 0.0
      %8510 = vmatpush1.msra.mxu0 0.0
      %8511 = vmatprep.subr.mxu0 0.0
      %8512 = vmatpush1.msra.mxu0 0.0
      %8513 = vmatprep.subr.mxu0 0.0
      %8514 = vmatpush1.msra.mxu0 0.0
      %8515 = vmatprep.subr.mxu0 0.0
      %8516 = vmatpush1.msra.mxu0 0.0
      %8517 = vmatprep.subr.mxu0 0.0
      %8518 = vmatpush1.msra.mxu0 0.0
      %8519 = vmatprep.subr.mxu0 0.0
      %8520 = vmatpush1.msra.mxu0 0.0
      %8521 = vmatprep.subr.mxu0 0.0
      %8522 = vmatpush1.msra.mxu0 0.0
      %8523 = vmatprep.subr.mxu0 0.0
      %8524 = vmatpush1.msra.mxu0 0.0
      %8525 = vmatprep.subr.mxu0 0.0
      %8526 = vmatpush1.msra.mxu0 0.0
      %8527 = vmatprep.subr.mxu0 0.0
      %8528 = vmatpush1.msra.mxu0 0.0
      %8529 = vmatprep.subr.mxu0 0.0
      %8530 = vmatpush1.msra.mxu0 0.0
      %8531 = vmatprep.subr.mxu0 0.0
      %8532 = vmatpush1.msra.mxu0 0.0
      %8533 = vmatprep.mubr.f32.mxu0 0.0
      %8534 = vmatmul.mubr.f32.gmra.mrb[0].mxu0 %v8464
      %v8535 = vpop.f32.mrb[0].mxu0
      %v8536 = vadd.f32 0.0, %v8535
      %v8537 = vpop.f32.mrb[0].mxu0
      %8538 = vmatprep.mubr.f32.mxu0 0.0
      %8539 = vmatmul.mubr.f32.gmra.mrb[0].mxu0 %v8467
      %v8540 = vpop.f32.mrb[0].mxu0
      %v8541 = vadd.f32 0.0, %v8540
      %v8542 = vpop.f32.mrb[0].mxu0
      %8543 = vdwg.mxu0
      %v8545 = vsel %vm4810, %v6153, 0
      %v8548 = vsel %vm4810, %v6155, 0
      %8550 = vmatprep.subr.mxu0 0.0
      %8551 = vmatpush1.msra.mxu0 %v1907
      %8552 = vmatprep.subr.mxu0 0.0
      %8553 = vmatpush1.msra.mxu0 %v1912
      %8554 = vmatprep.subr.mxu0 0.0
      %8555 = vmatpush1.msra.mxu0 0.0
      %8556 = vmatprep.subr.mxu0 0.0
      %8557 = vmatpush1.msra.mxu0 0.0
      %8558 = vmatprep.subr.mxu0 0.0
      %8559 = vmatpush1.msra.mxu0 0.0
      %8560 = vmatprep.subr.mxu0 0.0
      %8561 = vmatpush1.msra.mxu0 0.0
      %8562 = vmatprep.subr.mxu0 0.0
      %8563 = vmatpush1.msra.mxu0 0.0
      %8564 = vmatprep.subr.mxu0 0.0
      %8565 = vmatpush1.msra.mxu0 0.0
      %8566 = vmatprep.subr.mxu0 0.0
      %8567 = vmatpush1.msra.mxu0 0.0
      %8568 = vmatprep.subr.mxu0 0.0
      %8569 = vmatpush1.msra.mxu0 0.0
      %8570 = vmatprep.subr.mxu0 0.0
      %8571 = vmatpush1.msra.mxu0 0.0
      %8572 = vmatprep.subr.mxu0 0.0
      %8573 = vmatpush1.msra.mxu0 0.0
      %8574 = vmatprep.subr.mxu0 0.0
      %8575 = vmatpush1.msra.mxu0 0.0
      %8576 = vmatprep.subr.mxu0 0.0
      %8577 = vmatpush1.msra.mxu0 0.0
      %8578 = vmatprep.subr.mxu0 0.0
      %8579 = vmatpush1.msra.mxu0 0.0
      %8580 = vmatprep.subr.mxu0 0.0
      %8581 = vmatpush1.msra.mxu0 0.0
      %8582 = vmatprep.subr.mxu0 0.0
      %8583 = vmatpush1.msra.mxu0 0.0
      %8584 = vmatprep.subr.mxu0 0.0
      %8585 = vmatpush1.msra.mxu0 0.0
      %8586 = vmatprep.subr.mxu0 0.0
      %8587 = vmatpush1.msra.mxu0 0.0
      %8588 = vmatprep.subr.mxu0 0.0
      %8589 = vmatpush1.msra.mxu0 0.0
      %8590 = vmatprep.subr.mxu0 0.0
      %8591 = vmatpush1.msra.mxu0 0.0
      %8592 = vmatprep.subr.mxu0 0.0
      %8593 = vmatpush1.msra.mxu0 0.0
      %8594 = vmatprep.subr.mxu0 0.0
      %8595 = vmatpush1.msra.mxu0 0.0
      %8596 = vmatprep.subr.mxu0 0.0
      %8597 = vmatpush1.msra.mxu0 0.0
      %8598 = vmatprep.subr.mxu0 0.0
      %8599 = vmatpush1.msra.mxu0 0.0
      %8600 = vmatprep.subr.mxu0 0.0
      %8601 = vmatpush1.msra.mxu0 0.0
      %8602 = vmatprep.subr.mxu0 0.0
      %8603 = vmatpush1.msra.mxu0 0.0
      %8604 = vmatprep.subr.mxu0 0.0
      %8605 = vmatpush1.msra.mxu0 0.0
      %8606 = vmatprep.subr.mxu0 0.0
      %8607 = vmatpush1.msra.mxu0 0.0
      %8608 = vmatprep.subr.mxu0 0.0
      %8609 = vmatpush1.msra.mxu0 0.0
      %8610 = vmatprep.subr.mxu0 0.0
      %8611 = vmatpush1.msra.mxu0 0.0
      %8612 = vmatprep.subr.mxu0 0.0
      %8613 = vmatpush1.msra.mxu0 0.0
      %8614 = vmatprep.mubr.f32.mxu0 0.0
      %8615 = vmatmul.mubr.f32.gmra.mrb[0].mxu0 %v8545
      %v8616 = vpop.f32.mrb[0].mxu0
      %v8617 = vadd.f32 0.0, %v8616
      %v8618 = vpop.f32.mrb[0].mxu0
      %8619 = vmatprep.mubr.f32.mxu0 0.0
      %8620 = vmatmul.mubr.f32.gmra.mrb[0].mxu0 %v8548
      %v8621 = vpop.f32.mrb[0].mxu0
      %v8622 = vadd.f32 0.0, %v8621
      %v8623 = vpop.f32.mrb[0].mxu0
      %8624 = vdwg.mxu0
      %v8626 = vsel %vm4810, %v6157, 0
      %v8629 = vsel %vm4810, %v6159, 0
      %8631 = vmatprep.subr.mxu0 0.0
      %8632 = vmatpush1.msra.mxu0 %v1917
      %8633 = vmatprep.subr.mxu0 0.0
      %8634 = vmatpush1.msra.mxu0 %v1922
      %8635 = vmatprep.subr.mxu0 0.0
      %8636 = vmatpush1.msra.mxu0 0.0
      %8637 = vmatprep.subr.mxu0 0.0
      %8638 = vmatpush1.msra.mxu0 0.0
      %8639 = vmatprep.subr.mxu0 0.0
      %8640 = vmatpush1.msra.mxu0 0.0
      %8641 = vmatprep.subr.mxu0 0.0
      %8642 = vmatpush1.msra.mxu0 0.0
      %8643 = vmatprep.subr.mxu0 0.0
      %8644 = vmatpush1.msra.mxu0 0.0
      %8645 = vmatprep.subr.mxu0 0.0
      %8646 = vmatpush1.msra.mxu0 0.0
      %8647 = vmatprep.subr.mxu0 0.0
      %8648 = vmatpush1.msra.mxu0 0.0
      %8649 = vmatprep.subr.mxu0 0.0
      %8650 = vmatpush1.msra.mxu0 0.0
      %8651 = vmatprep.subr.mxu0 0.0
      %8652 = vmatpush1.msra.mxu0 0.0
      %8653 = vmatprep.subr.mxu0 0.0
      %8654 = vmatpush1.msra.mxu0 0.0
      %8655 = vmatprep.subr.mxu0 0.0
      %8656 = vmatpush1.msra.mxu0 0.0
      %8657 = vmatprep.subr.mxu0 0.0
      %8658 = vmatpush1.msra.mxu0 0.0
      %8659 = vmatprep.subr.mxu0 0.0
      %8660 = vmatpush1.msra.mxu0 0.0
      %8661 = vmatprep.subr.mxu0 0.0
      %8662 = vmatpush1.msra.mxu0 0.0
      %8663 = vmatprep.subr.mxu0 0.0
      %8664 = vmatpush1.msra.mxu0 0.0
      %8665 = vmatprep.subr.mxu0 0.0
      %8666 = vmatpush1.msra.mxu0 0.0
      %8667 = vmatprep.subr.mxu0 0.0
      %8668 = vmatpush1.msra.mxu0 0.0
      %8669 = vmatprep.subr.mxu0 0.0
      %8670 = vmatpush1.msra.mxu0 0.0
      %8671 = vmatprep.subr.mxu0 0.0
      %8672 = vmatpush1.msra.mxu0 0.0
      %8673 = vmatprep.subr.mxu0 0.0
      %8674 = vmatpush1.msra.mxu0 0.0
      %8675 = vmatprep.subr.mxu0 0.0
      %8676 = vmatpush1.msra.mxu0 0.0
      %8677 = vmatprep.subr.mxu0 0.0
      %8678 = vmatpush1.msra.mxu0 0.0
      %8679 = vmatprep.subr.mxu0 0.0
      %8680 = vmatpush1.msra.mxu0 0.0
      %8681 = vmatprep.subr.mxu0 0.0
      %8682 = vmatpush1.msra.mxu0 0.0
      %8683 = vmatprep.subr.mxu0 0.0
      %8684 = vmatpush1.msra.mxu0 0.0
      %8685 = vmatprep.subr.mxu0 0.0
      %8686 = vmatpush1.msra.mxu0 0.0
      %8687 = vmatprep.subr.mxu0 0.0
      %8688 = vmatpush1.msra.mxu0 0.0
      %8689 = vmatprep.subr.mxu0 0.0
      %8690 = vmatpush1.msra.mxu0 0.0
      %8691 = vmatprep.subr.mxu0 0.0
      %8692 = vmatpush1.msra.mxu0 0.0
      %8693 = vmatprep.subr.mxu0 0.0
      %8694 = vmatpush1.msra.mxu0 0.0
      %8695 = vmatprep.mubr.f32.mxu0 0.0
      %8696 = vmatmul.mubr.f32.gmra.mrb[0].mxu0 %v8626
      %v8697 = vpop.f32.mrb[0].mxu0
      %v8698 = vadd.f32 0.0, %v8697
      %v8699 = vpop.f32.mrb[0].mxu0
      %8700 = vmatprep.mubr.f32.mxu0 0.0
      %8701 = vmatmul.mubr.f32.gmra.mrb[0].mxu0 %v8629
      %v8702 = vpop.f32.mrb[0].mxu0
      %v8703 = vadd.f32 0.0, %v8702
      %v8704 = vpop.f32.mrb[0].mxu0
      %8705 = vdwg.mxu0
      %v8707 = vsel %vm4810, %v6161, 0
      %v8710 = vsel %vm4810, %v6163, 0
      %8712 = vmatprep.subr.mxu0 0.0
      %8713 = vmatpush1.msra.mxu0 %v1927
      %8714 = vmatprep.subr.mxu0 0.0
      %8715 = vmatpush1.msra.mxu0 %v1932
      %8716 = vmatprep.subr.mxu0 0.0
      %8717 = vmatpush1.msra.mxu0 0.0
      %8718 = vmatprep.subr.mxu0 0.0
      %8719 = vmatpush1.msra.mxu0 0.0
      %8720 = vmatprep.subr.mxu0 0.0
      %8721 = vmatpush1.msra.mxu0 0.0
      %8722 = vmatprep.subr.mxu0 0.0
      %8723 = vmatpush1.msra.mxu0 0.0
      %8724 = vmatprep.subr.mxu0 0.0
      %8725 = vmatpush1.msra.mxu0 0.0
      %8726 = vmatprep.subr.mxu0 0.0
      %8727 = vmatpush1.msra.mxu0 0.0
      %8728 = vmatprep.subr.mxu0 0.0
      %8729 = vmatpush1.msra.mxu0 0.0
      %8730 = vmatprep.subr.mxu0 0.0
      %8731 = vmatpush1.msra.mxu0 0.0
      %8732 = vmatprep.subr.mxu0 0.0
      %8733 = vmatpush1.msra.mxu0 0.0
      %8734 = vmatprep.subr.mxu0 0.0
      %8735 = vmatpush1.msra.mxu0 0.0
      %8736 = vmatprep.subr.mxu0 0.0
      %8737 = vmatpush1.msra.mxu0 0.0
      %8738 = vmatprep.subr.mxu0 0.0
      %8739 = vmatpush1.msra.mxu0 0.0
      %8740 = vmatprep.subr.mxu0 0.0
      %8741 = vmatpush1.msra.mxu0 0.0
      %8742 = vmatprep.subr.mxu0 0.0
      %8743 = vmatpush1.msra.mxu0 0.0
      %8744 = vmatprep.subr.mxu0 0.0
      %8745 = vmatpush1.msra.mxu0 0.0
      %8746 = vmatprep.subr.mxu0 0.0
      %8747 = vmatpush1.msra.mxu0 0.0
      %8748 = vmatprep.subr.mxu0 0.0
      %8749 = vmatpush1.msra.mxu0 0.0
      %8750 = vmatprep.subr.mxu0 0.0
      %8751 = vmatpush1.msra.mxu0 0.0
      %8752 = vmatprep.subr.mxu0 0.0
      %8753 = vmatpush1.msra.mxu0 0.0
      %8754 = vmatprep.subr.mxu0 0.0
      %8755 = vmatpush1.msra.mxu0 0.0
      %8756 = vmatprep.subr.mxu0 0.0
      %8757 = vmatpush1.msra.mxu0 0.0
      %8758 = vmatprep.subr.mxu0 0.0
      %8759 = vmatpush1.msra.mxu0 0.0
      %8760 = vmatprep.subr.mxu0 0.0
      %8761 = vmatpush1.msra.mxu0 0.0
      %8762 = vmatprep.subr.mxu0 0.0
      %8763 = vmatpush1.msra.mxu0 0.0
      %8764 = vmatprep.subr.mxu0 0.0
      %8765 = vmatpush1.msra.mxu0 0.0
      %8766 = vmatprep.subr.mxu0 0.0
      %8767 = vmatpush1.msra.mxu0 0.0
      %8768 = vmatprep.subr.mxu0 0.0
      %8769 = vmatpush1.msra.mxu0 0.0
      %8770 = vmatprep.subr.mxu0 0.0
      %8771 = vmatpush1.msra.mxu0 0.0
      %8772 = vmatprep.subr.mxu0 0.0
      %8773 = vmatpush1.msra.mxu0 0.0
      %8774 = vmatprep.subr.mxu0 0.0
      %8775 = vmatpush1.msra.mxu0 0.0
      %8776 = vmatprep.mubr.f32.mxu0 0.0
      %8777 = vmatmul.mubr.f32.gmra.mrb[0].mxu0 %v8707
      %v8778 = vpop.f32.mrb[0].mxu0
      %v8779 = vadd.f32 0.0, %v8778
      %v8780 = vpop.f32.mrb[0].mxu0
      %8781 = vmatprep.mubr.f32.mxu0 0.0
      %8782 = vmatmul.mubr.f32.gmra.mrb[0].mxu0 %v8710
      %v8783 = vpop.f32.mrb[0].mxu0
      %v8784 = vadd.f32 0.0, %v8783
      %v8785 = vpop.f32.mrb[0].mxu0
      %8786 = vdwg.mxu0
      %v8788 = vsel %vm4810, %v6165, 0
      %v8791 = vsel %vm4810, %v6167, 0
      %8793 = vmatprep.subr.mxu0 0.0
      %8794 = vmatpush1.msra.mxu0 %v1937
      %8795 = vmatprep.subr.mxu0 0.0
      %8796 = vmatpush1.msra.mxu0 %v1942
      %8797 = vmatprep.subr.mxu0 0.0
      %8798 = vmatpush1.msra.mxu0 0.0
      %8799 = vmatprep.subr.mxu0 0.0
      %8800 = vmatpush1.msra.mxu0 0.0
      %8801 = vmatprep.subr.mxu0 0.0
      %8802 = vmatpush1.msra.mxu0 0.0
      %8803 = vmatprep.subr.mxu0 0.0
      %8804 = vmatpush1.msra.mxu0 0.0
      %8805 = vmatprep.subr.mxu0 0.0
      %8806 = vmatpush1.msra.mxu0 0.0
      %8807 = vmatprep.subr.mxu0 0.0
      %8808 = vmatpush1.msra.mxu0 0.0
      %8809 = vmatprep.subr.mxu0 0.0
      %8810 = vmatpush1.msra.mxu0 0.0
      %8811 = vmatprep.subr.mxu0 0.0
      %8812 = vmatpush1.msra.mxu0 0.0
      %8813 = vmatprep.subr.mxu0 0.0
      %8814 = vmatpush1.msra.mxu0 0.0
      %8815 = vmatprep.subr.mxu0 0.0
      %8816 = vmatpush1.msra.mxu0 0.0
      %8817 = vmatprep.subr.mxu0 0.0
      %8818 = vmatpush1.msra.mxu0 0.0
      %8819 = vmatprep.subr.mxu0 0.0
      %8820 = vmatpush1.msra.mxu0 0.0
      %8821 = vmatprep.subr.mxu0 0.0
      %8822 = vmatpush1.msra.mxu0 0.0
      %8823 = vmatprep.subr.mxu0 0.0
      %8824 = vmatpush1.msra.mxu0 0.0
      %8825 = vmatprep.subr.mxu0 0.0
      %8826 = vmatpush1.msra.mxu0 0.0
      %8827 = vmatprep.subr.mxu0 0.0
      %8828 = vmatpush1.msra.mxu0 0.0
      %8829 = vmatprep.subr.mxu0 0.0
      %8830 = vmatpush1.msra.mxu0 0.0
      %8831 = vmatprep.subr.mxu0 0.0
      %8832 = vmatpush1.msra.mxu0 0.0
      %8833 = vmatprep.subr.mxu0 0.0
      %8834 = vmatpush1.msra.mxu0 0.0
      %8835 = vmatprep.subr.mxu0 0.0
      %8836 = vmatpush1.msra.mxu0 0.0
      %8837 = vmatprep.subr.mxu0 0.0
      %8838 = vmatpush1.msra.mxu0 0.0
      %8839 = vmatprep.subr.mxu0 0.0
      %8840 = vmatpush1.msra.mxu0 0.0
      %8841 = vmatprep.subr.mxu0 0.0
      %8842 = vmatpush1.msra.mxu0 0.0
      %8843 = vmatprep.subr.mxu0 0.0
      %8844 = vmatpush1.msra.mxu0 0.0
      %8845 = vmatprep.subr.mxu0 0.0
      %8846 = vmatpush1.msra.mxu0 0.0
      %8847 = vmatprep.subr.mxu0 0.0
      %8848 = vmatpush1.msra.mxu0 0.0
      %8849 = vmatprep.subr.mxu0 0.0
      %8850 = vmatpush1.msra.mxu0 0.0
      %8851 = vmatprep.subr.mxu0 0.0
      %8852 = vmatpush1.msra.mxu0 0.0
      %8853 = vmatprep.subr.mxu0 0.0
      %8854 = vmatpush1.msra.mxu0 0.0
      %8855 = vmatprep.subr.mxu0 0.0
      %8856 = vmatpush1.msra.mxu0 0.0
      %8857 = vmatprep.mubr.f32.mxu0 0.0
      %8858 = vmatmul.mubr.f32.gmra.mrb[0].mxu0 %v8788
      %v8859 = vpop.f32.mrb[0].mxu0
      %v8860 = vadd.f32 0.0, %v8859
      %v8861 = vpop.f32.mrb[0].mxu0
      %8862 = vmatprep.mubr.f32.mxu0 0.0
      %8863 = vmatmul.mubr.f32.gmra.mrb[0].mxu0 %v8791
      %v8864 = vpop.f32.mrb[0].mxu0
      %v8865 = vadd.f32 0.0, %v8864
      %v8866 = vpop.f32.mrb[0].mxu0
      %8867 = vdwg.mxu0
      %v8869 = vsel %vm4810, %v6169, 0
      %v8872 = vsel %vm4810, %v6171, 0
      %8874 = vmatprep.subr.mxu0 0.0
      %8875 = vmatpush1.msra.mxu0 %v1947
      %8876 = vmatprep.subr.mxu0 0.0
      %8877 = vmatpush1.msra.mxu0 %v1952
      %8878 = vmatprep.subr.mxu0 0.0
      %8879 = vmatpush1.msra.mxu0 0.0
      %8880 = vmatprep.subr.mxu0 0.0
      %8881 = vmatpush1.msra.mxu0 0.0
      %8882 = vmatprep.subr.mxu0 0.0
      %8883 = vmatpush1.msra.mxu0 0.0
      %8884 = vmatprep.subr.mxu0 0.0
      %8885 = vmatpush1.msra.mxu0 0.0
      %8886 = vmatprep.subr.mxu0 0.0
      %8887 = vmatpush1.msra.mxu0 0.0
      %8888 = vmatprep.subr.mxu0 0.0
      %8889 = vmatpush1.msra.mxu0 0.0
      %8890 = vmatprep.subr.mxu0 0.0
      %8891 = vmatpush1.msra.mxu0 0.0
      %8892 = vmatprep.subr.mxu0 0.0
      %8893 = vmatpush1.msra.mxu0 0.0
      %8894 = vmatprep.subr.mxu0 0.0
      %8895 = vmatpush1.msra.mxu0 0.0
      %8896 = vmatprep.subr.mxu0 0.0
      %8897 = vmatpush1.msra.mxu0 0.0
      %8898 = vmatprep.subr.mxu0 0.0
      %8899 = vmatpush1.msra.mxu0 0.0
      %8900 = vmatprep.subr.mxu0 0.0
      %8901 = vmatpush1.msra.mxu0 0.0
      %8902 = vmatprep.subr.mxu0 0.0
      %8903 = vmatpush1.msra.mxu0 0.0
      %8904 = vmatprep.subr.mxu0 0.0
      %8905 = vmatpush1.msra.mxu0 0.0
      %8906 = vmatprep.subr.mxu0 0.0
      %8907 = vmatpush1.msra.mxu0 0.0
      %8908 = vmatprep.subr.mxu0 0.0
      %8909 = vmatpush1.msra.mxu0 0.0
      %8910 = vmatprep.subr.mxu0 0.0
      %8911 = vmatpush1.msra.mxu0 0.0
      %8912 = vmatprep.subr.mxu0 0.0
      %8913 = vmatpush1.msra.mxu0 0.0
      %8914 = vmatprep.subr.mxu0 0.0
      %8915 = vmatpush1.msra.mxu0 0.0
      %8916 = vmatprep.subr.mxu0 0.0
      %8917 = vmatpush1.msra.mxu0 0.0
      %8918 = vmatprep.subr.mxu0 0.0
      %8919 = vmatpush1.msra.mxu0 0.0
      %8920 = vmatprep.subr.mxu0 0.0
      %8921 = vmatpush1.msra.mxu0 0.0
      %8922 = vmatprep.subr.mxu0 0.0
      %8923 = vmatpush1.msra.mxu0 0.0
      %8924 = vmatprep.subr.mxu0 0.0
      %8925 = vmatpush1.msra.mxu0 0.0
      %8926 = vmatprep.subr.mxu0 0.0
      %8927 = vmatpush1.msra.mxu0 0.0
      %8928 = vmatprep.subr.mxu0 0.0
      %8929 = vmatpush1.msra.mxu0 0.0
      %8930 = vmatprep.subr.mxu0 0.0
      %8931 = vmatpush1.msra.mxu0 0.0
      %8932 = vmatprep.subr.mxu0 0.0
      %8933 = vmatpush1.msra.mxu0 0.0
      %8934 = vmatprep.subr.mxu0 0.0
      %8935 = vmatpush1.msra.mxu0 0.0
      %8936 = vmatprep.subr.mxu0 0.0
      %8937 = vmatpush1.msra.mxu0 0.0
      %8938 = vmatprep.mubr.f32.mxu0 0.0
      %8939 = vmatmul.mubr.f32.gmra.mrb[0].mxu0 %v8869
      %v8940 = vpop.f32.mrb[0].mxu0
      %v8941 = vadd.f32 0.0, %v8940
      %v8942 = vpop.f32.mrb[0].mxu0
      %8943 = vmatprep.mubr.f32.mxu0 0.0
      %8944 = vmatmul.mubr.f32.gmra.mrb[0].mxu0 %v8872
      %v8945 = vpop.f32.mrb[0].mxu0
      %v8946 = vadd.f32 0.0, %v8945
      %v8947 = vpop.f32.mrb[0].mxu0
      %8948 = vdwg.mxu0
      %v8950 = vsel %vm4810, %v6173, 0
      %v8953 = vsel %vm4810, %v6175, 0
      %8955 = vmatprep.subr.mxu0 0.0
      %8956 = vmatpush1.msra.mxu0 %v1957
      %8957 = vmatprep.subr.mxu0 0.0
      %8958 = vmatpush1.msra.mxu0 %v1962
      %8959 = vmatprep.subr.mxu0 0.0
      %8960 = vmatpush1.msra.mxu0 0.0
      %8961 = vmatprep.subr.mxu0 0.0
      %8962 = vmatpush1.msra.mxu0 0.0
      %8963 = vmatprep.subr.mxu0 0.0
      %8964 = vmatpush1.msra.mxu0 0.0
      %8965 = vmatprep.subr.mxu0 0.0
      %8966 = vmatpush1.msra.mxu0 0.0
      %8967 = vmatprep.subr.mxu0 0.0
      %8968 = vmatpush1.msra.mxu0 0.0
      %8969 = vmatprep.subr.mxu0 0.0
      %8970 = vmatpush1.msra.mxu0 0.0
      %8971 = vmatprep.subr.mxu0 0.0
      %8972 = vmatpush1.msra.mxu0 0.0
      %8973 = vmatprep.subr.mxu0 0.0
      %8974 = vmatpush1.msra.mxu0 0.0
      %8975 = vmatprep.subr.mxu0 0.0
      %8976 = vmatpush1.msra.mxu0 0.0
      %8977 = vmatprep.subr.mxu0 0.0
      %8978 = vmatpush1.msra.mxu0 0.0
      %8979 = vmatprep.subr.mxu0 0.0
      %8980 = vmatpush1.msra.mxu0 0.0
      %8981 = vmatprep.subr.mxu0 0.0
      %8982 = vmatpush1.msra.mxu0 0.0
      %8983 = vmatprep.subr.mxu0 0.0
      %8984 = vmatpush1.msra.mxu0 0.0
      %8985 = vmatprep.subr.mxu0 0.0
      %8986 = vmatpush1.msra.mxu0 0.0
      %8987 = vmatprep.subr.mxu0 0.0
      %8988 = vmatpush1.msra.mxu0 0.0
      %8989 = vmatprep.subr.mxu0 0.0
      %8990 = vmatpush1.msra.mxu0 0.0
      %8991 = vmatprep.subr.mxu0 0.0
      %8992 = vmatpush1.msra.mxu0 0.0
      %8993 = vmatprep.subr.mxu0 0.0
      %8994 = vmatpush1.msra.mxu0 0.0
      %8995 = vmatprep.subr.mxu0 0.0
      %8996 = vmatpush1.msra.mxu0 0.0
      %8997 = vmatprep.subr.mxu0 0.0
      %8998 = vmatpush1.msra.mxu0 0.0
      %8999 = vmatprep.subr.mxu0 0.0
      %9000 = vmatpush1.msra.mxu0 0.0
      %9001 = vmatprep.subr.mxu0 0.0
      %9002 = vmatpush1.msra.mxu0 0.0
      %9003 = vmatprep.subr.mxu0 0.0
      %9004 = vmatpush1.msra.mxu0 0.0
      %9005 = vmatprep.subr.mxu0 0.0
      %9006 = vmatpush1.msra.mxu0 0.0
      %9007 = vmatprep.subr.mxu0 0.0
      %9008 = vmatpush1.msra.mxu0 0.0
      %9009 = vmatprep.subr.mxu0 0.0
      %9010 = vmatpush1.msra.mxu0 0.0
      %9011 = vmatprep.subr.mxu0 0.0
      %9012 = vmatpush1.msra.mxu0 0.0
      %9013 = vmatprep.subr.mxu0 0.0
      %9014 = vmatpush1.msra.mxu0 0.0
      %9015 = vmatprep.subr.mxu0 0.0
      %9016 = vmatpush1.msra.mxu0 0.0
      %9017 = vmatprep.subr.mxu0 0.0
      %9018 = vmatpush1.msra.mxu0 0.0
      %9019 = vmatprep.mubr.f32.mxu0 0.0
      %9020 = vmatmul.mubr.f32.gmra.mrb[0].mxu0 %v8950
      %v9021 = vpop.f32.mrb[0].mxu0
      %v9022 = vadd.f32 0.0, %v9021
      %v9023 = vpop.f32.mrb[0].mxu0
      %9024 = vmatprep.mubr.f32.mxu0 0.0
      %9025 = vmatmul.mubr.f32.gmra.mrb[0].mxu0 %v8953
      %v9026 = vpop.f32.mrb[0].mxu0
      %v9027 = vadd.f32 0.0, %v9026
      %v9028 = vpop.f32.mrb[0].mxu0
      %9029 = vdwg.mxu0
      %v9031 = vsel %vm4810, %v6177, 0
      %v9034 = vsel %vm4810, %v6179, 0
      %9036 = vmatprep.subr.mxu0 0.0
      %9037 = vmatpush1.msra.mxu0 %v1967
      %9038 = vmatprep.subr.mxu0 0.0
      %9039 = vmatpush1.msra.mxu0 %v1972
      %9040 = vmatprep.subr.mxu0 0.0
      %9041 = vmatpush1.msra.mxu0 0.0
      %9042 = vmatprep.subr.mxu0 0.0
      %9043 = vmatpush1.msra.mxu0 0.0
      %9044 = vmatprep.subr.mxu0 0.0
      %9045 = vmatpush1.msra.mxu0 0.0
      %9046 = vmatprep.subr.mxu0 0.0
      %9047 = vmatpush1.msra.mxu0 0.0
      %9048 = vmatprep.subr.mxu0 0.0
      %9049 = vmatpush1.msra.mxu0 0.0
      %9050 = vmatprep.subr.mxu0 0.0
      %9051 = vmatpush1.msra.mxu0 0.0
      %9052 = vmatprep.subr.mxu0 0.0
      %9053 = vmatpush1.msra.mxu0 0.0
      %9054 = vmatprep.subr.mxu0 0.0
      %9055 = vmatpush1.msra.mxu0 0.0
      %9056 = vmatprep.subr.mxu0 0.0
      %9057 = vmatpush1.msra.mxu0 0.0
      %9058 = vmatprep.subr.mxu0 0.0
      %9059 = vmatpush1.msra.mxu0 0.0
      %9060 = vmatprep.subr.mxu0 0.0
      %9061 = vmatpush1.msra.mxu0 0.0
      %9062 = vmatprep.subr.mxu0 0.0
      %9063 = vmatpush1.msra.mxu0 0.0
      %9064 = vmatprep.subr.mxu0 0.0
      %9065 = vmatpush1.msra.mxu0 0.0
      %9066 = vmatprep.subr.mxu0 0.0
      %9067 = vmatpush1.msra.mxu0 0.0
      %9068 = vmatprep.subr.mxu0 0.0
      %9069 = vmatpush1.msra.mxu0 0.0
      %9070 = vmatprep.subr.mxu0 0.0
      %9071 = vmatpush1.msra.mxu0 0.0
      %9072 = vmatprep.subr.mxu0 0.0
      %9073 = vmatpush1.msra.mxu0 0.0
      %9074 = vmatprep.subr.mxu0 0.0
      %9075 = vmatpush1.msra.mxu0 0.0
      %9076 = vmatprep.subr.mxu0 0.0
      %9077 = vmatpush1.msra.mxu0 0.0
      %9078 = vmatprep.subr.mxu0 0.0
      %9079 = vmatpush1.msra.mxu0 0.0
      %9080 = vmatprep.subr.mxu0 0.0
      %9081 = vmatpush1.msra.mxu0 0.0
      %9082 = vmatprep.subr.mxu0 0.0
      %9083 = vmatpush1.msra.mxu0 0.0
      %9084 = vmatprep.subr.mxu0 0.0
      %9085 = vmatpush1.msra.mxu0 0.0
      %9086 = vmatprep.subr.mxu0 0.0
      %9087 = vmatpush1.msra.mxu0 0.0
      %9088 = vmatprep.subr.mxu0 0.0
      %9089 = vmatpush1.msra.mxu0 0.0
      %9090 = vmatprep.subr.mxu0 0.0
      %9091 = vmatpush1.msra.mxu0 0.0
      %9092 = vmatprep.subr.mxu0 0.0
      %9093 = vmatpush1.msra.mxu0 0.0
      %9094 = vmatprep.subr.mxu0 0.0
      %9095 = vmatpush1.msra.mxu0 0.0
      %9096 = vmatprep.subr.mxu0 0.0
      %9097 = vmatpush1.msra.mxu0 0.0
      %9098 = vmatprep.subr.mxu0 0.0
      %9099 = vmatpush1.msra.mxu0 0.0
      %9100 = vmatprep.mubr.f32.mxu0 0.0
      %9101 = vmatmul.mubr.f32.gmra.mrb[0].mxu0 %v9031
      %v9102 = vpop.f32.mrb[0].mxu0
      %v9103 = vadd.f32 0.0, %v9102
      %v9104 = vpop.f32.mrb[0].mxu0
      %9105 = vmatprep.mubr.f32.mxu0 0.0
      %9106 = vmatmul.mubr.f32.gmra.mrb[0].mxu0 %v9034
      %v9107 = vpop.f32.mrb[0].mxu0
      %v9108 = vadd.f32 0.0, %v9107
      %v9109 = vpop.f32.mrb[0].mxu0
      %9110 = vdwg.mxu0
      %v9112 = vsel %vm4810, %v6181, 0
      %v9115 = vsel %vm4810, %v6183, 0
      %9117 = vmatprep.subr.mxu0 0.0
      %9118 = vmatpush1.msra.mxu0 %v1977
      %9119 = vmatprep.subr.mxu0 0.0
      %9120 = vmatpush1.msra.mxu0 %v1982
      %9121 = vmatprep.subr.mxu0 0.0
      %9122 = vmatpush1.msra.mxu0 0.0
      %9123 = vmatprep.subr.mxu0 0.0
      %9124 = vmatpush1.msra.mxu0 0.0
      %9125 = vmatprep.subr.mxu0 0.0
      %9126 = vmatpush1.msra.mxu0 0.0
      %9127 = vmatprep.subr.mxu0 0.0
      %9128 = vmatpush1.msra.mxu0 0.0
      %9129 = vmatprep.subr.mxu0 0.0
      %9130 = vmatpush1.msra.mxu0 0.0
      %9131 = vmatprep.subr.mxu0 0.0
      %9132 = vmatpush1.msra.mxu0 0.0
      %9133 = vmatprep.subr.mxu0 0.0
      %9134 = vmatpush1.msra.mxu0 0.0
      %9135 = vmatprep.subr.mxu0 0.0
      %9136 = vmatpush1.msra.mxu0 0.0
      %9137 = vmatprep.subr.mxu0 0.0
      %9138 = vmatpush1.msra.mxu0 0.0
      %9139 = vmatprep.subr.mxu0 0.0
      %9140 = vmatpush1.msra.mxu0 0.0
      %9141 = vmatprep.subr.mxu0 0.0
      %9142 = vmatpush1.msra.mxu0 0.0
      %9143 = vmatprep.subr.mxu0 0.0
      %9144 = vmatpush1.msra.mxu0 0.0
      %9145 = vmatprep.subr.mxu0 0.0
      %9146 = vmatpush1.msra.mxu0 0.0
      %9147 = vmatprep.subr.mxu0 0.0
      %9148 = vmatpush1.msra.mxu0 0.0
      %9149 = vmatprep.subr.mxu0 0.0
      %9150 = vmatpush1.msra.mxu0 0.0
      %9151 = vmatprep.subr.mxu0 0.0
      %9152 = vmatpush1.msra.mxu0 0.0
      %9153 = vmatprep.subr.mxu0 0.0
      %9154 = vmatpush1.msra.mxu0 0.0
      %9155 = vmatprep.subr.mxu0 0.0
      %9156 = vmatpush1.msra.mxu0 0.0
      %9157 = vmatprep.subr.mxu0 0.0
      %9158 = vmatpush1.msra.mxu0 0.0
      %9159 = vmatprep.subr.mxu0 0.0
      %9160 = vmatpush1.msra.mxu0 0.0
      %9161 = vmatprep.subr.mxu0 0.0
      %9162 = vmatpush1.msra.mxu0 0.0
      %9163 = vmatprep.subr.mxu0 0.0
      %9164 = vmatpush1.msra.mxu0 0.0
      %9165 = vmatprep.subr.mxu0 0.0
      %9166 = vmatpush1.msra.mxu0 0.0
      %9167 = vmatprep.subr.mxu0 0.0
      %9168 = vmatpush1.msra.mxu0 0.0
      %9169 = vmatprep.subr.mxu0 0.0
      %9170 = vmatpush1.msra.mxu0 0.0
      %9171 = vmatprep.subr.mxu0 0.0
      %9172 = vmatpush1.msra.mxu0 0.0
      %9173 = vmatprep.subr.mxu0 0.0
      %9174 = vmatpush1.msra.mxu0 0.0
      %9175 = vmatprep.subr.mxu0 0.0
      %9176 = vmatpush1.msra.mxu0 0.0
      %9177 = vmatprep.subr.mxu0 0.0
      %9178 = vmatpush1.msra.mxu0 0.0
      %9179 = vmatprep.subr.mxu0 0.0
      %9180 = vmatpush1.msra.mxu0 0.0
      %9181 = vmatprep.mubr.f32.mxu0 0.0
      %9182 = vmatmul.mubr.f32.gmra.mrb[0].mxu0 %v9112
      %v9183 = vpop.f32.mrb[0].mxu0
      %v9184 = vadd.f32 0.0, %v9183
      %v9185 = vpop.f32.mrb[0].mxu0
      %9186 = vmatprep.mubr.f32.mxu0 0.0
      %9187 = vmatmul.mubr.f32.gmra.mrb[0].mxu0 %v9115
      %v9188 = vpop.f32.mrb[0].mxu0
      %v9189 = vadd.f32 0.0, %v9188
      %v9190 = vpop.f32.mrb[0].mxu0
      %9191 = vdwg.mxu0
      %v9193 = vsel %vm4810, %v6185, 0
      %v9196 = vsel %vm4810, %v6187, 0
      %9198 = vmatprep.subr.mxu0 0.0
      %9199 = vmatpush1.msra.mxu0 %v1987
      %9200 = vmatprep.subr.mxu0 0.0
      %9201 = vmatpush1.msra.mxu0 %v1992
      %9202 = vmatprep.subr.mxu0 0.0
      %9203 = vmatpush1.msra.mxu0 0.0
      %9204 = vmatprep.subr.mxu0 0.0
      %9205 = vmatpush1.msra.mxu0 0.0
      %9206 = vmatprep.subr.mxu0 0.0
      %9207 = vmatpush1.msra.mxu0 0.0
      %9208 = vmatprep.subr.mxu0 0.0
      %9209 = vmatpush1.msra.mxu0 0.0
      %9210 = vmatprep.subr.mxu0 0.0
      %9211 = vmatpush1.msra.mxu0 0.0
      %9212 = vmatprep.subr.mxu0 0.0
      %9213 = vmatpush1.msra.mxu0 0.0
      %9214 = vmatprep.subr.mxu0 0.0
      %9215 = vmatpush1.msra.mxu0 0.0
      %9216 = vmatprep.subr.mxu0 0.0
      %9217 = vmatpush1.msra.mxu0 0.0
      %9218 = vmatprep.subr.mxu0 0.0
      %9219 = vmatpush1.msra.mxu0 0.0
      %9220 = vmatprep.subr.mxu0 0.0
      %9221 = vmatpush1.msra.mxu0 0.0
      %9222 = vmatprep.subr.mxu0 0.0
      %9223 = vmatpush1.msra.mxu0 0.0
      %9224 = vmatprep.subr.mxu0 0.0
      %9225 = vmatpush1.msra.mxu0 0.0
      %9226 = vmatprep.subr.mxu0 0.0
      %9227 = vmatpush1.msra.mxu0 0.0
      %9228 = vmatprep.subr.mxu0 0.0
      %9229 = vmatpush1.msra.mxu0 0.0
      %9230 = vmatprep.subr.mxu0 0.0
      %9231 = vmatpush1.msra.mxu0 0.0
      %9232 = vmatprep.subr.mxu0 0.0
      %9233 = vmatpush1.msra.mxu0 0.0
      %9234 = vmatprep.subr.mxu0 0.0
      %9235 = vmatpush1.msra.mxu0 0.0
      %9236 = vmatprep.subr.mxu0 0.0
      %9237 = vmatpush1.msra.mxu0 0.0
      %9238 = vmatprep.subr.mxu0 0.0
      %9239 = vmatpush1.msra.mxu0 0.0
      %9240 = vmatprep.subr.mxu0 0.0
      %9241 = vmatpush1.msra.mxu0 0.0
      %9242 = vmatprep.subr.mxu0 0.0
      %9243 = vmatpush1.msra.mxu0 0.0
      %9244 = vmatprep.subr.mxu0 0.0
      %9245 = vmatpush1.msra.mxu0 0.0
      %9246 = vmatprep.subr.mxu0 0.0
      %9247 = vmatpush1.msra.mxu0 0.0
      %9248 = vmatprep.subr.mxu0 0.0
      %9249 = vmatpush1.msra.mxu0 0.0
      %9250 = vmatprep.subr.mxu0 0.0
      %9251 = vmatpush1.msra.mxu0 0.0
      %9252 = vmatprep.subr.mxu0 0.0
      %9253 = vmatpush1.msra.mxu0 0.0
      %9254 = vmatprep.subr.mxu0 0.0
      %9255 = vmatpush1.msra.mxu0 0.0
      %9256 = vmatprep.subr.mxu0 0.0
      %9257 = vmatpush1.msra.mxu0 0.0
      %9258 = vmatprep.subr.mxu0 0.0
      %9259 = vmatpush1.msra.mxu0 0.0
      %9260 = vmatprep.subr.mxu0 0.0
      %9261 = vmatpush1.msra.mxu0 0.0
      %9262 = vmatprep.mubr.f32.mxu0 0.0
      %9263 = vmatmul.mubr.f32.gmra.mrb[0].mxu0 %v9193
      %v9264 = vpop.f32.mrb[0].mxu0
      %v9265 = vadd.f32 0.0, %v9264
      %v9266 = vpop.f32.mrb[0].mxu0
      %9267 = vmatprep.mubr.f32.mxu0 0.0
      %9268 = vmatmul.mubr.f32.gmra.mrb[0].mxu0 %v9196
      %v9269 = vpop.f32.mrb[0].mxu0
      %v9270 = vadd.f32 0.0, %v9269
      %v9271 = vpop.f32.mrb[0].mxu0
      %9272 = vdwg.mxu0
      %v9274 = vsel %vm4810, %v6189, 0
      %v9277 = vsel %vm4810, %v6191, 0
      %9279 = vmatprep.subr.mxu0 0.0
      %9280 = vmatpush1.msra.mxu0 %v1997
      %9281 = vmatprep.subr.mxu0 0.0
      %9282 = vmatpush1.msra.mxu0 %v2002
      %9283 = vmatprep.subr.mxu0 0.0
      %9284 = vmatpush1.msra.mxu0 0.0
      %9285 = vmatprep.subr.mxu0 0.0
      %9286 = vmatpush1.msra.mxu0 0.0
      %9287 = vmatprep.subr.mxu0 0.0
      %9288 = vmatpush1.msra.mxu0 0.0
      %9289 = vmatprep.subr.mxu0 0.0
      %9290 = vmatpush1.msra.mxu0 0.0
      %9291 = vmatprep.subr.mxu0 0.0
      %9292 = vmatpush1.msra.mxu0 0.0
      %9293 = vmatprep.subr.mxu0 0.0
      %9294 = vmatpush1.msra.mxu0 0.0
      %9295 = vmatprep.subr.mxu0 0.0
      %9296 = vmatpush1.msra.mxu0 0.0
      %9297 = vmatprep.subr.mxu0 0.0
      %9298 = vmatpush1.msra.mxu0 0.0
      %9299 = vmatprep.subr.mxu0 0.0
      %9300 = vmatpush1.msra.mxu0 0.0
      %9301 = vmatprep.subr.mxu0 0.0
      %9302 = vmatpush1.msra.mxu0 0.0
      %9303 = vmatprep.subr.mxu0 0.0
      %9304 = vmatpush1.msra.mxu0 0.0
      %9305 = vmatprep.subr.mxu0 0.0
      %9306 = vmatpush1.msra.mxu0 0.0
      %9307 = vmatprep.subr.mxu0 0.0
      %9308 = vmatpush1.msra.mxu0 0.0
      %9309 = vmatprep.subr.mxu0 0.0
      %9310 = vmatpush1.msra.mxu0 0.0
      %9311 = vmatprep.subr.mxu0 0.0
      %9312 = vmatpush1.msra.mxu0 0.0
      %9313 = vmatprep.subr.mxu0 0.0
      %9314 = vmatpush1.msra.mxu0 0.0
      %9315 = vmatprep.subr.mxu0 0.0
      %9316 = vmatpush1.msra.mxu0 0.0
      %9317 = vmatprep.subr.mxu0 0.0
      %9318 = vmatpush1.msra.mxu0 0.0
      %9319 = vmatprep.subr.mxu0 0.0
      %9320 = vmatpush1.msra.mxu0 0.0
      %9321 = vmatprep.subr.mxu0 0.0
      %9322 = vmatpush1.msra.mxu0 0.0
      %9323 = vmatprep.subr.mxu0 0.0
      %9324 = vmatpush1.msra.mxu0 0.0
      %9325 = vmatprep.subr.mxu0 0.0
      %9326 = vmatpush1.msra.mxu0 0.0
      %9327 = vmatprep.subr.mxu0 0.0
      %9328 = vmatpush1.msra.mxu0 0.0
      %9329 = vmatprep.subr.mxu0 0.0
      %9330 = vmatpush1.msra.mxu0 0.0
      %9331 = vmatprep.subr.mxu0 0.0
      %9332 = vmatpush1.msra.mxu0 0.0
      %9333 = vmatprep.subr.mxu0 0.0
      %9334 = vmatpush1.msra.mxu0 0.0
      %9335 = vmatprep.subr.mxu0 0.0
      %9336 = vmatpush1.msra.mxu0 0.0
      %9337 = vmatprep.subr.mxu0 0.0
      %9338 = vmatpush1.msra.mxu0 0.0
      %9339 = vmatprep.subr.mxu0 0.0
      %9340 = vmatpush1.msra.mxu0 0.0
      %9341 = vmatprep.subr.mxu0 0.0
      %9342 = vmatpush1.msra.mxu0 0.0
      %9343 = vmatprep.mubr.f32.mxu0 0.0
      %9344 = vmatmul.mubr.f32.gmra.mrb[0].mxu0 %v9274
      %v9345 = vpop.f32.mrb[0].mxu0
      %v9346 = vadd.f32 0.0, %v9345
      %v9347 = vpop.f32.mrb[0].mxu0
      %9348 = vmatprep.mubr.f32.mxu0 0.0
      %9349 = vmatmul.mubr.f32.gmra.mrb[0].mxu0 %v9277
      %v9350 = vpop.f32.mrb[0].mxu0
      %v9351 = vadd.f32 0.0, %v9350
      %v9352 = vpop.f32.mrb[0].mxu0
      %9353 = vdwg.mxu0
      %v9355 = vsel %vm4810, %v6193, 0
      %v9358 = vsel %vm4810, %v6195, 0
      %9360 = vmatprep.subr.mxu0 0.0
      %9361 = vmatpush1.msra.mxu0 %v2007
      %9362 = vmatprep.subr.mxu0 0.0
      %9363 = vmatpush1.msra.mxu0 %v2012
      %9364 = vmatprep.subr.mxu0 0.0
      %9365 = vmatpush1.msra.mxu0 0.0
      %9366 = vmatprep.subr.mxu0 0.0
      %9367 = vmatpush1.msra.mxu0 0.0
      %9368 = vmatprep.subr.mxu0 0.0
      %9369 = vmatpush1.msra.mxu0 0.0
      %9370 = vmatprep.subr.mxu0 0.0
      %9371 = vmatpush1.msra.mxu0 0.0
      %9372 = vmatprep.subr.mxu0 0.0
      %9373 = vmatpush1.msra.mxu0 0.0
      %9374 = vmatprep.subr.mxu0 0.0
      %9375 = vmatpush1.msra.mxu0 0.0
      %9376 = vmatprep.subr.mxu0 0.0
      %9377 = vmatpush1.msra.mxu0 0.0
      %9378 = vmatprep.subr.mxu0 0.0
      %9379 = vmatpush1.msra.mxu0 0.0
      %9380 = vmatprep.subr.mxu0 0.0
      %9381 = vmatpush1.msra.mxu0 0.0
      %9382 = vmatprep.subr.mxu0 0.0
      %9383 = vmatpush1.msra.mxu0 0.0
      %9384 = vmatprep.subr.mxu0 0.0
      %9385 = vmatpush1.msra.mxu0 0.0
      %9386 = vmatprep.subr.mxu0 0.0
      %9387 = vmatpush1.msra.mxu0 0.0
      %9388 = vmatprep.subr.mxu0 0.0
      %9389 = vmatpush1.msra.mxu0 0.0
      %9390 = vmatprep.subr.mxu0 0.0
      %9391 = vmatpush1.msra.mxu0 0.0
      %9392 = vmatprep.subr.mxu0 0.0
      %9393 = vmatpush1.msra.mxu0 0.0
      %9394 = vmatprep.subr.mxu0 0.0
      %9395 = vmatpush1.msra.mxu0 0.0
      %9396 = vmatprep.subr.mxu0 0.0
      %9397 = vmatpush1.msra.mxu0 0.0
      %9398 = vmatprep.subr.mxu0 0.0
      %9399 = vmatpush1.msra.mxu0 0.0
      %9400 = vmatprep.subr.mxu0 0.0
      %9401 = vmatpush1.msra.mxu0 0.0
      %9402 = vmatprep.subr.mxu0 0.0
      %9403 = vmatpush1.msra.mxu0 0.0
      %9404 = vmatprep.subr.mxu0 0.0
      %9405 = vmatpush1.msra.mxu0 0.0
      %9406 = vmatprep.subr.mxu0 0.0
      %9407 = vmatpush1.msra.mxu0 0.0
      %9408 = vmatprep.subr.mxu0 0.0
      %9409 = vmatpush1.msra.mxu0 0.0
      %9410 = vmatprep.subr.mxu0 0.0
      %9411 = vmatpush1.msra.mxu0 0.0
      %9412 = vmatprep.subr.mxu0 0.0
      %9413 = vmatpush1.msra.mxu0 0.0
      %9414 = vmatprep.subr.mxu0 0.0
      %9415 = vmatpush1.msra.mxu0 0.0
      %9416 = vmatprep.subr.mxu0 0.0
      %9417 = vmatpush1.msra.mxu0 0.0
      %9418 = vmatprep.subr.mxu0 0.0
      %9419 = vmatpush1.msra.mxu0 0.0
      %9420 = vmatprep.subr.mxu0 0.0
      %9421 = vmatpush1.msra.mxu0 0.0
      %9422 = vmatprep.subr.mxu0 0.0
      %9423 = vmatpush1.msra.mxu0 0.0
      %9424 = vmatprep.mubr.f32.mxu0 0.0
      %9425 = vmatmul.mubr.f32.gmra.mrb[0].mxu0 %v9355
      %v9426 = vpop.f32.mrb[0].mxu0
      %v9427 = vadd.f32 0.0, %v9426
      %v9428 = vpop.f32.mrb[0].mxu0
      %9429 = vmatprep.mubr.f32.mxu0 0.0
      %9430 = vmatmul.mubr.f32.gmra.mrb[0].mxu0 %v9358
      %v9431 = vpop.f32.mrb[0].mxu0
      %v9432 = vadd.f32 0.0, %v9431
      %v9433 = vpop.f32.mrb[0].mxu0
      %9434 = vdwg.mxu0
      %v9436 = vsel %vm4810, %v6197, 0
      %v9439 = vsel %vm4810, %v6199, 0
      %9441 = vmatprep.subr.mxu0 0.0
      %9442 = vmatpush1.msra.mxu0 %v2017
      %9443 = vmatprep.subr.mxu0 0.0
      %9444 = vmatpush1.msra.mxu0 %v2022
      %9445 = vmatprep.subr.mxu0 0.0
      %9446 = vmatpush1.msra.mxu0 0.0
      %9447 = vmatprep.subr.mxu0 0.0
      %9448 = vmatpush1.msra.mxu0 0.0
      %9449 = vmatprep.subr.mxu0 0.0
      %9450 = vmatpush1.msra.mxu0 0.0
      %9451 = vmatprep.subr.mxu0 0.0
      %9452 = vmatpush1.msra.mxu0 0.0
      %9453 = vmatprep.subr.mxu0 0.0
      %9454 = vmatpush1.msra.mxu0 0.0
      %9455 = vmatprep.subr.mxu0 0.0
      %9456 = vmatpush1.msra.mxu0 0.0
      %9457 = vmatprep.subr.mxu0 0.0
      %9458 = vmatpush1.msra.mxu0 0.0
      %9459 = vmatprep.subr.mxu0 0.0
      %9460 = vmatpush1.msra.mxu0 0.0
      %9461 = vmatprep.subr.mxu0 0.0
      %9462 = vmatpush1.msra.mxu0 0.0
      %9463 = vmatprep.subr.mxu0 0.0
      %9464 = vmatpush1.msra.mxu0 0.0
      %9465 = vmatprep.subr.mxu0 0.0
      %9466 = vmatpush1.msra.mxu0 0.0
      %9467 = vmatprep.subr.mxu0 0.0
      %9468 = vmatpush1.msra.mxu0 0.0
      %9469 = vmatprep.subr.mxu0 0.0
      %9470 = vmatpush1.msra.mxu0 0.0
      %9471 = vmatprep.subr.mxu0 0.0
      %9472 = vmatpush1.msra.mxu0 0.0
      %9473 = vmatprep.subr.mxu0 0.0
      %9474 = vmatpush1.msra.mxu0 0.0
      %9475 = vmatprep.subr.mxu0 0.0
      %9476 = vmatpush1.msra.mxu0 0.0
      %9477 = vmatprep.subr.mxu0 0.0
      %9478 = vmatpush1.msra.mxu0 0.0
      %9479 = vmatprep.subr.mxu0 0.0
      %9480 = vmatpush1.msra.mxu0 0.0
      %9481 = vmatprep.subr.mxu0 0.0
      %9482 = vmatpush1.msra.mxu0 0.0
      %9483 = vmatprep.subr.mxu0 0.0
      %9484 = vmatpush1.msra.mxu0 0.0
      %9485 = vmatprep.subr.mxu0 0.0
      %9486 = vmatpush1.msra.mxu0 0.0
      %9487 = vmatprep.subr.mxu0 0.0
      %9488 = vmatpush1.msra.mxu0 0.0
      %9489 = vmatprep.subr.mxu0 0.0
      %9490 = vmatpush1.msra.mxu0 0.0
      %9491 = vmatprep.subr.mxu0 0.0
      %9492 = vmatpush1.msra.mxu0 0.0
      %9493 = vmatprep.subr.mxu0 0.0
      %9494 = vmatpush1.msra.mxu0 0.0
      %9495 = vmatprep.subr.mxu0 0.0
      %9496 = vmatpush1.msra.mxu0 0.0
      %9497 = vmatprep.subr.mxu0 0.0
      %9498 = vmatpush1.msra.mxu0 0.0
      %9499 = vmatprep.subr.mxu0 0.0
      %9500 = vmatpush1.msra.mxu0 0.0
      %9501 = vmatprep.subr.mxu0 0.0
      %9502 = vmatpush1.msra.mxu0 0.0
      %9503 = vmatprep.subr.mxu0 0.0
      %9504 = vmatpush1.msra.mxu0 0.0
      %9505 = vmatprep.mubr.f32.mxu0 0.0
      %9506 = vmatmul.mubr.f32.gmra.mrb[0].mxu0 %v9436
      %v9507 = vpop.f32.mrb[0].mxu0
      %v9508 = vadd.f32 0.0, %v9507
      %v9509 = vpop.f32.mrb[0].mxu0
      %9510 = vmatprep.mubr.f32.mxu0 0.0
      %9511 = vmatmul.mubr.f32.gmra.mrb[0].mxu0 %v9439
      %v9512 = vpop.f32.mrb[0].mxu0
      %v9513 = vadd.f32 0.0, %v9512
      %v9514 = vpop.f32.mrb[0].mxu0
      %9515 = vdwg.mxu0
      %9517 = vset.pattern.permute.xlu0 0
      %9518 = vperm.xlu0 %9517, %v6861
      %v9519 = vpop.permute.xlu0 %9518
      %9522 = vset.pattern.permute.xlu0 0
      %9523 = vperm.xlu0 %9522, %v6863
      %v9524 = vpop.permute.xlu0 %9523
      %9527 = vset.pattern.permute.xlu0 0
      %9528 = vperm.xlu0 %9527, %v6865
      %v9529 = vpop.permute.xlu0 %9528
      %9532 = vset.pattern.permute.xlu0 0
      %9533 = vperm.xlu0 %9532, %v6867
      %v9534 = vpop.permute.xlu0 %9533
      %9537 = vset.pattern.permute.xlu0 0
      %9538 = vperm.xlu0 %9537, %v6869
      %v9539 = vpop.permute.xlu0 %9538
      %9542 = vset.pattern.permute.xlu0 0
      %9543 = vperm.xlu0 %9542, %v6871
      %v9544 = vpop.permute.xlu0 %9543
      %9547 = vset.pattern.permute.xlu0 0
      %9548 = vperm.xlu0 %9547, %v6873
      %v9549 = vpop.permute.xlu0 %9548
      %9552 = vset.pattern.permute.xlu0 0
      %9553 = vperm.xlu0 %9552, %v6875
      %v9554 = vpop.permute.xlu0 %9553
      %9557 = vset.pattern.permute.xlu0 0
      %9558 = vperm.xlu0 %9557, %v6877
      %v9559 = vpop.permute.xlu0 %9558
      %9562 = vset.pattern.permute.xlu0 0
      %9563 = vperm.xlu0 %9562, %v6879
      %v9564 = vpop.permute.xlu0 %9563
      %9567 = vset.pattern.permute.xlu0 0
      %9568 = vperm.xlu0 %9567, %v6881
      %v9569 = vpop.permute.xlu0 %9568
      %9572 = vset.pattern.permute.xlu0 0
      %9573 = vperm.xlu0 %9572, %v6883
      %v9574 = vpop.permute.xlu0 %9573
      %9577 = vset.pattern.permute.xlu0 0
      %9578 = vperm.xlu0 %9577, %v6885
      %v9579 = vpop.permute.xlu0 %9578
      %9582 = vset.pattern.permute.xlu0 0
      %9583 = vperm.xlu0 %9582, %v6887
      %v9584 = vpop.permute.xlu0 %9583
      %9587 = vset.pattern.permute.xlu0 0
      %9588 = vperm.xlu0 %9587, %v6889
      %v9589 = vpop.permute.xlu0 %9588
      %9592 = vset.pattern.permute.xlu0 0
      %9593 = vperm.xlu0 %9592, %v6891
      %v9594 = vpop.permute.xlu0 %9593
      %9597 = vset.pattern.permute.xlu0 0
      %9598 = vperm.xlu0 %9597, %v6893
      %v9599 = vpop.permute.xlu0 %9598
      %9602 = vset.pattern.permute.xlu0 0
      %9603 = vperm.xlu0 %9602, %v6895
      %v9604 = vpop.permute.xlu0 %9603
      %9607 = vset.pattern.permute.xlu0 0
      %9608 = vperm.xlu0 %9607, %v6897
      %v9609 = vpop.permute.xlu0 %9608
      %9612 = vset.pattern.permute.xlu0 0
      %9613 = vperm.xlu0 %9612, %v6899
      %v9614 = vpop.permute.xlu0 %9613
      %9617 = vset.pattern.permute.xlu0 0
      %9618 = vperm.xlu0 %9617, %v6901
      %v9619 = vpop.permute.xlu0 %9618
      %9622 = vset.pattern.permute.xlu0 0
      %9623 = vperm.xlu0 %9622, %v6903
      %v9624 = vpop.permute.xlu0 %9623
      %9627 = vset.pattern.permute.xlu0 0
      %9628 = vperm.xlu0 %9627, %v6905
      %v9629 = vpop.permute.xlu0 %9628
      %9632 = vset.pattern.permute.xlu0 0
      %9633 = vperm.xlu0 %9632, %v6907
      %v9634 = vpop.permute.xlu0 %9633
      %9637 = vset.pattern.permute.xlu0 0
      %9638 = vperm.xlu0 %9637, %v6909
      %v9639 = vpop.permute.xlu0 %9638
      %9642 = vset.pattern.permute.xlu0 0
      %9643 = vperm.xlu0 %9642, %v6911
      %v9644 = vpop.permute.xlu0 %9643
      %9647 = vset.pattern.permute.xlu0 0
      %9648 = vperm.xlu0 %9647, %v6913
      %v9649 = vpop.permute.xlu0 %9648
      %9652 = vset.pattern.permute.xlu0 0
      %9653 = vperm.xlu0 %9652, %v6915
      %v9654 = vpop.permute.xlu0 %9653
      %9657 = vset.pattern.permute.xlu0 0
      %9658 = vperm.xlu0 %9657, %v6917
      %v9659 = vpop.permute.xlu0 %9658
      %9662 = vset.pattern.permute.xlu0 0
      %9663 = vperm.xlu0 %9662, %v6919
      %v9664 = vpop.permute.xlu0 %9663
      %9667 = vset.pattern.permute.xlu0 0
      %9668 = vperm.xlu0 %9667, %v6921
      %v9669 = vpop.permute.xlu0 %9668
      %9672 = vset.pattern.permute.xlu0 0
      %9673 = vperm.xlu0 %9672, %v6923
      %v9674 = vpop.permute.xlu0 %9673
      %v9676 = vmul.f32 %v6997, %v9519
      %v9677 = vmul.f32 %v7002, %v9524
      %v9678 = vmul.f32 %v7078, %v9529
      %v9679 = vmul.f32 %v7083, %v9534
      %v9680 = vmul.f32 %v7159, %v9539
      %v9681 = vmul.f32 %v7164, %v9544
      %v9682 = vmul.f32 %v7240, %v9549
      %v9683 = vmul.f32 %v7245, %v9554
      %v9684 = vmul.f32 %v7321, %v9559
      %v9685 = vmul.f32 %v7326, %v9564
      %v9686 = vmul.f32 %v7402, %v9569
      %v9687 = vmul.f32 %v7407, %v9574
      %v9688 = vmul.f32 %v7483, %v9579
      %v9689 = vmul.f32 %v7488, %v9584
      %v9690 = vmul.f32 %v7564, %v9589
      %v9691 = vmul.f32 %v7569, %v9594
      %v9692 = vmul.f32 %v7645, %v9599
      %v9693 = vmul.f32 %v7650, %v9604
      %v9694 = vmul.f32 %v7726, %v9609
      %v9695 = vmul.f32 %v7731, %v9614
      %v9696 = vmul.f32 %v7807, %v9619
      %v9697 = vmul.f32 %v7812, %v9624
      %v9698 = vmul.f32 %v7888, %v9629
      %v9699 = vmul.f32 %v7893, %v9634
      %v9700 = vmul.f32 %v7969, %v9639
      %v9701 = vmul.f32 %v7974, %v9644
      %v9702 = vmul.f32 %v8050, %v9649
      %v9703 = vmul.f32 %v8055, %v9654
      %v9704 = vmul.f32 %v8131, %v9659
      %v9705 = vmul.f32 %v8136, %v9664
      %v9706 = vmul.f32 %v8212, %v9669
      %v9707 = vmul.f32 %v8217, %v9674
      %9708 = vst.msk [vmem:[%s388] sm:$0xff] %vm470, %v9676
      %9709 = vst.msk [vmem:[%s388 + $0x8] sm:$0xff] %vm470, %v9677
      %9710 = vst.msk [vmem:[%s388 + $0x10] sm:$0xff] %vm470, %v9678
      %9711 = vst.msk [vmem:[%s388 + $0x18] sm:$0xff] %vm470, %v9679
      %9712 = vst.msk [vmem:[%s388 + $0x20] sm:$0xff] %vm470, %v9680
      %9713 = vst.msk [vmem:[%s388 + $0x28] sm:$0xff] %vm470, %v9681
      %9714 = vst.msk [vmem:[%s388 + $0x30] sm:$0xff] %vm470, %v9682
      %9715 = vst.msk [vmem:[%s388 + $0x38] sm:$0xff] %vm470, %v9683
      %9716 = vst.msk [vmem:[%s388 + $0x40] sm:$0xff] %vm470, %v9684
      %9717 = vst.msk [vmem:[%s388 + $0x48] sm:$0xff] %vm470, %v9685
      %9718 = vst.msk [vmem:[%s388 + $0x50] sm:$0xff] %vm470, %v9686
      %9719 = vst.msk [vmem:[%s388 + $0x58] sm:$0xff] %vm470, %v9687
      %9720 = vst.msk [vmem:[%s388 + $0x60] sm:$0xff] %vm470, %v9688
      %9721 = vst.msk [vmem:[%s388 + $0x68] sm:$0xff] %vm470, %v9689
      %9722 = vst.msk [vmem:[%s388 + $0x70] sm:$0xff] %vm470, %v9690
      %9723 = vst.msk [vmem:[%s388 + $0x78] sm:$0xff] %vm470, %v9691
      %9724 = vst.msk [vmem:[%s388 + $0x80] sm:$0xff] %vm470, %v9692
      %9725 = vst.msk [vmem:[%s388 + $0x88] sm:$0xff] %vm470, %v9693
      %9726 = vst.msk [vmem:[%s388 + $0x90] sm:$0xff] %vm470, %v9694
      %9727 = vst.msk [vmem:[%s388 + $0x98] sm:$0xff] %vm470, %v9695
      %9728 = vst.msk [vmem:[%s388 + $0xa0] sm:$0xff] %vm470, %v9696
      %9729 = vst.msk [vmem:[%s388 + $0xa8] sm:$0xff] %vm470, %v9697
      %9730 = vst.msk [vmem:[%s388 + $0xb0] sm:$0xff] %vm470, %v9698
      %9731 = vst.msk [vmem:[%s388 + $0xb8] sm:$0xff] %vm470, %v9699
      %9732 = vst.msk [vmem:[%s388 + $0xc0] sm:$0xff] %vm470, %v9700
      %9733 = vst.msk [vmem:[%s388 + $0xc8] sm:$0xff] %vm470, %v9701
      %9734 = vst.msk [vmem:[%s388 + $0xd0] sm:$0xff] %vm470, %v9702
      %9735 = vst.msk [vmem:[%s388 + $0xd8] sm:$0xff] %vm470, %v9703
      %9736 = vst.msk [vmem:[%s388 + $0xe0] sm:$0xff] %vm470, %v9704
      %9737 = vst.msk [vmem:[%s388 + $0xe8] sm:$0xff] %vm470, %v9705
      %9738 = vst.msk [vmem:[%s388 + $0xf0] sm:$0xff] %vm470, %v9706
      %9739 = vst.msk [vmem:[%s388 + $0xf8] sm:$0xff] %vm470, %v9707
      %v9740 = vlaneseq
      %v9741 = vshrl.u32 %v9740, 7
      %v9742 = vsub.s32 %v5036, %v9741
      %v9743 = vrot.slane %v9519, %v9742
      %v9744 = vlaneseq
      %v9745 = vshrl.u32 %v9744, 7
      %v9746 = vsub.s32 %v5041, %v9745
      %v9747 = vrot.slane %v9524, %v9746
      %v9748 = vsel %vm5046, %v9747, %v9743
      %v9749 = vlaneseq
      %v9750 = vshrl.u32 %v9749, 7
      %v9751 = vsub.s32 %v5036, %v9750
      %v9752 = vrot.slane %v9529, %v9751
      %v9753 = vlaneseq
      %v9754 = vshrl.u32 %v9753, 7
      %v9755 = vsub.s32 %v5041, %v9754
      %v9756 = vrot.slane %v9534, %v9755
      %v9757 = vsel %vm5046, %v9756, %v9752
      %v9758 = vlaneseq
      %v9759 = vshrl.u32 %v9758, 7
      %v9760 = vsub.s32 %v5036, %v9759
      %v9761 = vrot.slane %v9539, %v9760
      %v9762 = vlaneseq
      %v9763 = vshrl.u32 %v9762, 7
      %v9764 = vsub.s32 %v5041, %v9763
      %v9765 = vrot.slane %v9544, %v9764
      %v9766 = vsel %vm5046, %v9765, %v9761
      %v9767 = vlaneseq
      %v9768 = vshrl.u32 %v9767, 7
      %v9769 = vsub.s32 %v5036, %v9768
      %v9770 = vrot.slane %v9549, %v9769
      %v9771 = vlaneseq
      %v9772 = vshrl.u32 %v9771, 7
      %v9773 = vsub.s32 %v5041, %v9772
      %v9774 = vrot.slane %v9554, %v9773
      %v9775 = vsel %vm5046, %v9774, %v9770
      %v9776 = vlaneseq
      %v9777 = vshrl.u32 %v9776, 7
      %v9778 = vsub.s32 %v5036, %v9777
      %v9779 = vrot.slane %v9559, %v9778
      %v9780 = vlaneseq
      %v9781 = vshrl.u32 %v9780, 7
      %v9782 = vsub.s32 %v5041, %v9781
      %v9783 = vrot.slane %v9564, %v9782
      %v9784 = vsel %vm5046, %v9783, %v9779
      %v9785 = vlaneseq
      %v9786 = vshrl.u32 %v9785, 7
      %v9787 = vsub.s32 %v5036, %v9786
      %v9788 = vrot.slane %v9569, %v9787
      %v9789 = vlaneseq
      %v9790 = vshrl.u32 %v9789, 7
      %v9791 = vsub.s32 %v5041, %v9790
      %v9792 = vrot.slane %v9574, %v9791
      %v9793 = vsel %vm5046, %v9792, %v9788
      %v9794 = vlaneseq
      %v9795 = vshrl.u32 %v9794, 7
      %v9796 = vsub.s32 %v5036, %v9795
      %v9797 = vrot.slane %v9579, %v9796
      %v9798 = vlaneseq
      %v9799 = vshrl.u32 %v9798, 7
      %v9800 = vsub.s32 %v5041, %v9799
      %v9801 = vrot.slane %v9584, %v9800
      %v9802 = vsel %vm5046, %v9801, %v9797
      %v9803 = vlaneseq
      %v9804 = vshrl.u32 %v9803, 7
      %v9805 = vsub.s32 %v5036, %v9804
      %v9806 = vrot.slane %v9589, %v9805
      %v9807 = vlaneseq
      %v9808 = vshrl.u32 %v9807, 7
      %v9809 = vsub.s32 %v5041, %v9808
      %v9810 = vrot.slane %v9594, %v9809
      %v9811 = vsel %vm5046, %v9810, %v9806
      %v9812 = vlaneseq
      %v9813 = vshrl.u32 %v9812, 7
      %v9814 = vsub.s32 %v5036, %v9813
      %v9815 = vrot.slane %v9599, %v9814
      %v9816 = vlaneseq
      %v9817 = vshrl.u32 %v9816, 7
      %v9818 = vsub.s32 %v5041, %v9817
      %v9819 = vrot.slane %v9604, %v9818
      %v9820 = vsel %vm5046, %v9819, %v9815
      %v9821 = vlaneseq
      %v9822 = vshrl.u32 %v9821, 7
      %v9823 = vsub.s32 %v5036, %v9822
      %v9824 = vrot.slane %v9609, %v9823
      %v9825 = vlaneseq
      %v9826 = vshrl.u32 %v9825, 7
      %v9827 = vsub.s32 %v5041, %v9826
      %v9828 = vrot.slane %v9614, %v9827
      %v9829 = vsel %vm5046, %v9828, %v9824
      %v9830 = vlaneseq
      %v9831 = vshrl.u32 %v9830, 7
      %v9832 = vsub.s32 %v5036, %v9831
      %v9833 = vrot.slane %v9619, %v9832
      %v9834 = vlaneseq
      %v9835 = vshrl.u32 %v9834, 7
      %v9836 = vsub.s32 %v5041, %v9835
      %v9837 = vrot.slane %v9624, %v9836
      %v9838 = vsel %vm5046, %v9837, %v9833
      %v9839 = vlaneseq
      %v9840 = vshrl.u32 %v9839, 7
      %v9841 = vsub.s32 %v5036, %v9840
      %v9842 = vrot.slane %v9629, %v9841
      %v9843 = vlaneseq
      %v9844 = vshrl.u32 %v9843, 7
      %v9845 = vsub.s32 %v5041, %v9844
      %v9846 = vrot.slane %v9634, %v9845
      %v9847 = vsel %vm5046, %v9846, %v9842
      %v9848 = vlaneseq
      %v9849 = vshrl.u32 %v9848, 7
      %v9850 = vsub.s32 %v5036, %v9849
      %v9851 = vrot.slane %v9639, %v9850
      %v9852 = vlaneseq
      %v9853 = vshrl.u32 %v9852, 7
      %v9854 = vsub.s32 %v5041, %v9853
      %v9855 = vrot.slane %v9644, %v9854
      %v9856 = vsel %vm5046, %v9855, %v9851
      %v9857 = vlaneseq
      %v9858 = vshrl.u32 %v9857, 7
      %v9859 = vsub.s32 %v5036, %v9858
      %v9860 = vrot.slane %v9649, %v9859
      %v9861 = vlaneseq
      %v9862 = vshrl.u32 %v9861, 7
      %v9863 = vsub.s32 %v5041, %v9862
      %v9864 = vrot.slane %v9654, %v9863
      %v9865 = vsel %vm5046, %v9864, %v9860
      %v9866 = vlaneseq
      %v9867 = vshrl.u32 %v9866, 7
      %v9868 = vsub.s32 %v5036, %v9867
      %v9869 = vrot.slane %v9659, %v9868
      %v9870 = vlaneseq
      %v9871 = vshrl.u32 %v9870, 7
      %v9872 = vsub.s32 %v5041, %v9871
      %v9873 = vrot.slane %v9664, %v9872
      %v9874 = vsel %vm5046, %v9873, %v9869
      %v9875 = vlaneseq
      %v9876 = vshrl.u32 %v9875, 7
      %v9877 = vsub.s32 %v5036, %v9876
      %v9878 = vrot.slane %v9669, %v9877
      %v9879 = vlaneseq
      %v9880 = vshrl.u32 %v9879, 7
      %v9881 = vsub.s32 %v5041, %v9880
      %v9882 = vrot.slane %v9674, %v9881
      %v9883 = vsel %vm5046, %v9882, %v9878
      %v9884 = vsel %vm5183, %v9757, %v9748
      %v9885 = vsel %vm5185, %v9766, %v9884
      %v9886 = vsel %vm5187, %v9775, %v9885
      %v9887 = vsel %vm5189, %v9784, %v9886
      %v9888 = vsel %vm5191, %v9793, %v9887
      %v9889 = vsel %vm5193, %v9802, %v9888
      %v9890 = vsel %vm5195, %v9811, %v9889
      %v9891 = vsel %vm5183, %v9829, %v9820
      %v9892 = vsel %vm5185, %v9838, %v9891
      %v9893 = vsel %vm5187, %v9847, %v9892
      %v9894 = vsel %vm5189, %v9856, %v9893
      %v9895 = vsel %vm5191, %v9865, %v9894
      %v9896 = vsel %vm5193, %v9874, %v9895
      %v9897 = vsel %vm5195, %v9883, %v9896
      %9900 = vxpose.xlu0.b32.start [1/16] %v9890, 128
      %9901 = vxpose.xlu0.b32.cont [2/16] %v9897, 128
      %9902 = vxpose.xlu0.b32.cont [3/16] 0.0, 128
      %9903 = vxpose.xlu0.b32.cont [4/16] 0.0, 128
      %9904 = vxpose.xlu0.b32.cont [5/16] 0.0, 128
      %9905 = vxpose.xlu0.b32.cont [6/16] 0.0, 128
      %9906 = vxpose.xlu0.b32.cont [7/16] 0.0, 128
      %9907 = vxpose.xlu0.b32.cont [8/16] 0.0, 128
      %9908 = vxpose.xlu0.b32.cont [9/16] 0.0, 128
      %9909 = vxpose.xlu0.b32.cont [10/16] 0.0, 128
      %9910 = vxpose.xlu0.b32.cont [11/16] 0.0, 128
      %9911 = vxpose.xlu0.b32.cont [12/16] 0.0, 128
      %9912 = vxpose.xlu0.b32.cont [13/16] 0.0, 128
      %9913 = vxpose.xlu0.b32.cont [14/16] 0.0, 128
      %9914 = vxpose.xlu0.b32.cont [15/16] 0.0, 128
      %9915 = vxpose.xlu0.b32.end [16/16] 0.0, 128
      %v9916 = vpop.trf.xlu0
      %v9917 = vpop.trf.xlu0
      %v9918 = vpop.trf.xlu0
      %v9919 = vpop.trf.xlu0
      %v9920 = vpop.trf.xlu0
      %v9921 = vpop.trf.xlu0
      %v9922 = vpop.trf.xlu0
      %v9923 = vpop.trf.xlu0
      %v9924 = vpop.trf.xlu0
      %v9925 = vpop.trf.xlu0
      %v9926 = vpop.trf.xlu0
      %v9927 = vpop.trf.xlu0
      %v9928 = vpop.trf.xlu0
      %v9929 = vpop.trf.xlu0
      %v9930 = vpop.trf.xlu0
      %v9931 = vpop.trf.xlu0
      %v9932 = vlaneseq
      %v9933 = vshrl.u32 %v9932, 7
      %v9934 = vsub.s32 0, %v9933
      %v9935 = vrot.slane %v9916, %v9934
      %9937 = vbcast.lane.b32.xlu0 %v9935, 256
      %v9938 = vpop.permute.xlu0 %9937
      %s9940 = sor.u32 256, 8
      %9941 = vbcast.lane.b32.xlu0 %v9935, %s9940
      %v9942 = vpop.permute.xlu0 %9941
      %v9943 = vlaneseq
      %v9944 = vshrl.u32 %v9943, 7
      %v9945 = vsub.s32 1, %v9944
      %v9946 = vrot.slane %v9916, %v9945
      %9948 = vbcast.lane.b32.xlu0 %v9946, 256
      %v9949 = vpop.permute.xlu0 %9948
      %s9951 = sor.u32 256, 8
      %9952 = vbcast.lane.b32.xlu0 %v9946, %s9951
      %v9953 = vpop.permute.xlu0 %9952
      %v9954 = vlaneseq
      %v9955 = vshrl.u32 %v9954, 7
      %v9956 = vsub.s32 2, %v9955
      %v9957 = vrot.slane %v9916, %v9956
      %9959 = vbcast.lane.b32.xlu0 %v9957, 256
      %v9960 = vpop.permute.xlu0 %9959
      %s9962 = sor.u32 256, 8
      %9963 = vbcast.lane.b32.xlu0 %v9957, %s9962
      %v9964 = vpop.permute.xlu0 %9963
      %v9965 = vlaneseq
      %v9966 = vshrl.u32 %v9965, 7
      %v9967 = vsub.s32 3, %v9966
      %v9968 = vrot.slane %v9916, %v9967
      %9970 = vbcast.lane.b32.xlu0 %v9968, 256
      %v9971 = vpop.permute.xlu0 %9970
      %s9973 = sor.u32 256, 8
      %9974 = vbcast.lane.b32.xlu0 %v9968, %s9973
      %v9975 = vpop.permute.xlu0 %9974
      %v9976 = vlaneseq
      %v9977 = vshrl.u32 %v9976, 7
      %v9978 = vsub.s32 4, %v9977
      %v9979 = vrot.slane %v9916, %v9978
      %9981 = vbcast.lane.b32.xlu0 %v9979, 256
      %v9982 = vpop.permute.xlu0 %9981
      %s9984 = sor.u32 256, 8
      %9985 = vbcast.lane.b32.xlu0 %v9979, %s9984
      %v9986 = vpop.permute.xlu0 %9985
      %v9987 = vlaneseq
      %v9988 = vshrl.u32 %v9987, 7
      %v9989 = vsub.s32 5, %v9988
      %v9990 = vrot.slane %v9916, %v9989
      %9992 = vbcast.lane.b32.xlu0 %v9990, 256
      %v9993 = vpop.permute.xlu0 %9992
      %s9995 = sor.u32 256, 8
      %9996 = vbcast.lane.b32.xlu0 %v9990, %s9995
      %v9997 = vpop.permute.xlu0 %9996
      %v9998 = vlaneseq
      %v9999 = vshrl.u32 %v9998, 7
      %v10000 = vsub.s32 6, %v9999
      %v10001 = vrot.slane %v9916, %v10000
      %10003 = vbcast.lane.b32.xlu0 %v10001, 256
      %v10004 = vpop.permute.xlu0 %10003
      %s10006 = sor.u32 256, 8
      %10007 = vbcast.lane.b32.xlu0 %v10001, %s10006
      %v10008 = vpop.permute.xlu0 %10007
      %v10009 = vlaneseq
      %v10010 = vshrl.u32 %v10009, 7
      %v10011 = vsub.s32 7, %v10010
      %v10012 = vrot.slane %v9916, %v10011
      %10014 = vbcast.lane.b32.xlu0 %v10012, 256
      %v10015 = vpop.permute.xlu0 %10014
      %s10017 = sor.u32 256, 8
      %10018 = vbcast.lane.b32.xlu0 %v10012, %s10017
      %v10019 = vpop.permute.xlu0 %10018
      %v10020 = vlaneseq
      %v10021 = vshrl.u32 %v10020, 7
      %v10022 = vsub.s32 0, %v10021
      %v10023 = vrot.slane %v9917, %v10022
      %10025 = vbcast.lane.b32.xlu0 %v10023, 256
      %v10026 = vpop.permute.xlu0 %10025
      %s10028 = sor.u32 256, 8
      %10029 = vbcast.lane.b32.xlu0 %v10023, %s10028
      %v10030 = vpop.permute.xlu0 %10029
      %v10031 = vlaneseq
      %v10032 = vshrl.u32 %v10031, 7
      %v10033 = vsub.s32 1, %v10032
      %v10034 = vrot.slane %v9917, %v10033
      %10036 = vbcast.lane.b32.xlu0 %v10034, 256
      %v10037 = vpop.permute.xlu0 %10036
      %s10039 = sor.u32 256, 8
      %10040 = vbcast.lane.b32.xlu0 %v10034, %s10039
      %v10041 = vpop.permute.xlu0 %10040
      %v10042 = vlaneseq
      %v10043 = vshrl.u32 %v10042, 7
      %v10044 = vsub.s32 2, %v10043
      %v10045 = vrot.slane %v9917, %v10044
      %10047 = vbcast.lane.b32.xlu0 %v10045, 256
      %v10048 = vpop.permute.xlu0 %10047
      %s10050 = sor.u32 256, 8
      %10051 = vbcast.lane.b32.xlu0 %v10045, %s10050
      %v10052 = vpop.permute.xlu0 %10051
      %v10053 = vlaneseq
      %v10054 = vshrl.u32 %v10053, 7
      %v10055 = vsub.s32 3, %v10054
      %v10056 = vrot.slane %v9917, %v10055
      %10058 = vbcast.lane.b32.xlu0 %v10056, 256
      %v10059 = vpop.permute.xlu0 %10058
      %s10061 = sor.u32 256, 8
      %10062 = vbcast.lane.b32.xlu0 %v10056, %s10061
      %v10063 = vpop.permute.xlu0 %10062
      %v10064 = vlaneseq
      %v10065 = vshrl.u32 %v10064, 7
      %v10066 = vsub.s32 4, %v10065
      %v10067 = vrot.slane %v9917, %v10066
      %10069 = vbcast.lane.b32.xlu0 %v10067, 256
      %v10070 = vpop.permute.xlu0 %10069
      %s10072 = sor.u32 256, 8
      %10073 = vbcast.lane.b32.xlu0 %v10067, %s10072
      %v10074 = vpop.permute.xlu0 %10073
      %v10075 = vlaneseq
      %v10076 = vshrl.u32 %v10075, 7
      %v10077 = vsub.s32 5, %v10076
      %v10078 = vrot.slane %v9917, %v10077
      %10080 = vbcast.lane.b32.xlu0 %v10078, 256
      %v10081 = vpop.permute.xlu0 %10080
      %s10083 = sor.u32 256, 8
      %10084 = vbcast.lane.b32.xlu0 %v10078, %s10083
      %v10085 = vpop.permute.xlu0 %10084
      %v10086 = vlaneseq
      %v10087 = vshrl.u32 %v10086, 7
      %v10088 = vsub.s32 6, %v10087
      %v10089 = vrot.slane %v9917, %v10088
      %10091 = vbcast.lane.b32.xlu0 %v10089, 256
      %v10092 = vpop.permute.xlu0 %10091
      %s10094 = sor.u32 256, 8
      %10095 = vbcast.lane.b32.xlu0 %v10089, %s10094
      %v10096 = vpop.permute.xlu0 %10095
      %v10097 = vlaneseq
      %v10098 = vshrl.u32 %v10097, 7
      %v10099 = vsub.s32 7, %v10098
      %v10100 = vrot.slane %v9917, %v10099
      %10102 = vbcast.lane.b32.xlu0 %v10100, 256
      %v10103 = vpop.permute.xlu0 %10102
      %s10105 = sor.u32 256, 8
      %10106 = vbcast.lane.b32.xlu0 %v10100, %s10105
      %v10107 = vpop.permute.xlu0 %10106
      %v10108 = vmul.f32 %v8293, %v9938
      %v10109 = vmul.f32 %v8298, %v9942
      %v10110 = vmul.f32 %v8374, %v9949
      %v10111 = vmul.f32 %v8379, %v9953
      %v10112 = vmul.f32 %v8455, %v9960
      %v10113 = vmul.f32 %v8460, %v9964
      %v10114 = vmul.f32 %v8536, %v9971
      %v10115 = vmul.f32 %v8541, %v9975
      %v10116 = vmul.f32 %v8617, %v9982
      %v10117 = vmul.f32 %v8622, %v9986
      %v10118 = vmul.f32 %v8698, %v9993
      %v10119 = vmul.f32 %v8703, %v9997
      %v10120 = vmul.f32 %v8779, %v10004
      %v10121 = vmul.f32 %v8784, %v10008
      %v10122 = vmul.f32 %v8860, %v10015
      %v10123 = vmul.f32 %v8865, %v10019
      %v10124 = vmul.f32 %v8941, %v10026
      %v10125 = vmul.f32 %v8946, %v10030
      %v10126 = vmul.f32 %v9022, %v10037
      %v10127 = vmul.f32 %v9027, %v10041
      %v10128 = vmul.f32 %v9103, %v10048
      %v10129 = vmul.f32 %v9108, %v10052
      %v10130 = vmul.f32 %v9184, %v10059
      %v10131 = vmul.f32 %v9189, %v10063
      %v10132 = vmul.f32 %v9265, %v10070
      %v10133 = vmul.f32 %v9270, %v10074
      %v10134 = vmul.f32 %v9346, %v10081
      %v10135 = vmul.f32 %v9351, %v10085
      %v10136 = vmul.f32 %v9427, %v10092
      %v10137 = vmul.f32 %v9432, %v10096
      %v10138 = vmul.f32 %v9508, %v10103
      %v10139 = vmul.f32 %v9513, %v10107
      %10140 = vst.msk [vmem:[%s393] sm:$0xff] %vm470, %v10108
      %10141 = vst.msk [vmem:[%s393 + $0x8] sm:$0xff] %vm470, %v10109
      %10142 = vst.msk [vmem:[%s393 + $0x10] sm:$0xff] %vm470, %v10110
      %10143 = vst.msk [vmem:[%s393 + $0x18] sm:$0xff] %vm470, %v10111
      %10144 = vst.msk [vmem:[%s393 + $0x20] sm:$0xff] %vm470, %v10112
      %10145 = vst.msk [vmem:[%s393 + $0x28] sm:$0xff] %vm470, %v10113
      %10146 = vst.msk [vmem:[%s393 + $0x30] sm:$0xff] %vm470, %v10114
      %10147 = vst.msk [vmem:[%s393 + $0x38] sm:$0xff] %vm470, %v10115
      %10148 = vst.msk [vmem:[%s393 + $0x40] sm:$0xff] %vm470, %v10116
      %10149 = vst.msk [vmem:[%s393 + $0x48] sm:$0xff] %vm470, %v10117
      %10150 = vst.msk [vmem:[%s393 + $0x50] sm:$0xff] %vm470, %v10118
      %10151 = vst.msk [vmem:[%s393 + $0x58] sm:$0xff] %vm470, %v10119
      %10152 = vst.msk [vmem:[%s393 + $0x60] sm:$0xff] %vm470, %v10120
      %10153 = vst.msk [vmem:[%s393 + $0x68] sm:$0xff] %vm470, %v10121
      %10154 = vst.msk [vmem:[%s393 + $0x70] sm:$0xff] %vm470, %v10122
      %10155 = vst.msk [vmem:[%s393 + $0x78] sm:$0xff] %vm470, %v10123
      %10156 = vst.msk [vmem:[%s393 + $0x80] sm:$0xff] %vm470, %v10124
      %10157 = vst.msk [vmem:[%s393 + $0x88] sm:$0xff] %vm470, %v10125
      %10158 = vst.msk [vmem:[%s393 + $0x90] sm:$0xff] %vm470, %v10126
      %10159 = vst.msk [vmem:[%s393 + $0x98] sm:$0xff] %vm470, %v10127
      %10160 = vst.msk [vmem:[%s393 + $0xa0] sm:$0xff] %vm470, %v10128
      %10161 = vst.msk [vmem:[%s393 + $0xa8] sm:$0xff] %vm470, %v10129
      %10162 = vst.msk [vmem:[%s393 + $0xb0] sm:$0xff] %vm470, %v10130
      %10163 = vst.msk [vmem:[%s393 + $0xb8] sm:$0xff] %vm470, %v10131
      %10164 = vst.msk [vmem:[%s393 + $0xc0] sm:$0xff] %vm470, %v10132
      %10165 = vst.msk [vmem:[%s393 + $0xc8] sm:$0xff] %vm470, %v10133
      %10166 = vst.msk [vmem:[%s393 + $0xd0] sm:$0xff] %vm470, %v10134
      %10167 = vst.msk [vmem:[%s393 + $0xd8] sm:$0xff] %vm470, %v10135
      %10168 = vst.msk [vmem:[%s393 + $0xe0] sm:$0xff] %vm470, %v10136
      %10169 = vst.msk [vmem:[%s393 + $0xe8] sm:$0xff] %vm470, %v10137
      %10170 = vst.msk [vmem:[%s393 + $0xf0] sm:$0xff] %vm470, %v10138
      %10171 = vst.msk [vmem:[%s393 + $0xf8] sm:$0xff] %vm470, %v10139
      %p10172 = scmp.lt.s32.totalorder %s23, 1
      %s10173 = scalar_select %p10172, %s23, 1
      %s10174 = smul.addr %s10173, 32
      %s10175 = smul.addr %s10174, 8
      %s10176 = scalar_lea.vmem %s9, %s10175
      %p10177 = scmp.lt.s32.totalorder %s23, 1
      %s10178 = scalar_select %p10177, %s23, 1
      %s10179 = smul.addr %s10178, 32
      %s10180 = smul.addr %s10179, 8
      %s10181 = scalar_lea.vmem %s10, %s10180
      // Predicated region
      $region57: #{tpu_custom_call.1} parent=55 // pred_check
        %p10182 = pneg %p240
      $region58: #{tpu_custom_call.1} parent=55 // pred_check_branch
        %10184 = sbr.rel (%p10182) target = $region60
      $region59: #{tpu_custom_call.1} parent=55 // pred_region
        _
      $region60: #{tpu_custom_call.1} parent=55 // pred_fallthru
        _
      // Predicated region
      $region61: #{tpu_custom_call.1} parent=55 // pred_check
        %p10185 = pneg %p266
      $region62: #{tpu_custom_call.1} parent=55 // pred_check_branch
        %10187 = sbr.rel (%p10185) target = $region64
      $region63: #{tpu_custom_call.1} parent=55 // pred_region
        _
      $region64: #{tpu_custom_call.1} parent=55 // pred_fallthru
        _
    $region56: #{tpu_custom_call.1} parent=5 // pred_fallthru
      _
    %p10188 = scmp.le.s32.totalorder 2, %s18
    // Predicated region
    $region65: #{tpu_custom_call.1} parent=5 // pred_check
      %p10189 = pneg %p10188
    $region66: #{tpu_custom_call.1} parent=5 // pred_check_branch
      %10191 = sbr.rel (%p10189) target = $region68
    $region67: #{tpu_custom_call.1} parent=5 // pred_region
      %s10192 = ssub.s32 %s18, 2
      // Predicated region
      $region69: #{tpu_custom_call.1} parent=67 // pred_check
        %p10193 = pneg %p246
      $region70: #{tpu_custom_call.1} parent=67 // pred_check_branch
        %10195 = sbr.rel (%p10193) target = $region72
      $region71: #{tpu_custom_call.1} parent=67 // pred_region
        %p10196 = scmp.lt.s32.totalorder %s24, 1
        %s10197 = scalar_select %p10196, %s24, 1
        %s10198 = smul.addr %s10197, 32
        %s10199 = smul.addr %s10198, 8
        %s10200 = scalar_lea.vmem %s9, %s10199
      $region72: #{tpu_custom_call.1} parent=67 // pred_fallthru
        _
      // Predicated region
      $region73: #{tpu_custom_call.1} parent=67 // pred_check
        %p10201 = pneg %p272
      $region74: #{tpu_custom_call.1} parent=67 // pred_check_branch
        %10203 = sbr.rel (%p10201) target = $region76
      $region75: #{tpu_custom_call.1} parent=67 // pred_region
        %p10204 = scmp.lt.s32.totalorder %s24, 1
        %s10205 = scalar_select %p10204, %s24, 1
        %s10206 = smul.addr %s10205, 32
        %s10207 = smul.addr %s10206, 8
        %s10208 = scalar_lea.vmem %s10, %s10207
      $region76: #{tpu_custom_call.1} parent=67 // pred_fallthru
        _
    $region68: #{tpu_custom_call.1} parent=5 // pred_fallthru
      _
  $region6: #{tpu_custom_call.1} parent=0 // loop_footer
    %s22 = sadd.s32 1, %s18
  $region7: #{tpu_custom_call.1} parent=0 // loop_footer_branch
    %17 = sbr.rel target = $region3
  $region8: #{tpu_custom_call.1} parent=0 // loop_exit
    _

</llo_original>
